<compile_context>
chip_gen: v7x
topology: tpu7x:2x2x1
jax: 0.10.0
libtpu: 0.0.40
codegen_flags: <defaults>
</compile_context>

<pallas_src>
import functools

import numpy as np
import jax
import jax.numpy as jnp
from jax.experimental import pallas as pl
from jax.experimental.pallas import tpu as pltpu

NUM_CLASSES = 5
CLS_PAD = 128                  # lane-dense classifier output (sliced to 5 outside)
STEM_C = 128                   # lane-dense channel config (multiples of 128)
HEAD_C = 512
ROW_TILE_CAP = 512             # review: HBM-bound 1x1 convs want 512-row tiles
VMEM_LIMIT = 32 * 1024 * 1024  # fits default scoped VMEM on v6e, safe on v5e/v7x


def _sigmoid(v):
    # EUP exp + EUP approx-reciprocal: frees VALU cycles (used only in kernels).
    return pl.reciprocal(1.0 + jnp.exp(-v), approx=True)


def _row_tile(p, cap=ROW_TILE_CAP):
    """Largest multiple-of-8 row tile <= cap that evenly divides p."""
    best = None
    for t in range(8, min(cap, p) + 1, 8):
        if p % t == 0:
            best = t
    if best is not None:
        return best
    # TODO(synk): at real 380px resolution (P=36100) pad P to a multiple of 256
    # and mask padded rows instead of falling back to ragged tiles.
    for t in range(min(cap, p), 0, -1):
        if p % t == 0:
            return t
    return 1


def _mosaic_params(semantics):
    return pltpu.CompilerParams(dimension_semantics=semantics,
                                vmem_limit_bytes=VMEM_LIMIT)


# ---------------------------------------------------------------------------
# Kernel 1: row-tiled matmul + folded BatchNorm + optional SiLU.
# Used for: stem conv (as im2col matmul) and head 1x1 conv.
# TODO(synk): on v6e, pipeline_mode=pl.Buffered(3) on the activation spec.
# ---------------------------------------------------------------------------
def matmul_bn_act_kernel(x_ref, w_ref, scale_ref, bias_ref, o_ref, *, act):
    y = jnp.dot(x_ref[...], w_ref[...], preferred_element_type=jnp.float32)
    y = y * scale_ref[...] + bias_ref[...]
    if act:                       # SiLU
        y = y * _sigmoid(y)
    o_ref[...] = y.astype(o_ref.dtype)


def fused_matmul_bn_act(x, cp, *, act):
    B, P, cin = x.shape
    cout = cp['w'].shape[1]
    tr = _row_tile(P)
    return pl.pallas_call(
        functools.partial(matmul_bn_act_kernel, act=act),
        out_shape=jax.ShapeDtypeStruct((B, P, cout), jnp.bfloat16),
        grid=(B, P // tr),
        in_specs=[
            pl.BlockSpec((None, tr, cin), lambda b, i: (b, i, 0)),
            pl.BlockSpec((cin, cout), lambda b, i: (0, 0)),
            pl.BlockSpec((1, cout), lambda b, i: (0, 0)),
            pl.BlockSpec((1, cout), lambda b, i: (0, 0)),
        ],
        out_specs=pl.BlockSpec((None, tr, cout), lambda b, i: (b, i, 0)),
        compiler_params=_mosaic_params(("parallel", "parallel")),
    )(x, cp['w'], cp['scale'], cp['bias'])


# ---------------------------------------------------------------------------
# Kernel 2: fused MBConv expand-1x1 + BN + SiLU + depthwise-3x3 + BN + SiLU
# + SE global-average pooled sum.  Gridded over (batch, 128-channel tiles of
# the expanded map); each channel tile only needs its slice of the expand
# weight, so the cexp-wide expanded map never touches HBM before the dwconv,
# and the SE pooling never re-reads the feature map from HBM.
# ---------------------------------------------------------------------------
def mbconv_expand_dw_pool_kernel(x_ref, we_ref, es_ref, eb_ref,
                                 dw_ref, ds_ref, db_ref,
                                 d_ref, pool_ref, ep_ref):
    H, W, tc = d_ref.shape
    cin = x_ref.shape[-1]
    # expand 1x1 conv (MXU) + folded BN + SiLU, kept in VMEM only
    x2 = x_ref[...].reshape(H * W, cin)
    e = jnp.dot(x2, we_ref[...], preferred_element_type=jnp.float32)
    e = e * es_ref[...] + eb_ref[...]
    e = e * _sigmoid(e)                                   # SiLU
    # zero same-padding via VMEM scratch (no HBM pad tensor)
    ep_ref[...] = jnp.zeros_like(ep_ref)
    ep_ref[1:H + 1, 1:W + 1, :] = e.reshape(H, W, tc)
    ep = ep_ref[...]
    # depthwise 3x3 conv + folded BN + SiLU
    # TODO(synk): on v5e move the kw=+-1 sublane shifts onto pltpu.roll (XLU),
    # and at real 380px resolution row-tile the spatial axis (TH~16-32) with a
    # recomputed 1-row halo to bound VMEM on v7x (64 MiB).
    wt = dw_ref[...]                                      # (9, tc) f32
    acc = jnp.zeros((H, W, tc), jnp.float32)
    for kh in range(3):
        for kw in range(3):
            acc = acc + ep[kh:kh + H, kw:kw + W, :] * wt[kh * 3 + kw]
    y = acc * ds_ref[...] + db_ref[...]
    y = y * _sigmoid(y)                                   # SiLU
    d_ref[...] = y.astype(d_ref.dtype)
    # SE global-average pooling (sum; mean finalized in the tiny FC kernel)
    pool_ref[...] = jnp.sum(y, axis=(0, 1)).reshape(1, tc)


def mbconv_expand_dw_pool(x, bp):
    B, H, W, cin = x.shape
    cexp = bp['expand']['w'].shape[1]
    tc = 128 if cexp % 128 == 0 else cexp
    return pl.pallas_call(
        mbconv_expand_dw_pool_kernel,
        out_shape=(jax.ShapeDtypeStruct((B, H, W, cexp), jnp.bfloat16),
                   jax.ShapeDtypeStruct((B, 1, cexp), jnp.float32)),
        grid=(B, cexp // tc),
        in_specs=[
            pl.BlockSpec((None, H, W, cin), lambda b, c: (b, 0, 0, 0)),
            pl.BlockSpec((cin, tc), lambda b, c: (0, c)),
            pl.BlockSpec((1, tc), lambda b, c: (0, c)),
            pl.BlockSpec((1, tc), lambda b, c: (0, c)),
            pl.BlockSpec((9, tc), lambda b, c: (0, c)),
            pl.BlockSpec((1, tc), lambda b, c: (0, c)),
            pl.BlockSpec((1, tc), lambda b, c: (0, c)),
        ],
        out_specs=(pl.BlockSpec((None, H, W, tc), lambda b, c: (b, 0, 0, c)),
                   pl.BlockSpec((None, 1, tc), lambda b, c: (b, 0, c))),
        scratch_shapes=[pltpu.VMEM((H + 2, W + 2, tc), jnp.float32)],
        compiler_params=_mosaic_params(("parallel", "parallel")),
    )(x, bp['expand']['w'], bp['expand']['scale'], bp['expand']['bias'],
      bp['dw']['w'], bp['dw']['scale'], bp['dw']['bias'])


# ---------------------------------------------------------------------------
# Kernel 3: SE FC stack on the pooled sum (mean -> FC -> SiLU -> FC -> sigmoid).
# Tiny: operates only on the (B,1,C) pooled tensor; emits a bf16 gate.
# ---------------------------------------------------------------------------
def se_fc_kernel(p_ref, w1_ref, b1_ref, w2_ref, b2_ref, g_ref, *, inv_p):
    pooled = p_ref[...] * inv_p                                        # (1, C)
    s = jnp.dot(pooled, w1_ref[...],
                preferred_element_type=jnp.float32) + b1_ref[...]      # (1, Cr)
    s = s * _sigmoid(s)                                                # SiLU
    s = jnp.dot(s, w2_ref[...],
                preferred_element_type=jnp.float32) + b2_ref[...]      # (1, C)
    g_ref[...] = _sigmoid(s).astype(g_ref.dtype)


def se_fc(pooled, sep, *, inv_p):
    B, _, C = pooled.shape
    cr = sep['w1'].shape[1]
    return pl.pallas_call(
        functools.partial(se_fc_kernel, inv_p=inv_p),
        out_shape=jax.ShapeDtypeStruct((B, 1, C), jnp.bfloat16),
        grid=(B,),
        in_specs=[
            pl.BlockSpec((None, 1, C), lambda b: (b, 0, 0)),
            pl.BlockSpec((C, cr), lambda b: (0, 0)),
            pl.BlockSpec((1, cr), lambda b: (0, 0)),
            pl.BlockSpec((cr, C), lambda b: (0, 0)),
            pl.BlockSpec((1, C), lambda b: (0, 0)),
        ],
        out_specs=pl.BlockSpec((None, 1, C), lambda b: (b, 0, 0)),
        compiler_params=_mosaic_params(("parallel",)),
    )(pooled, sep['w1'], sep['b1'], sep['w2'], sep['b2'])


# ---------------------------------------------------------------------------
# Kernel 4: MBConv project 1x1 conv with the SE gate fused in (bf16 gate applied
# to the rows before the dot) + folded BN + optional residual add.
# ---------------------------------------------------------------------------
def project_gate_kernel(x_ref, g_ref, w_ref, scale_ref, bias_ref, o_ref):
    x = x_ref[...] * g_ref[...]                            # bf16 SE gate, pre-dot
    y = jnp.dot(x, w_ref[...], preferred_element_type=jnp.float32)
    y = y * scale_ref[...] + bias_ref[...]
    o_ref[...] = y.astype(o_ref.dtype)


def project_gate_add_kernel(x_ref, g_ref, w_ref, scale_ref, bias_ref, r_ref, o_ref):
    x = x_ref[...] * g_ref[...]
    y = jnp.dot(x, w_ref[...], preferred_element_type=jnp.float32)
    y = y * scale_ref[...] + bias_ref[...]
    o_ref[...] = (y + r_ref[...].astype(jnp.float32)).astype(o_ref.dtype)


def fused_project_gate(x, gate, pp, residual=None):
    B, P, cin = x.shape
    cout = pp['w'].shape[1]
    tr = _row_tile(P)
    in_specs = [
        pl.BlockSpec((None, tr, cin), lambda b, i: (b, i, 0)),
        pl.BlockSpec((None, 1, cin), lambda b, i: (b, 0, 0)),     # per-batch gate
        pl.BlockSpec((cin, cout), lambda b, i: (0, 0)),
        pl.BlockSpec((1, cout), lambda b, i: (0, 0)),
        pl.BlockSpec((1, cout), lambda b, i: (0, 0)),
    ]
    out_spec = pl.BlockSpec((None, tr, cout), lambda b, i: (b, i, 0))
    params = _mosaic_params(("parallel", "parallel"))
    if residual is None:
        return pl.pallas_call(
            project_gate_kernel,
            out_shape=jax.ShapeDtypeStruct((B, P, cout), jnp.bfloat16),
            grid=(B, P // tr),
            in_specs=in_specs,
            out_specs=out_spec,
            compiler_params=params,
        )(x, gate, pp['w'], pp['scale'], pp['bias'])
    return pl.pallas_call(
        project_gate_add_kernel,
        out_shape=jax.ShapeDtypeStruct((B, P, cout), jnp.bfloat16),
        grid=(B, P // tr),
        in_specs=in_specs + [pl.BlockSpec((None, tr, cout), lambda b, i: (b, i, 0))],
        out_specs=out_spec,
        compiler_params=params,
    )(x, gate, pp['w'], pp['scale'], pp['bias'], residual)


# ---------------------------------------------------------------------------
# Kernel 5: global average pool + linear classifier (reduction grid + scratch).
# Classifier is padded to 128 lanes for unmasked stores; sliced outside.
# ---------------------------------------------------------------------------
def gap_linear_kernel(x_ref, w_ref, b_ref, o_ref, sum_ref, *, inv_p):
    i = pl.program_id(1)

    @pl.when(i == 0)
    def _():
        sum_ref[...] = jnp.zeros_like(sum_ref)

    sum_ref[...] += jnp.sum(x_ref[...].astype(jnp.float32), axis=0, keepdims=True)

    @pl.when(i == pl.num_programs(1) - 1)
    def _():
        pooled = sum_ref[...] * inv_p
        o_ref[...] = jnp.dot(pooled, w_ref[...],
                             preferred_element_type=jnp.float32) + b_ref[...]


def gap_linear(x, w, b):
    B, P, C = x.shape
    tr = _row_tile(P)
    ncls = w.shape[1]
    out = pl.pallas_call(
        functools.partial(gap_linear_kernel, inv_p=1.0 / P),
        out_shape=jax.ShapeDtypeStruct((B, 1, ncls), jnp.float32),
        grid=(B, P // tr),
        in_specs=[
            pl.BlockSpec((None, tr, C), lambda b, i: (b, i, 0)),
            pl.BlockSpec((C, ncls), lambda b, i: (0, 0)),
            pl.BlockSpec((1, ncls), lambda b, i: (0, 0)),
        ],
        out_specs=pl.BlockSpec((None, 1, ncls), lambda b, i: (b, 0, 0)),
        scratch_shapes=[pltpu.VMEM((1, C), jnp.float32)],
        compiler_params=_mosaic_params(("parallel", "arbitrary")),
    )(x, w, b)
    return out.reshape(B, ncls)


# ---------------------------------------------------------------------------
# Stem 3x3 stride-2 conv + folded BN + SiLU.
# Wrapper builds a 9*cin-wide im2col slab (layout plumbing on a tiny tensor),
# padded along K to a multiple of 32; the conv then runs as a single row-tiled
# lane-dense MXU matmul through the fused matmul+BN+SiLU kernel (one dot per
# tile, no duplicated input DMA, no per-output-row grid steps).
# ---------------------------------------------------------------------------
def stem_conv_bn_silu(x_nhwc, sp):
    B, H, W, cin = x_nhwc.shape
    ho, wo = H // 2, W // 2
    cout = sp['w'].shape[1]
    kp = sp['w'].shape[0]
    xp = jnp.pad(x_nhwc, ((0, 0), (1, 1), (1, 1), (0, 0)))
    cols = [xp[:, kh:kh + H:2, kw:kw + W:2, :]
            for kh in range(3) for kw in range(3)]
    xc = jnp.concatenate(cols, axis=-1)                    # (B, ho, wo, 9*cin)
    k = xc.shape[-1]
    if kp > k:
        xc = jnp.pad(xc, ((0, 0), (0, 0), (0, 0), (0, kp - k)))
    xc = xc.reshape(B, ho * wo, kp).astype(jnp.bfloat16)
    out = fused_matmul_bn_act(xc, sp, act=True)            # (B, ho*wo, cout)
    return out.reshape(B, ho, wo, cout)


# ---------------------------------------------------------------------------
# Deterministic parameter construction (synthetic -- no checkpoint load).
# ---------------------------------------------------------------------------
def _fold_bn(key, cout):
    k1, k2, k3, k4 = jax.random.split(key, 4)
    gamma = 1.0 + 0.1 * jax.random.normal(k1, (cout,), jnp.float32)
    beta = 0.05 * jax.random.normal(k2, (cout,), jnp.float32)
    mean = 0.05 * jax.random.normal(k3, (cout,), jnp.float32)
    var = 1.0 + 0.1 * jax.random.uniform(k4, (cout,), jnp.float32)
    scale = gamma / jnp.sqrt(var + 1e-5)     # eval-mode BN folded to affine
    bias = beta - mean * scale
    return scale.reshape(1, cout), bias.reshape(1, cout)


def _conv1x1_bn(key, cin, cout):
    kw_, kb = jax.random.split(key)
    w = jax.random.normal(kw_, (cin, cout), jnp.float32) / np.sqrt(cin)
    scale, bias = _fold_bn(kb, cout)
    return dict(w=w.astype(jnp.bfloat16), scale=scale, bias=bias)


def _stem_params(key, cin, cout, kmult=32):
    kw_, kb = jax.random.split(key)
    w = jax.random.normal(kw_, (3, 3, cin, cout), jnp.float32) / np.sqrt(9 * cin)
    w = w.reshape(9 * cin, cout)
    k = 9 * cin
    kp = ((k + kmult - 1) // kmult) * kmult
    w = jnp.pad(w, ((0, kp - k), (0, 0)))                  # zero rows: no-op
    scale, bias = _fold_bn(kb, cout)
    return dict(w=w.astype(jnp.bfloat16), scale=scale, bias=bias)


def _dw_bn(key, c):
    kw_, kb = jax.random.split(key)
    w = jax.random.normal(kw_, (3, 3, c), jnp.float32) / 3.0
    scale, bias = _fold_bn(kb, c)
    return dict(w=w.reshape(9, c), scale=scale, bias=bias)


def _se_params(key, c, cr):
    k1, k2, k3, k4 = jax.random.split(key, 4)
    return dict(
        w1=jax.random.normal(k1, (c, cr), jnp.float32) / np.sqrt(c),
        b1=0.05 * jax.random.normal(k2, (1, cr), jnp.float32),
        w2=jax.random.normal(k3, (cr, c), jnp.float32) / np.sqrt(cr),
        b2=0.05 * jax.random.normal(k4, (1, c), jnp.float32),
    )


def _mbconv_params(key, cin, cout, expand=4):
    cexp = cin * expand
    cr = max(4, cin // 4)                    # se_ratio = 0.25 of block input channels
    k1, k2, k3, k4 = jax.random.split(key, 4)
    return dict(
        expand=_conv1x1_bn(k1, cin, cexp),
        dw=_dw_bn(k2, cexp),
        se=_se_params(k3, cexp, cr),
        project=_conv1x1_bn(k4, cexp, cout),
    )


def init_params(key):
    ks = jax.random.split(key, 5)
    params = dict(
        stem=_stem_params(ks[0], 3, STEM_C),            # 3x3 stride-2 stem
        block1=_mbconv_params(ks[1], STEM_C, STEM_C),   # residual MBConv
        block2=_mbconv_params(ks[2], STEM_C, 2 * STEM_C),
        head=_conv1x1_bn(ks[3], 2 * STEM_C, HEAD_C),    # head 1x1 conv
    )
    kcw, kcb = jax.random.split(ks[4])
    w5 = jax.random.normal(kcw, (HEAD_C, NUM_CLASSES), jnp.float32) / np.sqrt(HEAD_C)
    b5 = 0.05 * jax.random.normal(kcb, (1, NUM_CLASSES), jnp.float32)
    w = jnp.zeros((HEAD_C, CLS_PAD), jnp.float32).at[:, :NUM_CLASSES].set(w5)
    b = jnp.zeros((1, CLS_PAD), jnp.float32).at[:, :NUM_CLASSES].set(b5)
    params['classifier'] = dict(w=w, b=b)
    return params


# ---------------------------------------------------------------------------
# Forward pass (glue in plain JAX, hot paths in the Pallas kernels above).
# ---------------------------------------------------------------------------
def mbconv_block(x_bhwc, bp):
    B, H, W, cin = x_bhwc.shape
    d, pooled = mbconv_expand_dw_pool(x_bhwc, bp)          # d never re-read for SE
    gate = se_fc(pooled, bp['se'], inv_p=1.0 / (H * W))    # (B, 1, cexp) bf16
    cexp = d.shape[-1]
    d2 = d.reshape(B, H * W, cexp)
    cout = bp['project']['w'].shape[1]
    resid = x_bhwc.reshape(B, H * W, cin) if cout == cin else None   # static shapes
    out = fused_project_gate(d2, gate, bp['project'], residual=resid)
    return out.reshape(B, H, W, cout)


def custom_efficientnet_forward(x_nchw, params):
    # x_nchw: (B, 3, H, W) float32, PyTorch NCHW layout.
    x = jnp.transpose(x_nchw, (0, 2, 3, 1)).astype(jnp.float32)   # -> NHWC
    h = stem_conv_bn_silu(x, params['stem'])                      # (B, ho, wo, C)
    h = mbconv_block(h, params['block1'])
    h = mbconv_block(h, params['block2'])
    B, H2, W2, C2 = h.shape
    hp = h.reshape(B, H2 * W2, C2)
    hh = fused_matmul_bn_act(hp, params['head'], act=True)        # head 1x1 conv
    logits = gap_linear(hh, params['classifier']['w'], params['classifier']['b'])
    return logits[:, :NUM_CLASSES]                                # drop lane padding


if __name__ == "__main__":
    key = jax.random.PRNGKey(0)
    kx, kp = jax.random.split(key)
    x = jax.random.normal(kx, (2, 3, 16, 16), jnp.float32)   # NCHW, like PyTorch
    params = init_params(kp)
    forward = jax.jit(custom_efficientnet_forward)
    logits = jax.block_until_ready(forward(x, params))
    assert logits.shape == (2, NUM_CLASSES), logits.shape
    assert bool(jnp.all(jnp.isfinite(logits)))
    print("KERNEL_OK")
</pallas_src>

<mosaic_0001>
module attributes {stable_mosaic.version = 11 : i64} {
  func.func @mbconv_expand_dw_pool_kernel(%arg0: i32, %arg1: i32, %arg2: memref<1x8x8x128xbf16, #tpu.memory_space<vmem>>, %arg3: memref<128x128xbf16, #tpu.memory_space<vmem>>, %arg4: memref<1x128xf32, #tpu.memory_space<vmem>>, %arg5: memref<1x128xf32, #tpu.memory_space<vmem>>, %arg6: memref<9x128xf32, #tpu.memory_space<vmem>>, %arg7: memref<1x128xf32, #tpu.memory_space<vmem>>, %arg8: memref<1x128xf32, #tpu.memory_space<vmem>>, %arg9: memref<1x8x8x128xbf16, #tpu.memory_space<vmem>>, %arg10: memref<1x1x128xf32, #tpu.memory_space<vmem>>, %arg11: memref<10x10x128xf32, #tpu.memory_space<vmem>>) attributes {dimension_semantics = [#tpu.dimension_semantics<parallel>, #tpu.dimension_semantics<parallel>], iteration_bounds = array<i64: 2, 4>, scalar_prefetch = 0 : i64, scratch_operands = 1 : i64, tpu.core_type = #tpu.core_type<tc>, window_params = [{transform_indices = @transform_0, window_bounds = array<i64: 1, 8, 8, 128>}, {transform_indices = @transform_1, window_bounds = array<i64: 128, 128>}, {transform_indices = @transform_2, window_bounds = array<i64: 1, 128>}, {transform_indices = @transform_3, window_bounds = array<i64: 1, 128>}, {transform_indices = @transform_4, window_bounds = array<i64: 9, 128>}, {transform_indices = @transform_5, window_bounds = array<i64: 1, 128>}, {transform_indices = @transform_6, window_bounds = array<i64: 1, 128>}, {transform_indices = @transform_7, window_bounds = array<i64: 1, 8, 8, 128>}, {transform_indices = @transform_8, window_bounds = array<i64: 1, 1, 128>}]} {
    %c0 = arith.constant 0 : index
    %c0_0 = arith.constant 0 : index
    %c0_1 = arith.constant 0 : index
    %c0_2 = arith.constant 0 : index
    %0 = vector.load %arg2[%c0, %c0_0, %c0_1, %c0_2] : memref<1x8x8x128xbf16, #tpu.memory_space<vmem>>, vector<1x8x8x128xbf16>
    %1 = vector.shape_cast %0 : vector<1x8x8x128xbf16> to vector<8x8x128xbf16>
    %2 = vector.shape_cast %1 : vector<8x8x128xbf16> to vector<64x128xbf16>
    %c0_3 = arith.constant 0 : index
    %c0_4 = arith.constant 0 : index
    %3 = vector.load %arg3[%c0_3, %c0_4] : memref<128x128xbf16, #tpu.memory_space<vmem>>, vector<128x128xbf16>
    %cst = arith.constant dense<0.000000e+00> : vector<64x128xf32>
    %4 = tpu.matmul %2, %3, %cst {dimension_numbers = #tpu.dot_dimension_numbers<[1], [0], [0], [1], [0, 0, 1, 1], [], []>} : vector<64x128xbf16>, vector<128x128xbf16>, vector<64x128xf32> -> vector<64x128xf32>
    %c0_5 = arith.constant 0 : index
    %c0_6 = arith.constant 0 : index
    %5 = vector.load %arg4[%c0_5, %c0_6] : memref<1x128xf32, #tpu.memory_space<vmem>>, vector<1x128xf32>
    %6 = vector.broadcast %5 : vector<1x128xf32> to vector<64x128xf32>
    %7 = arith.mulf %4, %6 : vector<64x128xf32>
    %c0_7 = arith.constant 0 : index
    %c0_8 = arith.constant 0 : index
    %8 = vector.load %arg5[%c0_7, %c0_8] : memref<1x128xf32, #tpu.memory_space<vmem>>, vector<1x128xf32>
    %9 = vector.broadcast %8 : vector<1x128xf32> to vector<64x128xf32>
    %10 = arith.addf %7, %9 : vector<64x128xf32>
    %cst_9 = arith.constant 0.000000e+00 : f32
    %11 = vector.broadcast %cst_9 : f32 to vector<64x128xf32>
    %12 = arith.subf %11, %10 : vector<64x128xf32>
    %13 = math.exp %12 : vector<64x128xf32>
    %cst_10 = arith.constant 1.000000e+00 : f32
    %14 = vector.broadcast %cst_10 : f32 to vector<64x128xf32>
    %15 = arith.addf %14, %13 : vector<64x128xf32>
    %16 = tpu.reciprocal %15 {approx = true} : vector<64x128xf32> -> vector<64x128xf32>
    %17 = arith.mulf %10, %16 : vector<64x128xf32>
    %cst_11 = arith.constant 0.000000e+00 : f32
    %18 = vector.broadcast %cst_11 : f32 to vector<10x10x128xf32>
    %c0_12 = arith.constant 0 : index
    %c0_13 = arith.constant 0 : index
    %c0_14 = arith.constant 0 : index
    %19 = vector.load %arg11[%c0_12, %c0_13, %c0_14] : memref<10x10x128xf32, #tpu.memory_space<vmem>>, vector<10x10x128xf32>
    tpu.vector_store %arg11[%c0_12, %c0_13, %c0_14], %18 {strides = array<i32>} : memref<10x10x128xf32, #tpu.memory_space<vmem>>, vector<10x10x128xf32>,
    %20 = vector.shape_cast %17 : vector<64x128xf32> to vector<8x8x128xf32>
    %c1 = arith.constant 1 : index
    %c1_15 = arith.constant 1 : index
    %c0_16 = arith.constant 0 : index
    %21 = vector.load %arg11[%c1, %c1_15, %c0_16] : memref<10x10x128xf32, #tpu.memory_space<vmem>>, vector<8x8x128xf32>
    tpu.vector_store %arg11[%c1, %c1_15, %c0_16], %20 {strides = array<i32>} : memref<10x10x128xf32, #tpu.memory_space<vmem>>, vector<8x8x128xf32>,
    %c0_17 = arith.constant 0 : index
    %c0_18 = arith.constant 0 : index
    %c0_19 = arith.constant 0 : index
    %22 = vector.load %arg11[%c0_17, %c0_18, %c0_19] : memref<10x10x128xf32, #tpu.memory_space<vmem>>, vector<10x10x128xf32>
    %c0_20 = arith.constant 0 : index
    %c0_21 = arith.constant 0 : index
    %23 = vector.load %arg6[%c0_20, %c0_21] : memref<9x128xf32, #tpu.memory_space<vmem>>, vector<9x128xf32>
    %cst_22 = arith.constant 0.000000e+00 : f32
    %24 = vector.broadcast %cst_22 : f32 to vector<8x8x128xf32>
    %25 = vector.extract_strided_slice %22 {offsets = [0, 0, 0], sizes = [8, 8, 128], strides = [1, 1, 1]} : vector<10x10x128xf32> to vector<8x8x128xf32>
    %26 = vector.extract_strided_slice %23 {offsets = [0, 0], sizes = [1, 128], strides = [1, 1]} : vector<9x128xf32> to vector<1x128xf32>
    %27 = vector.shape_cast %26 : vector<1x128xf32> to vector<128xf32>
    %28 = vector.shape_cast %27 : vector<128xf32> to vector<1x1x128xf32>
    %29 = vector.broadcast %28 : vector<1x1x128xf32> to vector<8x8x128xf32>
    %30 = arith.mulf %25, %29 : vector<8x8x128xf32>
    %31 = arith.addf %24, %30 : vector<8x8x128xf32>
    %32 = vector.extract_strided_slice %22 {offsets = [0, 1, 0], sizes = [8, 8, 128], strides = [1, 1, 1]} : vector<10x10x128xf32> to vector<8x8x128xf32>
    %33 = vector.extract_strided_slice %23 {offsets = [1, 0], sizes = [1, 128], strides = [1, 1]} : vector<9x128xf32> to vector<1x128xf32>
    %34 = vector.shape_cast %33 : vector<1x128xf32> to vector<128xf32>
    %35 = vector.shape_cast %34 : vector<128xf32> to vector<1x1x128xf32>
    %36 = vector.broadcast %35 : vector<1x1x128xf32> to vector<8x8x128xf32>
    %37 = arith.mulf %32, %36 : vector<8x8x128xf32>
    %38 = arith.addf %31, %37 : vector<8x8x128xf32>
    %39 = vector.extract_strided_slice %22 {offsets = [0, 2, 0], sizes = [8, 8, 128], strides = [1, 1, 1]} : vector<10x10x128xf32> to vector<8x8x128xf32>
    %40 = vector.extract_strided_slice %23 {offsets = [2, 0], sizes = [1, 128], strides = [1, 1]} : vector<9x128xf32> to vector<1x128xf32>
    %41 = vector.shape_cast %40 : vector<1x128xf32> to vector<128xf32>
    %42 = vector.shape_cast %41 : vector<128xf32> to vector<1x1x128xf32>
    %43 = vector.broadcast %42 : vector<1x1x128xf32> to vector<8x8x128xf32>
    %44 = arith.mulf %39, %43 : vector<8x8x128xf32>
    %45 = arith.addf %38, %44 : vector<8x8x128xf32>
    %46 = vector.extract_strided_slice %22 {offsets = [1, 0, 0], sizes = [8, 8, 128], strides = [1, 1, 1]} : vector<10x10x128xf32> to vector<8x8x128xf32>
    %47 = vector.extract_strided_slice %23 {offsets = [3, 0], sizes = [1, 128], strides = [1, 1]} : vector<9x128xf32> to vector<1x128xf32>
    %48 = vector.shape_cast %47 : vector<1x128xf32> to vector<128xf32>
    %49 = vector.shape_cast %48 : vector<128xf32> to vector<1x1x128xf32>
    %50 = vector.broadcast %49 : vector<1x1x128xf32> to vector<8x8x128xf32>
    %51 = arith.mulf %46, %50 : vector<8x8x128xf32>
    %52 = arith.addf %45, %51 : vector<8x8x128xf32>
    %53 = vector.extract_strided_slice %22 {offsets = [1, 1, 0], sizes = [8, 8, 128], strides = [1, 1, 1]} : vector<10x10x128xf32> to vector<8x8x128xf32>
    %54 = vector.extract_strided_slice %23 {offsets = [4, 0], sizes = [1, 128], strides = [1, 1]} : vector<9x128xf32> to vector<1x128xf32>
    %55 = vector.shape_cast %54 : vector<1x128xf32> to vector<128xf32>
    %56 = vector.shape_cast %55 : vector<128xf32> to vector<1x1x128xf32>
    %57 = vector.broadcast %56 : vector<1x1x128xf32> to vector<8x8x128xf32>
    %58 = arith.mulf %53, %57 : vector<8x8x128xf32>
    %59 = arith.addf %52, %58 : vector<8x8x128xf32>
    %60 = vector.extract_strided_slice %22 {offsets = [1, 2, 0], sizes = [8, 8, 128], strides = [1, 1, 1]} : vector<10x10x128xf32> to vector<8x8x128xf32>
    %61 = vector.extract_strided_slice %23 {offsets = [5, 0], sizes = [1, 128], strides = [1, 1]} : vector<9x128xf32> to vector<1x128xf32>
    %62 = vector.shape_cast %61 : vector<1x128xf32> to vector<128xf32>
    %63 = vector.shape_cast %62 : vector<128xf32> to vector<1x1x128xf32>
    %64 = vector.broadcast %63 : vector<1x1x128xf32> to vector<8x8x128xf32>
    %65 = arith.mulf %60, %64 : vector<8x8x128xf32>
    %66 = arith.addf %59, %65 : vector<8x8x128xf32>
    %67 = vector.extract_strided_slice %22 {offsets = [2, 0, 0], sizes = [8, 8, 128], strides = [1, 1, 1]} : vector<10x10x128xf32> to vector<8x8x128xf32>
    %68 = vector.extract_strided_slice %23 {offsets = [6, 0], sizes = [1, 128], strides = [1, 1]} : vector<9x128xf32> to vector<1x128xf32>
    %69 = vector.shape_cast %68 : vector<1x128xf32> to vector<128xf32>
    %70 = vector.shape_cast %69 : vector<128xf32> to vector<1x1x128xf32>
    %71 = vector.broadcast %70 : vector<1x1x128xf32> to vector<8x8x128xf32>
    %72 = arith.mulf %67, %71 : vector<8x8x128xf32>
    %73 = arith.addf %66, %72 : vector<8x8x128xf32>
    %74 = vector.extract_strided_slice %22 {offsets = [2, 1, 0], sizes = [8, 8, 128], strides = [1, 1, 1]} : vector<10x10x128xf32> to vector<8x8x128xf32>
    %75 = vector.extract_strided_slice %23 {offsets = [7, 0], sizes = [1, 128], strides = [1, 1]} : vector<9x128xf32> to vector<1x128xf32>
    %76 = vector.shape_cast %75 : vector<1x128xf32> to vector<128xf32>
    %77 = vector.shape_cast %76 : vector<128xf32> to vector<1x1x128xf32>
    %78 = vector.broadcast %77 : vector<1x1x128xf32> to vector<8x8x128xf32>
    %79 = arith.mulf %74, %78 : vector<8x8x128xf32>
    %80 = arith.addf %73, %79 : vector<8x8x128xf32>
    %81 = vector.extract_strided_slice %22 {offsets = [2, 2, 0], sizes = [8, 8, 128], strides = [1, 1, 1]} : vector<10x10x128xf32> to vector<8x8x128xf32>
    %82 = vector.extract_strided_slice %23 {offsets = [8, 0], sizes = [1, 128], strides = [1, 1]} : vector<9x128xf32> to vector<1x128xf32>
    %83 = vector.shape_cast %82 : vector<1x128xf32> to vector<128xf32>
    %84 = vector.shape_cast %83 : vector<128xf32> to vector<1x1x128xf32>
    %85 = vector.broadcast %84 : vector<1x1x128xf32> to vector<8x8x128xf32>
    %86 = arith.mulf %81, %85 : vector<8x8x128xf32>
    %87 = arith.addf %80, %86 : vector<8x8x128xf32>
    %c0_23 = arith.constant 0 : index
    %c0_24 = arith.constant 0 : index
    %88 = vector.load %arg7[%c0_23, %c0_24] : memref<1x128xf32, #tpu.memory_space<vmem>>, vector<1x128xf32>
    %89 = vector.shape_cast %88 : vector<1x128xf32> to vector<1x1x128xf32>
    %90 = vector.broadcast %89 : vector<1x1x128xf32> to vector<8x8x128xf32>
    %91 = arith.mulf %87, %90 : vector<8x8x128xf32>
    %c0_25 = arith.constant 0 : index
    %c0_26 = arith.constant 0 : index
    %92 = vector.load %arg8[%c0_25, %c0_26] : memref<1x128xf32, #tpu.memory_space<vmem>>, vector<1x128xf32>
    %93 = vector.shape_cast %92 : vector<1x128xf32> to vector<1x1x128xf32>
    %94 = vector.broadcast %93 : vector<1x1x128xf32> to vector<8x8x128xf32>
    %95 = arith.addf %91, %94 : vector<8x8x128xf32>
    %cst_27 = arith.constant 0.000000e+00 : f32
    %96 = vector.broadcast %cst_27 : f32 to vector<8x8x128xf32>
    %97 = arith.subf %96, %95 : vector<8x8x128xf32>
    %98 = math.exp %97 : vector<8x8x128xf32>
    %cst_28 = arith.constant 1.000000e+00 : f32
    %99 = vector.broadcast %cst_28 : f32 to vector<8x8x128xf32>
    %100 = arith.addf %99, %98 : vector<8x8x128xf32>
    %101 = tpu.reciprocal %100 {approx = true} : vector<8x8x128xf32> -> vector<8x8x128xf32>
    %102 = arith.mulf %95, %101 : vector<8x8x128xf32>
    %103 = arith.truncf %102 : vector<8x8x128xf32> to vector<8x8x128xbf16>
    %c0_29 = arith.constant 0 : index
    %c0_30 = arith.constant 0 : index
    %c0_31 = arith.constant 0 : index
    %c0_32 = arith.constant 0 : index
    %104 = vector.load %arg9[%c0_29, %c0_30, %c0_31, %c0_32] : memref<1x8x8x128xbf16, #tpu.memory_space<vmem>>, vector<1x8x8x128xbf16>
    %105 = vector.shape_cast %104 : vector<1x8x8x128xbf16> to vector<8x8x128xbf16>
    %106 = vector.shape_cast %103 : vector<8x8x128xbf16> to vector<1x8x8x128xbf16>
    tpu.vector_store %arg9[%c0_29, %c0_30, %c0_31, %c0_32], %106 {strides = array<i32>} : memref<1x8x8x128xbf16, #tpu.memory_space<vmem>>, vector<1x8x8x128xbf16>,
    %cst_33 = arith.constant dense<0.000000e+00> : vector<128xf32>
    %107 = vector.multi_reduction <add>, %102, %cst_33 [0, 1] : vector<8x8x128xf32> to vector<128xf32>
    %108 = vector.shape_cast %107 : vector<128xf32> to vector<1x128xf32>
    %c0_34 = arith.constant 0 : index
    %c0_35 = arith.constant 0 : index
    %c0_36 = arith.constant 0 : index
    %109 = vector.load %arg10[%c0_34, %c0_35, %c0_36] : memref<1x1x128xf32, #tpu.memory_space<vmem>>, vector<1x1x128xf32>
    %110 = vector.shape_cast %109 : vector<1x1x128xf32> to vector<1x128xf32>
    %111 = vector.shape_cast %108 : vector<1x128xf32> to vector<1x1x128xf32>
    tpu.vector_store %arg10[%c0_34, %c0_35, %c0_36], %111 {strides = array<i32>} : memref<1x1x128xf32, #tpu.memory_space<vmem>>, vector<1x1x128xf32>,
    return
  }
  func.func @transform_0(%arg0: i32, %arg1: i32) -> (i32, i32, i32, i32) {
    %c0_i32 = arith.constant 0 : i32
    %c0_i32_0 = arith.constant 0 : i32
    %c0_i32_1 = arith.constant 0 : i32
    %c0_i32_2 = arith.constant 0 : i32
    return %arg0, %c0_i32, %c0_i32_0, %c0_i32_1 : i32, i32, i32, i32
  }
  func.func @transform_1(%arg0: i32, %arg1: i32) -> (i32, i32) {
    %c0_i32 = arith.constant 0 : i32
    %c0_i32_0 = arith.constant 0 : i32
    return %c0_i32, %arg1 : i32, i32
  }
  func.func @transform_2(%arg0: i32, %arg1: i32) -> (i32, i32) {
    %c0_i32 = arith.constant 0 : i32
    %c0_i32_0 = arith.constant 0 : i32
    return %c0_i32, %arg1 : i32, i32
  }
  func.func @transform_3(%arg0: i32, %arg1: i32) -> (i32, i32) {
    %c0_i32 = arith.constant 0 : i32
    %c0_i32_0 = arith.constant 0 : i32
    return %c0_i32, %arg1 : i32, i32
  }
  func.func @transform_4(%arg0: i32, %arg1: i32) -> (i32, i32) {
    %c0_i32 = arith.constant 0 : i32
    %c0_i32_0 = arith.constant 0 : i32
    return %c0_i32, %arg1 : i32, i32
  }
  func.func @transform_5(%arg0: i32, %arg1: i32) -> (i32, i32) {
    %c0_i32 = arith.constant 0 : i32
    %c0_i32_0 = arith.constant 0 : i32
    return %c0_i32, %arg1 : i32, i32
  }
  func.func @transform_6(%arg0: i32, %arg1: i32) -> (i32, i32) {
    %c0_i32 = arith.constant 0 : i32
    %c0_i32_0 = arith.constant 0 : i32
    return %c0_i32, %arg1 : i32, i32
  }
  func.func @transform_7(%arg0: i32, %arg1: i32) -> (i32, i32, i32, i32) {
    %c0_i32 = arith.constant 0 : i32
    %c0_i32_0 = arith.constant 0 : i32
    %c0_i32_1 = arith.constant 0 : i32
    return %arg0, %c0_i32, %c0_i32_0, %arg1 : i32, i32, i32, i32
  }
  func.func @transform_8(%arg0: i32, %arg1: i32) -> (i32, i32, i32) {
    %c0_i32 = arith.constant 0 : i32
    %c0_i32_0 = arith.constant 0 : i32
    return %arg0, %c0_i32, %arg1 : i32, i32, i32
  }
}

module attributes {stable_mosaic.version = 11 : i64} {
  func.func @matmul_bn_act_kernel(%arg0: i32, %arg1: i32, %arg2: memref<1x64x32xbf16, #tpu.memory_space<vmem>>, %arg3: memref<32x128xbf16, #tpu.memory_space<vmem>>, %arg4: memref<1x128xf32, #tpu.memory_space<vmem>>, %arg5: memref<1x128xf32, #tpu.memory_space<vmem>>, %arg6: memref<1x64x128xbf16, #tpu.memory_space<vmem>>) attributes {dimension_semantics = [#tpu.dimension_semantics<parallel>, #tpu.dimension_semantics<parallel>], iteration_bounds = array<i64: 2, 1>, scalar_prefetch = 0 : i64, scratch_operands = 0 : i64, tpu.core_type = #tpu.core_type<tc>, window_params = [{transform_indices = @transform_0, window_bounds = array<i64: 1, 64, 32>}, {pipeline_mode = #tpu.pipeline_mode<synchronous>, transform_indices = @transform_1, window_bounds = array<i64: 32, 128>}, {pipeline_mode = #tpu.pipeline_mode<synchronous>, transform_indices = @transform_2, window_bounds = array<i64: 1, 128>}, {pipeline_mode = #tpu.pipeline_mode<synchronous>, transform_indices = @transform_3, window_bounds = array<i64: 1, 128>}, {transform_indices = @transform_4, window_bounds = array<i64: 1, 64, 128>}]} {
    %c0 = arith.constant 0 : index
    %c0_0 = arith.constant 0 : index
    %c0_1 = arith.constant 0 : index
    %0 = vector.load %arg2[%c0, %c0_0, %c0_1] : memref<1x64x32xbf16, #tpu.memory_space<vmem>>, vector<1x64x32xbf16>
    %1 = vector.shape_cast %0 : vector<1x64x32xbf16> to vector<64x32xbf16>
    %c0_2 = arith.constant 0 : index
    %c0_3 = arith.constant 0 : index
    %2 = vector.load %arg3[%c0_2, %c0_3] : memref<32x128xbf16, #tpu.memory_space<vmem>>, vector<32x128xbf16>
    %cst = arith.constant dense<0.000000e+00> : vector<64x128xf32>
    %3 = tpu.matmul %1, %2, %cst {dimension_numbers = #tpu.dot_dimension_numbers<[1], [0], [0], [1], [0, 0, 1, 1], [], []>} : vector<64x32xbf16>, vector<32x128xbf16>, vector<64x128xf32> -> vector<64x128xf32>
    %c0_4 = arith.constant 0 : index
    %c0_5 = arith.constant 0 : index
    %4 = vector.load %arg4[%c0_4, %c0_5] : memref<1x128xf32, #tpu.memory_space<vmem>>, vector<1x128xf32>
    %5 = vector.broadcast %4 : vector<1x128xf32> to vector<64x128xf32>
    %6 = arith.mulf %3, %5 : vector<64x128xf32>
    %c0_6 = arith.constant 0 : index
    %c0_7 = arith.constant 0 : index
    %7 = vector.load %arg5[%c0_6, %c0_7] : memref<1x128xf32, #tpu.memory_space<vmem>>, vector<1x128xf32>
    %8 = vector.broadcast %7 : vector<1x128xf32> to vector<64x128xf32>
    %9 = arith.addf %6, %8 : vector<64x128xf32>
    %cst_8 = arith.constant 0.000000e+00 : f32
    %10 = vector.broadcast %cst_8 : f32 to vector<64x128xf32>
    %11 = arith.subf %10, %9 : vector<64x128xf32>
    %12 = math.exp %11 : vector<64x128xf32>
    %cst_9 = arith.constant 1.000000e+00 : f32
    %13 = vector.broadcast %cst_9 : f32 to vector<64x128xf32>
    %14 = arith.addf %13, %12 : vector<64x128xf32>
    %15 = tpu.reciprocal %14 {approx = true} : vector<64x128xf32> -> vector<64x128xf32>
    %16 = arith.mulf %9, %15 : vector<64x128xf32>
    %17 = arith.truncf %16 : vector<64x128xf32> to vector<64x128xbf16>
    %c0_10 = arith.constant 0 : index
    %c0_11 = arith.constant 0 : index
    %c0_12 = arith.constant 0 : index
    %18 = vector.load %arg6[%c0_10, %c0_11, %c0_12] : memref<1x64x128xbf16, #tpu.memory_space<vmem>>, vector<1x64x128xbf16>
    %19 = vector.shape_cast %18 : vector<1x64x128xbf16> to vector<64x128xbf16>
    %20 = vector.shape_cast %17 : vector<64x128xbf16> to vector<1x64x128xbf16>
    tpu.vector_store %arg6[%c0_10, %c0_11, %c0_12], %20 {strides = array<i32>} : memref<1x64x128xbf16, #tpu.memory_space<vmem>>, vector<1x64x128xbf16>,
    return
  }
  func.func @transform_0(%arg0: i32, %arg1: i32) -> (i32, i32, i32) {
    %c0_i32 = arith.constant 0 : i32
    %c0_i32_0 = arith.constant 0 : i32
    return %arg0, %arg1, %c0_i32 : i32, i32, i32
  }
  func.func @transform_1(%arg0: i32, %arg1: i32) -> (i32, i32) {
    %c0_i32 = arith.constant 0 : i32
    %c0_i32_0 = arith.constant 0 : i32
    %c0_i32_1 = arith.constant 0 : i32
    return %c0_i32, %c0_i32_0 : i32, i32
  }
  func.func @transform_2(%arg0: i32, %arg1: i32) -> (i32, i32) {
    %c0_i32 = arith.constant 0 : i32
    %c0_i32_0 = arith.constant 0 : i32
    %c0_i32_1 = arith.constant 0 : i32
    return %c0_i32, %c0_i32_0 : i32, i32
  }
  func.func @transform_3(%arg0: i32, %arg1: i32) -> (i32, i32) {
    %c0_i32 = arith.constant 0 : i32
    %c0_i32_0 = arith.constant 0 : i32
    %c0_i32_1 = arith.constant 0 : i32
    return %c0_i32, %c0_i32_0 : i32, i32
  }
  func.func @transform_4(%arg0: i32, %arg1: i32) -> (i32, i32, i32) {
    %c0_i32 = arith.constant 0 : i32
    %c0_i32_0 = arith.constant 0 : i32
    return %arg0, %arg1, %c0_i32 : i32, i32, i32
  }
}

module attributes {stable_mosaic.version = 11 : i64} {
  func.func @se_fc_kernel(%arg0: i32, %arg1: memref<1x1x512xf32, #tpu.memory_space<vmem>>, %arg2: memref<512x32xf32, #tpu.memory_space<vmem>>, %arg3: memref<1x32xf32, #tpu.memory_space<vmem>>, %arg4: memref<32x512xf32, #tpu.memory_space<vmem>>, %arg5: memref<1x512xf32, #tpu.memory_space<vmem>>, %arg6: memref<1x1x512xbf16, #tpu.memory_space<vmem>>) attributes {dimension_semantics = [#tpu.dimension_semantics<parallel>], iteration_bounds = array<i64: 2>, scalar_prefetch = 0 : i64, scratch_operands = 0 : i64, tpu.core_type = #tpu.core_type<tc>, window_params = [{transform_indices = @transform_0, window_bounds = array<i64: 1, 1, 512>}, {pipeline_mode = #tpu.pipeline_mode<synchronous>, transform_indices = @transform_1, window_bounds = array<i64: 512, 32>}, {pipeline_mode = #tpu.pipeline_mode<synchronous>, transform_indices = @transform_2, window_bounds = array<i64: 1, 32>}, {pipeline_mode = #tpu.pipeline_mode<synchronous>, transform_indices = @transform_3, window_bounds = array<i64: 32, 512>}, {pipeline_mode = #tpu.pipeline_mode<synchronous>, transform_indices = @transform_4, window_bounds = array<i64: 1, 512>}, {transform_indices = @transform_5, window_bounds = array<i64: 1, 1, 512>}]} {
    %c0 = arith.constant 0 : index
    %c0_0 = arith.constant 0 : index
    %c0_1 = arith.constant 0 : index
    %0 = vector.load %arg1[%c0, %c0_0, %c0_1] : memref<1x1x512xf32, #tpu.memory_space<vmem>>, vector<1x1x512xf32>
    %1 = vector.shape_cast %0 : vector<1x1x512xf32> to vector<1x512xf32>
    %cst = arith.constant 1.562500e-02 : f32
    %2 = vector.broadcast %cst : f32 to vector<1x512xf32>
    %3 = arith.mulf %1, %2 : vector<1x512xf32>
    %c0_2 = arith.constant 0 : index
    %c0_3 = arith.constant 0 : index
    %4 = vector.load %arg2[%c0_2, %c0_3] : memref<512x32xf32, #tpu.memory_space<vmem>>, vector<512x32xf32>
    %cst_4 = arith.constant dense<0.000000e+00> : vector<1x32xf32>
    %5 = tpu.matmul %3, %4, %cst_4 {dimension_numbers = #tpu.dot_dimension_numbers<[1], [0], [0], [1], [0, 0, 1, 1], [], []>} : vector<1x512xf32>, vector<512x32xf32>, vector<1x32xf32> -> vector<1x32xf32>
    %c0_5 = arith.constant 0 : index
    %c0_6 = arith.constant 0 : index
    %6 = vector.load %arg3[%c0_5, %c0_6] : memref<1x32xf32, #tpu.memory_space<vmem>>, vector<1x32xf32>
    %7 = arith.addf %5, %6 : vector<1x32xf32>
    %cst_7 = arith.constant 0.000000e+00 : f32
    %8 = vector.broadcast %cst_7 : f32 to vector<1x32xf32>
    %9 = arith.subf %8, %7 : vector<1x32xf32>
    %10 = math.exp %9 : vector<1x32xf32>
    %cst_8 = arith.constant 1.000000e+00 : f32
    %11 = vector.broadcast %cst_8 : f32 to vector<1x32xf32>
    %12 = arith.addf %11, %10 : vector<1x32xf32>
    %13 = tpu.reciprocal %12 {approx = true} : vector<1x32xf32> -> vector<1x32xf32>
    %14 = arith.mulf %7, %13 : vector<1x32xf32>
    %c0_9 = arith.constant 0 : index
    %c0_10 = arith.constant 0 : index
    %15 = vector.load %arg4[%c0_9, %c0_10] : memref<32x512xf32, #tpu.memory_space<vmem>>, vector<32x512xf32>
    %cst_11 = arith.constant dense<0.000000e+00> : vector<1x512xf32>
    %16 = tpu.matmul %14, %15, %cst_11 {dimension_numbers = #tpu.dot_dimension_numbers<[1], [0], [0], [1], [0, 0, 1, 1], [], []>} : vector<1x32xf32>, vector<32x512xf32>, vector<1x512xf32> -> vector<1x512xf32>
    %c0_12 = arith.constant 0 : index
    %c0_13 = arith.constant 0 : index
    %17 = vector.load %arg5[%c0_12, %c0_13] : memref<1x512xf32, #tpu.memory_space<vmem>>, vector<1x512xf32>
    %18 = arith.addf %16, %17 : vector<1x512xf32>
    %cst_14 = arith.constant 0.000000e+00 : f32
    %19 = vector.broadcast %cst_14 : f32 to vector<1x512xf32>
    %20 = arith.subf %19, %18 : vector<1x512xf32>
    %21 = math.exp %20 : vector<1x512xf32>
    %cst_15 = arith.constant 1.000000e+00 : f32
    %22 = vector.broadcast %cst_15 : f32 to vector<1x512xf32>
    %23 = arith.addf %22, %21 : vector<1x512xf32>
    %24 = tpu.reciprocal %23 {approx = true} : vector<1x512xf32> -> vector<1x512xf32>
    %25 = arith.truncf %24 : vector<1x512xf32> to vector<1x512xbf16>
    %c0_16 = arith.constant 0 : index
    %c0_17 = arith.constant 0 : index
    %c0_18 = arith.constant 0 : index
    %26 = vector.load %arg6[%c0_16, %c0_17, %c0_18] : memref<1x1x512xbf16, #tpu.memory_space<vmem>>, vector<1x1x512xbf16>
    %27 = vector.shape_cast %26 : vector<1x1x512xbf16> to vector<1x512xbf16>
    %28 = vector.shape_cast %25 : vector<1x512xbf16> to vector<1x1x512xbf16>
    tpu.vector_store %arg6[%c0_16, %c0_17, %c0_18], %28 {strides = array<i32>} : memref<1x1x512xbf16, #tpu.memory_space<vmem>>, vector<1x1x512xbf16>,
    return
  }
  func.func @transform_0(%arg0: i32) -> (i32, i32, i32) {
    %c0_i32 = arith.constant 0 : i32
    %c0_i32_0 = arith.constant 0 : i32
    %c0_i32_1 = arith.constant 0 : i32
    return %arg0, %c0_i32, %c0_i32_0 : i32, i32, i32
  }
  func.func @transform_1(%arg0: i32) -> (i32, i32) {
    %c0_i32 = arith.constant 0 : i32
    %c0_i32_0 = arith.constant 0 : i32
    %c0_i32_1 = arith.constant 0 : i32
    return %c0_i32, %c0_i32_0 : i32, i32
  }
  func.func @transform_2(%arg0: i32) -> (i32, i32) {
    %c0_i32 = arith.constant 0 : i32
    %c0_i32_0 = arith.constant 0 : i32
    %c0_i32_1 = arith.constant 0 : i32
    return %c0_i32, %c0_i32_0 : i32, i32
  }
  func.func @transform_3(%arg0: i32) -> (i32, i32) {
    %c0_i32 = arith.constant 0 : i32
    %c0_i32_0 = arith.constant 0 : i32
    %c0_i32_1 = arith.constant 0 : i32
    return %c0_i32, %c0_i32_0 : i32, i32
  }
  func.func @transform_4(%arg0: i32) -> (i32, i32) {
    %c0_i32 = arith.constant 0 : i32
    %c0_i32_0 = arith.constant 0 : i32
    %c0_i32_1 = arith.constant 0 : i32
    return %c0_i32, %c0_i32_0 : i32, i32
  }
  func.func @transform_5(%arg0: i32) -> (i32, i32, i32) {
    %c0_i32 = arith.constant 0 : i32
    %c0_i32_0 = arith.constant 0 : i32
    %c0_i32_1 = arith.constant 0 : i32
    return %arg0, %c0_i32, %c0_i32_0 : i32, i32, i32
  }
}

module attributes {stable_mosaic.version = 11 : i64} {
  func.func @project_gate_add_kernel(%arg0: i32, %arg1: i32, %arg2: memref<1x64x512xbf16, #tpu.memory_space<vmem>>, %arg3: memref<1x1x512xbf16, #tpu.memory_space<vmem>>, %arg4: memref<512x128xbf16, #tpu.memory_space<vmem>>, %arg5: memref<1x128xf32, #tpu.memory_space<vmem>>, %arg6: memref<1x128xf32, #tpu.memory_space<vmem>>, %arg7: memref<1x64x128xbf16, #tpu.memory_space<vmem>>, %arg8: memref<1x64x128xbf16, #tpu.memory_space<vmem>>) attributes {dimension_semantics = [#tpu.dimension_semantics<parallel>, #tpu.dimension_semantics<parallel>], iteration_bounds = array<i64: 2, 1>, scalar_prefetch = 0 : i64, scratch_operands = 0 : i64, tpu.core_type = #tpu.core_type<tc>, window_params = [{transform_indices = @transform_0, window_bounds = array<i64: 1, 64, 512>}, {transform_indices = @transform_1, window_bounds = array<i64: 1, 1, 512>}, {pipeline_mode = #tpu.pipeline_mode<synchronous>, transform_indices = @transform_2, window_bounds = array<i64: 512, 128>}, {pipeline_mode = #tpu.pipeline_mode<synchronous>, transform_indices = @transform_3, window_bounds = array<i64: 1, 128>}, {pipeline_mode = #tpu.pipeline_mode<synchronous>, transform_indices = @transform_4, window_bounds = array<i64: 1, 128>}, {transform_indices = @transform_5, window_bounds = array<i64: 1, 64, 128>}, {transform_indices = @transform_6, window_bounds = array<i64: 1, 64, 128>}]} {
    %c0 = arith.constant 0 : index
    %c0_0 = arith.constant 0 : index
    %c0_1 = arith.constant 0 : index
    %0 = vector.load %arg2[%c0, %c0_0, %c0_1] : memref<1x64x512xbf16, #tpu.memory_space<vmem>>, vector<1x64x512xbf16>
    %1 = vector.shape_cast %0 : vector<1x64x512xbf16> to vector<64x512xbf16>
    %c0_2 = arith.constant 0 : index
    %c0_3 = arith.constant 0 : index
    %c0_4 = arith.constant 0 : index
    %2 = vector.load %arg3[%c0_2, %c0_3, %c0_4] : memref<1x1x512xbf16, #tpu.memory_space<vmem>>, vector<1x1x512xbf16>
    %3 = vector.shape_cast %2 : vector<1x1x512xbf16> to vector<1x512xbf16>
    %4 = vector.broadcast %3 : vector<1x512xbf16> to vector<64x512xbf16>
    %5 = arith.mulf %1, %4 : vector<64x512xbf16>
    %c0_5 = arith.constant 0 : index
    %c0_6 = arith.constant 0 : index
    %6 = vector.load %arg4[%c0_5, %c0_6] : memref<512x128xbf16, #tpu.memory_space<vmem>>, vector<512x128xbf16>
    %cst = arith.constant dense<0.000000e+00> : vector<64x128xf32>
    %7 = tpu.matmul %5, %6, %cst {dimension_numbers = #tpu.dot_dimension_numbers<[1], [0], [0], [1], [0, 0, 1, 1], [], []>} : vector<64x512xbf16>, vector<512x128xbf16>, vector<64x128xf32> -> vector<64x128xf32>
    %c0_7 = arith.constant 0 : index
    %c0_8 = arith.constant 0 : index
    %8 = vector.load %arg5[%c0_7, %c0_8] : memref<1x128xf32, #tpu.memory_space<vmem>>, vector<1x128xf32>
    %9 = vector.broadcast %8 : vector<1x128xf32> to vector<64x128xf32>
    %10 = arith.mulf %7, %9 : vector<64x128xf32>
    %c0_9 = arith.constant 0 : index
    %c0_10 = arith.constant 0 : index
    %11 = vector.load %arg6[%c0_9, %c0_10] : memref<1x128xf32, #tpu.memory_space<vmem>>, vector<1x128xf32>
    %12 = vector.broadcast %11 : vector<1x128xf32> to vector<64x128xf32>
    %13 = arith.addf %10, %12 : vector<64x128xf32>
    %c0_11 = arith.constant 0 : index
    %c0_12 = arith.constant 0 : index
    %c0_13 = arith.constant 0 : index
    %14 = vector.load %arg7[%c0_11, %c0_12, %c0_13] : memref<1x64x128xbf16, #tpu.memory_space<vmem>>, vector<1x64x128xbf16>
    %15 = vector.shape_cast %14 : vector<1x64x128xbf16> to vector<64x128xbf16>
    %16 = arith.extf %15 : vector<64x128xbf16> to vector<64x128xf32>
    %17 = arith.addf %13, %16 : vector<64x128xf32>
    %18 = arith.truncf %17 : vector<64x128xf32> to vector<64x128xbf16>
    %c0_14 = arith.constant 0 : index
    %c0_15 = arith.constant 0 : index
    %c0_16 = arith.constant 0 : index
    %19 = vector.load %arg8[%c0_14, %c0_15, %c0_16] : memref<1x64x128xbf16, #tpu.memory_space<vmem>>, vector<1x64x128xbf16>
    %20 = vector.shape_cast %19 : vector<1x64x128xbf16> to vector<64x128xbf16>
    %21 = vector.shape_cast %18 : vector<64x128xbf16> to vector<1x64x128xbf16>
    tpu.vector_store %arg8[%c0_14, %c0_15, %c0_16], %21 {strides = array<i32>} : memref<1x64x128xbf16, #tpu.memory_space<vmem>>, vector<1x64x128xbf16>,
    return
  }
  func.func @transform_0(%arg0: i32, %arg1: i32) -> (i32, i32, i32) {
    %c0_i32 = arith.constant 0 : i32
    %c0_i32_0 = arith.constant 0 : i32
    return %arg0, %arg1, %c0_i32 : i32, i32, i32
  }
  func.func @transform_1(%arg0: i32, %arg1: i32) -> (i32, i32, i32) {
    %c0_i32 = arith.constant 0 : i32
    %c0_i32_0 = arith.constant 0 : i32
    %c0_i32_1 = arith.constant 0 : i32
    return %arg0, %c0_i32, %c0_i32_0 : i32, i32, i32
  }
  func.func @transform_2(%arg0: i32, %arg1: i32) -> (i32, i32) {
    %c0_i32 = arith.constant 0 : i32
    %c0_i32_0 = arith.constant 0 : i32
    %c0_i32_1 = arith.constant 0 : i32
    return %c0_i32, %c0_i32_0 : i32, i32
  }
  func.func @transform_3(%arg0: i32, %arg1: i32) -> (i32, i32) {
    %c0_i32 = arith.constant 0 : i32
    %c0_i32_0 = arith.constant 0 : i32
    %c0_i32_1 = arith.constant 0 : i32
    return %c0_i32, %c0_i32_0 : i32, i32
  }
  func.func @transform_4(%arg0: i32, %arg1: i32) -> (i32, i32) {
    %c0_i32 = arith.constant 0 : i32
    %c0_i32_0 = arith.constant 0 : i32
    %c0_i32_1 = arith.constant 0 : i32
    return %c0_i32, %c0_i32_0 : i32, i32
  }
  func.func @transform_5(%arg0: i32, %arg1: i32) -> (i32, i32, i32) {
    %c0_i32 = arith.constant 0 : i32
    %c0_i32_0 = arith.constant 0 : i32
    return %arg0, %arg1, %c0_i32 : i32, i32, i32
  }
  func.func @transform_6(%arg0: i32, %arg1: i32) -> (i32, i32, i32) {
    %c0_i32 = arith.constant 0 : i32
    %c0_i32_0 = arith.constant 0 : i32
    return %arg0, %arg1, %c0_i32 : i32, i32, i32
  }
}

module attributes {stable_mosaic.version = 11 : i64} {
  func.func @project_gate_kernel(%arg0: i32, %arg1: i32, %arg2: memref<1x64x512xbf16, #tpu.memory_space<vmem>>, %arg3: memref<1x1x512xbf16, #tpu.memory_space<vmem>>, %arg4: memref<512x256xbf16, #tpu.memory_space<vmem>>, %arg5: memref<1x256xf32, #tpu.memory_space<vmem>>, %arg6: memref<1x256xf32, #tpu.memory_space<vmem>>, %arg7: memref<1x64x256xbf16, #tpu.memory_space<vmem>>) attributes {dimension_semantics = [#tpu.dimension_semantics<parallel>, #tpu.dimension_semantics<parallel>], iteration_bounds = array<i64: 2, 1>, scalar_prefetch = 0 : i64, scratch_operands = 0 : i64, tpu.core_type = #tpu.core_type<tc>, window_params = [{transform_indices = @transform_0, window_bounds = array<i64: 1, 64, 512>}, {transform_indices = @transform_1, window_bounds = array<i64: 1, 1, 512>}, {pipeline_mode = #tpu.pipeline_mode<synchronous>, transform_indices = @transform_2, window_bounds = array<i64: 512, 256>}, {pipeline_mode = #tpu.pipeline_mode<synchronous>, transform_indices = @transform_3, window_bounds = array<i64: 1, 256>}, {pipeline_mode = #tpu.pipeline_mode<synchronous>, transform_indices = @transform_4, window_bounds = array<i64: 1, 256>}, {transform_indices = @transform_5, window_bounds = array<i64: 1, 64, 256>}]} {
    %c0 = arith.constant 0 : index
    %c0_0 = arith.constant 0 : index
    %c0_1 = arith.constant 0 : index
    %0 = vector.load %arg2[%c0, %c0_0, %c0_1] : memref<1x64x512xbf16, #tpu.memory_space<vmem>>, vector<1x64x512xbf16>
    %1 = vector.shape_cast %0 : vector<1x64x512xbf16> to vector<64x512xbf16>
    %c0_2 = arith.constant 0 : index
    %c0_3 = arith.constant 0 : index
    %c0_4 = arith.constant 0 : index
    %2 = vector.load %arg3[%c0_2, %c0_3, %c0_4] : memref<1x1x512xbf16, #tpu.memory_space<vmem>>, vector<1x1x512xbf16>
    %3 = vector.shape_cast %2 : vector<1x1x512xbf16> to vector<1x512xbf16>
    %4 = vector.broadcast %3 : vector<1x512xbf16> to vector<64x512xbf16>
    %5 = arith.mulf %1, %4 : vector<64x512xbf16>
    %c0_5 = arith.constant 0 : index
    %c0_6 = arith.constant 0 : index
    %6 = vector.load %arg4[%c0_5, %c0_6] : memref<512x256xbf16, #tpu.memory_space<vmem>>, vector<512x256xbf16>
    %cst = arith.constant dense<0.000000e+00> : vector<64x256xf32>
    %7 = tpu.matmul %5, %6, %cst {dimension_numbers = #tpu.dot_dimension_numbers<[1], [0], [0], [1], [0, 0, 1, 1], [], []>} : vector<64x512xbf16>, vector<512x256xbf16>, vector<64x256xf32> -> vector<64x256xf32>
    %c0_7 = arith.constant 0 : index
    %c0_8 = arith.constant 0 : index
    %8 = vector.load %arg5[%c0_7, %c0_8] : memref<1x256xf32, #tpu.memory_space<vmem>>, vector<1x256xf32>
    %9 = vector.broadcast %8 : vector<1x256xf32> to vector<64x256xf32>
    %10 = arith.mulf %7, %9 : vector<64x256xf32>
    %c0_9 = arith.constant 0 : index
    %c0_10 = arith.constant 0 : index
    %11 = vector.load %arg6[%c0_9, %c0_10] : memref<1x256xf32, #tpu.memory_space<vmem>>, vector<1x256xf32>
    %12 = vector.broadcast %11 : vector<1x256xf32> to vector<64x256xf32>
    %13 = arith.addf %10, %12 : vector<64x256xf32>
    %14 = arith.truncf %13 : vector<64x256xf32> to vector<64x256xbf16>
    %c0_11 = arith.constant 0 : index
    %c0_12 = arith.constant 0 : index
    %c0_13 = arith.constant 0 : index
    %15 = vector.load %arg7[%c0_11, %c0_12, %c0_13] : memref<1x64x256xbf16, #tpu.memory_space<vmem>>, vector<1x64x256xbf16>
    %16 = vector.shape_cast %15 : vector<1x64x256xbf16> to vector<64x256xbf16>
    %17 = vector.shape_cast %14 : vector<64x256xbf16> to vector<1x64x256xbf16>
    tpu.vector_store %arg7[%c0_11, %c0_12, %c0_13], %17 {strides = array<i32>} : memref<1x64x256xbf16, #tpu.memory_space<vmem>>, vector<1x64x256xbf16>,
    return
  }
  func.func @transform_0(%arg0: i32, %arg1: i32) -> (i32, i32, i32) {
    %c0_i32 = arith.constant 0 : i32
    %c0_i32_0 = arith.constant 0 : i32
    return %arg0, %arg1, %c0_i32 : i32, i32, i32
  }
  func.func @transform_1(%arg0: i32, %arg1: i32) -> (i32, i32, i32) {
    %c0_i32 = arith.constant 0 : i32
    %c0_i32_0 = arith.constant 0 : i32
    %c0_i32_1 = arith.constant 0 : i32
    return %arg0, %c0_i32, %c0_i32_0 : i32, i32, i32
  }
  func.func @transform_2(%arg0: i32, %arg1: i32) -> (i32, i32) {
    %c0_i32 = arith.constant 0 : i32
    %c0_i32_0 = arith.constant 0 : i32
    %c0_i32_1 = arith.constant 0 : i32
    return %c0_i32, %c0_i32_0 : i32, i32
  }
  func.func @transform_3(%arg0: i32, %arg1: i32) -> (i32, i32) {
    %c0_i32 = arith.constant 0 : i32
    %c0_i32_0 = arith.constant 0 : i32
    %c0_i32_1 = arith.constant 0 : i32
    return %c0_i32, %c0_i32_0 : i32, i32
  }
  func.func @transform_4(%arg0: i32, %arg1: i32) -> (i32, i32) {
    %c0_i32 = arith.constant 0 : i32
    %c0_i32_0 = arith.constant 0 : i32
    %c0_i32_1 = arith.constant 0 : i32
    return %c0_i32, %c0_i32_0 : i32, i32
  }
  func.func @transform_5(%arg0: i32, %arg1: i32) -> (i32, i32, i32) {
    %c0_i32 = arith.constant 0 : i32
    %c0_i32_0 = arith.constant 0 : i32
    return %arg0, %arg1, %c0_i32 : i32, i32, i32
  }
}

module attributes {stable_mosaic.version = 11 : i64} {
  func.func @matmul_bn_act_kernel(%arg0: i32, %arg1: i32, %arg2: memref<1x64x256xbf16, #tpu.memory_space<vmem>>, %arg3: memref<256x512xbf16, #tpu.memory_space<vmem>>, %arg4: memref<1x512xf32, #tpu.memory_space<vmem>>, %arg5: memref<1x512xf32, #tpu.memory_space<vmem>>, %arg6: memref<1x64x512xbf16, #tpu.memory_space<vmem>>) attributes {dimension_semantics = [#tpu.dimension_semantics<parallel>, #tpu.dimension_semantics<parallel>], iteration_bounds = array<i64: 2, 1>, scalar_prefetch = 0 : i64, scratch_operands = 0 : i64, tpu.core_type = #tpu.core_type<tc>, window_params = [{transform_indices = @transform_0, window_bounds = array<i64: 1, 64, 256>}, {pipeline_mode = #tpu.pipeline_mode<synchronous>, transform_indices = @transform_1, window_bounds = array<i64: 256, 512>}, {pipeline_mode = #tpu.pipeline_mode<synchronous>, transform_indices = @transform_2, window_bounds = array<i64: 1, 512>}, {pipeline_mode = #tpu.pipeline_mode<synchronous>, transform_indices = @transform_3, window_bounds = array<i64: 1, 512>}, {transform_indices = @transform_4, window_bounds = array<i64: 1, 64, 512>}]} {
    %c0 = arith.constant 0 : index
    %c0_0 = arith.constant 0 : index
    %c0_1 = arith.constant 0 : index
    %0 = vector.load %arg2[%c0, %c0_0, %c0_1] : memref<1x64x256xbf16, #tpu.memory_space<vmem>>, vector<1x64x256xbf16>
    %1 = vector.shape_cast %0 : vector<1x64x256xbf16> to vector<64x256xbf16>
    %c0_2 = arith.constant 0 : index
    %c0_3 = arith.constant 0 : index
    %2 = vector.load %arg3[%c0_2, %c0_3] : memref<256x512xbf16, #tpu.memory_space<vmem>>, vector<256x512xbf16>
    %cst = arith.constant dense<0.000000e+00> : vector<64x512xf32>
    %3 = tpu.matmul %1, %2, %cst {dimension_numbers = #tpu.dot_dimension_numbers<[1], [0], [0], [1], [0, 0, 1, 1], [], []>} : vector<64x256xbf16>, vector<256x512xbf16>, vector<64x512xf32> -> vector<64x512xf32>
    %c0_4 = arith.constant 0 : index
    %c0_5 = arith.constant 0 : index
    %4 = vector.load %arg4[%c0_4, %c0_5] : memref<1x512xf32, #tpu.memory_space<vmem>>, vector<1x512xf32>
    %5 = vector.broadcast %4 : vector<1x512xf32> to vector<64x512xf32>
    %6 = arith.mulf %3, %5 : vector<64x512xf32>
    %c0_6 = arith.constant 0 : index
    %c0_7 = arith.constant 0 : index
    %7 = vector.load %arg5[%c0_6, %c0_7] : memref<1x512xf32, #tpu.memory_space<vmem>>, vector<1x512xf32>
    %8 = vector.broadcast %7 : vector<1x512xf32> to vector<64x512xf32>
    %9 = arith.addf %6, %8 : vector<64x512xf32>
    %cst_8 = arith.constant 0.000000e+00 : f32
    %10 = vector.broadcast %cst_8 : f32 to vector<64x512xf32>
    %11 = arith.subf %10, %9 : vector<64x512xf32>
    %12 = math.exp %11 : vector<64x512xf32>
    %cst_9 = arith.constant 1.000000e+00 : f32
    %13 = vector.broadcast %cst_9 : f32 to vector<64x512xf32>
    %14 = arith.addf %13, %12 : vector<64x512xf32>
    %15 = tpu.reciprocal %14 {approx = true} : vector<64x512xf32> -> vector<64x512xf32>
    %16 = arith.mulf %9, %15 : vector<64x512xf32>
    %17 = arith.truncf %16 : vector<64x512xf32> to vector<64x512xbf16>
    %c0_10 = arith.constant 0 : index
    %c0_11 = arith.constant 0 : index
    %c0_12 = arith.constant 0 : index
    %18 = vector.load %arg6[%c0_10, %c0_11, %c0_12] : memref<1x64x512xbf16, #tpu.memory_space<vmem>>, vector<1x64x512xbf16>
    %19 = vector.shape_cast %18 : vector<1x64x512xbf16> to vector<64x512xbf16>
    %20 = vector.shape_cast %17 : vector<64x512xbf16> to vector<1x64x512xbf16>
    tpu.vector_store %arg6[%c0_10, %c0_11, %c0_12], %20 {strides = array<i32>} : memref<1x64x512xbf16, #tpu.memory_space<vmem>>, vector<1x64x512xbf16>,
    return
  }
  func.func @transform_0(%arg0: i32, %arg1: i32) -> (i32, i32, i32) {
    %c0_i32 = arith.constant 0 : i32
    %c0_i32_0 = arith.constant 0 : i32
    return %arg0, %arg1, %c0_i32 : i32, i32, i32
  }
  func.func @transform_1(%arg0: i32, %arg1: i32) -> (i32, i32) {
    %c0_i32 = arith.constant 0 : i32
    %c0_i32_0 = arith.constant 0 : i32
    %c0_i32_1 = arith.constant 0 : i32
    return %c0_i32, %c0_i32_0 : i32, i32
  }
  func.func @transform_2(%arg0: i32, %arg1: i32) -> (i32, i32) {
    %c0_i32 = arith.constant 0 : i32
    %c0_i32_0 = arith.constant 0 : i32
    %c0_i32_1 = arith.constant 0 : i32
    return %c0_i32, %c0_i32_0 : i32, i32
  }
  func.func @transform_3(%arg0: i32, %arg1: i32) -> (i32, i32) {
    %c0_i32 = arith.constant 0 : i32
    %c0_i32_0 = arith.constant 0 : i32
    %c0_i32_1 = arith.constant 0 : i32
    return %c0_i32, %c0_i32_0 : i32, i32
  }
  func.func @transform_4(%arg0: i32, %arg1: i32) -> (i32, i32, i32) {
    %c0_i32 = arith.constant 0 : i32
    %c0_i32_0 = arith.constant 0 : i32
    return %arg0, %arg1, %c0_i32 : i32, i32, i32
  }
}

module attributes {stable_mosaic.version = 11 : i64} {
  func.func @gap_linear_kernel(%arg0: i32, %arg1: i32, %arg2: memref<1x64x512xbf16, #tpu.memory_space<vmem>>, %arg3: memref<512x128xf32, #tpu.memory_space<vmem>>, %arg4: memref<1x128xf32, #tpu.memory_space<vmem>>, %arg5: memref<1x1x128xf32, #tpu.memory_space<vmem>>, %arg6: memref<1x512xf32, #tpu.memory_space<vmem>>) attributes {dimension_semantics = [#tpu.dimension_semantics<parallel>, #tpu.dimension_semantics<arbitrary>], iteration_bounds = array<i64: 2, 1>, scalar_prefetch = 0 : i64, scratch_operands = 1 : i64, tpu.core_type = #tpu.core_type<tc>, window_params = [{transform_indices = @transform_0, window_bounds = array<i64: 1, 64, 512>}, {pipeline_mode = #tpu.pipeline_mode<synchronous>, transform_indices = @transform_1, window_bounds = array<i64: 512, 128>}, {pipeline_mode = #tpu.pipeline_mode<synchronous>, transform_indices = @transform_2, window_bounds = array<i64: 1, 128>}, {transform_indices = @transform_3, window_bounds = array<i64: 1, 1, 128>}]} {
    %c0_i32 = arith.constant 0 : i32
    %0 = arith.cmpi eq, %arg1, %c0_i32 : i32
    %1 = arith.extui %0 : i1 to i32
    %c0_i32_0 = arith.constant 0 : i32
    %2 = arith.cmpi ne, %1, %c0_i32_0 : i32
    scf.if %2 {
      %cst_9 = arith.constant 0.000000e+00 : f32
      %14 = vector.broadcast %cst_9 : f32 to vector<1x512xf32>
      %c0_10 = arith.constant 0 : index
      %c0_11 = arith.constant 0 : index
      %15 = vector.load %arg6[%c0_10, %c0_11] : memref<1x512xf32, #tpu.memory_space<vmem>>, vector<1x512xf32>
      tpu.vector_store %arg6[%c0_10, %c0_11], %14 {strides = array<i32>} : memref<1x512xf32, #tpu.memory_space<vmem>>, vector<1x512xf32>,
    } else {
    }
    %c0 = arith.constant 0 : index
    %c0_1 = arith.constant 0 : index
    %3 = vector.load %arg6[%c0, %c0_1] : memref<1x512xf32, #tpu.memory_space<vmem>>, vector<1x512xf32>
    %c0_2 = arith.constant 0 : index
    %c0_3 = arith.constant 0 : index
    %c0_4 = arith.constant 0 : index
    %4 = vector.load %arg2[%c0_2, %c0_3, %c0_4] : memref<1x64x512xbf16, #tpu.memory_space<vmem>>, vector<1x64x512xbf16>
    %5 = vector.shape_cast %4 : vector<1x64x512xbf16> to vector<64x512xbf16>
    %6 = arith.extf %5 : vector<64x512xbf16> to vector<64x512xf32>
    %cst = arith.constant dense<0.000000e+00> : vector<512xf32>
    %7 = vector.multi_reduction <add>, %6, %cst [0] : vector<64x512xf32> to vector<512xf32>
    %8 = vector.shape_cast %7 : vector<512xf32> to vector<1x512xf32>
    %9 = arith.addf %3, %8 : vector<1x512xf32>
    %c0_5 = arith.constant 0 : index
    %c0_6 = arith.constant 0 : index
    %10 = vector.load %arg6[%c0_5, %c0_6] : memref<1x512xf32, #tpu.memory_space<vmem>>, vector<1x512xf32>
    tpu.vector_store %arg6[%c0_5, %c0_6], %9 {strides = array<i32>} : memref<1x512xf32, #tpu.memory_space<vmem>>, vector<1x512xf32>,
    %c0_i32_7 = arith.constant 0 : i32
    %11 = arith.cmpi eq, %arg1, %c0_i32_7 : i32
    %12 = arith.extui %11 : i1 to i32
    %c0_i32_8 = arith.constant 0 : i32
    %13 = arith.cmpi ne, %12, %c0_i32_8 : i32
    scf.if %13 {
      %c0_9 = arith.constant 0 : index
      %c0_10 = arith.constant 0 : index
      %14 = vector.load %arg6[%c0_9, %c0_10] : memref<1x512xf32, #tpu.memory_space<vmem>>, vector<1x512xf32>
      %cst_11 = arith.constant 1.562500e-02 : f32
      %15 = vector.broadcast %cst_11 : f32 to vector<1x512xf32>
      %16 = arith.mulf %14, %15 : vector<1x512xf32>
      %c0_12 = arith.constant 0 : index
      %c0_13 = arith.constant 0 : index
      %17 = vector.load %arg3[%c0_12, %c0_13] : memref<512x128xf32, #tpu.memory_space<vmem>>, vector<512x128xf32>
      %cst_14 = arith.constant dense<0.000000e+00> : vector<1x128xf32>
      %18 = tpu.matmul %16, %17, %cst_14 {dimension_numbers = #tpu.dot_dimension_numbers<[1], [0], [0], [1], [0, 0, 1, 1], [], []>} : vector<1x512xf32>, vector<512x128xf32>, vector<1x128xf32> -> vector<1x128xf32>
      %c0_15 = arith.constant 0 : index
      %c0_16 = arith.constant 0 : index
      %19 = vector.load %arg4[%c0_15, %c0_16] : memref<1x128xf32, #tpu.memory_space<vmem>>, vector<1x128xf32>
      %20 = arith.addf %18, %19 : vector<1x128xf32>
      %c0_17 = arith.constant 0 : index
      %c0_18 = arith.constant 0 : index
      %c0_19 = arith.constant 0 : index
      %21 = vector.load %arg5[%c0_17, %c0_18, %c0_19] : memref<1x1x128xf32, #tpu.memory_space<vmem>>, vector<1x1x128xf32>
      %22 = vector.shape_cast %21 : vector<1x1x128xf32> to vector<1x128xf32>
      %23 = vector.shape_cast %20 : vector<1x128xf32> to vector<1x1x128xf32>
      tpu.vector_store %arg5[%c0_17, %c0_18, %c0_19], %23 {strides = array<i32>} : memref<1x1x128xf32, #tpu.memory_space<vmem>>, vector<1x1x128xf32>,
    } else {
    }
    return
  }
  func.func @transform_0(%arg0: i32, %arg1: i32) -> (i32, i32, i32) {
    %c0_i32 = arith.constant 0 : i32
    %c0_i32_0 = arith.constant 0 : i32
    return %arg0, %arg1, %c0_i32 : i32, i32, i32
  }
  func.func @transform_1(%arg0: i32, %arg1: i32) -> (i32, i32) {
    %c0_i32 = arith.constant 0 : i32
    %c0_i32_0 = arith.constant 0 : i32
    %c0_i32_1 = arith.constant 0 : i32
    return %c0_i32, %c0_i32_0 : i32, i32
  }
  func.func @transform_2(%arg0: i32, %arg1: i32) -> (i32, i32) {
    %c0_i32 = arith.constant 0 : i32
    %c0_i32_0 = arith.constant 0 : i32
    %c0_i32_1 = arith.constant 0 : i32
    return %c0_i32, %c0_i32_0 : i32, i32
  }
  func.func @transform_3(%arg0: i32, %arg1: i32) -> (i32, i32, i32) {
    %c0_i32 = arith.constant 0 : i32
    %c0_i32_0 = arith.constant 0 : i32
    %c0_i32_1 = arith.constant 0 : i32
    return %arg0, %c0_i32, %c0_i32_0 : i32, i32, i32
  }
}

</mosaic_0001>

<llo_original>
// kernel: custom_efficientnet_forward.9
$region0: #{custom_efficientnet_forward.9}
  #allocation0 [shape = 'u32[]', space=smem, size = 0x4, offset = 0x4, fixed_abs, tag = 'smem constant byte address 0x4 - core index']
  #allocation1 [shape = 'u32[144,128]{1,0:T(1,128)}', space=vmem, size = 0x12000, scoped, tag = 'internal scratch']
  %s0 = inlined_call_operand.vmem [shape: bf16[2,64,32], index: 0, kind: input, shape index: {}]
  %s1 = inlined_call_operand.vmem [shape: bf16[32,128], index: 1, kind: input, shape index: {}]
  %s2 = inlined_call_operand.vmem [shape: f32[1,128], index: 2, kind: input, shape index: {}]
  %s3 = inlined_call_operand.vmem [shape: f32[1,128], index: 3, kind: input, shape index: {}]
  %s4 = inlined_call_operand.vmem [shape: bf16[2,64,128], index: 4, kind: output, shape index: {}]
  %s5 = sld [smem:[#allocation0]]
  $region49: #{custom_efficientnet_forward.9} parent=0
    _
  %s7 = ssub.s32 1, %s5
  %s8 = scalar_select 0, %s7, %s5
  loop: start=0, step=1, limit=4
  $region2: #{custom_efficientnet_forward.9} parent=0 // loop_pre_header
    _
  $region3: #{custom_efficientnet_forward.9} parent=0 // loop_header
    %s10 = sphi 0, %s14
    %p11 = scmp.ge.s32.totalorder %s10, 4
    %s17 = sphi 0, %s29
    %s18 = sphi 0, %s25
    %s19 = sphi 0, %s17
    %s20 = sphi 0, %s18
    %s21 = sphi 0, %s19
    %s22 = sphi 0, %s20
    %s34 = sphi 0, %s36
    %s37 = sphi 0, %s34
    %s38 = sphi 0, %s37
    %s54 = sphi 0, %s38
    %s58 = sphi 0, %s58
    %s60 = sphi 0, %s58
    %s61 = sphi 0, %s60
    %s75 = sphi 0, %s61
    %s79 = sphi 0, %s79
    %s81 = sphi 0, %s79
    %s82 = sphi 0, %s81
    %s96 = sphi 0, %s82
    %s100 = sphi 0, %s100
    %s102 = sphi 0, %s100
    %s103 = sphi 0, %s102
    %s117 = sphi 0, %s103
    %s125 = sphi 0, %s127
    %s128 = sphi 0, %s125
    %s129 = sphi 0, %s128
    %s145 = sphi 0, %s129
  $region4: #{custom_efficientnet_forward.9} parent=0 // loop_header_branch
    %13 = sbr.rel (%p11) target = $region8
  $region5: #{custom_efficientnet_forward.9} parent=0 // loop_body
    %s15 = ssub.s32 %s10, 1
    %s16 = ssub.s32 %s10, 2
    %s23 = sadd.s32 1, %s18
    %p24 = scmp.ge.s32.totalorder %s23, 1
    %s25 = scalar_select %p24, 0, %s23
    %s26 = sadd.s32 1, %s17
    %s27 = scalar_select %p24, %s26, %s17
    %p28 = scmp.ge.s32.totalorder %s27, 2
    %s29 = scalar_select %p28, 0, %s27
    %s30 = ssub.s32 %s17, %s29
    %s31 = ssub.s32 %s18, %s25
    %s32 = sor.u32 %s30, %s31
    %p33 = scmp.eq.s32.totalorder %s32, 0
    %s35 = sadd.s32 %s34, 1
    %s36 = scalar_select %p33, %s34, %s35
    %p39 = pneg %p33
    %p40 = scmp.eq.s32.totalorder %s10, 1
    %p41 = por %p39, %p40
    %p42 = scmp.ne.s32.totalorder %s34, %s37
    %p43 = scmp.eq.s32.totalorder %s10, 0
    %p44 = por %p42, %p43
    %p45 = scmp.ne.s32.totalorder %s34, %s37
    %p46 = scmp.eq.s32.totalorder %s15, 1
    %p47 = por %p45, %p46
    %p48 = scmp.ne.s32.totalorder %s37, %s38
    %p49 = scmp.eq.s32.totalorder %s15, 0
    %p50 = por %p48, %p49
    %p51 = scmp.ne.s32.totalorder %s37, %s38
    %p52 = scmp.eq.s32.totalorder %s16, 1
    %p53 = por %p51, %p52
    %p55 = scmp.ne.s32.totalorder %s38, %s54
    %p56 = scmp.eq.s32.totalorder %s16, 0
    %p57 = por %p55, %p56
    %s59 = sadd.s32 %s58, 1
    %p62 = scmp.eq.s32.totalorder %s10, 1
    %p63 = scmp.ne.s32.totalorder %s58, %s60
    %p64 = scmp.eq.s32.totalorder %s10, 0
    %p65 = por %p63, %p64
    %p66 = scmp.ne.s32.totalorder %s58, %s60
    %p67 = scmp.eq.s32.totalorder %s15, 1
    %p68 = por %p66, %p67
    %p69 = scmp.ne.s32.totalorder %s60, %s61
    %p70 = scmp.eq.s32.totalorder %s15, 0
    %p71 = por %p69, %p70
    %p72 = scmp.ne.s32.totalorder %s60, %s61
    %p73 = scmp.eq.s32.totalorder %s16, 1
    %p74 = por %p72, %p73
    %p76 = scmp.ne.s32.totalorder %s61, %s75
    %p77 = scmp.eq.s32.totalorder %s16, 0
    %p78 = por %p76, %p77
    %s80 = sadd.s32 %s79, 1
    %p83 = scmp.eq.s32.totalorder %s10, 1
    %p84 = scmp.ne.s32.totalorder %s79, %s81
    %p85 = scmp.eq.s32.totalorder %s10, 0
    %p86 = por %p84, %p85
    %p87 = scmp.ne.s32.totalorder %s79, %s81
    %p88 = scmp.eq.s32.totalorder %s15, 1
    %p89 = por %p87, %p88
    %p90 = scmp.ne.s32.totalorder %s81, %s82
    %p91 = scmp.eq.s32.totalorder %s15, 0
    %p92 = por %p90, %p91
    %p93 = scmp.ne.s32.totalorder %s81, %s82
    %p94 = scmp.eq.s32.totalorder %s16, 1
    %p95 = por %p93, %p94
    %p97 = scmp.ne.s32.totalorder %s82, %s96
    %p98 = scmp.eq.s32.totalorder %s16, 0
    %p99 = por %p97, %p98
    %s101 = sadd.s32 %s100, 1
    %p104 = scmp.eq.s32.totalorder %s10, 1
    %p105 = scmp.ne.s32.totalorder %s100, %s102
    %p106 = scmp.eq.s32.totalorder %s10, 0
    %p107 = por %p105, %p106
    %p108 = scmp.ne.s32.totalorder %s100, %s102
    %p109 = scmp.eq.s32.totalorder %s15, 1
    %p110 = por %p108, %p109
    %p111 = scmp.ne.s32.totalorder %s102, %s103
    %p112 = scmp.eq.s32.totalorder %s15, 0
    %p113 = por %p111, %p112
    %p114 = scmp.ne.s32.totalorder %s102, %s103
    %p115 = scmp.eq.s32.totalorder %s16, 1
    %p116 = por %p114, %p115
    %p118 = scmp.ne.s32.totalorder %s103, %s117
    %p119 = scmp.eq.s32.totalorder %s16, 0
    %p120 = por %p118, %p119
    %s121 = ssub.s32 %s17, %s29
    %s122 = ssub.s32 %s18, %s25
    %s123 = sor.u32 %s121, %s122
    %p124 = scmp.eq.s32.totalorder %s123, 0
    %s126 = sadd.s32 %s125, 1
    %s127 = scalar_select %p124, %s125, %s126
    %p130 = pneg %p124
    %p131 = scmp.eq.s32.totalorder %s10, 1
    %p132 = por %p130, %p131
    %p133 = scmp.ne.s32.totalorder %s125, %s128
    %p134 = scmp.eq.s32.totalorder %s10, 0
    %p135 = por %p133, %p134
    %p136 = scmp.ne.s32.totalorder %s125, %s128
    %p137 = scmp.eq.s32.totalorder %s15, 1
    %p138 = por %p136, %p137
    %p139 = scmp.ne.s32.totalorder %s128, %s129
    %p140 = scmp.eq.s32.totalorder %s15, 0
    %p141 = por %p139, %p140
    %p142 = scmp.ne.s32.totalorder %s128, %s129
    %p143 = scmp.eq.s32.totalorder %s16, 1
    %p144 = por %p142, %p143
    %p146 = scmp.ne.s32.totalorder %s129, %s145
    %p147 = scmp.eq.s32.totalorder %s16, 0
    %p148 = por %p146, %p147
    %p149 = scmp.le.s32.totalorder 1, %s10
    %p150 = scmp.lt.s32.totalorder %s10, 3
    %p151 = pnand %p149, %p150
    %p152 = pneg %p151
    // Predicated region
    $region9: #{custom_efficientnet_forward.9} parent=5 // pred_check
      _
    $region10: #{custom_efficientnet_forward.9} parent=5 // pred_check_branch
      %154 = sbr.rel (%p151) target = $region12
    $region11: #{custom_efficientnet_forward.9} parent=5 // pred_region
      %s155 = ssub.s32 %s10, 1
      // Predicated region
      $region13: #{custom_efficientnet_forward.9} parent=11 // pred_check
        %p156 = pneg %p71
      $region14: #{custom_efficientnet_forward.9} parent=11 // pred_check_branch
        %158 = sbr.rel (%p156) target = $region16
      $region15: #{custom_efficientnet_forward.9} parent=11 // pred_region
        _
      $region16: #{custom_efficientnet_forward.9} parent=11 // pred_fallthru
        _
      // Predicated region
      $region17: #{custom_efficientnet_forward.9} parent=11 // pred_check
        %p159 = pneg %p92
      $region18: #{custom_efficientnet_forward.9} parent=11 // pred_check_branch
        %161 = sbr.rel (%p159) target = $region20
      $region19: #{custom_efficientnet_forward.9} parent=11 // pred_region
        _
      $region20: #{custom_efficientnet_forward.9} parent=11 // pred_fallthru
        _
      // Predicated region
      $region21: #{custom_efficientnet_forward.9} parent=11 // pred_check
        %p162 = pneg %p113
      $region22: #{custom_efficientnet_forward.9} parent=11 // pred_check_branch
        %164 = sbr.rel (%p162) target = $region24
      $region23: #{custom_efficientnet_forward.9} parent=11 // pred_region
        _
      $region24: #{custom_efficientnet_forward.9} parent=11 // pred_fallthru
        _
    $region12: #{custom_efficientnet_forward.9} parent=5 // pred_fallthru
      _
    %p165 = scmp.lt.s32.totalorder %s10, 2
    // Predicated region
    $region25: #{custom_efficientnet_forward.9} parent=5 // pred_check
      %p166 = pneg %p165
    $region26: #{custom_efficientnet_forward.9} parent=5 // pred_check_branch
      %168 = sbr.rel (%p166) target = $region28
    $region27: #{custom_efficientnet_forward.9} parent=5 // pred_region
      // Predicated region
      $region29: #{custom_efficientnet_forward.9} parent=27 // pred_check
        %p169 = pneg %p44
      $region30: #{custom_efficientnet_forward.9} parent=27 // pred_check_branch
        %171 = sbr.rel (%p169) target = $region32
      $region31: #{custom_efficientnet_forward.9} parent=27 // pred_region
        %s172 = smul.u32 8, %s18
        %p173 = scmp.lt.s32.totalorder %s17, 1
        %s174 = scalar_select %p173, %s17, 1
        %p175 = scmp.lt.s32.totalorder %s172, 7
        %s176 = scalar_select %p175, %s172, 7
        %s177 = smul.addr %s174, 8
        %s178 = sadd.s32 %s176, %s177
        %s179 = smul.addr %s178, 4
        %s180 = scalar_lea.vmem %s0, %s179
        %s181 = smul.u32 8, %s18
      $region32: #{custom_efficientnet_forward.9} parent=27 // pred_fallthru
        _
    $region28: #{custom_efficientnet_forward.9} parent=5 // pred_fallthru
      _
    %p182 = scmp.le.s32.totalorder 1, %s10
    %p183 = scmp.lt.s32.totalorder %s10, 3
    %p184 = pnand %p182, %p183
    %p185 = pneg %p184
    // Predicated region
    $region33: #{custom_efficientnet_forward.9} parent=5 // pred_check
      _
    $region34: #{custom_efficientnet_forward.9} parent=5 // pred_check_branch
      %187 = sbr.rel (%p184) target = $region36
    $region35: #{custom_efficientnet_forward.9} parent=5 // pred_region
      %s188 = ssub.s32 %s10, 1
      %s189 = smul.u32 8, %s20
      %p190 = scmp.lt.s32.totalorder %s19, 1
      %s191 = scalar_select %p190, %s19, 1
      %p192 = scmp.lt.s32.totalorder %s189, 7
      %s193 = scalar_select %p192, %s189, 7
      %s194 = smul.addr %s191, 8
      %s195 = sadd.s32 %s193, %s194
      %s196 = smul.addr %s195, 4
      %s197 = scalar_lea.vmem %s0, %s196
      %p198 = pneg %p50
      %p199 = pneg %p47
      %p200 = pneg %p71
      %p201 = pneg %p68
      %p202 = pneg %p92
      %p203 = pneg %p89
      %p204 = pneg %p113
      %p205 = pneg %p110
      %p206 = pneg %p141
      %p207 = pneg %p138
      %s208 = smul.u32 8, %s20
      %p209 = scmp.lt.s32.totalorder %s19, 1
      %s210 = scalar_select %p209, %s19, 1
      %p211 = scmp.lt.s32.totalorder %s208, 7
      %s212 = scalar_select %p211, %s208, 7
      %s213 = smul.addr %s210, 8
      %s214 = sadd.s32 %s212, %s213
      %s215 = smul.addr %s214, 4
      %s216 = scalar_lea.vmem %s4, %s215
      %s217 = smul.u32 8, %s20
      %p218 = scmp.lt.s32.totalorder %s19, 1
      %s219 = scalar_select %p218, %s19, 1
      %p220 = scmp.lt.s32.totalorder %s217, 7
      %s221 = scalar_select %p220, %s217, 7
      %s222 = smul.addr %s219, 8
      %s223 = sadd.s32 %s221, %s222
      %s224 = smul.addr %s223, 4
      %s225 = scalar_lea.vmem %s0, %s224
      %s226 = smul.u32 8, %s20
      %s227 = smul.u32 8, %s20
      %p228 = scmp.lt.s32.totalorder %s19, 1
      %s229 = scalar_select %p228, %s19, 1
      %p230 = scmp.lt.s32.totalorder %s227, 7
      %s231 = scalar_select %p230, %s227, 7
      %s232 = smul.addr %s229, 8
      %s233 = sadd.s32 %s231, %s232
      %s234 = smul.addr %s233, 4
      %s235 = scalar_lea.vmem %s4, %s234
      %s236 = smul.u32 8, %s20
      %v238 = vld [vmem:[%s225] sm:$0xf]
      %v239 = vld [vmem:[%s225 + $0x4] sm:$0xf]
      %v240 = vld [vmem:[%s225 + $0x8] sm:$0xf]
      %v241 = vld [vmem:[%s225 + $0xc] sm:$0xf]
      %v242 = vld [vmem:[%s225 + $0x10] sm:$0xf]
      %v243 = vld [vmem:[%s225 + $0x14] sm:$0xf]
      %v244 = vld [vmem:[%s225 + $0x18] sm:$0xf]
      %v245 = vld [vmem:[%s225 + $0x1c] sm:$0xf]
      %v246 = vld [vmem:[%s1] sm:$0xf]
      %v247 = vld [vmem:[%s1 + $0x4] sm:$0xf]
      %v248 = vld [vmem:[%s1 + $0x8] sm:$0xf]
      %v249 = vld [vmem:[%s1 + $0xc] sm:$0xf]
      %v258 = vunpack.c.l.b16 %v238
      %v259 = vunpack.c.l.b16 %v239
      %v260 = vunpack.c.l.b16 %v240
      %v261 = vunpack.c.l.b16 %v241
      %v262 = vunpack.c.l.b16 %v242
      %v263 = vunpack.c.l.b16 %v243
      %v264 = vunpack.c.l.b16 %v244
      %v265 = vunpack.c.l.b16 %v245
      %v266 = vpack.c.b16 %v259, %v258
      %v267 = vpack.c.b16 %v261, %v260
      %v268 = vpack.c.b16 %v263, %v262
      %v269 = vpack.c.b16 %v265, %v264
      %v274 = vunpack.c.l.b16 %v246
      %v275 = vunpack.c.l.b16 %v247
      %v276 = vunpack.c.l.b16 %v248
      %v277 = vunpack.c.l.b16 %v249
      %v278 = vpack.c.b16 %v275, %v274
      %v279 = vpack.c.b16 %v277, %v276
      %vm282 = vcmask 261120
      %v284 = vsel %vm282, %v266, 0
      %v287 = vsel %vm282, %v267, 0
      %v290 = vsel %vm282, %v268, 0
      %v293 = vsel %vm282, %v269, 0
      %295 = vmatprep.subr.bf16.mxu0 0
      %296 = vmatpush1.bf16.msra.mxu0 %v278
      %297 = vmatprep.subr.bf16.mxu0 0
      %298 = vmatpush1.bf16.msra.mxu0 %v279
      %299 = vmatprep.subr.bf16.mxu0 0
      %300 = vmatpush1.bf16.msra.mxu0 0
      %301 = vmatprep.subr.bf16.mxu0 0
      %302 = vmatpush1.bf16.msra.mxu0 0
      %303 = vmatprep.subr.bf16.mxu0 0
      %304 = vmatpush1.bf16.msra.mxu0 0
      %305 = vmatprep.subr.bf16.mxu0 0
      %306 = vmatpush1.bf16.msra.mxu0 0
      %307 = vmatprep.subr.bf16.mxu0 0
      %308 = vmatpush1.bf16.msra.mxu0 0
      %309 = vmatprep.subr.bf16.mxu0 0
      %310 = vmatpush1.bf16.msra.mxu0 0
      %311 = vmatprep.subr.bf16.mxu0 0
      %312 = vmatpush1.bf16.msra.mxu0 0
      %313 = vmatprep.subr.bf16.mxu0 0
      %314 = vmatpush1.bf16.msra.mxu0 0
      %315 = vmatprep.subr.bf16.mxu0 0
      %316 = vmatpush1.bf16.msra.mxu0 0
      %317 = vmatprep.subr.bf16.mxu0 0
      %318 = vmatpush1.bf16.msra.mxu0 0
      %319 = vmatprep.subr.bf16.mxu0 0
      %320 = vmatpush1.bf16.msra.mxu0 0
      %321 = vmatprep.subr.bf16.mxu0 0
      %322 = vmatpush1.bf16.msra.mxu0 0
      %323 = vmatprep.subr.bf16.mxu0 0
      %324 = vmatpush1.bf16.msra.mxu0 0
      %325 = vmatprep.subr.bf16.mxu0 0
      %326 = vmatpush1.bf16.msra.mxu0 0
      %327 = vmatprep.mubr.bf16.mxu0 0
      %328 = vmatmul.mubr.bf16.gmra.mrb[0].mxu0 %v284
      %v329 = vpop.f32.mrb[0].mxu0
      %v330 = vadd.f32 0.0, %v329
      %v331 = vpop.f32.mrb[0].mxu0
      %v332 = vpop.f32.mrb[0].mxu0
      %v333 = vadd.f32 0.0, %v332
      %v334 = vpop.f32.mrb[0].mxu0
      %335 = vmatprep.mubr.bf16.mxu0 0
      %336 = vmatmul.mubr.bf16.gmra.mrb[0].mxu0 %v287
      %v337 = vpop.f32.mrb[0].mxu0
      %v338 = vadd.f32 0.0, %v337
      %v339 = vpop.f32.mrb[0].mxu0
      %v340 = vpop.f32.mrb[0].mxu0
      %v341 = vadd.f32 0.0, %v340
      %v342 = vpop.f32.mrb[0].mxu0
      %343 = vmatprep.mubr.bf16.mxu0 0
      %344 = vmatmul.mubr.bf16.gmra.mrb[0].mxu0 %v290
      %v345 = vpop.f32.mrb[0].mxu0
      %v346 = vadd.f32 0.0, %v345
      %v347 = vpop.f32.mrb[0].mxu0
      %v348 = vpop.f32.mrb[0].mxu0
      %v349 = vadd.f32 0.0, %v348
      %v350 = vpop.f32.mrb[0].mxu0
      %351 = vmatprep.mubr.bf16.mxu0 0
      %352 = vmatmul.mubr.bf16.gmra.mrb[0].mxu0 %v293
      %v353 = vpop.f32.mrb[0].mxu0
      %v354 = vadd.f32 0.0, %v353
      %v355 = vpop.f32.mrb[0].mxu0
      %v356 = vpop.f32.mrb[0].mxu0
      %v357 = vadd.f32 0.0, %v356
      %v358 = vpop.f32.mrb[0].mxu0
      %359 = vdwg.mxu0
      %v360 = vld [vmem:[%s2] sm:$0x1]
      %v362 = vlaneseq
      %v363 = vshrl.u32 %v362, 7
      %v364 = vsub.s32 0, %v363
      %v365 = vrot.slane %v360, %v364
      %v367 = vmul.f32 %v330, %v365
      %v368 = vmul.f32 %v333, %v365
      %v369 = vmul.f32 %v338, %v365
      %v370 = vmul.f32 %v341, %v365
      %v371 = vmul.f32 %v346, %v365
      %v372 = vmul.f32 %v349, %v365
      %v373 = vmul.f32 %v354, %v365
      %v374 = vmul.f32 %v357, %v365
      %v375 = vld [vmem:[%s3] sm:$0x1]
      %v377 = vlaneseq
      %v378 = vshrl.u32 %v377, 7
      %v379 = vsub.s32 0, %v378
      %v380 = vrot.slane %v375, %v379
      %v382 = vadd.f32 %v367, %v380
      %v383 = vadd.f32 %v368, %v380
      %v384 = vadd.f32 %v369, %v380
      %v385 = vadd.f32 %v370, %v380
      %v386 = vadd.f32 %v371, %v380
      %v387 = vadd.f32 %v372, %v380
      %v388 = vadd.f32 %v373, %v380
      %v389 = vadd.f32 %v374, %v380
      %v390 = vsub.f32 0.0, %v382
      %v391 = vsub.f32 0.0, %v383
      %v392 = vsub.f32 0.0, %v384
      %v393 = vsub.f32 0.0, %v385
      %v394 = vsub.f32 0.0, %v386
      %v395 = vsub.f32 0.0, %v387
      %v396 = vsub.f32 0.0, %v388
      %v397 = vsub.f32 0.0, %v389
      %v398 = vmul.f32 %v390, 1.442695
      %v399 = vpow.pop %v398
      %v400 = vmul.f32 %v391, 1.442695
      %v401 = vpow.pop %v400
      %v402 = vmul.f32 %v392, 1.442695
      %v403 = vpow.pop %v402
      %v404 = vmul.f32 %v393, 1.442695
      %v405 = vpow.pop %v404
      %v406 = vmul.f32 %v394, 1.442695
      %v407 = vpow.pop %v406
      %v408 = vmul.f32 %v395, 1.442695
      %v409 = vpow.pop %v408
      %v410 = vmul.f32 %v396, 1.442695
      %v411 = vpow.pop %v410
      %v412 = vmul.f32 %v397, 1.442695
      %v413 = vpow.pop %v412
      %v414 = vadd.f32 %v399, 1.0
      %v415 = vadd.f32 %v401, 1.0
      %v416 = vadd.f32 %v403, 1.0
      %v417 = vadd.f32 %v405, 1.0
      %v418 = vadd.f32 %v407, 1.0
      %v419 = vadd.f32 %v409, 1.0
      %v420 = vadd.f32 %v411, 1.0
      %v421 = vadd.f32 %v413, 1.0
      %v422 = vrcp.pop %v414
      %v423 = vrcp.pop %v415
      %v424 = vrcp.pop %v416
      %v425 = vrcp.pop %v417
      %v426 = vrcp.pop %v418
      %v427 = vrcp.pop %v419
      %v428 = vrcp.pop %v420
      %v429 = vrcp.pop %v421
      %v430 = vmul.f32 %v382, %v422
      %v431 = vmul.f32 %v383, %v423
      %v432 = vmul.f32 %v384, %v424
      %v433 = vmul.f32 %v385, %v425
      %v434 = vmul.f32 %v386, %v426
      %v435 = vmul.f32 %v387, %v427
      %v436 = vmul.f32 %v388, %v428
      %v437 = vmul.f32 %v389, %v429
      %v438 = vpack.c.bf16 %v431, %v430
      %v439 = vpack.c.bf16 %v433, %v432
      %v440 = vpack.c.bf16 %v435, %v434
      %v441 = vpack.c.bf16 %v437, %v436
      %v446 = vunpack.c.l.b16 %v438
      %v447 = vunpack.c.h.b16 %v438
      %v448 = vunpack.c.l.b16 %v439
      %v449 = vunpack.c.h.b16 %v439
      %v450 = vunpack.c.l.b16 %v440
      %v451 = vunpack.c.h.b16 %v440
      %v452 = vunpack.c.l.b16 %v441
      %v453 = vunpack.c.h.b16 %v441
      %v454 = vpack.c.b16 %v446, %v446
      %v455 = vpack.c.b16 %v447, %v447
      %v456 = vpack.c.b16 %v448, %v448
      %v457 = vpack.c.b16 %v449, %v449
      %v458 = vpack.c.b16 %v450, %v450
      %v459 = vpack.c.b16 %v451, %v451
      %v460 = vpack.c.b16 %v452, %v452
      %v461 = vpack.c.b16 %v453, %v453
      %470 = vst [vmem:[%s235] sm:$0xf] %v454
      %471 = vst [vmem:[%s235 + $0x4] sm:$0xf] %v455
      %472 = vst [vmem:[%s235 + $0x8] sm:$0xf] %v456
      %473 = vst [vmem:[%s235 + $0xc] sm:$0xf] %v457
      %474 = vst [vmem:[%s235 + $0x10] sm:$0xf] %v458
      %475 = vst [vmem:[%s235 + $0x14] sm:$0xf] %v459
      %476 = vst [vmem:[%s235 + $0x18] sm:$0xf] %v460
      %477 = vst [vmem:[%s235 + $0x1c] sm:$0xf] %v461
      %s478 = smul.u32 8, %s20
      %p479 = scmp.lt.s32.totalorder %s19, 1
      %s480 = scalar_select %p479, %s19, 1
      %p481 = scmp.lt.s32.totalorder %s478, 7
      %s482 = scalar_select %p481, %s478, 7
      %s483 = smul.addr %s480, 8
      %s484 = sadd.s32 %s482, %s483
      %s485 = smul.addr %s484, 4
      %s486 = scalar_lea.vmem %s4, %s485
      // Predicated region
      $region37: #{custom_efficientnet_forward.9} parent=35 // pred_check
        %p487 = pneg %p138
      $region38: #{custom_efficientnet_forward.9} parent=35 // pred_check_branch
        %489 = sbr.rel (%p487) target = $region40
      $region39: #{custom_efficientnet_forward.9} parent=35 // pred_region
        %s490 = smul.u32 8, %s20
      $region40: #{custom_efficientnet_forward.9} parent=35 // pred_fallthru
        _
    $region36: #{custom_efficientnet_forward.9} parent=5 // pred_fallthru
      _
    %p491 = scmp.le.s32.totalorder 2, %s10
    // Predicated region
    $region41: #{custom_efficientnet_forward.9} parent=5 // pred_check
      %p492 = pneg %p491
    $region42: #{custom_efficientnet_forward.9} parent=5 // pred_check_branch
      %494 = sbr.rel (%p492) target = $region44
    $region43: #{custom_efficientnet_forward.9} parent=5 // pred_region
      %s495 = ssub.s32 %s10, 2
      // Predicated region
      $region45: #{custom_efficientnet_forward.9} parent=43 // pred_check
        %p496 = pneg %p144
      $region46: #{custom_efficientnet_forward.9} parent=43 // pred_check_branch
        %498 = sbr.rel (%p496) target = $region48
      $region47: #{custom_efficientnet_forward.9} parent=43 // pred_region
        %s499 = smul.u32 8, %s22
        %p500 = scmp.lt.s32.totalorder %s21, 1
        %s501 = scalar_select %p500, %s21, 1
        %p502 = scmp.lt.s32.totalorder %s499, 7
        %s503 = scalar_select %p502, %s499, 7
        %s504 = smul.addr %s501, 8
        %s505 = sadd.s32 %s503, %s504
        %s506 = smul.addr %s505, 4
        %s507 = scalar_lea.vmem %s4, %s506
      $region48: #{custom_efficientnet_forward.9} parent=43 // pred_fallthru
        _
    $region44: #{custom_efficientnet_forward.9} parent=5 // pred_fallthru
      _
  $region6: #{custom_efficientnet_forward.9} parent=0 // loop_footer
    %s14 = sadd.s32 1, %s10
  $region7: #{custom_efficientnet_forward.9} parent=0 // loop_footer_branch
    %9 = sbr.rel target = $region3
  $region8: #{custom_efficientnet_forward.9} parent=0 // loop_exit
    _

// kernel: custom_efficientnet_forward.10
$region0: #{custom_efficientnet_forward.10}
  #allocation0 [shape = 'u32[]', space=smem, size = 0x4, offset = 0x4, fixed_abs, tag = 'smem constant byte address 0x4 - core index']
  #allocation1 [shape = 'u32[144,128]{1,0:T(1,128)}', space=vmem, size = 0x12000, scoped, tag = 'internal scratch']
  #allocation2 [shape = 'f32[10,10,128]{2,1,0:T(8,128)}', space=vmem, size = 0x14000, scoped, tag = 'scratch operand']
  %s0 = inlined_call_operand.vmem [shape: bf16[2,8,8,128], index: 0, kind: input, shape index: {}]
  %s1 = inlined_call_operand.vmem [shape: bf16[128,512], index: 1, kind: input, shape index: {}]
  %s2 = inlined_call_operand.vmem [shape: f32[1,512], index: 2, kind: input, shape index: {}]
  %s3 = inlined_call_operand.vmem [shape: f32[1,512], index: 3, kind: input, shape index: {}]
  %s4 = inlined_call_operand.vmem [shape: f32[9,512], index: 4, kind: input, shape index: {}]
  %s5 = inlined_call_operand.vmem [shape: f32[1,512], index: 5, kind: input, shape index: {}]
  %s6 = inlined_call_operand.vmem [shape: f32[1,512], index: 6, kind: input, shape index: {}]
  %s7 = inlined_call_operand.vmem [shape: bf16[2,8,8,512], index: 7, kind: output, shape index: {0}]
  %s8 = inlined_call_operand.vmem [shape: f32[2,1,512], index: 8, kind: output, shape index: {1}]
  %9 = xla_tuple %s7, %s8
  %s10 = sld [smem:[#allocation0]]
  $region185: #{custom_efficientnet_forward.10} parent=0
    _
  %s12 = ssub.s32 1, %s10
  %s13 = scalar_select 0, %s12, %s10
  $region1: #{custom_efficientnet_forward.10} parent=0
    #allocation3 [shape = 'u8[65536]{0}', space=vmem, size = 0x10000, scoped, tag = 'input window, operand 1']
    #allocation4 [shape = 'u8[16384]{0}', space=vmem, size = 0x4000, scoped, tag = 'input window, operand 4']
    #allocation5 [shape = 'u8[32768]{0}', space=vmem, size = 0x8000, scoped, tag = 'output window, operand 0']
    loop: start=0, step=1, limit=10
    $region2: #{custom_efficientnet_forward.10} parent=1 // loop_pre_header
      _
    $region3: #{custom_efficientnet_forward.10} parent=1 // loop_header
      %s15 = sphi 0, %s19
      %p16 = scmp.ge.s32.totalorder %s15, 10
      %s22 = sphi 0, %s34
      %s23 = sphi 0, %s30
      %s24 = sphi 0, %s22
      %s25 = sphi 0, %s23
      %s26 = sphi 0, %s24
      %s27 = sphi 0, %s25
      %s37 = sphi 0, %s39
      %s40 = sphi 0, %s37
      %s41 = sphi 0, %s40
      %s57 = sphi 0, %s41
      %s63 = sphi 0, %s65
      %s66 = sphi 0, %s63
      %s67 = sphi 0, %s66
      %s83 = sphi 0, %s67
      %s89 = sphi 0, %s91
      %s92 = sphi 0, %s89
      %s93 = sphi 0, %s92
      %s109 = sphi 0, %s93
      %s115 = sphi 0, %s117
      %s118 = sphi 0, %s115
      %s119 = sphi 0, %s118
      %s135 = sphi 0, %s119
      %s141 = sphi 0, %s143
      %s144 = sphi 0, %s141
      %s145 = sphi 0, %s144
      %s161 = sphi 0, %s145
      %s167 = sphi 0, %s169
      %s170 = sphi 0, %s167
      %s171 = sphi 0, %s170
      %s187 = sphi 0, %s171
      %s193 = sphi 0, %s195
      %s196 = sphi 0, %s193
      %s197 = sphi 0, %s196
      %s213 = sphi 0, %s197
      %s221 = sphi 0, %s223
      %s224 = sphi 0, %s221
      %s225 = sphi 0, %s224
      %s241 = sphi 0, %s225
      %s249 = sphi 0, %s251
      %s252 = sphi 0, %s249
      %s253 = sphi 0, %s252
      %s269 = sphi 0, %s253
    $region4: #{custom_efficientnet_forward.10} parent=1 // loop_header_branch
      %18 = sbr.rel (%p16) target = $region8
    $region5: #{custom_efficientnet_forward.10} parent=1 // loop_body
      %s20 = ssub.s32 %s15, 1
      %s21 = ssub.s32 %s15, 2
      %s28 = sadd.s32 1, %s23
      %p29 = scmp.ge.s32.totalorder %s28, 4
      %s30 = scalar_select %p29, 0, %s28
      %s31 = sadd.s32 1, %s22
      %s32 = scalar_select %p29, %s31, %s22
      %p33 = scmp.ge.s32.totalorder %s32, 2
      %s34 = scalar_select %p33, 0, %s32
      %s35 = ssub.s32 %s22, %s34
      %p36 = scmp.eq.s32.totalorder %s35, 0
      %s38 = sadd.s32 %s37, 1
      %s39 = scalar_select %p36, %s37, %s38
      %p42 = pneg %p36
      %p43 = scmp.eq.s32.totalorder %s15, 7
      %p44 = por %p42, %p43
      %p45 = scmp.ne.s32.totalorder %s37, %s40
      %p46 = scmp.eq.s32.totalorder %s15, 0
      %p47 = por %p45, %p46
      %p48 = scmp.ne.s32.totalorder %s37, %s40
      %p49 = scmp.eq.s32.totalorder %s20, 7
      %p50 = por %p48, %p49
      %p51 = scmp.ne.s32.totalorder %s40, %s41
      %p52 = scmp.eq.s32.totalorder %s20, 0
      %p53 = por %p51, %p52
      %p54 = scmp.ne.s32.totalorder %s40, %s41
      %p55 = scmp.eq.s32.totalorder %s21, 7
      %p56 = por %p54, %p55
      %p58 = scmp.ne.s32.totalorder %s41, %s57
      %p59 = scmp.eq.s32.totalorder %s21, 0
      %p60 = por %p58, %p59
      %s61 = ssub.s32 %s23, %s30
      %p62 = scmp.eq.s32.totalorder %s61, 0
      %s64 = sadd.s32 %s63, 1
      %s65 = scalar_select %p62, %s63, %s64
      %p68 = pneg %p62
      %p69 = scmp.eq.s32.totalorder %s15, 7
      %p70 = por %p68, %p69
      %p71 = scmp.ne.s32.totalorder %s63, %s66
      %p72 = scmp.eq.s32.totalorder %s15, 0
      %p73 = por %p71, %p72
      %p74 = scmp.ne.s32.totalorder %s63, %s66
      %p75 = scmp.eq.s32.totalorder %s20, 7
      %p76 = por %p74, %p75
      %p77 = scmp.ne.s32.totalorder %s66, %s67
      %p78 = scmp.eq.s32.totalorder %s20, 0
      %p79 = por %p77, %p78
      %p80 = scmp.ne.s32.totalorder %s66, %s67
      %p81 = scmp.eq.s32.totalorder %s21, 7
      %p82 = por %p80, %p81
      %p84 = scmp.ne.s32.totalorder %s67, %s83
      %p85 = scmp.eq.s32.totalorder %s21, 0
      %p86 = por %p84, %p85
      %s87 = ssub.s32 %s23, %s30
      %p88 = scmp.eq.s32.totalorder %s87, 0
      %s90 = sadd.s32 %s89, 1
      %s91 = scalar_select %p88, %s89, %s90
      %p94 = pneg %p88
      %p95 = scmp.eq.s32.totalorder %s15, 7
      %p96 = por %p94, %p95
      %p97 = scmp.ne.s32.totalorder %s89, %s92
      %p98 = scmp.eq.s32.totalorder %s15, 0
      %p99 = por %p97, %p98
      %p100 = scmp.ne.s32.totalorder %s89, %s92
      %p101 = scmp.eq.s32.totalorder %s20, 7
      %p102 = por %p100, %p101
      %p103 = scmp.ne.s32.totalorder %s92, %s93
      %p104 = scmp.eq.s32.totalorder %s20, 0
      %p105 = por %p103, %p104
      %p106 = scmp.ne.s32.totalorder %s92, %s93
      %p107 = scmp.eq.s32.totalorder %s21, 7
      %p108 = por %p106, %p107
      %p110 = scmp.ne.s32.totalorder %s93, %s109
      %p111 = scmp.eq.s32.totalorder %s21, 0
      %p112 = por %p110, %p111
      %s113 = ssub.s32 %s23, %s30
      %p114 = scmp.eq.s32.totalorder %s113, 0
      %s116 = sadd.s32 %s115, 1
      %s117 = scalar_select %p114, %s115, %s116
      %p120 = pneg %p114
      %p121 = scmp.eq.s32.totalorder %s15, 7
      %p122 = por %p120, %p121
      %p123 = scmp.ne.s32.totalorder %s115, %s118
      %p124 = scmp.eq.s32.totalorder %s15, 0
      %p125 = por %p123, %p124
      %p126 = scmp.ne.s32.totalorder %s115, %s118
      %p127 = scmp.eq.s32.totalorder %s20, 7
      %p128 = por %p126, %p127
      %p129 = scmp.ne.s32.totalorder %s118, %s119
      %p130 = scmp.eq.s32.totalorder %s20, 0
      %p131 = por %p129, %p130
      %p132 = scmp.ne.s32.totalorder %s118, %s119
      %p133 = scmp.eq.s32.totalorder %s21, 7
      %p134 = por %p132, %p133
      %p136 = scmp.ne.s32.totalorder %s119, %s135
      %p137 = scmp.eq.s32.totalorder %s21, 0
      %p138 = por %p136, %p137
      %s139 = ssub.s32 %s23, %s30
      %p140 = scmp.eq.s32.totalorder %s139, 0
      %s142 = sadd.s32 %s141, 1
      %s143 = scalar_select %p140, %s141, %s142
      %p146 = pneg %p140
      %p147 = scmp.eq.s32.totalorder %s15, 7
      %p148 = por %p146, %p147
      %p149 = scmp.ne.s32.totalorder %s141, %s144
      %p150 = scmp.eq.s32.totalorder %s15, 0
      %p151 = por %p149, %p150
      %p152 = scmp.ne.s32.totalorder %s141, %s144
      %p153 = scmp.eq.s32.totalorder %s20, 7
      %p154 = por %p152, %p153
      %p155 = scmp.ne.s32.totalorder %s144, %s145
      %p156 = scmp.eq.s32.totalorder %s20, 0
      %p157 = por %p155, %p156
      %p158 = scmp.ne.s32.totalorder %s144, %s145
      %p159 = scmp.eq.s32.totalorder %s21, 7
      %p160 = por %p158, %p159
      %p162 = scmp.ne.s32.totalorder %s145, %s161
      %p163 = scmp.eq.s32.totalorder %s21, 0
      %p164 = por %p162, %p163
      %s165 = ssub.s32 %s23, %s30
      %p166 = scmp.eq.s32.totalorder %s165, 0
      %s168 = sadd.s32 %s167, 1
      %s169 = scalar_select %p166, %s167, %s168
      %p172 = pneg %p166
      %p173 = scmp.eq.s32.totalorder %s15, 7
      %p174 = por %p172, %p173
      %p175 = scmp.ne.s32.totalorder %s167, %s170
      %p176 = scmp.eq.s32.totalorder %s15, 0
      %p177 = por %p175, %p176
      %p178 = scmp.ne.s32.totalorder %s167, %s170
      %p179 = scmp.eq.s32.totalorder %s20, 7
      %p180 = por %p178, %p179
      %p181 = scmp.ne.s32.totalorder %s170, %s171
      %p182 = scmp.eq.s32.totalorder %s20, 0
      %p183 = por %p181, %p182
      %p184 = scmp.ne.s32.totalorder %s170, %s171
      %p185 = scmp.eq.s32.totalorder %s21, 7
      %p186 = por %p184, %p185
      %p188 = scmp.ne.s32.totalorder %s171, %s187
      %p189 = scmp.eq.s32.totalorder %s21, 0
      %p190 = por %p188, %p189
      %s191 = ssub.s32 %s23, %s30
      %p192 = scmp.eq.s32.totalorder %s191, 0
      %s194 = sadd.s32 %s193, 1
      %s195 = scalar_select %p192, %s193, %s194
      %p198 = pneg %p192
      %p199 = scmp.eq.s32.totalorder %s15, 7
      %p200 = por %p198, %p199
      %p201 = scmp.ne.s32.totalorder %s193, %s196
      %p202 = scmp.eq.s32.totalorder %s15, 0
      %p203 = por %p201, %p202
      %p204 = scmp.ne.s32.totalorder %s193, %s196
      %p205 = scmp.eq.s32.totalorder %s20, 7
      %p206 = por %p204, %p205
      %p207 = scmp.ne.s32.totalorder %s196, %s197
      %p208 = scmp.eq.s32.totalorder %s20, 0
      %p209 = por %p207, %p208
      %p210 = scmp.ne.s32.totalorder %s196, %s197
      %p211 = scmp.eq.s32.totalorder %s21, 7
      %p212 = por %p210, %p211
      %p214 = scmp.ne.s32.totalorder %s197, %s213
      %p215 = scmp.eq.s32.totalorder %s21, 0
      %p216 = por %p214, %p215
      %s217 = ssub.s32 %s22, %s34
      %s218 = ssub.s32 %s23, %s30
      %s219 = sor.u32 %s217, %s218
      %p220 = scmp.eq.s32.totalorder %s219, 0
      %s222 = sadd.s32 %s221, 1
      %s223 = scalar_select %p220, %s221, %s222
      %p226 = pneg %p220
      %p227 = scmp.eq.s32.totalorder %s15, 7
      %p228 = por %p226, %p227
      %p229 = scmp.ne.s32.totalorder %s221, %s224
      %p230 = scmp.eq.s32.totalorder %s15, 0
      %p231 = por %p229, %p230
      %p232 = scmp.ne.s32.totalorder %s221, %s224
      %p233 = scmp.eq.s32.totalorder %s20, 7
      %p234 = por %p232, %p233
      %p235 = scmp.ne.s32.totalorder %s224, %s225
      %p236 = scmp.eq.s32.totalorder %s20, 0
      %p237 = por %p235, %p236
      %p238 = scmp.ne.s32.totalorder %s224, %s225
      %p239 = scmp.eq.s32.totalorder %s21, 7
      %p240 = por %p238, %p239
      %p242 = scmp.ne.s32.totalorder %s225, %s241
      %p243 = scmp.eq.s32.totalorder %s21, 0
      %p244 = por %p242, %p243
      %s245 = ssub.s32 %s22, %s34
      %s246 = ssub.s32 %s23, %s30
      %s247 = sor.u32 %s245, %s246
      %p248 = scmp.eq.s32.totalorder %s247, 0
      %s250 = sadd.s32 %s249, 1
      %s251 = scalar_select %p248, %s249, %s250
      %p254 = pneg %p248
      %p255 = scmp.eq.s32.totalorder %s15, 7
      %p256 = por %p254, %p255
      %p257 = scmp.ne.s32.totalorder %s249, %s252
      %p258 = scmp.eq.s32.totalorder %s15, 0
      %p259 = por %p257, %p258
      %p260 = scmp.ne.s32.totalorder %s249, %s252
      %p261 = scmp.eq.s32.totalorder %s20, 7
      %p262 = por %p260, %p261
      %p263 = scmp.ne.s32.totalorder %s252, %s253
      %p264 = scmp.eq.s32.totalorder %s20, 0
      %p265 = por %p263, %p264
      %p266 = scmp.ne.s32.totalorder %s252, %s253
      %p267 = scmp.eq.s32.totalorder %s21, 7
      %p268 = por %p266, %p267
      %p270 = scmp.ne.s32.totalorder %s253, %s269
      %p271 = scmp.eq.s32.totalorder %s21, 0
      %p272 = por %p270, %p271
      %p273 = scmp.le.s32.totalorder 1, %s15
      %p274 = scmp.lt.s32.totalorder %s15, 9
      %p275 = pnand %p273, %p274
      %p276 = pneg %p275
      // Predicated region
      $region9: #{custom_efficientnet_forward.10} parent=5 // pred_check
        _
      $region10: #{custom_efficientnet_forward.10} parent=5 // pred_check_branch
        %278 = sbr.rel (%p275) target = $region12
      $region11: #{custom_efficientnet_forward.10} parent=5 // pred_region
        %s279 = ssub.s32 %s15, 1
      $region12: #{custom_efficientnet_forward.10} parent=5 // pred_fallthru
        _
      %p280 = scmp.lt.s32.totalorder %s15, 8
      // Predicated region
      $region13: #{custom_efficientnet_forward.10} parent=5 // pred_check
        %p281 = pneg %p280
      $region14: #{custom_efficientnet_forward.10} parent=5 // pred_check_branch
        %283 = sbr.rel (%p281) target = $region16
      $region15: #{custom_efficientnet_forward.10} parent=5 // pred_region
        // Predicated region
        $region17: #{custom_efficientnet_forward.10} parent=15 // pred_check
          %p284 = pneg %p47
        $region18: #{custom_efficientnet_forward.10} parent=15 // pred_check_branch
          %286 = sbr.rel (%p284) target = $region20
        $region19: #{custom_efficientnet_forward.10} parent=15 // pred_region
          %p287 = scmp.lt.s32.totalorder %s22, 1
          %s288 = scalar_select %p287, %s22, 1
          %s289 = smul.addr %s288, 8
          %s290 = smul.addr %s289, 4
          %s291 = scalar_lea.vmem %s0, %s290
        $region20: #{custom_efficientnet_forward.10} parent=15 // pred_fallthru
          _
        // Predicated region
        $region21: #{custom_efficientnet_forward.10} parent=15 // pred_check
          %p292 = pneg %p73
        $region22: #{custom_efficientnet_forward.10} parent=15 // pred_check_branch
          %294 = sbr.rel (%p292) target = $region24
        $region23: #{custom_efficientnet_forward.10} parent=15 // pred_region
          %s295 = sand.u32 %s63, 1
          %s296 = sand.u32 %s63, 1
          %s297 = smul.addr %s296, 64
          %s298 = scalar_lea.vmem [#allocation3], %s297
          %s299 = smul.addr %s23, 4
          %s300 = scalar_lea.vmem %s1, %s299
          // Predicated region
          $region25: #{custom_efficientnet_forward.10} parent=23 // pred_check
            _
          $region26: #{custom_efficientnet_forward.10} parent=23 // pred_check_branch
            %302 = sbr.rel (0) target = $region28
          $region27: #{custom_efficientnet_forward.10} parent=23 // pred_region
            // Predicated region
            $region29: #{custom_efficientnet_forward.10} parent=27 // pred_check
              _
            $region30: #{custom_efficientnet_forward.10} parent=27 // pred_check_branch
              %304 = sbr.rel target = $region32
            $region31: #{custom_efficientnet_forward.10} parent=27 // pred_region
              // Predicated region
              $region44: #{custom_efficientnet_forward.10} parent=31 // pred_check
                _
              $region45: #{custom_efficientnet_forward.10} parent=31 // pred_check_branch
                %349 = sbr.rel (0) target = $region47
              $region46: #{custom_efficientnet_forward.10} parent=31 // pred_region
                loop: start=0, step=1, limit=1
                $region48: #{custom_efficientnet_forward.10} parent=46 // loop_pre_header
                  _
                $region49: #{custom_efficientnet_forward.10} parent=46 // loop_header
                  %s351 = sphi 0, %s355
                  %p352 = scmp.ge.s32.totalorder %s351, 1
                  %s356 = sphi %s300, %s300
                  %s357 = sphi %s298, %s298
                $region50: #{custom_efficientnet_forward.10} parent=46 // loop_header_branch
                  %354 = sbr.rel (%p352) target = $region54
                $region51: #{custom_efficientnet_forward.10} parent=46 // loop_body
                  _
                $region52: #{custom_efficientnet_forward.10} parent=46 // loop_footer
                  %s355 = sadd.s32 1, %s351
                $region53: #{custom_efficientnet_forward.10} parent=46 // loop_footer_branch
                  %350 = sbr.rel target = $region49
                $region54: #{custom_efficientnet_forward.10} parent=46 // loop_exit
                  _
                loop: start=0, step=1, limit=1
                $region55: #{custom_efficientnet_forward.10} parent=46 // loop_pre_header
                  _
                $region56: #{custom_efficientnet_forward.10} parent=46 // loop_header
                  %s360 = sphi 0, %s364
                  %p361 = scmp.ge.s32.totalorder %s360, 1
                  %s365 = sphi %s300, %s300
                  %s366 = sphi %s298, %s298
                $region57: #{custom_efficientnet_forward.10} parent=46 // loop_header_branch
                  %363 = sbr.rel (%p361) target = $region61
                $region58: #{custom_efficientnet_forward.10} parent=46 // loop_body
                  %v367 = vld [vmem:[%s365] sm:$0xf]
                  %368 = vst [vmem:[%s366] sm:$0xf] %v367
                  %v369 = vld [vmem:[%s365 + $0x10] sm:$0xf]
                  %370 = vst [vmem:[%s366 + $0x4] sm:$0xf] %v369
                  %v371 = vld [vmem:[%s365 + $0x20] sm:$0xf]
                  %372 = vst [vmem:[%s366 + $0x8] sm:$0xf] %v371
                  %v373 = vld [vmem:[%s365 + $0x30] sm:$0xf]
                  %374 = vst [vmem:[%s366 + $0xc] sm:$0xf] %v373
                  %v375 = vld [vmem:[%s365 + $0x40] sm:$0xf]
                  %376 = vst [vmem:[%s366 + $0x10] sm:$0xf] %v375
                  %v377 = vld [vmem:[%s365 + $0x50] sm:$0xf]
                  %378 = vst [vmem:[%s366 + $0x14] sm:$0xf] %v377
                  %v379 = vld [vmem:[%s365 + $0x60] sm:$0xf]
                  %380 = vst [vmem:[%s366 + $0x18] sm:$0xf] %v379
                  %v381 = vld [vmem:[%s365 + $0x70] sm:$0xf]
                  %382 = vst [vmem:[%s366 + $0x1c] sm:$0xf] %v381
                  %v383 = vld [vmem:[%s365 + $0x80] sm:$0xf]
                  %384 = vst [vmem:[%s366 + $0x20] sm:$0xf] %v383
                  %v385 = vld [vmem:[%s365 + $0x90] sm:$0xf]
                  %386 = vst [vmem:[%s366 + $0x24] sm:$0xf] %v385
                  %v387 = vld [vmem:[%s365 + $0xa0] sm:$0xf]
                  %388 = vst [vmem:[%s366 + $0x28] sm:$0xf] %v387
                  %v389 = vld [vmem:[%s365 + $0xb0] sm:$0xf]
                  %390 = vst [vmem:[%s366 + $0x2c] sm:$0xf] %v389
                  %v391 = vld [vmem:[%s365 + $0xc0] sm:$0xf]
                  %392 = vst [vmem:[%s366 + $0x30] sm:$0xf] %v391
                  %v393 = vld [vmem:[%s365 + $0xd0] sm:$0xf]
                  %394 = vst [vmem:[%s366 + $0x34] sm:$0xf] %v393
                  %v395 = vld [vmem:[%s365 + $0xe0] sm:$0xf]
                  %396 = vst [vmem:[%s366 + $0x38] sm:$0xf] %v395
                  %v397 = vld [vmem:[%s365 + $0xf0] sm:$0xf]
                  %398 = vst [vmem:[%s366 + $0x3c] sm:$0xf] %v397
                $region59: #{custom_efficientnet_forward.10} parent=46 // loop_footer
                  %s364 = sadd.s32 1, %s360
                $region60: #{custom_efficientnet_forward.10} parent=46 // loop_footer_branch
                  %359 = sbr.rel target = $region56
                $region61: #{custom_efficientnet_forward.10} parent=46 // loop_exit
                  _
              $region47: #{custom_efficientnet_forward.10} parent=31 // pred_fallthru
                _
            $region32: #{custom_efficientnet_forward.10} parent=27 // pred_fallthru
              _
            // Predicated region
            $region33: #{custom_efficientnet_forward.10} parent=27 // pred_check
              _
            $region34: #{custom_efficientnet_forward.10} parent=27 // pred_check_branch
              %306 = sbr.rel (0) target = $region36
            $region35: #{custom_efficientnet_forward.10} parent=27 // pred_region
              loop: start=0, step=1, limit=1
              $region37: #{custom_efficientnet_forward.10} parent=35 // loop_pre_header
                _
              $region38: #{custom_efficientnet_forward.10} parent=35 // loop_header
                %s309 = sphi 0, %s313
                %p310 = scmp.ge.s32.totalorder %s309, 1
                %s314 = sphi %s300, %s300
                %s315 = sphi %s298, %s298
              $region39: #{custom_efficientnet_forward.10} parent=35 // loop_header_branch
                %312 = sbr.rel (%p310) target = $region43
              $region40: #{custom_efficientnet_forward.10} parent=35 // loop_body
                %v316 = vld [vmem:[%s314] sm:$0xf]
                %317 = vst [vmem:[%s315] sm:$0xf] %v316
                %v318 = vld [vmem:[%s314 + $0x10] sm:$0xf]
                %319 = vst [vmem:[%s315 + $0x4] sm:$0xf] %v318
                %v320 = vld [vmem:[%s314 + $0x20] sm:$0xf]
                %321 = vst [vmem:[%s315 + $0x8] sm:$0xf] %v320
                %v322 = vld [vmem:[%s314 + $0x30] sm:$0xf]
                %323 = vst [vmem:[%s315 + $0xc] sm:$0xf] %v322
                %v324 = vld [vmem:[%s314 + $0x40] sm:$0xf]
                %325 = vst [vmem:[%s315 + $0x10] sm:$0xf] %v324
                %v326 = vld [vmem:[%s314 + $0x50] sm:$0xf]
                %327 = vst [vmem:[%s315 + $0x14] sm:$0xf] %v326
                %v328 = vld [vmem:[%s314 + $0x60] sm:$0xf]
                %329 = vst [vmem:[%s315 + $0x18] sm:$0xf] %v328
                %v330 = vld [vmem:[%s314 + $0x70] sm:$0xf]
                %331 = vst [vmem:[%s315 + $0x1c] sm:$0xf] %v330
                %v332 = vld [vmem:[%s314 + $0x80] sm:$0xf]
                %333 = vst [vmem:[%s315 + $0x20] sm:$0xf] %v332
                %v334 = vld [vmem:[%s314 + $0x90] sm:$0xf]
                %335 = vst [vmem:[%s315 + $0x24] sm:$0xf] %v334
                %v336 = vld [vmem:[%s314 + $0xa0] sm:$0xf]
                %337 = vst [vmem:[%s315 + $0x28] sm:$0xf] %v336
                %v338 = vld [vmem:[%s314 + $0xb0] sm:$0xf]
                %339 = vst [vmem:[%s315 + $0x2c] sm:$0xf] %v338
                %v340 = vld [vmem:[%s314 + $0xc0] sm:$0xf]
                %341 = vst [vmem:[%s315 + $0x30] sm:$0xf] %v340
                %v342 = vld [vmem:[%s314 + $0xd0] sm:$0xf]
                %343 = vst [vmem:[%s315 + $0x34] sm:$0xf] %v342
                %v344 = vld [vmem:[%s314 + $0xe0] sm:$0xf]
                %345 = vst [vmem:[%s315 + $0x38] sm:$0xf] %v344
                %v346 = vld [vmem:[%s314 + $0xf0] sm:$0xf]
                %347 = vst [vmem:[%s315 + $0x3c] sm:$0xf] %v346
              $region41: #{custom_efficientnet_forward.10} parent=35 // loop_footer
                %s313 = sadd.s32 1, %s309
              $region42: #{custom_efficientnet_forward.10} parent=35 // loop_footer_branch
                %308 = sbr.rel target = $region38
              $region43: #{custom_efficientnet_forward.10} parent=35 // loop_exit
                _
            $region36: #{custom_efficientnet_forward.10} parent=27 // pred_fallthru
              _
          $region28: #{custom_efficientnet_forward.10} parent=23 // pred_fallthru
            _
          %399 = vnop
        $region24: #{custom_efficientnet_forward.10} parent=15 // pred_fallthru
          _
        // Predicated region
        $region62: #{custom_efficientnet_forward.10} parent=15 // pred_check
          %p400 = pneg %p99
        $region63: #{custom_efficientnet_forward.10} parent=15 // pred_check_branch
          %402 = sbr.rel (%p400) target = $region65
        $region64: #{custom_efficientnet_forward.10} parent=15 // pred_region
          %p403 = scmp.lt.s32.totalorder %s23, 3
          %s404 = scalar_select %p403, %s23, 3
          %s405 = scalar_lea.vmem %s2, %s404
        $region65: #{custom_efficientnet_forward.10} parent=15 // pred_fallthru
          _
        // Predicated region
        $region66: #{custom_efficientnet_forward.10} parent=15 // pred_check
          %p406 = pneg %p125
        $region67: #{custom_efficientnet_forward.10} parent=15 // pred_check_branch
          %408 = sbr.rel (%p406) target = $region69
        $region68: #{custom_efficientnet_forward.10} parent=15 // pred_region
          %p409 = scmp.lt.s32.totalorder %s23, 3
          %s410 = scalar_select %p409, %s23, 3
          %s411 = scalar_lea.vmem %s3, %s410
        $region69: #{custom_efficientnet_forward.10} parent=15 // pred_fallthru
          _
        // Predicated region
        $region70: #{custom_efficientnet_forward.10} parent=15 // pred_check
          %p412 = pneg %p151
        $region71: #{custom_efficientnet_forward.10} parent=15 // pred_check_branch
          %414 = sbr.rel (%p412) target = $region73
        $region72: #{custom_efficientnet_forward.10} parent=15 // pred_region
          %s415 = sand.u32 %s141, 1
          %s416 = sand.u32 %s141, 1
          %s417 = smul.addr %s416, 16
          %s418 = scalar_lea.vmem [#allocation4], %s417
          %s419 = smul.addr %s23, 8
          %s420 = scalar_lea.vmem %s4, %s419
          // Predicated region
          $region74: #{custom_efficientnet_forward.10} parent=72 // pred_check
            _
          $region75: #{custom_efficientnet_forward.10} parent=72 // pred_check_branch
            %422 = sbr.rel (0) target = $region77
          $region76: #{custom_efficientnet_forward.10} parent=72 // pred_region
            // Predicated region
            $region78: #{custom_efficientnet_forward.10} parent=76 // pred_check
              _
            $region79: #{custom_efficientnet_forward.10} parent=76 // pred_check_branch
              %424 = sbr.rel (0) target = $region81
            $region80: #{custom_efficientnet_forward.10} parent=76 // pred_region
              // Predicated region
              $region93: #{custom_efficientnet_forward.10} parent=80 // pred_check
                _
              $region94: #{custom_efficientnet_forward.10} parent=80 // pred_check_branch
                %441 = sbr.rel (0) target = $region96
              $region95: #{custom_efficientnet_forward.10} parent=80 // pred_region
                loop: start=0, step=1, limit=1
                $region97: #{custom_efficientnet_forward.10} parent=95 // loop_pre_header
                  _
                $region98: #{custom_efficientnet_forward.10} parent=95 // loop_header
                  %s443 = sphi 0, %s447
                  %p444 = scmp.ge.s32.totalorder %s443, 1
                  %s448 = sphi %s420, %s420
                  %s449 = sphi %s418, %s418
                $region99: #{custom_efficientnet_forward.10} parent=95 // loop_header_branch
                  %446 = sbr.rel (%p444) target = $region103
                $region100: #{custom_efficientnet_forward.10} parent=95 // loop_body
                  %v450 = vld [vmem:[%s448] sm:$0xff]
                  %451 = vst [vmem:[%s449] sm:$0xff] %v450
                  %v452 = vld [vmem:[%s448 + $0x20] sm:$0xff]
                  %453 = vst [vmem:[%s449 + $0x8] sm:$0xff] %v452
                $region101: #{custom_efficientnet_forward.10} parent=95 // loop_footer
                  %s447 = sadd.s32 1, %s443
                $region102: #{custom_efficientnet_forward.10} parent=95 // loop_footer_branch
                  %442 = sbr.rel target = $region98
                $region103: #{custom_efficientnet_forward.10} parent=95 // loop_exit
                  _
              $region96: #{custom_efficientnet_forward.10} parent=80 // pred_fallthru
                _
              // Predicated region
              $region104: #{custom_efficientnet_forward.10} parent=80 // pred_check
                _
              $region105: #{custom_efficientnet_forward.10} parent=80 // pred_check_branch
                %455 = sbr.rel target = $region107
              $region106: #{custom_efficientnet_forward.10} parent=80 // pred_region
                _
              $region107: #{custom_efficientnet_forward.10} parent=80 // pred_fallthru
                _
            $region81: #{custom_efficientnet_forward.10} parent=76 // pred_fallthru
              _
            // Predicated region
            $region82: #{custom_efficientnet_forward.10} parent=76 // pred_check
              _
            $region83: #{custom_efficientnet_forward.10} parent=76 // pred_check_branch
              %426 = sbr.rel target = $region85
            $region84: #{custom_efficientnet_forward.10} parent=76 // pred_region
              loop: start=0, step=1, limit=1
              $region86: #{custom_efficientnet_forward.10} parent=84 // loop_pre_header
                _
              $region87: #{custom_efficientnet_forward.10} parent=84 // loop_header
                %s429 = sphi 0, %s433
                %p430 = scmp.ge.s32.totalorder %s429, 1
                %s434 = sphi %s420, %s420
                %s435 = sphi %s418, %s418
              $region88: #{custom_efficientnet_forward.10} parent=84 // loop_header_branch
                %432 = sbr.rel (%p430) target = $region92
              $region89: #{custom_efficientnet_forward.10} parent=84 // loop_body
                %v436 = vld [vmem:[%s434] sm:$0xff]
                %437 = vst [vmem:[%s435] sm:$0xff] %v436
                %v438 = vld [vmem:[%s434 + $0x20] sm:$0xff]
                %439 = vst [vmem:[%s435 + $0x8] sm:$0xff] %v438
              $region90: #{custom_efficientnet_forward.10} parent=84 // loop_footer
                %s433 = sadd.s32 1, %s429
              $region91: #{custom_efficientnet_forward.10} parent=84 // loop_footer_branch
                %428 = sbr.rel target = $region87
              $region92: #{custom_efficientnet_forward.10} parent=84 // loop_exit
                _
            $region85: #{custom_efficientnet_forward.10} parent=76 // pred_fallthru
              _
          $region77: #{custom_efficientnet_forward.10} parent=72 // pred_fallthru
            _
          %456 = vnop
        $region73: #{custom_efficientnet_forward.10} parent=15 // pred_fallthru
          _
        // Predicated region
        $region108: #{custom_efficientnet_forward.10} parent=15 // pred_check
          %p457 = pneg %p177
        $region109: #{custom_efficientnet_forward.10} parent=15 // pred_check_branch
          %459 = sbr.rel (%p457) target = $region111
        $region110: #{custom_efficientnet_forward.10} parent=15 // pred_region
          %p460 = scmp.lt.s32.totalorder %s23, 3
          %s461 = scalar_select %p460, %s23, 3
          %s462 = scalar_lea.vmem %s5, %s461
        $region111: #{custom_efficientnet_forward.10} parent=15 // pred_fallthru
          _
        // Predicated region
        $region112: #{custom_efficientnet_forward.10} parent=15 // pred_check
          %p463 = pneg %p203
        $region113: #{custom_efficientnet_forward.10} parent=15 // pred_check_branch
          %465 = sbr.rel (%p463) target = $region115
        $region114: #{custom_efficientnet_forward.10} parent=15 // pred_region
          %p466 = scmp.lt.s32.totalorder %s23, 3
          %s467 = scalar_select %p466, %s23, 3
          %s468 = scalar_lea.vmem %s6, %s467
        $region115: #{custom_efficientnet_forward.10} parent=15 // pred_fallthru
          _
      $region16: #{custom_efficientnet_forward.10} parent=5 // pred_fallthru
        _
      %p469 = scmp.le.s32.totalorder 1, %s15
      %p470 = scmp.lt.s32.totalorder %s15, 9
      %p471 = pnand %p469, %p470
      %p472 = pneg %p471
      // Predicated region
      $region116: #{custom_efficientnet_forward.10} parent=5 // pred_check
        _
      $region117: #{custom_efficientnet_forward.10} parent=5 // pred_check_branch
        %474 = sbr.rel (%p471) target = $region119
      $region118: #{custom_efficientnet_forward.10} parent=5 // pred_region
        %s475 = ssub.s32 %s15, 1
        %s476 = sand.u32 %s66, 1
        %s477 = sand.u32 %s66, 1
        %s478 = smul.addr %s477, 64
        %s479 = scalar_lea.vmem [#allocation3], %s478
        // Predicated region
        $region120: #{custom_efficientnet_forward.10} parent=118 // pred_check
          %p480 = pneg %p79
        $region121: #{custom_efficientnet_forward.10} parent=118 // pred_check_branch
          %482 = sbr.rel (%p480) target = $region123
        $region122: #{custom_efficientnet_forward.10} parent=118 // pred_region
          _
        $region123: #{custom_efficientnet_forward.10} parent=118 // pred_fallthru
          _
        %s483 = sand.u32 %s144, 1
        %s484 = sand.u32 %s144, 1
        %s485 = smul.addr %s484, 16
        %s486 = scalar_lea.vmem [#allocation4], %s485
        // Predicated region
        $region124: #{custom_efficientnet_forward.10} parent=118 // pred_check
          %p487 = pneg %p157
        $region125: #{custom_efficientnet_forward.10} parent=118 // pred_check_branch
          %489 = sbr.rel (%p487) target = $region127
        $region126: #{custom_efficientnet_forward.10} parent=118 // pred_region
          _
        $region127: #{custom_efficientnet_forward.10} parent=118 // pred_fallthru
          _
        %p490 = scmp.lt.s32.totalorder %s24, 1
        %s491 = scalar_select %p490, %s24, 1
        %s492 = smul.addr %s491, 8
        %s493 = smul.addr %s492, 4
        %s494 = scalar_lea.vmem %s0, %s493
        %p495 = pneg %p53
        %p496 = pneg %p50
        %s497 = sand.u32 %s66, 1
        %s498 = sand.u32 %s66, 1
        %s499 = smul.addr %s498, 64
        %s500 = scalar_lea.vmem [#allocation3], %s499
        %p501 = pneg %p79
        %p502 = pneg %p76
        %p503 = scmp.lt.s32.totalorder %s25, 3
        %s504 = scalar_select %p503, %s25, 3
        %s505 = scalar_lea.vmem %s2, %s504
        %p506 = pneg %p105
        %p507 = pneg %p102
        %p508 = scmp.lt.s32.totalorder %s25, 3
        %s509 = scalar_select %p508, %s25, 3
        %s510 = scalar_lea.vmem %s3, %s509
        %p511 = pneg %p131
        %p512 = pneg %p128
        %s513 = sand.u32 %s144, 1
        %s514 = sand.u32 %s144, 1
        %s515 = smul.addr %s514, 16
        %s516 = scalar_lea.vmem [#allocation4], %s515
        %p517 = pneg %p157
        %p518 = pneg %p154
        %p519 = scmp.lt.s32.totalorder %s25, 3
        %s520 = scalar_select %p519, %s25, 3
        %s521 = scalar_lea.vmem %s5, %s520
        %p522 = pneg %p183
        %p523 = pneg %p180
        %p524 = scmp.lt.s32.totalorder %s25, 3
        %s525 = scalar_select %p524, %s25, 3
        %s526 = scalar_lea.vmem %s6, %s525
        %p527 = pneg %p209
        %p528 = pneg %p206
        %p529 = pneg %p237
        %p530 = pneg %p234
        %s531 = sand.u32 %s224, 1
        %s532 = sand.u32 %s224, 1
        %s533 = smul.addr %s532, 32
        %s534 = scalar_lea.vmem [#allocation5], %s533
        %p535 = pneg %p265
        %p536 = pneg %p262
        %p537 = scmp.lt.s32.totalorder %s24, 1
        %s538 = scalar_select %p537, %s24, 1
        %p539 = scmp.lt.s32.totalorder %s25, 3
        %s540 = scalar_select %p539, %s25, 3
        %s541 = smul.addr %s538, 4
        %s542 = sadd.s32 %s540, %s541
        %s543 = scalar_lea.vmem %s8, %s542
        %p544 = scmp.lt.s32.totalorder %s24, 1
        %s545 = scalar_select %p544, %s24, 1
        %s546 = smul.addr %s545, 8
        %s547 = smul.addr %s546, 4
        %s548 = scalar_lea.vmem %s0, %s547
        %p549 = scmp.lt.s32.totalorder %s25, 3
        %s550 = scalar_select %p549, %s25, 3
        %s551 = scalar_lea.vmem %s2, %s550
        %p552 = scmp.lt.s32.totalorder %s25, 3
        %s553 = scalar_select %p552, %s25, 3
        %s554 = scalar_lea.vmem %s3, %s553
        %p555 = scmp.lt.s32.totalorder %s25, 3
        %s556 = scalar_select %p555, %s25, 3
        %s557 = scalar_lea.vmem %s5, %s556
        %p558 = scmp.lt.s32.totalorder %s25, 3
        %s559 = scalar_select %p558, %s25, 3
        %s560 = scalar_lea.vmem %s6, %s559
        %p561 = scmp.lt.s32.totalorder %s24, 1
        %s562 = scalar_select %p561, %s24, 1
        %p563 = scmp.lt.s32.totalorder %s25, 3
        %s564 = scalar_select %p563, %s25, 3
        %s565 = smul.addr %s562, 4
        %s566 = sadd.s32 %s564, %s565
        %s567 = scalar_lea.vmem %s8, %s566
        %v569 = vld [vmem:[%s548] sm:$0xf]
        %v570 = vld [vmem:[%s548 + $0x4] sm:$0xf]
        %v571 = vld [vmem:[%s548 + $0x8] sm:$0xf]
        %v572 = vld [vmem:[%s548 + $0xc] sm:$0xf]
        %v573 = vld [vmem:[%s548 + $0x10] sm:$0xf]
        %v574 = vld [vmem:[%s548 + $0x14] sm:$0xf]
        %v575 = vld [vmem:[%s548 + $0x18] sm:$0xf]
        %v576 = vld [vmem:[%s548 + $0x1c] sm:$0xf]
        %v577 = vld [vmem:[%s479] sm:$0xf]
        %v578 = vld [vmem:[%s479 + $0x4] sm:$0xf]
        %v579 = vld [vmem:[%s479 + $0x8] sm:$0xf]
        %v580 = vld [vmem:[%s479 + $0xc] sm:$0xf]
        %v581 = vld [vmem:[%s479 + $0x10] sm:$0xf]
        %v582 = vld [vmem:[%s479 + $0x14] sm:$0xf]
        %v583 = vld [vmem:[%s479 + $0x18] sm:$0xf]
        %v584 = vld [vmem:[%s479 + $0x1c] sm:$0xf]
        %v585 = vld [vmem:[%s479 + $0x20] sm:$0xf]
        %v586 = vld [vmem:[%s479 + $0x24] sm:$0xf]
        %v587 = vld [vmem:[%s479 + $0x28] sm:$0xf]
        %v588 = vld [vmem:[%s479 + $0x2c] sm:$0xf]
        %v589 = vld [vmem:[%s479 + $0x30] sm:$0xf]
        %v590 = vld [vmem:[%s479 + $0x34] sm:$0xf]
        %v591 = vld [vmem:[%s479 + $0x38] sm:$0xf]
        %v592 = vld [vmem:[%s479 + $0x3c] sm:$0xf]
        %v601 = vunpack.c.l.b16 %v569
        %v602 = vunpack.c.l.b16 %v570
        %v603 = vunpack.c.l.b16 %v571
        %v604 = vunpack.c.l.b16 %v572
        %v605 = vunpack.c.l.b16 %v573
        %v606 = vunpack.c.l.b16 %v574
        %v607 = vunpack.c.l.b16 %v575
        %v608 = vunpack.c.l.b16 %v576
        %v609 = vpack.c.b16 %v602, %v601
        %v610 = vpack.c.b16 %v604, %v603
        %v611 = vpack.c.b16 %v606, %v605
        %v612 = vpack.c.b16 %v608, %v607
        %v633 = vunpack.c.l.b16 %v577
        %v634 = vunpack.c.l.b16 %v578
        %v635 = vunpack.c.l.b16 %v579
        %v636 = vunpack.c.l.b16 %v580
        %v637 = vunpack.c.l.b16 %v581
        %v638 = vunpack.c.l.b16 %v582
        %v639 = vunpack.c.l.b16 %v583
        %v640 = vunpack.c.l.b16 %v584
        %v641 = vunpack.c.l.b16 %v585
        %v642 = vunpack.c.l.b16 %v586
        %v643 = vunpack.c.l.b16 %v587
        %v644 = vunpack.c.l.b16 %v588
        %v645 = vunpack.c.l.b16 %v589
        %v646 = vunpack.c.l.b16 %v590
        %v647 = vunpack.c.l.b16 %v591
        %v648 = vunpack.c.l.b16 %v592
        %v649 = vpack.c.b16 %v634, %v633
        %v650 = vpack.c.b16 %v636, %v635
        %v651 = vpack.c.b16 %v638, %v637
        %v652 = vpack.c.b16 %v640, %v639
        %v653 = vpack.c.b16 %v642, %v641
        %v654 = vpack.c.b16 %v644, %v643
        %v655 = vpack.c.b16 %v646, %v645
        %v656 = vpack.c.b16 %v648, %v647
        %665 = vmatprep.subr.bf16.mxu0 0
        %666 = vmatpush1.bf16.msra.mxu0 %v649
        %667 = vmatprep.subr.bf16.mxu0 0
        %668 = vmatpush1.bf16.msra.mxu0 %v650
        %669 = vmatprep.subr.bf16.mxu0 0
        %670 = vmatpush1.bf16.msra.mxu0 %v651
        %671 = vmatprep.subr.bf16.mxu0 0
        %672 = vmatpush1.bf16.msra.mxu0 %v652
        %673 = vmatprep.subr.bf16.mxu0 0
        %674 = vmatpush1.bf16.msra.mxu0 %v653
        %675 = vmatprep.subr.bf16.mxu0 0
        %676 = vmatpush1.bf16.msra.mxu0 %v654
        %677 = vmatprep.subr.bf16.mxu0 0
        %678 = vmatpush1.bf16.msra.mxu0 %v655
        %679 = vmatprep.subr.bf16.mxu0 0
        %680 = vmatpush1.bf16.msra.mxu0 %v656
        %681 = vmatprep.subr.bf16.mxu0 0
        %682 = vmatpush1.bf16.msra.mxu0 0
        %683 = vmatprep.subr.bf16.mxu0 0
        %684 = vmatpush1.bf16.msra.mxu0 0
        %685 = vmatprep.subr.bf16.mxu0 0
        %686 = vmatpush1.bf16.msra.mxu0 0
        %687 = vmatprep.subr.bf16.mxu0 0
        %688 = vmatpush1.bf16.msra.mxu0 0
        %689 = vmatprep.subr.bf16.mxu0 0
        %690 = vmatpush1.bf16.msra.mxu0 0
        %691 = vmatprep.subr.bf16.mxu0 0
        %692 = vmatpush1.bf16.msra.mxu0 0
        %693 = vmatprep.subr.bf16.mxu0 0
        %694 = vmatpush1.bf16.msra.mxu0 0
        %695 = vmatprep.subr.bf16.mxu0 0
        %696 = vmatpush1.bf16.msra.mxu0 0
        %697 = vmatprep.mubr.bf16.mxu0 0
        %698 = vmatmul.mubr.bf16.gmra.mrb[0].mxu0 %v609
        %v699 = vpop.f32.mrb[0].mxu0
        %v700 = vadd.f32 0.0, %v699
        %v701 = vpop.f32.mrb[0].mxu0
        %v702 = vpop.f32.mrb[0].mxu0
        %v703 = vadd.f32 0.0, %v702
        %v704 = vpop.f32.mrb[0].mxu0
        %705 = vmatprep.mubr.bf16.mxu0 0
        %706 = vmatmul.mubr.bf16.gmra.mrb[0].mxu0 %v610
        %v707 = vpop.f32.mrb[0].mxu0
        %v708 = vadd.f32 0.0, %v707
        %v709 = vpop.f32.mrb[0].mxu0
        %v710 = vpop.f32.mrb[0].mxu0
        %v711 = vadd.f32 0.0, %v710
        %v712 = vpop.f32.mrb[0].mxu0
        %713 = vmatprep.mubr.bf16.mxu0 0
        %714 = vmatmul.mubr.bf16.gmra.mrb[0].mxu0 %v611
        %v715 = vpop.f32.mrb[0].mxu0
        %v716 = vadd.f32 0.0, %v715
        %v717 = vpop.f32.mrb[0].mxu0
        %v718 = vpop.f32.mrb[0].mxu0
        %v719 = vadd.f32 0.0, %v718
        %v720 = vpop.f32.mrb[0].mxu0
        %721 = vmatprep.mubr.bf16.mxu0 0
        %722 = vmatmul.mubr.bf16.gmra.mrb[0].mxu0 %v612
        %v723 = vpop.f32.mrb[0].mxu0
        %v724 = vadd.f32 0.0, %v723
        %v725 = vpop.f32.mrb[0].mxu0
        %v726 = vpop.f32.mrb[0].mxu0
        %v727 = vadd.f32 0.0, %v726
        %v728 = vpop.f32.mrb[0].mxu0
        %729 = vdwg.mxu0
        %v730 = vld [vmem:[%s551] sm:$0x1]
        %v732 = vlaneseq
        %v733 = vshrl.u32 %v732, 7
        %v734 = vsub.s32 0, %v733
        %v735 = vrot.slane %v730, %v734
        %v737 = vmul.f32 %v700, %v735
        %v738 = vmul.f32 %v703, %v735
        %v739 = vmul.f32 %v708, %v735
        %v740 = vmul.f32 %v711, %v735
        %v741 = vmul.f32 %v716, %v735
        %v742 = vmul.f32 %v719, %v735
        %v743 = vmul.f32 %v724, %v735
        %v744 = vmul.f32 %v727, %v735
        %v745 = vld [vmem:[%s554] sm:$0x1]
        %v747 = vlaneseq
        %v748 = vshrl.u32 %v747, 7
        %v749 = vsub.s32 0, %v748
        %v750 = vrot.slane %v745, %v749
        %v752 = vadd.f32 %v737, %v750
        %v753 = vadd.f32 %v738, %v750
        %v754 = vadd.f32 %v739, %v750
        %v755 = vadd.f32 %v740, %v750
        %v756 = vadd.f32 %v741, %v750
        %v757 = vadd.f32 %v742, %v750
        %v758 = vadd.f32 %v743, %v750
        %v759 = vadd.f32 %v744, %v750
        %v760 = vsub.f32 0.0, %v752
        %v761 = vsub.f32 0.0, %v753
        %v762 = vsub.f32 0.0, %v754
        %v763 = vsub.f32 0.0, %v755
        %v764 = vsub.f32 0.0, %v756
        %v765 = vsub.f32 0.0, %v757
        %v766 = vsub.f32 0.0, %v758
        %v767 = vsub.f32 0.0, %v759
        %v768 = vmul.f32 %v760, 1.442695
        %v769 = vpow.pop %v768
        %v770 = vmul.f32 %v761, 1.442695
        %v771 = vpow.pop %v770
        %v772 = vmul.f32 %v762, 1.442695
        %v773 = vpow.pop %v772
        %v774 = vmul.f32 %v763, 1.442695
        %v775 = vpow.pop %v774
        %v776 = vmul.f32 %v764, 1.442695
        %v777 = vpow.pop %v776
        %v778 = vmul.f32 %v765, 1.442695
        %v779 = vpow.pop %v778
        %v780 = vmul.f32 %v766, 1.442695
        %v781 = vpow.pop %v780
        %v782 = vmul.f32 %v767, 1.442695
        %v783 = vpow.pop %v782
        %v784 = vadd.f32 %v769, 1.0
        %v785 = vadd.f32 %v771, 1.0
        %v786 = vadd.f32 %v773, 1.0
        %v787 = vadd.f32 %v775, 1.0
        %v788 = vadd.f32 %v777, 1.0
        %v789 = vadd.f32 %v779, 1.0
        %v790 = vadd.f32 %v781, 1.0
        %v791 = vadd.f32 %v783, 1.0
        %v792 = vrcp.pop %v784
        %v793 = vrcp.pop %v785
        %v794 = vrcp.pop %v786
        %v795 = vrcp.pop %v787
        %v796 = vrcp.pop %v788
        %v797 = vrcp.pop %v789
        %v798 = vrcp.pop %v790
        %v799 = vrcp.pop %v791
        %v800 = vmul.f32 %v752, %v792
        %v801 = vmul.f32 %v753, %v793
        %v802 = vmul.f32 %v754, %v794
        %v803 = vmul.f32 %v755, %v795
        %v804 = vmul.f32 %v756, %v796
        %v805 = vmul.f32 %v757, %v797
        %v806 = vmul.f32 %v758, %v798
        %v807 = vmul.f32 %v759, %v799
        %808 = vst [vmem:[#allocation2] sm:$0xff] 0.0
        %809 = vst [vmem:[#allocation2 + $0x8] sm:$0x3] 0.0
        %810 = vst [vmem:[#allocation2 + $0x10] sm:$0xff] 0.0
        %811 = vst [vmem:[#allocation2 + $0x18] sm:$0x3] 0.0
        %812 = vst [vmem:[#allocation2 + $0x20] sm:$0xff] 0.0
        %813 = vst [vmem:[#allocation2 + $0x28] sm:$0x3] 0.0
        %814 = vst [vmem:[#allocation2 + $0x30] sm:$0xff] 0.0
        %815 = vst [vmem:[#allocation2 + $0x38] sm:$0x3] 0.0
        %816 = vst [vmem:[#allocation2 + $0x40] sm:$0xff] 0.0
        %817 = vst [vmem:[#allocation2 + $0x48] sm:$0x3] 0.0
        %818 = vst [vmem:[#allocation2 + $0x50] sm:$0xff] 0.0
        %819 = vst [vmem:[#allocation2 + $0x58] sm:$0x3] 0.0
        %820 = vst [vmem:[#allocation2 + $0x60] sm:$0xff] 0.0
        %821 = vst [vmem:[#allocation2 + $0x68] sm:$0x3] 0.0
        %822 = vst [vmem:[#allocation2 + $0x70] sm:$0xff] 0.0
        %823 = vst [vmem:[#allocation2 + $0x78] sm:$0x3] 0.0
        %824 = vst [vmem:[#allocation2 + $0x80] sm:$0xff] 0.0
        %825 = vst [vmem:[#allocation2 + $0x88] sm:$0x3] 0.0
        %826 = vst [vmem:[#allocation2 + $0x90] sm:$0xff] 0.0
        %827 = vst [vmem:[#allocation2 + $0x98] sm:$0x3] 0.0
        %s828 = scalar_lea.vmem [#allocation2], 16
        %829 = vst [vmem:[%s828 + $0x1] sm:$0xff] %v800
        %830 = vst [vmem:[%s828 + $0x11] sm:$0xff] %v801
        %831 = vst [vmem:[%s828 + $0x21] sm:$0xff] %v802
        %832 = vst [vmem:[%s828 + $0x31] sm:$0xff] %v803
        %833 = vst [vmem:[%s828 + $0x41] sm:$0xff] %v804
        %834 = vst [vmem:[%s828 + $0x51] sm:$0xff] %v805
        %835 = vst [vmem:[%s828 + $0x61] sm:$0xff] %v806
        %836 = vst [vmem:[%s828 + $0x71] sm:$0xff] %v807
        %v837 = vld [vmem:[#allocation2] sm:$0xff]
        %v838 = vld [vmem:[#allocation2 + $0x8] sm:$0x3]
        %v839 = vld [vmem:[#allocation2 + $0x10] sm:$0xff]
        %v840 = vld [vmem:[#allocation2 + $0x18] sm:$0x3]
        %v841 = vld [vmem:[#allocation2 + $0x20] sm:$0xff]
        %v842 = vld [vmem:[#allocation2 + $0x28] sm:$0x3]
        %v843 = vld [vmem:[#allocation2 + $0x30] sm:$0xff]
        %v844 = vld [vmem:[#allocation2 + $0x38] sm:$0x3]
        %v845 = vld [vmem:[#allocation2 + $0x40] sm:$0xff]
        %v846 = vld [vmem:[#allocation2 + $0x48] sm:$0x3]
        %v847 = vld [vmem:[#allocation2 + $0x50] sm:$0xff]
        %v848 = vld [vmem:[#allocation2 + $0x58] sm:$0x3]
        %v849 = vld [vmem:[#allocation2 + $0x60] sm:$0xff]
        %v850 = vld [vmem:[#allocation2 + $0x68] sm:$0x3]
        %v851 = vld [vmem:[#allocation2 + $0x70] sm:$0xff]
        %v852 = vld [vmem:[#allocation2 + $0x78] sm:$0x3]
        %v853 = vld [vmem:[#allocation2 + $0x80] sm:$0xff]
        %v854 = vld [vmem:[#allocation2 + $0x88] sm:$0x3]
        %v855 = vld [vmem:[#allocation2 + $0x90] sm:$0xff]
        %v856 = vld [vmem:[#allocation2 + $0x98] sm:$0x3]
        %v857 = vld [vmem:[%s486] sm:$0xff]
        %v858 = vld [vmem:[%s486 + $0x8] sm:$0x1]
        %v859 = vlaneseq
        %v860 = vshrl.u32 %v859, 7
        %v861 = vsub.s32 0, %v860
        %v862 = vrot.slane %v857, %v861
        %v863 = vmul.f32 %v837, %v862
        %v864 = vmul.f32 %v839, %v862
        %v865 = vmul.f32 %v841, %v862
        %v866 = vmul.f32 %v843, %v862
        %v867 = vmul.f32 %v845, %v862
        %v868 = vmul.f32 %v847, %v862
        %v869 = vmul.f32 %v849, %v862
        %v870 = vmul.f32 %v851, %v862
        %v871 = vadd.f32 %v863, 0.0
        %v872 = vadd.f32 %v864, 0.0
        %v873 = vadd.f32 %v865, 0.0
        %v874 = vadd.f32 %v866, 0.0
        %v875 = vadd.f32 %v867, 0.0
        %v876 = vadd.f32 %v868, 0.0
        %v877 = vadd.f32 %v869, 0.0
        %v878 = vadd.f32 %v870, 0.0
        %v879 = vlaneseq
        %v880 = vshrl.u32 %v879, 7
        %v881 = vsub.s32 1, %v880
        %v882 = vrot.slane %v857, %v881
        %v883 = vmul.f32 %v837, %v882
        %v884 = vmul.f32 %v838, %v882
        %v885 = vmul.f32 %v839, %v882
        %v886 = vmul.f32 %v840, %v882
        %v887 = vmul.f32 %v841, %v882
        %v888 = vmul.f32 %v842, %v882
        %v889 = vmul.f32 %v843, %v882
        %v890 = vmul.f32 %v844, %v882
        %v891 = vmul.f32 %v845, %v882
        %v892 = vmul.f32 %v846, %v882
        %v893 = vmul.f32 %v847, %v882
        %v894 = vmul.f32 %v848, %v882
        %v895 = vmul.f32 %v849, %v882
        %v896 = vmul.f32 %v850, %v882
        %v897 = vmul.f32 %v851, %v882
        %v898 = vmul.f32 %v852, %v882
        %vm915 = vcmask 1046528
        %v916 = vrot.slane %v883, 1
        %v917 = vrot.slane %v884, 1
        %v918 = vsel %vm915, %v916, %v917
        %v919 = vrot.slane %v885, 1
        %v920 = vrot.slane %v886, 1
        %v921 = vsel %vm915, %v919, %v920
        %v922 = vrot.slane %v887, 1
        %v923 = vrot.slane %v888, 1
        %v924 = vsel %vm915, %v922, %v923
        %v925 = vrot.slane %v889, 1
        %v926 = vrot.slane %v890, 1
        %v927 = vsel %vm915, %v925, %v926
        %v928 = vrot.slane %v891, 1
        %v929 = vrot.slane %v892, 1
        %v930 = vsel %vm915, %v928, %v929
        %v931 = vrot.slane %v893, 1
        %v932 = vrot.slane %v894, 1
        %v933 = vsel %vm915, %v931, %v932
        %v934 = vrot.slane %v895, 1
        %v935 = vrot.slane %v896, 1
        %v936 = vsel %vm915, %v934, %v935
        %v937 = vrot.slane %v897, 1
        %v938 = vrot.slane %v898, 1
        %v939 = vsel %vm915, %v937, %v938
        %v948 = vadd.f32 %v871, %v918
        %v949 = vadd.f32 %v872, %v921
        %v950 = vadd.f32 %v873, %v924
        %v951 = vadd.f32 %v874, %v927
        %v952 = vadd.f32 %v875, %v930
        %v953 = vadd.f32 %v876, %v933
        %v954 = vadd.f32 %v877, %v936
        %v955 = vadd.f32 %v878, %v939
        %v956 = vlaneseq
        %v957 = vshrl.u32 %v956, 7
        %v958 = vsub.s32 2, %v957
        %v959 = vrot.slane %v857, %v958
        %v960 = vmul.f32 %v837, %v959
        %v961 = vmul.f32 %v838, %v959
        %v962 = vmul.f32 %v839, %v959
        %v963 = vmul.f32 %v840, %v959
        %v964 = vmul.f32 %v841, %v959
        %v965 = vmul.f32 %v842, %v959
        %v966 = vmul.f32 %v843, %v959
        %v967 = vmul.f32 %v844, %v959
        %v968 = vmul.f32 %v845, %v959
        %v969 = vmul.f32 %v846, %v959
        %v970 = vmul.f32 %v847, %v959
        %v971 = vmul.f32 %v848, %v959
        %v972 = vmul.f32 %v849, %v959
        %v973 = vmul.f32 %v850, %v959
        %v974 = vmul.f32 %v851, %v959
        %v975 = vmul.f32 %v852, %v959
        %vm992 = vcmask 1045504
        %v993 = vrot.slane %v960, 2
        %v994 = vrot.slane %v961, 2
        %v995 = vsel %vm992, %v993, %v994
        %v996 = vrot.slane %v962, 2
        %v997 = vrot.slane %v963, 2
        %v998 = vsel %vm992, %v996, %v997
        %v999 = vrot.slane %v964, 2
        %v1000 = vrot.slane %v965, 2
        %v1001 = vsel %vm992, %v999, %v1000
        %v1002 = vrot.slane %v966, 2
        %v1003 = vrot.slane %v967, 2
        %v1004 = vsel %vm992, %v1002, %v1003
        %v1005 = vrot.slane %v968, 2
        %v1006 = vrot.slane %v969, 2
        %v1007 = vsel %vm992, %v1005, %v1006
        %v1008 = vrot.slane %v970, 2
        %v1009 = vrot.slane %v971, 2
        %v1010 = vsel %vm992, %v1008, %v1009
        %v1011 = vrot.slane %v972, 2
        %v1012 = vrot.slane %v973, 2
        %v1013 = vsel %vm992, %v1011, %v1012
        %v1014 = vrot.slane %v974, 2
        %v1015 = vrot.slane %v975, 2
        %v1016 = vsel %vm992, %v1014, %v1015
        %v1025 = vadd.f32 %v948, %v995
        %v1026 = vadd.f32 %v949, %v998
        %v1027 = vadd.f32 %v950, %v1001
        %v1028 = vadd.f32 %v951, %v1004
        %v1029 = vadd.f32 %v952, %v1007
        %v1030 = vadd.f32 %v953, %v1010
        %v1031 = vadd.f32 %v954, %v1013
        %v1032 = vadd.f32 %v955, %v1016
        %v1033 = vlaneseq
        %v1034 = vshrl.u32 %v1033, 7
        %v1035 = vsub.s32 3, %v1034
        %v1036 = vrot.slane %v857, %v1035
        %v1037 = vmul.f32 %v839, %v1036
        %v1038 = vmul.f32 %v841, %v1036
        %v1039 = vmul.f32 %v843, %v1036
        %v1040 = vmul.f32 %v845, %v1036
        %v1041 = vmul.f32 %v847, %v1036
        %v1042 = vmul.f32 %v849, %v1036
        %v1043 = vmul.f32 %v851, %v1036
        %v1044 = vmul.f32 %v853, %v1036
        %v1045 = vadd.f32 %v1025, %v1037
        %v1046 = vadd.f32 %v1026, %v1038
        %v1047 = vadd.f32 %v1027, %v1039
        %v1048 = vadd.f32 %v1028, %v1040
        %v1049 = vadd.f32 %v1029, %v1041
        %v1050 = vadd.f32 %v1030, %v1042
        %v1051 = vadd.f32 %v1031, %v1043
        %v1052 = vadd.f32 %v1032, %v1044
        %v1053 = vlaneseq
        %v1054 = vshrl.u32 %v1053, 7
        %v1055 = vsub.s32 4, %v1054
        %v1056 = vrot.slane %v857, %v1055
        %v1057 = vmul.f32 %v839, %v1056
        %v1058 = vmul.f32 %v840, %v1056
        %v1059 = vmul.f32 %v841, %v1056
        %v1060 = vmul.f32 %v842, %v1056
        %v1061 = vmul.f32 %v843, %v1056
        %v1062 = vmul.f32 %v844, %v1056
        %v1063 = vmul.f32 %v845, %v1056
        %v1064 = vmul.f32 %v846, %v1056
        %v1065 = vmul.f32 %v847, %v1056
        %v1066 = vmul.f32 %v848, %v1056
        %v1067 = vmul.f32 %v849, %v1056
        %v1068 = vmul.f32 %v850, %v1056
        %v1069 = vmul.f32 %v851, %v1056
        %v1070 = vmul.f32 %v852, %v1056
        %v1071 = vmul.f32 %v853, %v1056
        %v1072 = vmul.f32 %v854, %v1056
        %v1089 = vrot.slane %v1057, 1
        %v1090 = vrot.slane %v1058, 1
        %v1091 = vsel %vm915, %v1089, %v1090
        %v1092 = vrot.slane %v1059, 1
        %v1093 = vrot.slane %v1060, 1
        %v1094 = vsel %vm915, %v1092, %v1093
        %v1095 = vrot.slane %v1061, 1
        %v1096 = vrot.slane %v1062, 1
        %v1097 = vsel %vm915, %v1095, %v1096
        %v1098 = vrot.slane %v1063, 1
        %v1099 = vrot.slane %v1064, 1
        %v1100 = vsel %vm915, %v1098, %v1099
        %v1101 = vrot.slane %v1065, 1
        %v1102 = vrot.slane %v1066, 1
        %v1103 = vsel %vm915, %v1101, %v1102
        %v1104 = vrot.slane %v1067, 1
        %v1105 = vrot.slane %v1068, 1
        %v1106 = vsel %vm915, %v1104, %v1105
        %v1107 = vrot.slane %v1069, 1
        %v1108 = vrot.slane %v1070, 1
        %v1109 = vsel %vm915, %v1107, %v1108
        %v1110 = vrot.slane %v1071, 1
        %v1111 = vrot.slane %v1072, 1
        %v1112 = vsel %vm915, %v1110, %v1111
        %v1121 = vadd.f32 %v1045, %v1091
        %v1122 = vadd.f32 %v1046, %v1094
        %v1123 = vadd.f32 %v1047, %v1097
        %v1124 = vadd.f32 %v1048, %v1100
        %v1125 = vadd.f32 %v1049, %v1103
        %v1126 = vadd.f32 %v1050, %v1106
        %v1127 = vadd.f32 %v1051, %v1109
        %v1128 = vadd.f32 %v1052, %v1112
        %v1129 = vlaneseq
        %v1130 = vshrl.u32 %v1129, 7
        %v1131 = vsub.s32 5, %v1130
        %v1132 = vrot.slane %v857, %v1131
        %v1133 = vmul.f32 %v839, %v1132
        %v1134 = vmul.f32 %v840, %v1132
        %v1135 = vmul.f32 %v841, %v1132
        %v1136 = vmul.f32 %v842, %v1132
        %v1137 = vmul.f32 %v843, %v1132
        %v1138 = vmul.f32 %v844, %v1132
        %v1139 = vmul.f32 %v845, %v1132
        %v1140 = vmul.f32 %v846, %v1132
        %v1141 = vmul.f32 %v847, %v1132
        %v1142 = vmul.f32 %v848, %v1132
        %v1143 = vmul.f32 %v849, %v1132
        %v1144 = vmul.f32 %v850, %v1132
        %v1145 = vmul.f32 %v851, %v1132
        %v1146 = vmul.f32 %v852, %v1132
        %v1147 = vmul.f32 %v853, %v1132
        %v1148 = vmul.f32 %v854, %v1132
        %v1165 = vrot.slane %v1133, 2
        %v1166 = vrot.slane %v1134, 2
        %v1167 = vsel %vm992, %v1165, %v1166
        %v1168 = vrot.slane %v1135, 2
        %v1169 = vrot.slane %v1136, 2
        %v1170 = vsel %vm992, %v1168, %v1169
        %v1171 = vrot.slane %v1137, 2
        %v1172 = vrot.slane %v1138, 2
        %v1173 = vsel %vm992, %v1171, %v1172
        %v1174 = vrot.slane %v1139, 2
        %v1175 = vrot.slane %v1140, 2
        %v1176 = vsel %vm992, %v1174, %v1175
        %v1177 = vrot.slane %v1141, 2
        %v1178 = vrot.slane %v1142, 2
        %v1179 = vsel %vm992, %v1177, %v1178
        %v1180 = vrot.slane %v1143, 2
        %v1181 = vrot.slane %v1144, 2
        %v1182 = vsel %vm992, %v1180, %v1181
        %v1183 = vrot.slane %v1145, 2
        %v1184 = vrot.slane %v1146, 2
        %v1185 = vsel %vm992, %v1183, %v1184
        %v1186 = vrot.slane %v1147, 2
        %v1187 = vrot.slane %v1148, 2
        %v1188 = vsel %vm992, %v1186, %v1187
        %v1197 = vadd.f32 %v1121, %v1167
        %v1198 = vadd.f32 %v1122, %v1170
        %v1199 = vadd.f32 %v1123, %v1173
        %v1200 = vadd.f32 %v1124, %v1176
        %v1201 = vadd.f32 %v1125, %v1179
        %v1202 = vadd.f32 %v1126, %v1182
        %v1203 = vadd.f32 %v1127, %v1185
        %v1204 = vadd.f32 %v1128, %v1188
        %v1205 = vlaneseq
        %v1206 = vshrl.u32 %v1205, 7
        %v1207 = vsub.s32 6, %v1206
        %v1208 = vrot.slane %v857, %v1207
        %v1209 = vmul.f32 %v841, %v1208
        %v1210 = vmul.f32 %v843, %v1208
        %v1211 = vmul.f32 %v845, %v1208
        %v1212 = vmul.f32 %v847, %v1208
        %v1213 = vmul.f32 %v849, %v1208
        %v1214 = vmul.f32 %v851, %v1208
        %v1215 = vmul.f32 %v853, %v1208
        %v1216 = vmul.f32 %v855, %v1208
        %v1217 = vadd.f32 %v1197, %v1209
        %v1218 = vadd.f32 %v1198, %v1210
        %v1219 = vadd.f32 %v1199, %v1211
        %v1220 = vadd.f32 %v1200, %v1212
        %v1221 = vadd.f32 %v1201, %v1213
        %v1222 = vadd.f32 %v1202, %v1214
        %v1223 = vadd.f32 %v1203, %v1215
        %v1224 = vadd.f32 %v1204, %v1216
        %v1225 = vlaneseq
        %v1226 = vshrl.u32 %v1225, 7
        %v1227 = vsub.s32 7, %v1226
        %v1228 = vrot.slane %v857, %v1227
        %v1229 = vmul.f32 %v841, %v1228
        %v1230 = vmul.f32 %v842, %v1228
        %v1231 = vmul.f32 %v843, %v1228
        %v1232 = vmul.f32 %v844, %v1228
        %v1233 = vmul.f32 %v845, %v1228
        %v1234 = vmul.f32 %v846, %v1228
        %v1235 = vmul.f32 %v847, %v1228
        %v1236 = vmul.f32 %v848, %v1228
        %v1237 = vmul.f32 %v849, %v1228
        %v1238 = vmul.f32 %v850, %v1228
        %v1239 = vmul.f32 %v851, %v1228
        %v1240 = vmul.f32 %v852, %v1228
        %v1241 = vmul.f32 %v853, %v1228
        %v1242 = vmul.f32 %v854, %v1228
        %v1243 = vmul.f32 %v855, %v1228
        %v1244 = vmul.f32 %v856, %v1228
        %v1261 = vrot.slane %v1229, 1
        %v1262 = vrot.slane %v1230, 1
        %v1263 = vsel %vm915, %v1261, %v1262
        %v1264 = vrot.slane %v1231, 1
        %v1265 = vrot.slane %v1232, 1
        %v1266 = vsel %vm915, %v1264, %v1265
        %v1267 = vrot.slane %v1233, 1
        %v1268 = vrot.slane %v1234, 1
        %v1269 = vsel %vm915, %v1267, %v1268
        %v1270 = vrot.slane %v1235, 1
        %v1271 = vrot.slane %v1236, 1
        %v1272 = vsel %vm915, %v1270, %v1271
        %v1273 = vrot.slane %v1237, 1
        %v1274 = vrot.slane %v1238, 1
        %v1275 = vsel %vm915, %v1273, %v1274
        %v1276 = vrot.slane %v1239, 1
        %v1277 = vrot.slane %v1240, 1
        %v1278 = vsel %vm915, %v1276, %v1277
        %v1279 = vrot.slane %v1241, 1
        %v1280 = vrot.slane %v1242, 1
        %v1281 = vsel %vm915, %v1279, %v1280
        %v1282 = vrot.slane %v1243, 1
        %v1283 = vrot.slane %v1244, 1
        %v1284 = vsel %vm915, %v1282, %v1283
        %v1293 = vadd.f32 %v1217, %v1263
        %v1294 = vadd.f32 %v1218, %v1266
        %v1295 = vadd.f32 %v1219, %v1269
        %v1296 = vadd.f32 %v1220, %v1272
        %v1297 = vadd.f32 %v1221, %v1275
        %v1298 = vadd.f32 %v1222, %v1278
        %v1299 = vadd.f32 %v1223, %v1281
        %v1300 = vadd.f32 %v1224, %v1284
        %v1301 = vlaneseq
        %v1302 = vshrl.u32 %v1301, 7
        %v1303 = vsub.s32 0, %v1302
        %v1304 = vrot.slane %v858, %v1303
        %v1305 = vmul.f32 %v841, %v1304
        %v1306 = vmul.f32 %v842, %v1304
        %v1307 = vmul.f32 %v843, %v1304
        %v1308 = vmul.f32 %v844, %v1304
        %v1309 = vmul.f32 %v845, %v1304
        %v1310 = vmul.f32 %v846, %v1304
        %v1311 = vmul.f32 %v847, %v1304
        %v1312 = vmul.f32 %v848, %v1304
        %v1313 = vmul.f32 %v849, %v1304
        %v1314 = vmul.f32 %v850, %v1304
        %v1315 = vmul.f32 %v851, %v1304
        %v1316 = vmul.f32 %v852, %v1304
        %v1317 = vmul.f32 %v853, %v1304
        %v1318 = vmul.f32 %v854, %v1304
        %v1319 = vmul.f32 %v855, %v1304
        %v1320 = vmul.f32 %v856, %v1304
        %v1337 = vrot.slane %v1305, 2
        %v1338 = vrot.slane %v1306, 2
        %v1339 = vsel %vm992, %v1337, %v1338
        %v1340 = vrot.slane %v1307, 2
        %v1341 = vrot.slane %v1308, 2
        %v1342 = vsel %vm992, %v1340, %v1341
        %v1343 = vrot.slane %v1309, 2
        %v1344 = vrot.slane %v1310, 2
        %v1345 = vsel %vm992, %v1343, %v1344
        %v1346 = vrot.slane %v1311, 2
        %v1347 = vrot.slane %v1312, 2
        %v1348 = vsel %vm992, %v1346, %v1347
        %v1349 = vrot.slane %v1313, 2
        %v1350 = vrot.slane %v1314, 2
        %v1351 = vsel %vm992, %v1349, %v1350
        %v1352 = vrot.slane %v1315, 2
        %v1353 = vrot.slane %v1316, 2
        %v1354 = vsel %vm992, %v1352, %v1353
        %v1355 = vrot.slane %v1317, 2
        %v1356 = vrot.slane %v1318, 2
        %v1357 = vsel %vm992, %v1355, %v1356
        %v1358 = vrot.slane %v1319, 2
        %v1359 = vrot.slane %v1320, 2
        %v1360 = vsel %vm992, %v1358, %v1359
        %v1369 = vadd.f32 %v1293, %v1339
        %v1370 = vadd.f32 %v1294, %v1342
        %v1371 = vadd.f32 %v1295, %v1345
        %v1372 = vadd.f32 %v1296, %v1348
        %v1373 = vadd.f32 %v1297, %v1351
        %v1374 = vadd.f32 %v1298, %v1354
        %v1375 = vadd.f32 %v1299, %v1357
        %v1376 = vadd.f32 %v1300, %v1360
        %v1377 = vld [vmem:[%s557] sm:$0x1]
        %v1379 = vlaneseq
        %v1380 = vshrl.u32 %v1379, 7
        %v1381 = vsub.s32 0, %v1380
        %v1382 = vrot.slane %v1377, %v1381
        %v1384 = vmul.f32 %v1369, %v1382
        %v1385 = vmul.f32 %v1370, %v1382
        %v1386 = vmul.f32 %v1371, %v1382
        %v1387 = vmul.f32 %v1372, %v1382
        %v1388 = vmul.f32 %v1373, %v1382
        %v1389 = vmul.f32 %v1374, %v1382
        %v1390 = vmul.f32 %v1375, %v1382
        %v1391 = vmul.f32 %v1376, %v1382
        %v1392 = vld [vmem:[%s560] sm:$0x1]
        %v1394 = vlaneseq
        %v1395 = vshrl.u32 %v1394, 7
        %v1396 = vsub.s32 0, %v1395
        %v1397 = vrot.slane %v1392, %v1396
        %v1399 = vadd.f32 %v1384, %v1397
        %v1400 = vadd.f32 %v1385, %v1397
        %v1401 = vadd.f32 %v1386, %v1397
        %v1402 = vadd.f32 %v1387, %v1397
        %v1403 = vadd.f32 %v1388, %v1397
        %v1404 = vadd.f32 %v1389, %v1397
        %v1405 = vadd.f32 %v1390, %v1397
        %v1406 = vadd.f32 %v1391, %v1397
        %v1407 = vsub.f32 0.0, %v1399
        %v1408 = vsub.f32 0.0, %v1400
        %v1409 = vsub.f32 0.0, %v1401
        %v1410 = vsub.f32 0.0, %v1402
        %v1411 = vsub.f32 0.0, %v1403
        %v1412 = vsub.f32 0.0, %v1404
        %v1413 = vsub.f32 0.0, %v1405
        %v1414 = vsub.f32 0.0, %v1406
        %v1415 = vmul.f32 %v1407, 1.442695
        %v1416 = vpow.pop %v1415
        %v1417 = vmul.f32 %v1408, 1.442695
        %v1418 = vpow.pop %v1417
        %v1419 = vmul.f32 %v1409, 1.442695
        %v1420 = vpow.pop %v1419
        %v1421 = vmul.f32 %v1410, 1.442695
        %v1422 = vpow.pop %v1421
        %v1423 = vmul.f32 %v1411, 1.442695
        %v1424 = vpow.pop %v1423
        %v1425 = vmul.f32 %v1412, 1.442695
        %v1426 = vpow.pop %v1425
        %v1427 = vmul.f32 %v1413, 1.442695
        %v1428 = vpow.pop %v1427
        %v1429 = vmul.f32 %v1414, 1.442695
        %v1430 = vpow.pop %v1429
        %v1431 = vadd.f32 %v1416, 1.0
        %v1432 = vadd.f32 %v1418, 1.0
        %v1433 = vadd.f32 %v1420, 1.0
        %v1434 = vadd.f32 %v1422, 1.0
        %v1435 = vadd.f32 %v1424, 1.0
        %v1436 = vadd.f32 %v1426, 1.0
        %v1437 = vadd.f32 %v1428, 1.0
        %v1438 = vadd.f32 %v1430, 1.0
        %v1439 = vrcp.pop %v1431
        %v1440 = vrcp.pop %v1432
        %v1441 = vrcp.pop %v1433
        %v1442 = vrcp.pop %v1434
        %v1443 = vrcp.pop %v1435
        %v1444 = vrcp.pop %v1436
        %v1445 = vrcp.pop %v1437
        %v1446 = vrcp.pop %v1438
        %v1447 = vmul.f32 %v1399, %v1439
        %v1448 = vmul.f32 %v1400, %v1440
        %v1449 = vmul.f32 %v1401, %v1441
        %v1450 = vmul.f32 %v1402, %v1442
        %v1451 = vmul.f32 %v1403, %v1443
        %v1452 = vmul.f32 %v1404, %v1444
        %v1453 = vmul.f32 %v1405, %v1445
        %v1454 = vmul.f32 %v1406, %v1446
        %v1455 = vpack.c.bf16 %v1447, %v1447
        %v1456 = vpack.c.bf16 %v1448, %v1448
        %v1457 = vpack.c.bf16 %v1449, %v1449
        %v1458 = vpack.c.bf16 %v1450, %v1450
        %v1459 = vpack.c.bf16 %v1451, %v1451
        %v1460 = vpack.c.bf16 %v1452, %v1452
        %v1461 = vpack.c.bf16 %v1453, %v1453
        %v1462 = vpack.c.bf16 %v1454, %v1454
        %1463 = vst [vmem:[%s534] sm:$0xf] %v1455
        %1464 = vst [vmem:[%s534 + $0x4] sm:$0xf] %v1456
        %1465 = vst [vmem:[%s534 + $0x8] sm:$0xf] %v1457
        %1466 = vst [vmem:[%s534 + $0xc] sm:$0xf] %v1458
        %1467 = vst [vmem:[%s534 + $0x10] sm:$0xf] %v1459
        %1468 = vst [vmem:[%s534 + $0x14] sm:$0xf] %v1460
        %1469 = vst [vmem:[%s534 + $0x18] sm:$0xf] %v1461
        %1470 = vst [vmem:[%s534 + $0x1c] sm:$0xf] %v1462
        %v1471 = vadd.f32 %v1447, %v1448
        %v1472 = vadd.f32 %v1471, %v1449
        %v1473 = vadd.f32 %v1472, %v1450
        %v1474 = vadd.f32 %v1473, %v1451
        %v1475 = vadd.f32 %v1474, %v1452
        %v1476 = vadd.f32 %v1475, %v1453
        %v1477 = vadd.f32 %v1476, %v1454
        %v1478 = vrot.slane %v1477, 4
        %v1479 = vadd.f32 %v1477, %v1478
        %v1480 = vrot.slane %v1479, 2
        %v1481 = vadd.f32 %v1479, %v1480
        %v1482 = vrot.slane %v1481, 1
        %v1483 = vadd.f32 %v1481, %v1482
        %1484 = vst [vmem:[%s567] sm:$0x1] %v1483
        %s1485 = sand.u32 %s224, 1
        %s1486 = sand.u32 %s224, 1
        %s1487 = smul.addr %s1486, 32
        %s1488 = scalar_lea.vmem [#allocation5], %s1487
        %p1489 = scmp.lt.s32.totalorder %s24, 1
        %s1490 = scalar_select %p1489, %s24, 1
        %p1491 = scmp.lt.s32.totalorder %s25, 3
        %s1492 = scalar_select %p1491, %s25, 3
        %s1493 = smul.addr %s1490, 4
        %s1494 = sadd.s32 %s1492, %s1493
        %s1495 = scalar_lea.vmem %s8, %s1494
        // Predicated region
        $region128: #{custom_efficientnet_forward.10} parent=118 // pred_check
          %p1496 = pneg %p234
        $region129: #{custom_efficientnet_forward.10} parent=118 // pred_check_branch
          %1498 = sbr.rel (%p1496) target = $region131
        $region130: #{custom_efficientnet_forward.10} parent=118 // pred_region
          %s1499 = smul.addr %s24, 32
          %s1500 = sadd.s32 %s25, %s1499
          %s1501 = smul.addr %s1500, 4
          %s1502 = scalar_lea.vmem %s7, %s1501
          // Predicated region
          $region132: #{custom_efficientnet_forward.10} parent=130 // pred_check
            _
          $region133: #{custom_efficientnet_forward.10} parent=130 // pred_check_branch
            %1504 = sbr.rel (0) target = $region135
          $region134: #{custom_efficientnet_forward.10} parent=130 // pred_region
            // Predicated region
            $region136: #{custom_efficientnet_forward.10} parent=134 // pred_check
              _
            $region137: #{custom_efficientnet_forward.10} parent=134 // pred_check_branch
              %1506 = sbr.rel target = $region139
            $region138: #{custom_efficientnet_forward.10} parent=134 // pred_region
              // Predicated region
              $region151: #{custom_efficientnet_forward.10} parent=138 // pred_check
                _
              $region152: #{custom_efficientnet_forward.10} parent=138 // pred_check_branch
                %1535 = sbr.rel (0) target = $region154
              $region153: #{custom_efficientnet_forward.10} parent=138 // pred_region
                loop: start=0, step=1, limit=1
                $region155: #{custom_efficientnet_forward.10} parent=153 // loop_pre_header
                  _
                $region156: #{custom_efficientnet_forward.10} parent=153 // loop_header
                  %s1537 = sphi 0, %s1541
                  %p1538 = scmp.ge.s32.totalorder %s1537, 1
                  %s1542 = sphi %s1488, %s1488
                  %s1543 = sphi %s1502, %s1502
                $region157: #{custom_efficientnet_forward.10} parent=153 // loop_header_branch
                  %1540 = sbr.rel (%p1538) target = $region161
                $region158: #{custom_efficientnet_forward.10} parent=153 // loop_body
                  _
                $region159: #{custom_efficientnet_forward.10} parent=153 // loop_footer
                  %s1541 = sadd.s32 1, %s1537
                $region160: #{custom_efficientnet_forward.10} parent=153 // loop_footer_branch
                  %1536 = sbr.rel target = $region156
                $region161: #{custom_efficientnet_forward.10} parent=153 // loop_exit
                  _
                loop: start=0, step=1, limit=1
                $region162: #{custom_efficientnet_forward.10} parent=153 // loop_pre_header
                  _
                $region163: #{custom_efficientnet_forward.10} parent=153 // loop_header
                  %s1546 = sphi 0, %s1550
                  %p1547 = scmp.ge.s32.totalorder %s1546, 1
                  %s1551 = sphi %s1488, %s1488
                  %s1552 = sphi %s1502, %s1502
                $region164: #{custom_efficientnet_forward.10} parent=153 // loop_header_branch
                  %1549 = sbr.rel (%p1547) target = $region168
                $region165: #{custom_efficientnet_forward.10} parent=153 // loop_body
                  %v1553 = vld [vmem:[%s1551] sm:$0xf]
                  %1554 = vst [vmem:[%s1552] sm:$0xf] %v1553
                  %v1555 = vld [vmem:[%s1551 + $0x4] sm:$0xf]
                  %1556 = vst [vmem:[%s1552 + $0x10] sm:$0xf] %v1555
                  %v1557 = vld [vmem:[%s1551 + $0x8] sm:$0xf]
                  %1558 = vst [vmem:[%s1552 + $0x20] sm:$0xf] %v1557
                  %v1559 = vld [vmem:[%s1551 + $0xc] sm:$0xf]
                  %1560 = vst [vmem:[%s1552 + $0x30] sm:$0xf] %v1559
                  %v1561 = vld [vmem:[%s1551 + $0x10] sm:$0xf]
                  %1562 = vst [vmem:[%s1552 + $0x40] sm:$0xf] %v1561
                  %v1563 = vld [vmem:[%s1551 + $0x14] sm:$0xf]
                  %1564 = vst [vmem:[%s1552 + $0x50] sm:$0xf] %v1563
                  %v1565 = vld [vmem:[%s1551 + $0x18] sm:$0xf]
                  %1566 = vst [vmem:[%s1552 + $0x60] sm:$0xf] %v1565
                  %v1567 = vld [vmem:[%s1551 + $0x1c] sm:$0xf]
                  %1568 = vst [vmem:[%s1552 + $0x70] sm:$0xf] %v1567
                $region166: #{custom_efficientnet_forward.10} parent=153 // loop_footer
                  %s1550 = sadd.s32 1, %s1546
                $region167: #{custom_efficientnet_forward.10} parent=153 // loop_footer_branch
                  %1545 = sbr.rel target = $region163
                $region168: #{custom_efficientnet_forward.10} parent=153 // loop_exit
                  _
              $region154: #{custom_efficientnet_forward.10} parent=138 // pred_fallthru
                _
            $region139: #{custom_efficientnet_forward.10} parent=134 // pred_fallthru
              _
            // Predicated region
            $region140: #{custom_efficientnet_forward.10} parent=134 // pred_check
              _
            $region141: #{custom_efficientnet_forward.10} parent=134 // pred_check_branch
              %1508 = sbr.rel (0) target = $region143
            $region142: #{custom_efficientnet_forward.10} parent=134 // pred_region
              loop: start=0, step=1, limit=1
              $region144: #{custom_efficientnet_forward.10} parent=142 // loop_pre_header
                _
              $region145: #{custom_efficientnet_forward.10} parent=142 // loop_header
                %s1511 = sphi 0, %s1515
                %p1512 = scmp.ge.s32.totalorder %s1511, 1
                %s1516 = sphi %s1488, %s1488
                %s1517 = sphi %s1502, %s1502
              $region146: #{custom_efficientnet_forward.10} parent=142 // loop_header_branch
                %1514 = sbr.rel (%p1512) target = $region150
              $region147: #{custom_efficientnet_forward.10} parent=142 // loop_body
                %v1518 = vld [vmem:[%s1516] sm:$0xf]
                %1519 = vst [vmem:[%s1517] sm:$0xf] %v1518
                %v1520 = vld [vmem:[%s1516 + $0x4] sm:$0xf]
                %1521 = vst [vmem:[%s1517 + $0x10] sm:$0xf] %v1520
                %v1522 = vld [vmem:[%s1516 + $0x8] sm:$0xf]
                %1523 = vst [vmem:[%s1517 + $0x20] sm:$0xf] %v1522
                %v1524 = vld [vmem:[%s1516 + $0xc] sm:$0xf]
                %1525 = vst [vmem:[%s1517 + $0x30] sm:$0xf] %v1524
                %v1526 = vld [vmem:[%s1516 + $0x10] sm:$0xf]
                %1527 = vst [vmem:[%s1517 + $0x40] sm:$0xf] %v1526
                %v1528 = vld [vmem:[%s1516 + $0x14] sm:$0xf]
                %1529 = vst [vmem:[%s1517 + $0x50] sm:$0xf] %v1528
                %v1530 = vld [vmem:[%s1516 + $0x18] sm:$0xf]
                %1531 = vst [vmem:[%s1517 + $0x60] sm:$0xf] %v1530
                %v1532 = vld [vmem:[%s1516 + $0x1c] sm:$0xf]
                %1533 = vst [vmem:[%s1517 + $0x70] sm:$0xf] %v1532
              $region148: #{custom_efficientnet_forward.10} parent=142 // loop_footer
                %s1515 = sadd.s32 1, %s1511
              $region149: #{custom_efficientnet_forward.10} parent=142 // loop_footer_branch
                %1510 = sbr.rel target = $region145
              $region150: #{custom_efficientnet_forward.10} parent=142 // loop_exit
                _
            $region143: #{custom_efficientnet_forward.10} parent=134 // pred_fallthru
              _
          $region135: #{custom_efficientnet_forward.10} parent=130 // pred_fallthru
            _
          %1569 = vnop
        $region131: #{custom_efficientnet_forward.10} parent=118 // pred_fallthru
          _
        // Predicated region
        $region169: #{custom_efficientnet_forward.10} parent=118 // pred_check
          %p1570 = pneg %p262
        $region170: #{custom_efficientnet_forward.10} parent=118 // pred_check_branch
          %1572 = sbr.rel (%p1570) target = $region172
        $region171: #{custom_efficientnet_forward.10} parent=118 // pred_region
          _
        $region172: #{custom_efficientnet_forward.10} parent=118 // pred_fallthru
          _
      $region119: #{custom_efficientnet_forward.10} parent=5 // pred_fallthru
        _
      %p1573 = scmp.le.s32.totalorder 2, %s15
      // Predicated region
      $region173: #{custom_efficientnet_forward.10} parent=5 // pred_check
        %p1574 = pneg %p1573
      $region174: #{custom_efficientnet_forward.10} parent=5 // pred_check_branch
        %1576 = sbr.rel (%p1574) target = $region176
      $region175: #{custom_efficientnet_forward.10} parent=5 // pred_region
        %s1577 = ssub.s32 %s15, 2
        // Predicated region
        $region177: #{custom_efficientnet_forward.10} parent=175 // pred_check
          %p1578 = pneg %p240
        $region178: #{custom_efficientnet_forward.10} parent=175 // pred_check_branch
          %1580 = sbr.rel (%p1578) target = $region180
        $region179: #{custom_efficientnet_forward.10} parent=175 // pred_region
          %s1581 = sand.u32 %s225, 1
          %s1582 = sand.u32 %s225, 1
          %s1583 = smul.addr %s1582, 32
          %s1584 = scalar_lea.vmem [#allocation5], %s1583
        $region180: #{custom_efficientnet_forward.10} parent=175 // pred_fallthru
          _
        // Predicated region
        $region181: #{custom_efficientnet_forward.10} parent=175 // pred_check
          %p1585 = pneg %p268
        $region182: #{custom_efficientnet_forward.10} parent=175 // pred_check_branch
          %1587 = sbr.rel (%p1585) target = $region184
        $region183: #{custom_efficientnet_forward.10} parent=175 // pred_region
          %p1588 = scmp.lt.s32.totalorder %s26, 1
          %s1589 = scalar_select %p1588, %s26, 1
          %p1590 = scmp.lt.s32.totalorder %s27, 3
          %s1591 = scalar_select %p1590, %s27, 3
          %s1592 = smul.addr %s1589, 4
          %s1593 = sadd.s32 %s1591, %s1592
          %s1594 = scalar_lea.vmem %s8, %s1593
        $region184: #{custom_efficientnet_forward.10} parent=175 // pred_fallthru
          _
      $region176: #{custom_efficientnet_forward.10} parent=5 // pred_fallthru
        _
    $region6: #{custom_efficientnet_forward.10} parent=1 // loop_footer
      %s19 = sadd.s32 1, %s15
    $region7: #{custom_efficientnet_forward.10} parent=1 // loop_footer_branch
      %14 = sbr.rel target = $region3
    $region8: #{custom_efficientnet_forward.10} parent=1 // loop_exit
      _

// kernel: custom_efficientnet_forward.11
$region0: #{custom_efficientnet_forward.11}
  #allocation0 [shape = 'u32[]', space=smem, size = 0x4, offset = 0x4, fixed_abs, tag = 'smem constant byte address 0x4 - core index']
  #allocation1 [shape = 'u32[144,128]{1,0:T(1,128)}', space=vmem, size = 0x12000, scoped, tag = 'internal scratch']
  %s0 = inlined_call_operand.vmem [shape: f32[2,1,512], index: 0, kind: input, shape index: {}]
  %s1 = inlined_call_operand.vmem [shape: f32[512,32], index: 1, kind: input, shape index: {}]
  %s2 = inlined_call_operand.vmem [shape: f32[1,32], index: 2, kind: input, shape index: {}]
  %s3 = inlined_call_operand.vmem [shape: f32[32,512], index: 3, kind: input, shape index: {}]
  %s4 = inlined_call_operand.vmem [shape: f32[1,512], index: 4, kind: input, shape index: {}]
  %s5 = inlined_call_operand.vmem [shape: bf16[2,1,512], index: 5, kind: output, shape index: {}]
  %s6 = sld [smem:[#allocation0]]
  $region53: #{custom_efficientnet_forward.11} parent=0
    _
  %s8 = ssub.s32 1, %s6
  %s9 = scalar_select 0, %s8, %s6
  loop: start=0, step=1, limit=4
  $region2: #{custom_efficientnet_forward.11} parent=0 // loop_pre_header
    _
  $region3: #{custom_efficientnet_forward.11} parent=0 // loop_header
    %s11 = sphi 0, %s15
    %p12 = scmp.ge.s32.totalorder %s11, 4
    %s21 = sphi 0, %s23
    %s24 = sphi 0, %s21
    %s25 = sphi 0, %s24
    %s41 = sphi 0, %s25
    %s45 = sphi 0, %s45
    %s47 = sphi 0, %s45
    %s48 = sphi 0, %s47
    %s62 = sphi 0, %s48
    %s66 = sphi 0, %s66
    %s68 = sphi 0, %s66
    %s69 = sphi 0, %s68
    %s83 = sphi 0, %s69
    %s87 = sphi 0, %s87
    %s89 = sphi 0, %s87
    %s90 = sphi 0, %s89
    %s104 = sphi 0, %s90
    %s108 = sphi 0, %s108
    %s110 = sphi 0, %s108
    %s111 = sphi 0, %s110
    %s125 = sphi 0, %s111
    %s131 = sphi 0, %s133
    %s134 = sphi 0, %s131
    %s135 = sphi 0, %s134
    %s151 = sphi 0, %s135
  $region4: #{custom_efficientnet_forward.11} parent=0 // loop_header_branch
    %14 = sbr.rel (%p12) target = $region8
  $region5: #{custom_efficientnet_forward.11} parent=0 // loop_body
    %s16 = ssub.s32 %s11, 1
    %s17 = ssub.s32 %s11, 2
    %s18 = sadd.s32 %s11, 1
    %s19 = ssub.s32 %s11, %s18
    %p20 = scmp.eq.s32.totalorder %s19, 0
    %s22 = sadd.s32 %s21, 1
    %s23 = scalar_select %p20, %s21, %s22
    %p26 = pneg %p20
    %p27 = scmp.eq.s32.totalorder %s11, 1
    %p28 = por %p26, %p27
    %p29 = scmp.ne.s32.totalorder %s21, %s24
    %p30 = scmp.eq.s32.totalorder %s11, 0
    %p31 = por %p29, %p30
    %p32 = scmp.ne.s32.totalorder %s21, %s24
    %p33 = scmp.eq.s32.totalorder %s16, 1
    %p34 = por %p32, %p33
    %p35 = scmp.ne.s32.totalorder %s24, %s25
    %p36 = scmp.eq.s32.totalorder %s16, 0
    %p37 = por %p35, %p36
    %p38 = scmp.ne.s32.totalorder %s24, %s25
    %p39 = scmp.eq.s32.totalorder %s17, 1
    %p40 = por %p38, %p39
    %p42 = scmp.ne.s32.totalorder %s25, %s41
    %p43 = scmp.eq.s32.totalorder %s17, 0
    %p44 = por %p42, %p43
    %s46 = sadd.s32 %s45, 1
    %p49 = scmp.eq.s32.totalorder %s11, 1
    %p50 = scmp.ne.s32.totalorder %s45, %s47
    %p51 = scmp.eq.s32.totalorder %s11, 0
    %p52 = por %p50, %p51
    %p53 = scmp.ne.s32.totalorder %s45, %s47
    %p54 = scmp.eq.s32.totalorder %s16, 1
    %p55 = por %p53, %p54
    %p56 = scmp.ne.s32.totalorder %s47, %s48
    %p57 = scmp.eq.s32.totalorder %s16, 0
    %p58 = por %p56, %p57
    %p59 = scmp.ne.s32.totalorder %s47, %s48
    %p60 = scmp.eq.s32.totalorder %s17, 1
    %p61 = por %p59, %p60
    %p63 = scmp.ne.s32.totalorder %s48, %s62
    %p64 = scmp.eq.s32.totalorder %s17, 0
    %p65 = por %p63, %p64
    %s67 = sadd.s32 %s66, 1
    %p70 = scmp.eq.s32.totalorder %s11, 1
    %p71 = scmp.ne.s32.totalorder %s66, %s68
    %p72 = scmp.eq.s32.totalorder %s11, 0
    %p73 = por %p71, %p72
    %p74 = scmp.ne.s32.totalorder %s66, %s68
    %p75 = scmp.eq.s32.totalorder %s16, 1
    %p76 = por %p74, %p75
    %p77 = scmp.ne.s32.totalorder %s68, %s69
    %p78 = scmp.eq.s32.totalorder %s16, 0
    %p79 = por %p77, %p78
    %p80 = scmp.ne.s32.totalorder %s68, %s69
    %p81 = scmp.eq.s32.totalorder %s17, 1
    %p82 = por %p80, %p81
    %p84 = scmp.ne.s32.totalorder %s69, %s83
    %p85 = scmp.eq.s32.totalorder %s17, 0
    %p86 = por %p84, %p85
    %s88 = sadd.s32 %s87, 1
    %p91 = scmp.eq.s32.totalorder %s11, 1
    %p92 = scmp.ne.s32.totalorder %s87, %s89
    %p93 = scmp.eq.s32.totalorder %s11, 0
    %p94 = por %p92, %p93
    %p95 = scmp.ne.s32.totalorder %s87, %s89
    %p96 = scmp.eq.s32.totalorder %s16, 1
    %p97 = por %p95, %p96
    %p98 = scmp.ne.s32.totalorder %s89, %s90
    %p99 = scmp.eq.s32.totalorder %s16, 0
    %p100 = por %p98, %p99
    %p101 = scmp.ne.s32.totalorder %s89, %s90
    %p102 = scmp.eq.s32.totalorder %s17, 1
    %p103 = por %p101, %p102
    %p105 = scmp.ne.s32.totalorder %s90, %s104
    %p106 = scmp.eq.s32.totalorder %s17, 0
    %p107 = por %p105, %p106
    %s109 = sadd.s32 %s108, 1
    %p112 = scmp.eq.s32.totalorder %s11, 1
    %p113 = scmp.ne.s32.totalorder %s108, %s110
    %p114 = scmp.eq.s32.totalorder %s11, 0
    %p115 = por %p113, %p114
    %p116 = scmp.ne.s32.totalorder %s108, %s110
    %p117 = scmp.eq.s32.totalorder %s16, 1
    %p118 = por %p116, %p117
    %p119 = scmp.ne.s32.totalorder %s110, %s111
    %p120 = scmp.eq.s32.totalorder %s16, 0
    %p121 = por %p119, %p120
    %p122 = scmp.ne.s32.totalorder %s110, %s111
    %p123 = scmp.eq.s32.totalorder %s17, 1
    %p124 = por %p122, %p123
    %p126 = scmp.ne.s32.totalorder %s111, %s125
    %p127 = scmp.eq.s32.totalorder %s17, 0
    %p128 = por %p126, %p127
    %s129 = ssub.s32 %s11, %s18
    %p130 = scmp.eq.s32.totalorder %s129, 0
    %s132 = sadd.s32 %s131, 1
    %s133 = scalar_select %p130, %s131, %s132
    %p136 = pneg %p130
    %p137 = scmp.eq.s32.totalorder %s11, 1
    %p138 = por %p136, %p137
    %p139 = scmp.ne.s32.totalorder %s131, %s134
    %p140 = scmp.eq.s32.totalorder %s11, 0
    %p141 = por %p139, %p140
    %p142 = scmp.ne.s32.totalorder %s131, %s134
    %p143 = scmp.eq.s32.totalorder %s16, 1
    %p144 = por %p142, %p143
    %p145 = scmp.ne.s32.totalorder %s134, %s135
    %p146 = scmp.eq.s32.totalorder %s16, 0
    %p147 = por %p145, %p146
    %p148 = scmp.ne.s32.totalorder %s134, %s135
    %p149 = scmp.eq.s32.totalorder %s17, 1
    %p150 = por %p148, %p149
    %p152 = scmp.ne.s32.totalorder %s135, %s151
    %p153 = scmp.eq.s32.totalorder %s17, 0
    %p154 = por %p152, %p153
    %p155 = scmp.le.s32.totalorder 1, %s11
    %p156 = scmp.lt.s32.totalorder %s11, 3
    %p157 = pnand %p155, %p156
    %p158 = pneg %p157
    // Predicated region
    $region9: #{custom_efficientnet_forward.11} parent=5 // pred_check
      _
    $region10: #{custom_efficientnet_forward.11} parent=5 // pred_check_branch
      %160 = sbr.rel (%p157) target = $region12
    $region11: #{custom_efficientnet_forward.11} parent=5 // pred_region
      %s161 = ssub.s32 %s11, 1
      // Predicated region
      $region13: #{custom_efficientnet_forward.11} parent=11 // pred_check
        %p162 = pneg %p58
      $region14: #{custom_efficientnet_forward.11} parent=11 // pred_check_branch
        %164 = sbr.rel (%p162) target = $region16
      $region15: #{custom_efficientnet_forward.11} parent=11 // pred_region
        _
      $region16: #{custom_efficientnet_forward.11} parent=11 // pred_fallthru
        _
      // Predicated region
      $region17: #{custom_efficientnet_forward.11} parent=11 // pred_check
        %p165 = pneg %p79
      $region18: #{custom_efficientnet_forward.11} parent=11 // pred_check_branch
        %167 = sbr.rel (%p165) target = $region20
      $region19: #{custom_efficientnet_forward.11} parent=11 // pred_region
        _
      $region20: #{custom_efficientnet_forward.11} parent=11 // pred_fallthru
        _
      // Predicated region
      $region21: #{custom_efficientnet_forward.11} parent=11 // pred_check
        %p168 = pneg %p100
      $region22: #{custom_efficientnet_forward.11} parent=11 // pred_check_branch
        %170 = sbr.rel (%p168) target = $region24
      $region23: #{custom_efficientnet_forward.11} parent=11 // pred_region
        _
      $region24: #{custom_efficientnet_forward.11} parent=11 // pred_fallthru
        _
      // Predicated region
      $region25: #{custom_efficientnet_forward.11} parent=11 // pred_check
        %p171 = pneg %p121
      $region26: #{custom_efficientnet_forward.11} parent=11 // pred_check_branch
        %173 = sbr.rel (%p171) target = $region28
      $region27: #{custom_efficientnet_forward.11} parent=11 // pred_region
        _
      $region28: #{custom_efficientnet_forward.11} parent=11 // pred_fallthru
        _
    $region12: #{custom_efficientnet_forward.11} parent=5 // pred_fallthru
      _
    %p174 = scmp.lt.s32.totalorder %s11, 2
    // Predicated region
    $region29: #{custom_efficientnet_forward.11} parent=5 // pred_check
      %p175 = pneg %p174
    $region30: #{custom_efficientnet_forward.11} parent=5 // pred_check_branch
      %177 = sbr.rel (%p175) target = $region32
    $region31: #{custom_efficientnet_forward.11} parent=5 // pred_region
      // Predicated region
      $region33: #{custom_efficientnet_forward.11} parent=31 // pred_check
        %p178 = pneg %p31
      $region34: #{custom_efficientnet_forward.11} parent=31 // pred_check_branch
        %180 = sbr.rel (%p178) target = $region36
      $region35: #{custom_efficientnet_forward.11} parent=31 // pred_region
        %p181 = scmp.lt.s32.totalorder %s11, 1
        %s182 = scalar_select %p181, %s11, 1
        %s183 = smul.addr %s182, 4
        %s184 = scalar_lea.vmem %s0, %s183
      $region36: #{custom_efficientnet_forward.11} parent=31 // pred_fallthru
        _
    $region32: #{custom_efficientnet_forward.11} parent=5 // pred_fallthru
      _
    %p185 = scmp.le.s32.totalorder 1, %s11
    %p186 = scmp.lt.s32.totalorder %s11, 3
    %p187 = pnand %p185, %p186
    %p188 = pneg %p187
    // Predicated region
    $region37: #{custom_efficientnet_forward.11} parent=5 // pred_check
      _
    $region38: #{custom_efficientnet_forward.11} parent=5 // pred_check_branch
      %190 = sbr.rel (%p187) target = $region40
    $region39: #{custom_efficientnet_forward.11} parent=5 // pred_region
      %s191 = ssub.s32 %s11, 1
      %p192 = scmp.lt.s32.totalorder %s16, 1
      %s193 = scalar_select %p192, %s16, 1
      %s194 = smul.addr %s193, 4
      %s195 = scalar_lea.vmem %s0, %s194
      %p196 = pneg %p37
      %p197 = pneg %p34
      %p198 = pneg %p58
      %p199 = pneg %p55
      %p200 = pneg %p79
      %p201 = pneg %p76
      %p202 = pneg %p100
      %p203 = pneg %p97
      %p204 = pneg %p121
      %p205 = pneg %p118
      %p206 = pneg %p147
      %p207 = pneg %p144
      %p208 = scmp.lt.s32.totalorder %s16, 1
      %s209 = scalar_select %p208, %s16, 1
      %s210 = smul.addr %s209, 4
      %s211 = scalar_lea.vmem %s5, %s210
      %p212 = scmp.lt.s32.totalorder %s16, 1
      %s213 = scalar_select %p212, %s16, 1
      %s214 = smul.addr %s213, 4
      %s215 = scalar_lea.vmem %s0, %s214
      %p216 = scmp.lt.s32.totalorder %s16, 1
      %s217 = scalar_select %p216, %s16, 1
      %s218 = smul.addr %s217, 4
      %s219 = scalar_lea.vmem %s5, %s218
      %v220 = vld [vmem:[%s215] sm:$0xf]
      %v221 = vmul.f32 %v220, 0.015625
      %v222 = vld [vmem:[%s1] sm:$0xff]
      %v223 = vld [vmem:[%s1 + $0x8] sm:$0xff]
      %v224 = vld [vmem:[%s1 + $0x10] sm:$0xff]
      %v225 = vld [vmem:[%s1 + $0x18] sm:$0xff]
      %v226 = vld [vmem:[%s1 + $0x20] sm:$0xff]
      %v227 = vld [vmem:[%s1 + $0x28] sm:$0xff]
      %v228 = vld [vmem:[%s1 + $0x30] sm:$0xff]
      %v229 = vld [vmem:[%s1 + $0x38] sm:$0xff]
      %v230 = vld [vmem:[%s1 + $0x40] sm:$0xff]
      %v231 = vld [vmem:[%s1 + $0x48] sm:$0xff]
      %v232 = vld [vmem:[%s1 + $0x50] sm:$0xff]
      %v233 = vld [vmem:[%s1 + $0x58] sm:$0xff]
      %v234 = vld [vmem:[%s1 + $0x60] sm:$0xff]
      %v235 = vld [vmem:[%s1 + $0x68] sm:$0xff]
      %v236 = vld [vmem:[%s1 + $0x70] sm:$0xff]
      %v237 = vld [vmem:[%s1 + $0x78] sm:$0xff]
      %v238 = vld [vmem:[%s1 + $0x80] sm:$0xff]
      %v239 = vld [vmem:[%s1 + $0x88] sm:$0xff]
      %v240 = vld [vmem:[%s1 + $0x90] sm:$0xff]
      %v241 = vld [vmem:[%s1 + $0x98] sm:$0xff]
      %v242 = vld [vmem:[%s1 + $0xa0] sm:$0xff]
      %v243 = vld [vmem:[%s1 + $0xa8] sm:$0xff]
      %v244 = vld [vmem:[%s1 + $0xb0] sm:$0xff]
      %v245 = vld [vmem:[%s1 + $0xb8] sm:$0xff]
      %v246 = vld [vmem:[%s1 + $0xc0] sm:$0xff]
      %v247 = vld [vmem:[%s1 + $0xc8] sm:$0xff]
      %v248 = vld [vmem:[%s1 + $0xd0] sm:$0xff]
      %v249 = vld [vmem:[%s1 + $0xd8] sm:$0xff]
      %v250 = vld [vmem:[%s1 + $0xe0] sm:$0xff]
      %v251 = vld [vmem:[%s1 + $0xe8] sm:$0xff]
      %v252 = vld [vmem:[%s1 + $0xf0] sm:$0xff]
      %v253 = vld [vmem:[%s1 + $0xf8] sm:$0xff]
      %v254 = vld [vmem:[%s1 + $0x100] sm:$0xff]
      %v255 = vld [vmem:[%s1 + $0x108] sm:$0xff]
      %v256 = vld [vmem:[%s1 + $0x110] sm:$0xff]
      %v257 = vld [vmem:[%s1 + $0x118] sm:$0xff]
      %v258 = vld [vmem:[%s1 + $0x120] sm:$0xff]
      %v259 = vld [vmem:[%s1 + $0x128] sm:$0xff]
      %v260 = vld [vmem:[%s1 + $0x130] sm:$0xff]
      %v261 = vld [vmem:[%s1 + $0x138] sm:$0xff]
      %v262 = vld [vmem:[%s1 + $0x140] sm:$0xff]
      %v263 = vld [vmem:[%s1 + $0x148] sm:$0xff]
      %v264 = vld [vmem:[%s1 + $0x150] sm:$0xff]
      %v265 = vld [vmem:[%s1 + $0x158] sm:$0xff]
      %v266 = vld [vmem:[%s1 + $0x160] sm:$0xff]
      %v267 = vld [vmem:[%s1 + $0x168] sm:$0xff]
      %v268 = vld [vmem:[%s1 + $0x170] sm:$0xff]
      %v269 = vld [vmem:[%s1 + $0x178] sm:$0xff]
      %v270 = vld [vmem:[%s1 + $0x180] sm:$0xff]
      %v271 = vld [vmem:[%s1 + $0x188] sm:$0xff]
      %v272 = vld [vmem:[%s1 + $0x190] sm:$0xff]
      %v273 = vld [vmem:[%s1 + $0x198] sm:$0xff]
      %v274 = vld [vmem:[%s1 + $0x1a0] sm:$0xff]
      %v275 = vld [vmem:[%s1 + $0x1a8] sm:$0xff]
      %v276 = vld [vmem:[%s1 + $0x1b0] sm:$0xff]
      %v277 = vld [vmem:[%s1 + $0x1b8] sm:$0xff]
      %v278 = vld [vmem:[%s1 + $0x1c0] sm:$0xff]
      %v279 = vld [vmem:[%s1 + $0x1c8] sm:$0xff]
      %v280 = vld [vmem:[%s1 + $0x1d0] sm:$0xff]
      %v281 = vld [vmem:[%s1 + $0x1d8] sm:$0xff]
      %v282 = vld [vmem:[%s1 + $0x1e0] sm:$0xff]
      %v283 = vld [vmem:[%s1 + $0x1e8] sm:$0xff]
      %v284 = vld [vmem:[%s1 + $0x1f0] sm:$0xff]
      %v285 = vld [vmem:[%s1 + $0x1f8] sm:$0xff]
      %v286 = vld [vmem:[%s2] sm:$0x1]
      %v288 = vlaneseq
      %v289 = vshrl.u32 %v288, 7
      %v290 = vsub.s32 0, %v289
      %v291 = vrot.slane %v221, %v290
      %v292 = vlaneseq
      %v293 = vshrl.u32 %v292, 7
      %v294 = vsub.s32 1, %v293
      %v295 = vrot.slane %v221, %v294
      %v296 = vlaneseq
      %v297 = vshrl.u32 %v296, 7
      %v298 = vsub.s32 2, %v297
      %v299 = vrot.slane %v221, %v298
      %v300 = vlaneseq
      %v301 = vshrl.u32 %v300, 7
      %v302 = vsub.s32 3, %v301
      %v303 = vrot.slane %v221, %v302
      %308 = vmatprep.subr.mxu0 0.0
      %309 = vmatpush1.msra.mxu0 %v222
      %310 = vmatprep.subr.mxu0 0.0
      %311 = vmatpush1.msra.mxu0 %v223
      %312 = vmatprep.subr.mxu0 0.0
      %313 = vmatpush1.msra.mxu0 %v224
      %314 = vmatprep.subr.mxu0 0.0
      %315 = vmatpush1.msra.mxu0 %v225
      %316 = vmatprep.subr.mxu0 0.0
      %317 = vmatpush1.msra.mxu0 %v226
      %318 = vmatprep.subr.mxu0 0.0
      %319 = vmatpush1.msra.mxu0 %v227
      %320 = vmatprep.subr.mxu0 0.0
      %321 = vmatpush1.msra.mxu0 %v228
      %322 = vmatprep.subr.mxu0 0.0
      %323 = vmatpush1.msra.mxu0 %v229
      %324 = vmatprep.subr.mxu0 0.0
      %325 = vmatpush1.msra.mxu0 %v230
      %326 = vmatprep.subr.mxu0 0.0
      %327 = vmatpush1.msra.mxu0 %v231
      %328 = vmatprep.subr.mxu0 0.0
      %329 = vmatpush1.msra.mxu0 %v232
      %330 = vmatprep.subr.mxu0 0.0
      %331 = vmatpush1.msra.mxu0 %v233
      %332 = vmatprep.subr.mxu0 0.0
      %333 = vmatpush1.msra.mxu0 %v234
      %334 = vmatprep.subr.mxu0 0.0
      %335 = vmatpush1.msra.mxu0 %v235
      %336 = vmatprep.subr.mxu0 0.0
      %337 = vmatpush1.msra.mxu0 %v236
      %338 = vmatprep.subr.mxu0 0.0
      %339 = vmatpush1.msra.mxu0 %v237
      %340 = vmatprep.subr.mxu0 0.0
      %341 = vmatpush1.msra.mxu0 %v238
      %342 = vmatprep.subr.mxu0 0.0
      %343 = vmatpush1.msra.mxu0 %v239
      %344 = vmatprep.subr.mxu0 0.0
      %345 = vmatpush1.msra.mxu0 %v240
      %346 = vmatprep.subr.mxu0 0.0
      %347 = vmatpush1.msra.mxu0 %v241
      %348 = vmatprep.subr.mxu0 0.0
      %349 = vmatpush1.msra.mxu0 %v242
      %350 = vmatprep.subr.mxu0 0.0
      %351 = vmatpush1.msra.mxu0 %v243
      %352 = vmatprep.subr.mxu0 0.0
      %353 = vmatpush1.msra.mxu0 %v244
      %354 = vmatprep.subr.mxu0 0.0
      %355 = vmatpush1.msra.mxu0 %v245
      %356 = vmatprep.subr.mxu0 0.0
      %357 = vmatpush1.msra.mxu0 %v246
      %358 = vmatprep.subr.mxu0 0.0
      %359 = vmatpush1.msra.mxu0 %v247
      %360 = vmatprep.subr.mxu0 0.0
      %361 = vmatpush1.msra.mxu0 %v248
      %362 = vmatprep.subr.mxu0 0.0
      %363 = vmatpush1.msra.mxu0 %v249
      %364 = vmatprep.subr.mxu0 0.0
      %365 = vmatpush1.msra.mxu0 %v250
      %366 = vmatprep.subr.mxu0 0.0
      %367 = vmatpush1.msra.mxu0 %v251
      %368 = vmatprep.subr.mxu0 0.0
      %369 = vmatpush1.msra.mxu0 %v252
      %370 = vmatprep.subr.mxu0 0.0
      %371 = vmatpush1.msra.mxu0 %v253
      %372 = vmatprep.mubr.f32.mxu0 %v295
      %373 = vmatmul.mubr.f32.gmra.mrb[0].mxu0 %v291
      %v374 = vpop.f32.mrb[0].mxu0
      %v375 = vadd.f32 %v286, %v374
      %v376 = vpop.f32.mrb[0].mxu0
      %377 = vdwg.mxu0
      %378 = vmatprep.subr.mxu0 0.0
      %379 = vmatpush1.msra.mxu0 %v254
      %380 = vmatprep.subr.mxu0 0.0
      %381 = vmatpush1.msra.mxu0 %v255
      %382 = vmatprep.subr.mxu0 0.0
      %383 = vmatpush1.msra.mxu0 %v256
      %384 = vmatprep.subr.mxu0 0.0
      %385 = vmatpush1.msra.mxu0 %v257
      %386 = vmatprep.subr.mxu0 0.0
      %387 = vmatpush1.msra.mxu0 %v258
      %388 = vmatprep.subr.mxu0 0.0
      %389 = vmatpush1.msra.mxu0 %v259
      %390 = vmatprep.subr.mxu0 0.0
      %391 = vmatpush1.msra.mxu0 %v260
      %392 = vmatprep.subr.mxu0 0.0
      %393 = vmatpush1.msra.mxu0 %v261
      %394 = vmatprep.subr.mxu0 0.0
      %395 = vmatpush1.msra.mxu0 %v262
      %396 = vmatprep.subr.mxu0 0.0
      %397 = vmatpush1.msra.mxu0 %v263
      %398 = vmatprep.subr.mxu0 0.0
      %399 = vmatpush1.msra.mxu0 %v264
      %400 = vmatprep.subr.mxu0 0.0
      %401 = vmatpush1.msra.mxu0 %v265
      %402 = vmatprep.subr.mxu0 0.0
      %403 = vmatpush1.msra.mxu0 %v266
      %404 = vmatprep.subr.mxu0 0.0
      %405 = vmatpush1.msra.mxu0 %v267
      %406 = vmatprep.subr.mxu0 0.0
      %407 = vmatpush1.msra.mxu0 %v268
      %408 = vmatprep.subr.mxu0 0.0
      %409 = vmatpush1.msra.mxu0 %v269
      %410 = vmatprep.subr.mxu0 0.0
      %411 = vmatpush1.msra.mxu0 %v270
      %412 = vmatprep.subr.mxu0 0.0
      %413 = vmatpush1.msra.mxu0 %v271
      %414 = vmatprep.subr.mxu0 0.0
      %415 = vmatpush1.msra.mxu0 %v272
      %416 = vmatprep.subr.mxu0 0.0
      %417 = vmatpush1.msra.mxu0 %v273
      %418 = vmatprep.subr.mxu0 0.0
      %419 = vmatpush1.msra.mxu0 %v274
      %420 = vmatprep.subr.mxu0 0.0
      %421 = vmatpush1.msra.mxu0 %v275
      %422 = vmatprep.subr.mxu0 0.0
      %423 = vmatpush1.msra.mxu0 %v276
      %424 = vmatprep.subr.mxu0 0.0
      %425 = vmatpush1.msra.mxu0 %v277
      %426 = vmatprep.subr.mxu0 0.0
      %427 = vmatpush1.msra.mxu0 %v278
      %428 = vmatprep.subr.mxu0 0.0
      %429 = vmatpush1.msra.mxu0 %v279
      %430 = vmatprep.subr.mxu0 0.0
      %431 = vmatpush1.msra.mxu0 %v280
      %432 = vmatprep.subr.mxu0 0.0
      %433 = vmatpush1.msra.mxu0 %v281
      %434 = vmatprep.subr.mxu0 0.0
      %435 = vmatpush1.msra.mxu0 %v282
      %436 = vmatprep.subr.mxu0 0.0
      %437 = vmatpush1.msra.mxu0 %v283
      %438 = vmatprep.subr.mxu0 0.0
      %439 = vmatpush1.msra.mxu0 %v284
      %440 = vmatprep.subr.mxu0 0.0
      %441 = vmatpush1.msra.mxu0 %v285
      %442 = vmatprep.mubr.f32.mxu0 %v303
      %443 = vmatmul.mubr.f32.gmra.mrb[0].mxu0 %v299
      %v444 = vpop.f32.mrb[0].mxu0
      %v445 = vadd.f32 %v375, %v444
      %v446 = vpop.f32.mrb[0].mxu0
      %447 = vdwg.mxu0
      %v448 = vsub.f32 0.0, %v445
      %v449 = vmul.f32 %v448, 1.442695
      %v450 = vpow.pop %v449
      %v451 = vadd.f32 %v450, 1.0
      %v452 = vrcp.pop %v451
      %v453 = vmul.f32 %v445, %v452
      %v454 = vld [vmem:[%s3] sm:$0xff]
      %v455 = vld [vmem:[%s3 + $0x8] sm:$0xff]
      %v456 = vld [vmem:[%s3 + $0x10] sm:$0xff]
      %v457 = vld [vmem:[%s3 + $0x18] sm:$0xff]
      %v458 = vld [vmem:[%s3 + $0x20] sm:$0xff]
      %v459 = vld [vmem:[%s3 + $0x28] sm:$0xff]
      %v460 = vld [vmem:[%s3 + $0x30] sm:$0xff]
      %v461 = vld [vmem:[%s3 + $0x38] sm:$0xff]
      %v462 = vld [vmem:[%s3 + $0x40] sm:$0xff]
      %v463 = vld [vmem:[%s3 + $0x48] sm:$0xff]
      %v464 = vld [vmem:[%s3 + $0x50] sm:$0xff]
      %v465 = vld [vmem:[%s3 + $0x58] sm:$0xff]
      %v466 = vld [vmem:[%s3 + $0x60] sm:$0xff]
      %v467 = vld [vmem:[%s3 + $0x68] sm:$0xff]
      %v468 = vld [vmem:[%s3 + $0x70] sm:$0xff]
      %v469 = vld [vmem:[%s3 + $0x78] sm:$0xff]
      %v470 = vld [vmem:[%s4] sm:$0xf]
      %v472 = vlaneseq
      %v473 = vshrl.u32 %v472, 7
      %v474 = vsub.s32 0, %v473
      %v475 = vrot.slane %v470, %v474
      %v476 = vlaneseq
      %v477 = vshrl.u32 %v476, 7
      %v478 = vsub.s32 1, %v477
      %v479 = vrot.slane %v470, %v478
      %v480 = vlaneseq
      %v481 = vshrl.u32 %v480, 7
      %v482 = vsub.s32 2, %v481
      %v483 = vrot.slane %v470, %v482
      %v484 = vlaneseq
      %v485 = vshrl.u32 %v484, 7
      %v486 = vsub.s32 3, %v485
      %v487 = vrot.slane %v470, %v486
      %vm492 = vcmask 261120
      %v494 = vsel %vm492, %v453, 0
      %496 = vmatprep.subr.mxu0 %v455
      %497 = vmatpush1.msra.mxu0 %v454
      %498 = vmatprep.subr.mxu0 %v459
      %499 = vmatpush1.msra.mxu0 %v458
      %500 = vmatprep.subr.mxu0 %v463
      %501 = vmatpush1.msra.mxu0 %v462
      %502 = vmatprep.subr.mxu0 %v467
      %503 = vmatpush1.msra.mxu0 %v466
      %504 = vmatprep.subr.mxu0 0.0
      %505 = vmatpush1.msra.mxu0 0.0
      %506 = vmatprep.subr.mxu0 0.0
      %507 = vmatpush1.msra.mxu0 0.0
      %508 = vmatprep.subr.mxu0 0.0
      %509 = vmatpush1.msra.mxu0 0.0
      %510 = vmatprep.subr.mxu0 0.0
      %511 = vmatpush1.msra.mxu0 0.0
      %512 = vmatprep.subr.mxu0 0.0
      %513 = vmatpush1.msra.mxu0 0.0
      %514 = vmatprep.subr.mxu0 0.0
      %515 = vmatpush1.msra.mxu0 0.0
      %516 = vmatprep.subr.mxu0 0.0
      %517 = vmatpush1.msra.mxu0 0.0
      %518 = vmatprep.subr.mxu0 0.0
      %519 = vmatpush1.msra.mxu0 0.0
      %520 = vmatprep.subr.mxu0 0.0
      %521 = vmatpush1.msra.mxu0 0.0
      %522 = vmatprep.subr.mxu0 0.0
      %523 = vmatpush1.msra.mxu0 0.0
      %524 = vmatprep.subr.mxu0 0.0
      %525 = vmatpush1.msra.mxu0 0.0
      %526 = vmatprep.subr.mxu0 0.0
      %527 = vmatpush1.msra.mxu0 0.0
      %528 = vmatprep.subr.mxu0 0.0
      %529 = vmatpush1.msra.mxu0 0.0
      %530 = vmatprep.subr.mxu0 0.0
      %531 = vmatpush1.msra.mxu0 0.0
      %532 = vmatprep.subr.mxu0 0.0
      %533 = vmatpush1.msra.mxu0 0.0
      %534 = vmatprep.subr.mxu0 0.0
      %535 = vmatpush1.msra.mxu0 0.0
      %536 = vmatprep.subr.mxu0 0.0
      %537 = vmatpush1.msra.mxu0 0.0
      %538 = vmatprep.subr.mxu0 0.0
      %539 = vmatpush1.msra.mxu0 0.0
      %540 = vmatprep.subr.mxu0 0.0
      %541 = vmatpush1.msra.mxu0 0.0
      %542 = vmatprep.subr.mxu0 0.0
      %543 = vmatpush1.msra.mxu0 0.0
      %544 = vmatprep.subr.mxu0 0.0
      %545 = vmatpush1.msra.mxu0 0.0
      %546 = vmatprep.subr.mxu0 0.0
      %547 = vmatpush1.msra.mxu0 0.0
      %548 = vmatprep.subr.mxu0 0.0
      %549 = vmatpush1.msra.mxu0 0.0
      %550 = vmatprep.subr.mxu0 0.0
      %551 = vmatpush1.msra.mxu0 0.0
      %552 = vmatprep.subr.mxu0 0.0
      %553 = vmatpush1.msra.mxu0 0.0
      %554 = vmatprep.subr.mxu0 0.0
      %555 = vmatpush1.msra.mxu0 0.0
      %556 = vmatprep.subr.mxu0 0.0
      %557 = vmatpush1.msra.mxu0 0.0
      %558 = vmatprep.subr.mxu0 0.0
      %559 = vmatpush1.msra.mxu0 0.0
      %560 = vmatprep.mubr.f32.mxu0 0.0
      %561 = vmatmul.mubr.f32.gmra.mrb[0].mxu0 %v494
      %v562 = vpop.f32.mrb[0].mxu0
      %v563 = vadd.f32 %v475, %v562
      %v564 = vpop.f32.mrb[0].mxu0
      %v565 = vadd.f32 %v479, %v564
      %566 = vdwg.mxu0
      %567 = vmatprep.subr.mxu0 %v457
      %568 = vmatpush1.msra.mxu0 %v456
      %569 = vmatprep.subr.mxu0 %v461
      %570 = vmatpush1.msra.mxu0 %v460
      %571 = vmatprep.subr.mxu0 %v465
      %572 = vmatpush1.msra.mxu0 %v464
      %573 = vmatprep.subr.mxu0 %v469
      %574 = vmatpush1.msra.mxu0 %v468
      %575 = vmatprep.subr.mxu0 0.0
      %576 = vmatpush1.msra.mxu0 0.0
      %577 = vmatprep.subr.mxu0 0.0
      %578 = vmatpush1.msra.mxu0 0.0
      %579 = vmatprep.subr.mxu0 0.0
      %580 = vmatpush1.msra.mxu0 0.0
      %581 = vmatprep.subr.mxu0 0.0
      %582 = vmatpush1.msra.mxu0 0.0
      %583 = vmatprep.subr.mxu0 0.0
      %584 = vmatpush1.msra.mxu0 0.0
      %585 = vmatprep.subr.mxu0 0.0
      %586 = vmatpush1.msra.mxu0 0.0
      %587 = vmatprep.subr.mxu0 0.0
      %588 = vmatpush1.msra.mxu0 0.0
      %589 = vmatprep.subr.mxu0 0.0
      %590 = vmatpush1.msra.mxu0 0.0
      %591 = vmatprep.subr.mxu0 0.0
      %592 = vmatpush1.msra.mxu0 0.0
      %593 = vmatprep.subr.mxu0 0.0
      %594 = vmatpush1.msra.mxu0 0.0
      %595 = vmatprep.subr.mxu0 0.0
      %596 = vmatpush1.msra.mxu0 0.0
      %597 = vmatprep.subr.mxu0 0.0
      %598 = vmatpush1.msra.mxu0 0.0
      %599 = vmatprep.subr.mxu0 0.0
      %600 = vmatpush1.msra.mxu0 0.0
      %601 = vmatprep.subr.mxu0 0.0
      %602 = vmatpush1.msra.mxu0 0.0
      %603 = vmatprep.subr.mxu0 0.0
      %604 = vmatpush1.msra.mxu0 0.0
      %605 = vmatprep.subr.mxu0 0.0
      %606 = vmatpush1.msra.mxu0 0.0
      %607 = vmatprep.subr.mxu0 0.0
      %608 = vmatpush1.msra.mxu0 0.0
      %609 = vmatprep.subr.mxu0 0.0
      %610 = vmatpush1.msra.mxu0 0.0
      %611 = vmatprep.subr.mxu0 0.0
      %612 = vmatpush1.msra.mxu0 0.0
      %613 = vmatprep.subr.mxu0 0.0
      %614 = vmatpush1.msra.mxu0 0.0
      %615 = vmatprep.subr.mxu0 0.0
      %616 = vmatpush1.msra.mxu0 0.0
      %617 = vmatprep.subr.mxu0 0.0
      %618 = vmatpush1.msra.mxu0 0.0
      %619 = vmatprep.subr.mxu0 0.0
      %620 = vmatpush1.msra.mxu0 0.0
      %621 = vmatprep.subr.mxu0 0.0
      %622 = vmatpush1.msra.mxu0 0.0
      %623 = vmatprep.subr.mxu0 0.0
      %624 = vmatpush1.msra.mxu0 0.0
      %625 = vmatprep.subr.mxu0 0.0
      %626 = vmatpush1.msra.mxu0 0.0
      %627 = vmatprep.subr.mxu0 0.0
      %628 = vmatpush1.msra.mxu0 0.0
      %629 = vmatprep.subr.mxu0 0.0
      %630 = vmatpush1.msra.mxu0 0.0
      %631 = vmatprep.mubr.f32.mxu0 0.0
      %632 = vmatmul.mubr.f32.gmra.mrb[0].mxu0 %v494
      %v633 = vpop.f32.mrb[0].mxu0
      %v634 = vadd.f32 %v483, %v633
      %v635 = vpop.f32.mrb[0].mxu0
      %v636 = vadd.f32 %v487, %v635
      %637 = vdwg.mxu0
      %v638 = vsub.f32 0.0, %v563
      %v639 = vsub.f32 0.0, %v565
      %v640 = vsub.f32 0.0, %v634
      %v641 = vsub.f32 0.0, %v636
      %v642 = vmul.f32 %v638, 1.442695
      %v643 = vpow.pop %v642
      %v644 = vmul.f32 %v639, 1.442695
      %v645 = vpow.pop %v644
      %v646 = vmul.f32 %v640, 1.442695
      %v647 = vpow.pop %v646
      %v648 = vmul.f32 %v641, 1.442695
      %v649 = vpow.pop %v648
      %v650 = vadd.f32 %v643, 1.0
      %v651 = vadd.f32 %v645, 1.0
      %v652 = vadd.f32 %v647, 1.0
      %v653 = vadd.f32 %v649, 1.0
      %v654 = vrcp.pop %v650
      %v655 = vrcp.pop %v651
      %v656 = vrcp.pop %v652
      %v657 = vrcp.pop %v653
      %v658 = vpack.c.bf16 %v654, %v654
      %v659 = vpack.c.bf16 %v655, %v655
      %v660 = vpack.c.bf16 %v656, %v656
      %v661 = vpack.c.bf16 %v657, %v657
      %v666 = vcombine.low %v658, %v659
      %v667 = vcombine.low %v660, %v661
      %v669 = vunpack.c.l.s4 1966171168
      %v670 = vunpack.c.0.s8 %v669
      %v671 = vlaneseq
      %v672 = vshrl.u32 %v671, 7
      %v673 = vsub.s32 %v670, %v672
      %v674 = vrot.slane %v666, %v673
      %v676 = vunpack.c.l.s4 1966171168
      %v677 = vunpack.c.0.s8 %v676
      %v678 = vlaneseq
      %v679 = vshrl.u32 %v678, 7
      %v680 = vsub.s32 %v677, %v679
      %v681 = vrot.slane %v667, %v680
      %v682 = vcombine.low %v674, %v681
      %v684 = vunpack.c.l.s4 1966171168
      %v685 = vunpack.c.0.s8 %v684
      %v686 = vlaneseq
      %v687 = vshrl.u32 %v686, 7
      %v688 = vsub.s32 %v685, %v687
      %v689 = vrot.slane %v682, %v688
      %vm691 = vcmask 1040384
      %vm692 = vsmask.f32 256
      %vm693 = vmand %vm691, %vm692
      %vm694 = vcmask 1041409
      %vm695 = vsmask.f32 1280
      %vm696 = vmand %vm694, %vm695
      %vm697 = vmor %vm696, %vm693
      %vm698 = vcmask 1042434
      %vm699 = vsmask.f32 2304
      %vm700 = vmand %vm698, %vm699
      %vm701 = vmor %vm700, %vm697
      %vm702 = vcmask 1043459
      %vm703 = vsmask.f32 3328
      %vm704 = vmand %vm702, %vm703
      %vm705 = vmor %vm704, %vm701
      %v706 = vld [vmem:[%s219] sm:$0xf]
      %v707 = vsel %vm705, %v689, %v706
      %708 = vst [vmem:[%s219] sm:$0xf] %v707
      %p709 = scmp.lt.s32.totalorder %s16, 1
      %s710 = scalar_select %p709, %s16, 1
      %s711 = smul.addr %s710, 4
      %s712 = scalar_lea.vmem %s5, %s711
      // Predicated region
      $region41: #{custom_efficientnet_forward.11} parent=39 // pred_check
        %p713 = pneg %p144
      $region42: #{custom_efficientnet_forward.11} parent=39 // pred_check_branch
        %715 = sbr.rel (%p713) target = $region44
      $region43: #{custom_efficientnet_forward.11} parent=39 // pred_region
        _
      $region44: #{custom_efficientnet_forward.11} parent=39 // pred_fallthru
        _
    $region40: #{custom_efficientnet_forward.11} parent=5 // pred_fallthru
      _
    %p716 = scmp.le.s32.totalorder 2, %s11
    // Predicated region
    $region45: #{custom_efficientnet_forward.11} parent=5 // pred_check
      %p717 = pneg %p716
    $region46: #{custom_efficientnet_forward.11} parent=5 // pred_check_branch
      %719 = sbr.rel (%p717) target = $region48
    $region47: #{custom_efficientnet_forward.11} parent=5 // pred_region
      %s720 = ssub.s32 %s11, 2
      // Predicated region
      $region49: #{custom_efficientnet_forward.11} parent=47 // pred_check
        %p721 = pneg %p150
      $region50: #{custom_efficientnet_forward.11} parent=47 // pred_check_branch
        %723 = sbr.rel (%p721) target = $region52
      $region51: #{custom_efficientnet_forward.11} parent=47 // pred_region
        %p724 = scmp.lt.s32.totalorder %s17, 1
        %s725 = scalar_select %p724, %s17, 1
        %s726 = smul.addr %s725, 4
        %s727 = scalar_lea.vmem %s5, %s726
      $region52: #{custom_efficientnet_forward.11} parent=47 // pred_fallthru
        _
    $region48: #{custom_efficientnet_forward.11} parent=5 // pred_fallthru
      _
  $region6: #{custom_efficientnet_forward.11} parent=0 // loop_footer
    %s15 = sadd.s32 1, %s11
  $region7: #{custom_efficientnet_forward.11} parent=0 // loop_footer_branch
    %10 = sbr.rel target = $region3
  $region8: #{custom_efficientnet_forward.11} parent=0 // loop_exit
    _

// kernel: custom_efficientnet_forward.12
$region0: #{custom_efficientnet_forward.12}
  #allocation0 [shape = 'u32[]', space=smem, size = 0x4, offset = 0x4, fixed_abs, tag = 'smem constant byte address 0x4 - core index']
  #allocation1 [shape = 'u32[144,128]{1,0:T(1,128)}', space=vmem, size = 0x12000, scoped, tag = 'internal scratch']
  %s0 = inlined_call_operand.vmem [shape: bf16[2,64,512], index: 0, kind: input, shape index: {}]
  %s1 = inlined_call_operand.vmem [shape: bf16[2,1,512], index: 1, kind: input, shape index: {}]
  %s2 = inlined_call_operand.vmem [shape: bf16[512,128], index: 2, kind: input, shape index: {}]
  %s3 = inlined_call_operand.vmem [shape: f32[1,128], index: 3, kind: input, shape index: {}]
  %s4 = inlined_call_operand.vmem [shape: f32[1,128], index: 4, kind: input, shape index: {}]
  %s5 = inlined_call_operand.vmem [shape: bf16[2,64,128], index: 5, kind: input, shape index: {}]
  %s6 = inlined_call_operand.vmem [shape: bf16[2,64,128], index: 6, kind: output, shape index: {}]
  %s7 = sld [smem:[#allocation0]]
  $region57: #{custom_efficientnet_forward.12} parent=0
    _
  %s9 = ssub.s32 1, %s7
  %s10 = scalar_select 0, %s9, %s7
  loop: start=0, step=1, limit=4
  $region2: #{custom_efficientnet_forward.12} parent=0 // loop_pre_header
    _
  $region3: #{custom_efficientnet_forward.12} parent=0 // loop_header
    %s12 = sphi 0, %s16
    %p13 = scmp.ge.s32.totalorder %s12, 4
    %s19 = sphi 0, %s31
    %s20 = sphi 0, %s27
    %s21 = sphi 0, %s19
    %s22 = sphi 0, %s20
    %s23 = sphi 0, %s21
    %s24 = sphi 0, %s22
    %s36 = sphi 0, %s38
    %s39 = sphi 0, %s36
    %s40 = sphi 0, %s39
    %s56 = sphi 0, %s40
    %s62 = sphi 0, %s64
    %s65 = sphi 0, %s62
    %s66 = sphi 0, %s65
    %s82 = sphi 0, %s66
    %s86 = sphi 0, %s86
    %s88 = sphi 0, %s86
    %s89 = sphi 0, %s88
    %s103 = sphi 0, %s89
    %s107 = sphi 0, %s107
    %s109 = sphi 0, %s107
    %s110 = sphi 0, %s109
    %s124 = sphi 0, %s110
    %s128 = sphi 0, %s128
    %s130 = sphi 0, %s128
    %s131 = sphi 0, %s130
    %s145 = sphi 0, %s131
    %s153 = sphi 0, %s155
    %s156 = sphi 0, %s153
    %s157 = sphi 0, %s156
    %s173 = sphi 0, %s157
    %s181 = sphi 0, %s183
    %s184 = sphi 0, %s181
    %s185 = sphi 0, %s184
    %s201 = sphi 0, %s185
  $region4: #{custom_efficientnet_forward.12} parent=0 // loop_header_branch
    %15 = sbr.rel (%p13) target = $region8
  $region5: #{custom_efficientnet_forward.12} parent=0 // loop_body
    %s17 = ssub.s32 %s12, 1
    %s18 = ssub.s32 %s12, 2
    %s25 = sadd.s32 1, %s20
    %p26 = scmp.ge.s32.totalorder %s25, 1
    %s27 = scalar_select %p26, 0, %s25
    %s28 = sadd.s32 1, %s19
    %s29 = scalar_select %p26, %s28, %s19
    %p30 = scmp.ge.s32.totalorder %s29, 2
    %s31 = scalar_select %p30, 0, %s29
    %s32 = ssub.s32 %s19, %s31
    %s33 = ssub.s32 %s20, %s27
    %s34 = sor.u32 %s32, %s33
    %p35 = scmp.eq.s32.totalorder %s34, 0
    %s37 = sadd.s32 %s36, 1
    %s38 = scalar_select %p35, %s36, %s37
    %p41 = pneg %p35
    %p42 = scmp.eq.s32.totalorder %s12, 1
    %p43 = por %p41, %p42
    %p44 = scmp.ne.s32.totalorder %s36, %s39
    %p45 = scmp.eq.s32.totalorder %s12, 0
    %p46 = por %p44, %p45
    %p47 = scmp.ne.s32.totalorder %s36, %s39
    %p48 = scmp.eq.s32.totalorder %s17, 1
    %p49 = por %p47, %p48
    %p50 = scmp.ne.s32.totalorder %s39, %s40
    %p51 = scmp.eq.s32.totalorder %s17, 0
    %p52 = por %p50, %p51
    %p53 = scmp.ne.s32.totalorder %s39, %s40
    %p54 = scmp.eq.s32.totalorder %s18, 1
    %p55 = por %p53, %p54
    %p57 = scmp.ne.s32.totalorder %s40, %s56
    %p58 = scmp.eq.s32.totalorder %s18, 0
    %p59 = por %p57, %p58
    %s60 = ssub.s32 %s19, %s31
    %p61 = scmp.eq.s32.totalorder %s60, 0
    %s63 = sadd.s32 %s62, 1
    %s64 = scalar_select %p61, %s62, %s63
    %p67 = pneg %p61
    %p68 = scmp.eq.s32.totalorder %s12, 1
    %p69 = por %p67, %p68
    %p70 = scmp.ne.s32.totalorder %s62, %s65
    %p71 = scmp.eq.s32.totalorder %s12, 0
    %p72 = por %p70, %p71
    %p73 = scmp.ne.s32.totalorder %s62, %s65
    %p74 = scmp.eq.s32.totalorder %s17, 1
    %p75 = por %p73, %p74
    %p76 = scmp.ne.s32.totalorder %s65, %s66
    %p77 = scmp.eq.s32.totalorder %s17, 0
    %p78 = por %p76, %p77
    %p79 = scmp.ne.s32.totalorder %s65, %s66
    %p80 = scmp.eq.s32.totalorder %s18, 1
    %p81 = por %p79, %p80
    %p83 = scmp.ne.s32.totalorder %s66, %s82
    %p84 = scmp.eq.s32.totalorder %s18, 0
    %p85 = por %p83, %p84
    %s87 = sadd.s32 %s86, 1
    %p90 = scmp.eq.s32.totalorder %s12, 1
    %p91 = scmp.ne.s32.totalorder %s86, %s88
    %p92 = scmp.eq.s32.totalorder %s12, 0
    %p93 = por %p91, %p92
    %p94 = scmp.ne.s32.totalorder %s86, %s88
    %p95 = scmp.eq.s32.totalorder %s17, 1
    %p96 = por %p94, %p95
    %p97 = scmp.ne.s32.totalorder %s88, %s89
    %p98 = scmp.eq.s32.totalorder %s17, 0
    %p99 = por %p97, %p98
    %p100 = scmp.ne.s32.totalorder %s88, %s89
    %p101 = scmp.eq.s32.totalorder %s18, 1
    %p102 = por %p100, %p101
    %p104 = scmp.ne.s32.totalorder %s89, %s103
    %p105 = scmp.eq.s32.totalorder %s18, 0
    %p106 = por %p104, %p105
    %s108 = sadd.s32 %s107, 1
    %p111 = scmp.eq.s32.totalorder %s12, 1
    %p112 = scmp.ne.s32.totalorder %s107, %s109
    %p113 = scmp.eq.s32.totalorder %s12, 0
    %p114 = por %p112, %p113
    %p115 = scmp.ne.s32.totalorder %s107, %s109
    %p116 = scmp.eq.s32.totalorder %s17, 1
    %p117 = por %p115, %p116
    %p118 = scmp.ne.s32.totalorder %s109, %s110
    %p119 = scmp.eq.s32.totalorder %s17, 0
    %p120 = por %p118, %p119
    %p121 = scmp.ne.s32.totalorder %s109, %s110
    %p122 = scmp.eq.s32.totalorder %s18, 1
    %p123 = por %p121, %p122
    %p125 = scmp.ne.s32.totalorder %s110, %s124
    %p126 = scmp.eq.s32.totalorder %s18, 0
    %p127 = por %p125, %p126
    %s129 = sadd.s32 %s128, 1
    %p132 = scmp.eq.s32.totalorder %s12, 1
    %p133 = scmp.ne.s32.totalorder %s128, %s130
    %p134 = scmp.eq.s32.totalorder %s12, 0
    %p135 = por %p133, %p134
    %p136 = scmp.ne.s32.totalorder %s128, %s130
    %p137 = scmp.eq.s32.totalorder %s17, 1
    %p138 = por %p136, %p137
    %p139 = scmp.ne.s32.totalorder %s130, %s131
    %p140 = scmp.eq.s32.totalorder %s17, 0
    %p141 = por %p139, %p140
    %p142 = scmp.ne.s32.totalorder %s130, %s131
    %p143 = scmp.eq.s32.totalorder %s18, 1
    %p144 = por %p142, %p143
    %p146 = scmp.ne.s32.totalorder %s131, %s145
    %p147 = scmp.eq.s32.totalorder %s18, 0
    %p148 = por %p146, %p147
    %s149 = ssub.s32 %s19, %s31
    %s150 = ssub.s32 %s20, %s27
    %s151 = sor.u32 %s149, %s150
    %p152 = scmp.eq.s32.totalorder %s151, 0
    %s154 = sadd.s32 %s153, 1
    %s155 = scalar_select %p152, %s153, %s154
    %p158 = pneg %p152
    %p159 = scmp.eq.s32.totalorder %s12, 1
    %p160 = por %p158, %p159
    %p161 = scmp.ne.s32.totalorder %s153, %s156
    %p162 = scmp.eq.s32.totalorder %s12, 0
    %p163 = por %p161, %p162
    %p164 = scmp.ne.s32.totalorder %s153, %s156
    %p165 = scmp.eq.s32.totalorder %s17, 1
    %p166 = por %p164, %p165
    %p167 = scmp.ne.s32.totalorder %s156, %s157
    %p168 = scmp.eq.s32.totalorder %s17, 0
    %p169 = por %p167, %p168
    %p170 = scmp.ne.s32.totalorder %s156, %s157
    %p171 = scmp.eq.s32.totalorder %s18, 1
    %p172 = por %p170, %p171
    %p174 = scmp.ne.s32.totalorder %s157, %s173
    %p175 = scmp.eq.s32.totalorder %s18, 0
    %p176 = por %p174, %p175
    %s177 = ssub.s32 %s19, %s31
    %s178 = ssub.s32 %s20, %s27
    %s179 = sor.u32 %s177, %s178
    %p180 = scmp.eq.s32.totalorder %s179, 0
    %s182 = sadd.s32 %s181, 1
    %s183 = scalar_select %p180, %s181, %s182
    %p186 = pneg %p180
    %p187 = scmp.eq.s32.totalorder %s12, 1
    %p188 = por %p186, %p187
    %p189 = scmp.ne.s32.totalorder %s181, %s184
    %p190 = scmp.eq.s32.totalorder %s12, 0
    %p191 = por %p189, %p190
    %p192 = scmp.ne.s32.totalorder %s181, %s184
    %p193 = scmp.eq.s32.totalorder %s17, 1
    %p194 = por %p192, %p193
    %p195 = scmp.ne.s32.totalorder %s184, %s185
    %p196 = scmp.eq.s32.totalorder %s17, 0
    %p197 = por %p195, %p196
    %p198 = scmp.ne.s32.totalorder %s184, %s185
    %p199 = scmp.eq.s32.totalorder %s18, 1
    %p200 = por %p198, %p199
    %p202 = scmp.ne.s32.totalorder %s185, %s201
    %p203 = scmp.eq.s32.totalorder %s18, 0
    %p204 = por %p202, %p203
    %p205 = scmp.le.s32.totalorder 1, %s12
    %p206 = scmp.lt.s32.totalorder %s12, 3
    %p207 = pnand %p205, %p206
    %p208 = pneg %p207
    // Predicated region
    $region9: #{custom_efficientnet_forward.12} parent=5 // pred_check
      _
    $region10: #{custom_efficientnet_forward.12} parent=5 // pred_check_branch
      %210 = sbr.rel (%p207) target = $region12
    $region11: #{custom_efficientnet_forward.12} parent=5 // pred_region
      %s211 = ssub.s32 %s12, 1
      // Predicated region
      $region13: #{custom_efficientnet_forward.12} parent=11 // pred_check
        %p212 = pneg %p99
      $region14: #{custom_efficientnet_forward.12} parent=11 // pred_check_branch
        %214 = sbr.rel (%p212) target = $region16
      $region15: #{custom_efficientnet_forward.12} parent=11 // pred_region
        _
      $region16: #{custom_efficientnet_forward.12} parent=11 // pred_fallthru
        _
      // Predicated region
      $region17: #{custom_efficientnet_forward.12} parent=11 // pred_check
        %p215 = pneg %p120
      $region18: #{custom_efficientnet_forward.12} parent=11 // pred_check_branch
        %217 = sbr.rel (%p215) target = $region20
      $region19: #{custom_efficientnet_forward.12} parent=11 // pred_region
        _
      $region20: #{custom_efficientnet_forward.12} parent=11 // pred_fallthru
        _
      // Predicated region
      $region21: #{custom_efficientnet_forward.12} parent=11 // pred_check
        %p218 = pneg %p141
      $region22: #{custom_efficientnet_forward.12} parent=11 // pred_check_branch
        %220 = sbr.rel (%p218) target = $region24
      $region23: #{custom_efficientnet_forward.12} parent=11 // pred_region
        _
      $region24: #{custom_efficientnet_forward.12} parent=11 // pred_fallthru
        _
    $region12: #{custom_efficientnet_forward.12} parent=5 // pred_fallthru
      _
    %p221 = scmp.lt.s32.totalorder %s12, 2
    // Predicated region
    $region25: #{custom_efficientnet_forward.12} parent=5 // pred_check
      %p222 = pneg %p221
    $region26: #{custom_efficientnet_forward.12} parent=5 // pred_check_branch
      %224 = sbr.rel (%p222) target = $region28
    $region27: #{custom_efficientnet_forward.12} parent=5 // pred_region
      // Predicated region
      $region29: #{custom_efficientnet_forward.12} parent=27 // pred_check
        %p225 = pneg %p46
      $region30: #{custom_efficientnet_forward.12} parent=27 // pred_check_branch
        %227 = sbr.rel (%p225) target = $region32
      $region31: #{custom_efficientnet_forward.12} parent=27 // pred_region
        %s228 = smul.u32 8, %s20
        %p229 = scmp.lt.s32.totalorder %s19, 1
        %s230 = scalar_select %p229, %s19, 1
        %p231 = scmp.lt.s32.totalorder %s228, 7
        %s232 = scalar_select %p231, %s228, 7
        %s233 = smul.addr %s232, 4
        %s234 = smul.addr %s230, 32
        %s235 = sadd.s32 %s233, %s234
        %s236 = smul.addr %s235, 4
        %s237 = scalar_lea.vmem %s0, %s236
        %s238 = smul.u32 8, %s20
      $region32: #{custom_efficientnet_forward.12} parent=27 // pred_fallthru
        _
      // Predicated region
      $region33: #{custom_efficientnet_forward.12} parent=27 // pred_check
        %p239 = pneg %p72
      $region34: #{custom_efficientnet_forward.12} parent=27 // pred_check_branch
        %241 = sbr.rel (%p239) target = $region36
      $region35: #{custom_efficientnet_forward.12} parent=27 // pred_region
        %p242 = scmp.lt.s32.totalorder %s19, 1
        %s243 = scalar_select %p242, %s19, 1
        %s244 = smul.addr %s243, 4
        %s245 = scalar_lea.vmem %s1, %s244
      $region36: #{custom_efficientnet_forward.12} parent=27 // pred_fallthru
        _
      // Predicated region
      $region37: #{custom_efficientnet_forward.12} parent=27 // pred_check
        %p246 = pneg %p163
      $region38: #{custom_efficientnet_forward.12} parent=27 // pred_check_branch
        %248 = sbr.rel (%p246) target = $region40
      $region39: #{custom_efficientnet_forward.12} parent=27 // pred_region
        %s249 = smul.u32 8, %s20
        %p250 = scmp.lt.s32.totalorder %s19, 1
        %s251 = scalar_select %p250, %s19, 1
        %p252 = scmp.lt.s32.totalorder %s249, 7
        %s253 = scalar_select %p252, %s249, 7
        %s254 = smul.addr %s251, 8
        %s255 = sadd.s32 %s253, %s254
        %s256 = smul.addr %s255, 4
        %s257 = scalar_lea.vmem %s5, %s256
        %s258 = smul.u32 8, %s20
      $region40: #{custom_efficientnet_forward.12} parent=27 // pred_fallthru
        _
    $region28: #{custom_efficientnet_forward.12} parent=5 // pred_fallthru
      _
    %p259 = scmp.le.s32.totalorder 1, %s12
    %p260 = scmp.lt.s32.totalorder %s12, 3
    %p261 = pnand %p259, %p260
    %p262 = pneg %p261
    // Predicated region
    $region41: #{custom_efficientnet_forward.12} parent=5 // pred_check
      _
    $region42: #{custom_efficientnet_forward.12} parent=5 // pred_check_branch
      %264 = sbr.rel (%p261) target = $region44
    $region43: #{custom_efficientnet_forward.12} parent=5 // pred_region
      %s265 = ssub.s32 %s12, 1
      %s266 = smul.u32 8, %s22
      %p267 = scmp.lt.s32.totalorder %s21, 1
      %s268 = scalar_select %p267, %s21, 1
      %p269 = scmp.lt.s32.totalorder %s266, 7
      %s270 = scalar_select %p269, %s266, 7
      %s271 = smul.addr %s270, 4
      %s272 = smul.addr %s268, 32
      %s273 = sadd.s32 %s271, %s272
      %s274 = smul.addr %s273, 4
      %s275 = scalar_lea.vmem %s0, %s274
      %p276 = pneg %p52
      %p277 = pneg %p49
      %p278 = scmp.lt.s32.totalorder %s21, 1
      %s279 = scalar_select %p278, %s21, 1
      %s280 = smul.addr %s279, 4
      %s281 = scalar_lea.vmem %s1, %s280
      %p282 = pneg %p78
      %p283 = pneg %p75
      %p284 = pneg %p99
      %p285 = pneg %p96
      %p286 = pneg %p120
      %p287 = pneg %p117
      %p288 = pneg %p141
      %p289 = pneg %p138
      %s290 = smul.u32 8, %s22
      %p291 = scmp.lt.s32.totalorder %s21, 1
      %s292 = scalar_select %p291, %s21, 1
      %p293 = scmp.lt.s32.totalorder %s290, 7
      %s294 = scalar_select %p293, %s290, 7
      %s295 = smul.addr %s292, 8
      %s296 = sadd.s32 %s294, %s295
      %s297 = smul.addr %s296, 4
      %s298 = scalar_lea.vmem %s5, %s297
      %p299 = pneg %p169
      %p300 = pneg %p166
      %p301 = pneg %p197
      %p302 = pneg %p194
      %s303 = smul.u32 8, %s22
      %p304 = scmp.lt.s32.totalorder %s21, 1
      %s305 = scalar_select %p304, %s21, 1
      %p306 = scmp.lt.s32.totalorder %s303, 7
      %s307 = scalar_select %p306, %s303, 7
      %s308 = smul.addr %s305, 8
      %s309 = sadd.s32 %s307, %s308
      %s310 = smul.addr %s309, 4
      %s311 = scalar_lea.vmem %s6, %s310
      %s312 = smul.u32 8, %s22
      %p313 = scmp.lt.s32.totalorder %s21, 1
      %s314 = scalar_select %p313, %s21, 1
      %p315 = scmp.lt.s32.totalorder %s312, 7
      %s316 = scalar_select %p315, %s312, 7
      %s317 = smul.addr %s316, 4
      %s318 = smul.addr %s314, 32
      %s319 = sadd.s32 %s317, %s318
      %s320 = smul.addr %s319, 4
      %s321 = scalar_lea.vmem %s0, %s320
      %s322 = smul.u32 8, %s22
      %p323 = scmp.lt.s32.totalorder %s21, 1
      %s324 = scalar_select %p323, %s21, 1
      %s325 = smul.addr %s324, 4
      %s326 = scalar_lea.vmem %s1, %s325
      %s327 = smul.u32 8, %s22
      %p328 = scmp.lt.s32.totalorder %s21, 1
      %s329 = scalar_select %p328, %s21, 1
      %p330 = scmp.lt.s32.totalorder %s327, 7
      %s331 = scalar_select %p330, %s327, 7
      %s332 = smul.addr %s329, 8
      %s333 = sadd.s32 %s331, %s332
      %s334 = smul.addr %s333, 4
      %s335 = scalar_lea.vmem %s5, %s334
      %s336 = smul.u32 8, %s22
      %s337 = smul.u32 8, %s22
      %p338 = scmp.lt.s32.totalorder %s21, 1
      %s339 = scalar_select %p338, %s21, 1
      %p340 = scmp.lt.s32.totalorder %s337, 7
      %s341 = scalar_select %p340, %s337, 7
      %s342 = smul.addr %s339, 8
      %s343 = sadd.s32 %s341, %s342
      %s344 = smul.addr %s343, 4
      %s345 = scalar_lea.vmem %s6, %s344
      %s346 = smul.u32 8, %s22
      %v348 = vld [vmem:[%s321] sm:$0xff]
      %v349 = vld [vmem:[%s321 + $0x8] sm:$0xff]
      %v350 = vld [vmem:[%s321 + $0x10] sm:$0xff]
      %v351 = vld [vmem:[%s321 + $0x18] sm:$0xff]
      %v352 = vld [vmem:[%s321 + $0x20] sm:$0xff]
      %v353 = vld [vmem:[%s321 + $0x28] sm:$0xff]
      %v354 = vld [vmem:[%s321 + $0x30] sm:$0xff]
      %v355 = vld [vmem:[%s321 + $0x38] sm:$0xff]
      %v356 = vld [vmem:[%s321 + $0x40] sm:$0xff]
      %v357 = vld [vmem:[%s321 + $0x48] sm:$0xff]
      %v358 = vld [vmem:[%s321 + $0x50] sm:$0xff]
      %v359 = vld [vmem:[%s321 + $0x58] sm:$0xff]
      %v360 = vld [vmem:[%s321 + $0x60] sm:$0xff]
      %v361 = vld [vmem:[%s321 + $0x68] sm:$0xff]
      %v362 = vld [vmem:[%s321 + $0x70] sm:$0xff]
      %v363 = vld [vmem:[%s321 + $0x78] sm:$0xff]
      %v364 = vld [vmem:[%s326] sm:$0xf]
      %v367 = vunpack.c.l.s4 1966171168
      %v368 = vunpack.c.0.s8 %v367
      %v369 = vlaneseq
      %v370 = vshrl.u32 %v369, 7
      %v371 = vsub.s32 %v368, %v370
      %v372 = vrot.slane %v364, %v371
      %v373 = vcombine.high %v372, %v372
      %v375 = vunpack.c.l.s4 1966171168
      %v376 = vunpack.c.0.s8 %v375
      %v377 = vlaneseq
      %v378 = vshrl.u32 %v377, 7
      %v379 = vsub.s32 %v376, %v378
      %v380 = vrot.slane %v372, %v379
      %v382 = vunpack.c.l.s4 1966171168
      %v383 = vunpack.c.0.s8 %v382
      %v384 = vlaneseq
      %v385 = vshrl.u32 %v384, 7
      %v386 = vsub.s32 %v383, %v385
      %v387 = vrot.slane %v373, %v386
      %v388 = vcombine.high %v380, %v380
      %v389 = vcombine.high %v387, %v387
      %v391 = vpack.i.b16 %v380, %v380
      %v393 = vlaneseq
      %v394 = vshrl.u32 %v393, 7
      %v395 = vsub.s32 0, %v394
      %v396 = vrot.slane %v391, %v395
      %v398 = vpack.i.b16 %v387, %v387
      %v400 = vlaneseq
      %v401 = vshrl.u32 %v400, 7
      %v402 = vsub.s32 0, %v401
      %v403 = vrot.slane %v398, %v402
      %v405 = vpack.i.b16 %v388, %v388
      %v407 = vlaneseq
      %v408 = vshrl.u32 %v407, 7
      %v409 = vsub.s32 0, %v408
      %v410 = vrot.slane %v405, %v409
      %v412 = vpack.i.b16 %v389, %v389
      %v414 = vlaneseq
      %v415 = vshrl.u32 %v414, 7
      %v416 = vsub.s32 0, %v415
      %v417 = vrot.slane %v412, %v416
      %v422 = vunpack.c.l.b16 %v396
      %v423 = vunpack.c.l.b16 %v403
      %v424 = vunpack.c.l.b16 %v410
      %v425 = vunpack.c.l.b16 %v417
      %v426 = vpack.c.b16 %v423, %v422
      %v427 = vpack.c.b16 %v425, %v424
      %v430 = vmul.bf16 %v348, %v426
      %v431 = vmul.bf16 %v349, %v427
      %v432 = vmul.bf16 %v350, %v426
      %v433 = vmul.bf16 %v351, %v427
      %v434 = vmul.bf16 %v352, %v426
      %v435 = vmul.bf16 %v353, %v427
      %v436 = vmul.bf16 %v354, %v426
      %v437 = vmul.bf16 %v355, %v427
      %v438 = vmul.bf16 %v356, %v426
      %v439 = vmul.bf16 %v357, %v427
      %v440 = vmul.bf16 %v358, %v426
      %v441 = vmul.bf16 %v359, %v427
      %v442 = vmul.bf16 %v360, %v426
      %v443 = vmul.bf16 %v361, %v427
      %v444 = vmul.bf16 %v362, %v426
      %v445 = vmul.bf16 %v363, %v427
      %v446 = vld [vmem:[%s2] sm:$0xf]
      %v447 = vld [vmem:[%s2 + $0x4] sm:$0xf]
      %v448 = vld [vmem:[%s2 + $0x8] sm:$0xf]
      %v449 = vld [vmem:[%s2 + $0xc] sm:$0xf]
      %v450 = vld [vmem:[%s2 + $0x10] sm:$0xf]
      %v451 = vld [vmem:[%s2 + $0x14] sm:$0xf]
      %v452 = vld [vmem:[%s2 + $0x18] sm:$0xf]
      %v453 = vld [vmem:[%s2 + $0x1c] sm:$0xf]
      %v454 = vld [vmem:[%s2 + $0x20] sm:$0xf]
      %v455 = vld [vmem:[%s2 + $0x24] sm:$0xf]
      %v456 = vld [vmem:[%s2 + $0x28] sm:$0xf]
      %v457 = vld [vmem:[%s2 + $0x2c] sm:$0xf]
      %v458 = vld [vmem:[%s2 + $0x30] sm:$0xf]
      %v459 = vld [vmem:[%s2 + $0x34] sm:$0xf]
      %v460 = vld [vmem:[%s2 + $0x38] sm:$0xf]
      %v461 = vld [vmem:[%s2 + $0x3c] sm:$0xf]
      %v462 = vld [vmem:[%s2 + $0x40] sm:$0xf]
      %v463 = vld [vmem:[%s2 + $0x44] sm:$0xf]
      %v464 = vld [vmem:[%s2 + $0x48] sm:$0xf]
      %v465 = vld [vmem:[%s2 + $0x4c] sm:$0xf]
      %v466 = vld [vmem:[%s2 + $0x50] sm:$0xf]
      %v467 = vld [vmem:[%s2 + $0x54] sm:$0xf]
      %v468 = vld [vmem:[%s2 + $0x58] sm:$0xf]
      %v469 = vld [vmem:[%s2 + $0x5c] sm:$0xf]
      %v470 = vld [vmem:[%s2 + $0x60] sm:$0xf]
      %v471 = vld [vmem:[%s2 + $0x64] sm:$0xf]
      %v472 = vld [vmem:[%s2 + $0x68] sm:$0xf]
      %v473 = vld [vmem:[%s2 + $0x6c] sm:$0xf]
      %v474 = vld [vmem:[%s2 + $0x70] sm:$0xf]
      %v475 = vld [vmem:[%s2 + $0x74] sm:$0xf]
      %v476 = vld [vmem:[%s2 + $0x78] sm:$0xf]
      %v477 = vld [vmem:[%s2 + $0x7c] sm:$0xf]
      %v478 = vld [vmem:[%s2 + $0x80] sm:$0xf]
      %v479 = vld [vmem:[%s2 + $0x84] sm:$0xf]
      %v480 = vld [vmem:[%s2 + $0x88] sm:$0xf]
      %v481 = vld [vmem:[%s2 + $0x8c] sm:$0xf]
      %v482 = vld [vmem:[%s2 + $0x90] sm:$0xf]
      %v483 = vld [vmem:[%s2 + $0x94] sm:$0xf]
      %v484 = vld [vmem:[%s2 + $0x98] sm:$0xf]
      %v485 = vld [vmem:[%s2 + $0x9c] sm:$0xf]
      %v486 = vld [vmem:[%s2 + $0xa0] sm:$0xf]
      %v487 = vld [vmem:[%s2 + $0xa4] sm:$0xf]
      %v488 = vld [vmem:[%s2 + $0xa8] sm:$0xf]
      %v489 = vld [vmem:[%s2 + $0xac] sm:$0xf]
      %v490 = vld [vmem:[%s2 + $0xb0] sm:$0xf]
      %v491 = vld [vmem:[%s2 + $0xb4] sm:$0xf]
      %v492 = vld [vmem:[%s2 + $0xb8] sm:$0xf]
      %v493 = vld [vmem:[%s2 + $0xbc] sm:$0xf]
      %v494 = vld [vmem:[%s2 + $0xc0] sm:$0xf]
      %v495 = vld [vmem:[%s2 + $0xc4] sm:$0xf]
      %v496 = vld [vmem:[%s2 + $0xc8] sm:$0xf]
      %v497 = vld [vmem:[%s2 + $0xcc] sm:$0xf]
      %v498 = vld [vmem:[%s2 + $0xd0] sm:$0xf]
      %v499 = vld [vmem:[%s2 + $0xd4] sm:$0xf]
      %v500 = vld [vmem:[%s2 + $0xd8] sm:$0xf]
      %v501 = vld [vmem:[%s2 + $0xdc] sm:$0xf]
      %v502 = vld [vmem:[%s2 + $0xe0] sm:$0xf]
      %v503 = vld [vmem:[%s2 + $0xe4] sm:$0xf]
      %v504 = vld [vmem:[%s2 + $0xe8] sm:$0xf]
      %v505 = vld [vmem:[%s2 + $0xec] sm:$0xf]
      %v506 = vld [vmem:[%s2 + $0xf0] sm:$0xf]
      %v507 = vld [vmem:[%s2 + $0xf4] sm:$0xf]
      %v508 = vld [vmem:[%s2 + $0xf8] sm:$0xf]
      %v509 = vld [vmem:[%s2 + $0xfc] sm:$0xf]
      %v526 = vunpack.c.l.b16 %v430
      %v527 = vunpack.c.h.b16 %v430
      %v528 = vunpack.c.l.b16 %v431
      %v529 = vunpack.c.h.b16 %v431
      %v530 = vunpack.c.l.b16 %v432
      %v531 = vunpack.c.h.b16 %v432
      %v532 = vunpack.c.l.b16 %v433
      %v533 = vunpack.c.h.b16 %v433
      %v534 = vunpack.c.l.b16 %v434
      %v535 = vunpack.c.h.b16 %v434
      %v536 = vunpack.c.l.b16 %v435
      %v537 = vunpack.c.h.b16 %v435
      %v538 = vunpack.c.l.b16 %v436
      %v539 = vunpack.c.h.b16 %v436
      %v540 = vunpack.c.l.b16 %v437
      %v541 = vunpack.c.h.b16 %v437
      %v542 = vunpack.c.l.b16 %v438
      %v543 = vunpack.c.h.b16 %v438
      %v544 = vunpack.c.l.b16 %v439
      %v545 = vunpack.c.h.b16 %v439
      %v546 = vunpack.c.l.b16 %v440
      %v547 = vunpack.c.h.b16 %v440
      %v548 = vunpack.c.l.b16 %v441
      %v549 = vunpack.c.h.b16 %v441
      %v550 = vunpack.c.l.b16 %v442
      %v551 = vunpack.c.h.b16 %v442
      %v552 = vunpack.c.l.b16 %v443
      %v553 = vunpack.c.h.b16 %v443
      %v554 = vunpack.c.l.b16 %v444
      %v555 = vunpack.c.h.b16 %v444
      %v556 = vunpack.c.l.b16 %v445
      %v557 = vunpack.c.h.b16 %v445
      %v558 = vpack.c.b16 %v530, %v526
      %v559 = vpack.c.b16 %v531, %v527
      %v560 = vpack.c.b16 %v532, %v528
      %v561 = vpack.c.b16 %v533, %v529
      %v562 = vpack.c.b16 %v538, %v534
      %v563 = vpack.c.b16 %v539, %v535
      %v564 = vpack.c.b16 %v540, %v536
      %v565 = vpack.c.b16 %v541, %v537
      %v566 = vpack.c.b16 %v546, %v542
      %v567 = vpack.c.b16 %v547, %v543
      %v568 = vpack.c.b16 %v548, %v544
      %v569 = vpack.c.b16 %v549, %v545
      %v570 = vpack.c.b16 %v554, %v550
      %v571 = vpack.c.b16 %v555, %v551
      %v572 = vpack.c.b16 %v556, %v552
      %v573 = vpack.c.b16 %v557, %v553
      %v654 = vunpack.c.l.b16 %v446
      %v655 = vunpack.c.l.b16 %v447
      %v656 = vunpack.c.l.b16 %v448
      %v657 = vunpack.c.l.b16 %v449
      %v658 = vunpack.c.l.b16 %v450
      %v659 = vunpack.c.l.b16 %v451
      %v660 = vunpack.c.l.b16 %v452
      %v661 = vunpack.c.l.b16 %v453
      %v662 = vunpack.c.l.b16 %v454
      %v663 = vunpack.c.l.b16 %v455
      %v664 = vunpack.c.l.b16 %v456
      %v665 = vunpack.c.l.b16 %v457
      %v666 = vunpack.c.l.b16 %v458
      %v667 = vunpack.c.l.b16 %v459
      %v668 = vunpack.c.l.b16 %v460
      %v669 = vunpack.c.l.b16 %v461
      %v670 = vunpack.c.l.b16 %v462
      %v671 = vunpack.c.l.b16 %v463
      %v672 = vunpack.c.l.b16 %v464
      %v673 = vunpack.c.l.b16 %v465
      %v674 = vunpack.c.l.b16 %v466
      %v675 = vunpack.c.l.b16 %v467
      %v676 = vunpack.c.l.b16 %v468
      %v677 = vunpack.c.l.b16 %v469
      %v678 = vunpack.c.l.b16 %v470
      %v679 = vunpack.c.l.b16 %v471
      %v680 = vunpack.c.l.b16 %v472
      %v681 = vunpack.c.l.b16 %v473
      %v682 = vunpack.c.l.b16 %v474
      %v683 = vunpack.c.l.b16 %v475
      %v684 = vunpack.c.l.b16 %v476
      %v685 = vunpack.c.l.b16 %v477
      %v686 = vunpack.c.l.b16 %v478
      %v687 = vunpack.c.l.b16 %v479
      %v688 = vunpack.c.l.b16 %v480
      %v689 = vunpack.c.l.b16 %v481
      %v690 = vunpack.c.l.b16 %v482
      %v691 = vunpack.c.l.b16 %v483
      %v692 = vunpack.c.l.b16 %v484
      %v693 = vunpack.c.l.b16 %v485
      %v694 = vunpack.c.l.b16 %v486
      %v695 = vunpack.c.l.b16 %v487
      %v696 = vunpack.c.l.b16 %v488
      %v697 = vunpack.c.l.b16 %v489
      %v698 = vunpack.c.l.b16 %v490
      %v699 = vunpack.c.l.b16 %v491
      %v700 = vunpack.c.l.b16 %v492
      %v701 = vunpack.c.l.b16 %v493
      %v702 = vunpack.c.l.b16 %v494
      %v703 = vunpack.c.l.b16 %v495
      %v704 = vunpack.c.l.b16 %v496
      %v705 = vunpack.c.l.b16 %v497
      %v706 = vunpack.c.l.b16 %v498
      %v707 = vunpack.c.l.b16 %v499
      %v708 = vunpack.c.l.b16 %v500
      %v709 = vunpack.c.l.b16 %v501
      %v710 = vunpack.c.l.b16 %v502
      %v711 = vunpack.c.l.b16 %v503
      %v712 = vunpack.c.l.b16 %v504
      %v713 = vunpack.c.l.b16 %v505
      %v714 = vunpack.c.l.b16 %v506
      %v715 = vunpack.c.l.b16 %v507
      %v716 = vunpack.c.l.b16 %v508
      %v717 = vunpack.c.l.b16 %v509
      %v718 = vpack.c.b16 %v655, %v654
      %v719 = vpack.c.b16 %v657, %v656
      %v720 = vpack.c.b16 %v659, %v658
      %v721 = vpack.c.b16 %v661, %v660
      %v722 = vpack.c.b16 %v663, %v662
      %v723 = vpack.c.b16 %v665, %v664
      %v724 = vpack.c.b16 %v667, %v666
      %v725 = vpack.c.b16 %v669, %v668
      %v726 = vpack.c.b16 %v671, %v670
      %v727 = vpack.c.b16 %v673, %v672
      %v728 = vpack.c.b16 %v675, %v674
      %v729 = vpack.c.b16 %v677, %v676
      %v730 = vpack.c.b16 %v679, %v678
      %v731 = vpack.c.b16 %v681, %v680
      %v732 = vpack.c.b16 %v683, %v682
      %v733 = vpack.c.b16 %v685, %v684
      %v734 = vpack.c.b16 %v687, %v686
      %v735 = vpack.c.b16 %v689, %v688
      %v736 = vpack.c.b16 %v691, %v690
      %v737 = vpack.c.b16 %v693, %v692
      %v738 = vpack.c.b16 %v695, %v694
      %v739 = vpack.c.b16 %v697, %v696
      %v740 = vpack.c.b16 %v699, %v698
      %v741 = vpack.c.b16 %v701, %v700
      %v742 = vpack.c.b16 %v703, %v702
      %v743 = vpack.c.b16 %v705, %v704
      %v744 = vpack.c.b16 %v707, %v706
      %v745 = vpack.c.b16 %v709, %v708
      %v746 = vpack.c.b16 %v711, %v710
      %v747 = vpack.c.b16 %v713, %v712
      %v748 = vpack.c.b16 %v715, %v714
      %v749 = vpack.c.b16 %v717, %v716
      %782 = vmatprep.subr.bf16.mxu0 0
      %783 = vmatpush1.bf16.msra.mxu0 %v718
      %784 = vmatprep.subr.bf16.mxu0 0
      %785 = vmatpush1.bf16.msra.mxu0 %v719
      %786 = vmatprep.subr.bf16.mxu0 0
      %787 = vmatpush1.bf16.msra.mxu0 %v720
      %788 = vmatprep.subr.bf16.mxu0 0
      %789 = vmatpush1.bf16.msra.mxu0 %v721
      %790 = vmatprep.subr.bf16.mxu0 0
      %791 = vmatpush1.bf16.msra.mxu0 %v722
      %792 = vmatprep.subr.bf16.mxu0 0
      %793 = vmatpush1.bf16.msra.mxu0 %v723
      %794 = vmatprep.subr.bf16.mxu0 0
      %795 = vmatpush1.bf16.msra.mxu0 %v724
      %796 = vmatprep.subr.bf16.mxu0 0
      %797 = vmatpush1.bf16.msra.mxu0 %v725
      %798 = vmatprep.subr.bf16.mxu0 0
      %799 = vmatpush1.bf16.msra.mxu0 %v726
      %800 = vmatprep.subr.bf16.mxu0 0
      %801 = vmatpush1.bf16.msra.mxu0 %v727
      %802 = vmatprep.subr.bf16.mxu0 0
      %803 = vmatpush1.bf16.msra.mxu0 %v728
      %804 = vmatprep.subr.bf16.mxu0 0
      %805 = vmatpush1.bf16.msra.mxu0 %v729
      %806 = vmatprep.subr.bf16.mxu0 0
      %807 = vmatpush1.bf16.msra.mxu0 %v730
      %808 = vmatprep.subr.bf16.mxu0 0
      %809 = vmatpush1.bf16.msra.mxu0 %v731
      %810 = vmatprep.subr.bf16.mxu0 0
      %811 = vmatpush1.bf16.msra.mxu0 %v732
      %812 = vmatprep.subr.bf16.mxu0 0
      %813 = vmatpush1.bf16.msra.mxu0 %v733
      %814 = vmatprep.mubr.bf16.mxu0 %v559
      %815 = vmatmul.mubr.bf16.gmra.mrb[0].mxu0 %v558
      %v816 = vpop.f32.mrb[0].mxu0
      %v817 = vadd.f32 0.0, %v816
      %v818 = vpop.f32.mrb[0].mxu0
      %v819 = vpop.f32.mrb[0].mxu0
      %v820 = vadd.f32 0.0, %v819
      %v821 = vpop.f32.mrb[0].mxu0
      %822 = vmatprep.mubr.bf16.mxu0 %v563
      %823 = vmatmul.mubr.bf16.gmra.mrb[0].mxu0 %v562
      %v824 = vpop.f32.mrb[0].mxu0
      %v825 = vadd.f32 0.0, %v824
      %v826 = vpop.f32.mrb[0].mxu0
      %v827 = vpop.f32.mrb[0].mxu0
      %v828 = vadd.f32 0.0, %v827
      %v829 = vpop.f32.mrb[0].mxu0
      %830 = vmatprep.mubr.bf16.mxu0 %v567
      %831 = vmatmul.mubr.bf16.gmra.mrb[0].mxu0 %v566
      %v832 = vpop.f32.mrb[0].mxu0
      %v833 = vadd.f32 0.0, %v832
      %v834 = vpop.f32.mrb[0].mxu0
      %v835 = vpop.f32.mrb[0].mxu0
      %v836 = vadd.f32 0.0, %v835
      %v837 = vpop.f32.mrb[0].mxu0
      %838 = vmatprep.mubr.bf16.mxu0 %v571
      %839 = vmatmul.mubr.bf16.gmra.mrb[0].mxu0 %v570
      %v840 = vpop.f32.mrb[0].mxu0
      %v841 = vadd.f32 0.0, %v840
      %v842 = vpop.f32.mrb[0].mxu0
      %v843 = vpop.f32.mrb[0].mxu0
      %v844 = vadd.f32 0.0, %v843
      %v845 = vpop.f32.mrb[0].mxu0
      %846 = vdwg.mxu0
      %847 = vmatprep.subr.bf16.mxu0 0
      %848 = vmatpush1.bf16.msra.mxu0 %v734
      %849 = vmatprep.subr.bf16.mxu0 0
      %850 = vmatpush1.bf16.msra.mxu0 %v735
      %851 = vmatprep.subr.bf16.mxu0 0
      %852 = vmatpush1.bf16.msra.mxu0 %v736
      %853 = vmatprep.subr.bf16.mxu0 0
      %854 = vmatpush1.bf16.msra.mxu0 %v737
      %855 = vmatprep.subr.bf16.mxu0 0
      %856 = vmatpush1.bf16.msra.mxu0 %v738
      %857 = vmatprep.subr.bf16.mxu0 0
      %858 = vmatpush1.bf16.msra.mxu0 %v739
      %859 = vmatprep.subr.bf16.mxu0 0
      %860 = vmatpush1.bf16.msra.mxu0 %v740
      %861 = vmatprep.subr.bf16.mxu0 0
      %862 = vmatpush1.bf16.msra.mxu0 %v741
      %863 = vmatprep.subr.bf16.mxu0 0
      %864 = vmatpush1.bf16.msra.mxu0 %v742
      %865 = vmatprep.subr.bf16.mxu0 0
      %866 = vmatpush1.bf16.msra.mxu0 %v743
      %867 = vmatprep.subr.bf16.mxu0 0
      %868 = vmatpush1.bf16.msra.mxu0 %v744
      %869 = vmatprep.subr.bf16.mxu0 0
      %870 = vmatpush1.bf16.msra.mxu0 %v745
      %871 = vmatprep.subr.bf16.mxu0 0
      %872 = vmatpush1.bf16.msra.mxu0 %v746
      %873 = vmatprep.subr.bf16.mxu0 0
      %874 = vmatpush1.bf16.msra.mxu0 %v747
      %875 = vmatprep.subr.bf16.mxu0 0
      %876 = vmatpush1.bf16.msra.mxu0 %v748
      %877 = vmatprep.subr.bf16.mxu0 0
      %878 = vmatpush1.bf16.msra.mxu0 %v749
      %879 = vmatprep.mubr.bf16.mxu0 %v561
      %880 = vmatmul.mubr.bf16.gmra.mrb[0].mxu0 %v560
      %v881 = vpop.f32.mrb[0].mxu0
      %v882 = vadd.f32 %v817, %v881
      %v883 = vpop.f32.mrb[0].mxu0
      %v884 = vpop.f32.mrb[0].mxu0
      %v885 = vadd.f32 %v820, %v884
      %v886 = vpop.f32.mrb[0].mxu0
      %887 = vmatprep.mubr.bf16.mxu0 %v565
      %888 = vmatmul.mubr.bf16.gmra.mrb[0].mxu0 %v564
      %v889 = vpop.f32.mrb[0].mxu0
      %v890 = vadd.f32 %v825, %v889
      %v891 = vpop.f32.mrb[0].mxu0
      %v892 = vpop.f32.mrb[0].mxu0
      %v893 = vadd.f32 %v828, %v892
      %v894 = vpop.f32.mrb[0].mxu0
      %895 = vmatprep.mubr.bf16.mxu0 %v569
      %896 = vmatmul.mubr.bf16.gmra.mrb[0].mxu0 %v568
      %v897 = vpop.f32.mrb[0].mxu0
      %v898 = vadd.f32 %v833, %v897
      %v899 = vpop.f32.mrb[0].mxu0
      %v900 = vpop.f32.mrb[0].mxu0
      %v901 = vadd.f32 %v836, %v900
      %v902 = vpop.f32.mrb[0].mxu0
      %903 = vmatprep.mubr.bf16.mxu0 %v573
      %904 = vmatmul.mubr.bf16.gmra.mrb[0].mxu0 %v572
      %v905 = vpop.f32.mrb[0].mxu0
      %v906 = vadd.f32 %v841, %v905
      %v907 = vpop.f32.mrb[0].mxu0
      %v908 = vpop.f32.mrb[0].mxu0
      %v909 = vadd.f32 %v844, %v908
      %v910 = vpop.f32.mrb[0].mxu0
      %911 = vdwg.mxu0
      %v912 = vld [vmem:[%s3] sm:$0x1]
      %v914 = vlaneseq
      %v915 = vshrl.u32 %v914, 7
      %v916 = vsub.s32 0, %v915
      %v917 = vrot.slane %v912, %v916
      %v919 = vmul.f32 %v882, %v917
      %v920 = vmul.f32 %v885, %v917
      %v921 = vmul.f32 %v890, %v917
      %v922 = vmul.f32 %v893, %v917
      %v923 = vmul.f32 %v898, %v917
      %v924 = vmul.f32 %v901, %v917
      %v925 = vmul.f32 %v906, %v917
      %v926 = vmul.f32 %v909, %v917
      %v927 = vld [vmem:[%s4] sm:$0x1]
      %v929 = vlaneseq
      %v930 = vshrl.u32 %v929, 7
      %v931 = vsub.s32 0, %v930
      %v932 = vrot.slane %v927, %v931
      %v934 = vadd.f32 %v919, %v932
      %v935 = vadd.f32 %v920, %v932
      %v936 = vadd.f32 %v921, %v932
      %v937 = vadd.f32 %v922, %v932
      %v938 = vadd.f32 %v923, %v932
      %v939 = vadd.f32 %v924, %v932
      %v940 = vadd.f32 %v925, %v932
      %v941 = vadd.f32 %v926, %v932
      %v942 = vld [vmem:[%s335] sm:$0xf]
      %v943 = vld [vmem:[%s335 + $0x4] sm:$0xf]
      %v944 = vld [vmem:[%s335 + $0x8] sm:$0xf]
      %v945 = vld [vmem:[%s335 + $0xc] sm:$0xf]
      %v946 = vld [vmem:[%s335 + $0x10] sm:$0xf]
      %v947 = vld [vmem:[%s335 + $0x14] sm:$0xf]
      %v948 = vld [vmem:[%s335 + $0x18] sm:$0xf]
      %v949 = vld [vmem:[%s335 + $0x1c] sm:$0xf]
      %v950 = vunpack.c.l.bf16 %v942
      %v951 = vunpack.c.l.bf16 %v943
      %v952 = vunpack.c.l.bf16 %v944
      %v953 = vunpack.c.l.bf16 %v945
      %v954 = vunpack.c.l.bf16 %v946
      %v955 = vunpack.c.l.bf16 %v947
      %v956 = vunpack.c.l.bf16 %v948
      %v957 = vunpack.c.l.bf16 %v949
      %v958 = vadd.f32 %v934, %v950
      %v959 = vadd.f32 %v935, %v951
      %v960 = vadd.f32 %v936, %v952
      %v961 = vadd.f32 %v937, %v953
      %v962 = vadd.f32 %v938, %v954
      %v963 = vadd.f32 %v939, %v955
      %v964 = vadd.f32 %v940, %v956
      %v965 = vadd.f32 %v941, %v957
      %v966 = vpack.c.bf16 %v959, %v958
      %v967 = vpack.c.bf16 %v961, %v960
      %v968 = vpack.c.bf16 %v963, %v962
      %v969 = vpack.c.bf16 %v965, %v964
      %v974 = vunpack.c.l.b16 %v966
      %v975 = vunpack.c.h.b16 %v966
      %v976 = vunpack.c.l.b16 %v967
      %v977 = vunpack.c.h.b16 %v967
      %v978 = vunpack.c.l.b16 %v968
      %v979 = vunpack.c.h.b16 %v968
      %v980 = vunpack.c.l.b16 %v969
      %v981 = vunpack.c.h.b16 %v969
      %v982 = vpack.c.b16 %v974, %v974
      %v983 = vpack.c.b16 %v975, %v975
      %v984 = vpack.c.b16 %v976, %v976
      %v985 = vpack.c.b16 %v977, %v977
      %v986 = vpack.c.b16 %v978, %v978
      %v987 = vpack.c.b16 %v979, %v979
      %v988 = vpack.c.b16 %v980, %v980
      %v989 = vpack.c.b16 %v981, %v981
      %998 = vst [vmem:[%s345] sm:$0xf] %v982
      %999 = vst [vmem:[%s345 + $0x4] sm:$0xf] %v983
      %1000 = vst [vmem:[%s345 + $0x8] sm:$0xf] %v984
      %1001 = vst [vmem:[%s345 + $0xc] sm:$0xf] %v985
      %1002 = vst [vmem:[%s345 + $0x10] sm:$0xf] %v986
      %1003 = vst [vmem:[%s345 + $0x14] sm:$0xf] %v987
      %1004 = vst [vmem:[%s345 + $0x18] sm:$0xf] %v988
      %1005 = vst [vmem:[%s345 + $0x1c] sm:$0xf] %v989
      %s1006 = smul.u32 8, %s22
      %p1007 = scmp.lt.s32.totalorder %s21, 1
      %s1008 = scalar_select %p1007, %s21, 1
      %p1009 = scmp.lt.s32.totalorder %s1006, 7
      %s1010 = scalar_select %p1009, %s1006, 7
      %s1011 = smul.addr %s1008, 8
      %s1012 = sadd.s32 %s1010, %s1011
      %s1013 = smul.addr %s1012, 4
      %s1014 = scalar_lea.vmem %s6, %s1013
      // Predicated region
      $region45: #{custom_efficientnet_forward.12} parent=43 // pred_check
        %p1015 = pneg %p194
      $region46: #{custom_efficientnet_forward.12} parent=43 // pred_check_branch
        %1017 = sbr.rel (%p1015) target = $region48
      $region47: #{custom_efficientnet_forward.12} parent=43 // pred_region
        %s1018 = smul.u32 8, %s22
      $region48: #{custom_efficientnet_forward.12} parent=43 // pred_fallthru
        _
    $region44: #{custom_efficientnet_forward.12} parent=5 // pred_fallthru
      _
    %p1019 = scmp.le.s32.totalorder 2, %s12
    // Predicated region
    $region49: #{custom_efficientnet_forward.12} parent=5 // pred_check
      %p1020 = pneg %p1019
    $region50: #{custom_efficientnet_forward.12} parent=5 // pred_check_branch
      %1022 = sbr.rel (%p1020) target = $region52
    $region51: #{custom_efficientnet_forward.12} parent=5 // pred_region
      %s1023 = ssub.s32 %s12, 2
      // Predicated region
      $region53: #{custom_efficientnet_forward.12} parent=51 // pred_check
        %p1024 = pneg %p200
      $region54: #{custom_efficientnet_forward.12} parent=51 // pred_check_branch
        %1026 = sbr.rel (%p1024) target = $region56
      $region55: #{custom_efficientnet_forward.12} parent=51 // pred_region
        %s1027 = smul.u32 8, %s24
        %p1028 = scmp.lt.s32.totalorder %s23, 1
        %s1029 = scalar_select %p1028, %s23, 1
        %p1030 = scmp.lt.s32.totalorder %s1027, 7
        %s1031 = scalar_select %p1030, %s1027, 7
        %s1032 = smul.addr %s1029, 8
        %s1033 = sadd.s32 %s1031, %s1032
        %s1034 = smul.addr %s1033, 4
        %s1035 = scalar_lea.vmem %s6, %s1034
      $region56: #{custom_efficientnet_forward.12} parent=51 // pred_fallthru
        _
    $region52: #{custom_efficientnet_forward.12} parent=5 // pred_fallthru
      _
  $region6: #{custom_efficientnet_forward.12} parent=0 // loop_footer
    %s16 = sadd.s32 1, %s12
  $region7: #{custom_efficientnet_forward.12} parent=0 // loop_footer_branch
    %11 = sbr.rel target = $region3
  $region8: #{custom_efficientnet_forward.12} parent=0 // loop_exit
    _

// kernel: custom_efficientnet_forward.16
$region0: #{custom_efficientnet_forward.16}
  #allocation0 [shape = 'u32[]', space=smem, size = 0x4, offset = 0x4, fixed_abs, tag = 'smem constant byte address 0x4 - core index']
  #allocation1 [shape = 'u32[144,128]{1,0:T(1,128)}', space=vmem, size = 0x12000, scoped, tag = 'internal scratch']
  %s0 = inlined_call_operand.vmem [shape: bf16[2,64,256], index: 0, kind: input, shape index: {}]
  %s1 = inlined_call_operand.vmem [shape: bf16[256,512], index: 1, kind: input, shape index: {}]
  %s2 = inlined_call_operand.vmem [shape: f32[1,512], index: 2, kind: input, shape index: {}]
  %s3 = inlined_call_operand.vmem [shape: f32[1,512], index: 3, kind: input, shape index: {}]
  %s4 = inlined_call_operand.vmem [shape: bf16[2,64,512], index: 4, kind: output, shape index: {}]
  %s5 = sld [smem:[#allocation0]]
  $region49: #{custom_efficientnet_forward.16} parent=0
    _
  %s7 = ssub.s32 1, %s5
  %s8 = scalar_select 0, %s7, %s5
  loop: start=0, step=1, limit=4
  $region2: #{custom_efficientnet_forward.16} parent=0 // loop_pre_header
    _
  $region3: #{custom_efficientnet_forward.16} parent=0 // loop_header
    %s10 = sphi 0, %s14
    %p11 = scmp.ge.s32.totalorder %s10, 4
    %s17 = sphi 0, %s29
    %s18 = sphi 0, %s25
    %s19 = sphi 0, %s17
    %s20 = sphi 0, %s18
    %s21 = sphi 0, %s19
    %s22 = sphi 0, %s20
    %s34 = sphi 0, %s36
    %s37 = sphi 0, %s34
    %s38 = sphi 0, %s37
    %s54 = sphi 0, %s38
    %s58 = sphi 0, %s58
    %s60 = sphi 0, %s58
    %s61 = sphi 0, %s60
    %s75 = sphi 0, %s61
    %s79 = sphi 0, %s79
    %s81 = sphi 0, %s79
    %s82 = sphi 0, %s81
    %s96 = sphi 0, %s82
    %s100 = sphi 0, %s100
    %s102 = sphi 0, %s100
    %s103 = sphi 0, %s102
    %s117 = sphi 0, %s103
    %s125 = sphi 0, %s127
    %s128 = sphi 0, %s125
    %s129 = sphi 0, %s128
    %s145 = sphi 0, %s129
  $region4: #{custom_efficientnet_forward.16} parent=0 // loop_header_branch
    %13 = sbr.rel (%p11) target = $region8
  $region5: #{custom_efficientnet_forward.16} parent=0 // loop_body
    %s15 = ssub.s32 %s10, 1
    %s16 = ssub.s32 %s10, 2
    %s23 = sadd.s32 1, %s18
    %p24 = scmp.ge.s32.totalorder %s23, 1
    %s25 = scalar_select %p24, 0, %s23
    %s26 = sadd.s32 1, %s17
    %s27 = scalar_select %p24, %s26, %s17
    %p28 = scmp.ge.s32.totalorder %s27, 2
    %s29 = scalar_select %p28, 0, %s27
    %s30 = ssub.s32 %s17, %s29
    %s31 = ssub.s32 %s18, %s25
    %s32 = sor.u32 %s30, %s31
    %p33 = scmp.eq.s32.totalorder %s32, 0
    %s35 = sadd.s32 %s34, 1
    %s36 = scalar_select %p33, %s34, %s35
    %p39 = pneg %p33
    %p40 = scmp.eq.s32.totalorder %s10, 1
    %p41 = por %p39, %p40
    %p42 = scmp.ne.s32.totalorder %s34, %s37
    %p43 = scmp.eq.s32.totalorder %s10, 0
    %p44 = por %p42, %p43
    %p45 = scmp.ne.s32.totalorder %s34, %s37
    %p46 = scmp.eq.s32.totalorder %s15, 1
    %p47 = por %p45, %p46
    %p48 = scmp.ne.s32.totalorder %s37, %s38
    %p49 = scmp.eq.s32.totalorder %s15, 0
    %p50 = por %p48, %p49
    %p51 = scmp.ne.s32.totalorder %s37, %s38
    %p52 = scmp.eq.s32.totalorder %s16, 1
    %p53 = por %p51, %p52
    %p55 = scmp.ne.s32.totalorder %s38, %s54
    %p56 = scmp.eq.s32.totalorder %s16, 0
    %p57 = por %p55, %p56
    %s59 = sadd.s32 %s58, 1
    %p62 = scmp.eq.s32.totalorder %s10, 1
    %p63 = scmp.ne.s32.totalorder %s58, %s60
    %p64 = scmp.eq.s32.totalorder %s10, 0
    %p65 = por %p63, %p64
    %p66 = scmp.ne.s32.totalorder %s58, %s60
    %p67 = scmp.eq.s32.totalorder %s15, 1
    %p68 = por %p66, %p67
    %p69 = scmp.ne.s32.totalorder %s60, %s61
    %p70 = scmp.eq.s32.totalorder %s15, 0
    %p71 = por %p69, %p70
    %p72 = scmp.ne.s32.totalorder %s60, %s61
    %p73 = scmp.eq.s32.totalorder %s16, 1
    %p74 = por %p72, %p73
    %p76 = scmp.ne.s32.totalorder %s61, %s75
    %p77 = scmp.eq.s32.totalorder %s16, 0
    %p78 = por %p76, %p77
    %s80 = sadd.s32 %s79, 1
    %p83 = scmp.eq.s32.totalorder %s10, 1
    %p84 = scmp.ne.s32.totalorder %s79, %s81
    %p85 = scmp.eq.s32.totalorder %s10, 0
    %p86 = por %p84, %p85
    %p87 = scmp.ne.s32.totalorder %s79, %s81
    %p88 = scmp.eq.s32.totalorder %s15, 1
    %p89 = por %p87, %p88
    %p90 = scmp.ne.s32.totalorder %s81, %s82
    %p91 = scmp.eq.s32.totalorder %s15, 0
    %p92 = por %p90, %p91
    %p93 = scmp.ne.s32.totalorder %s81, %s82
    %p94 = scmp.eq.s32.totalorder %s16, 1
    %p95 = por %p93, %p94
    %p97 = scmp.ne.s32.totalorder %s82, %s96
    %p98 = scmp.eq.s32.totalorder %s16, 0
    %p99 = por %p97, %p98
    %s101 = sadd.s32 %s100, 1
    %p104 = scmp.eq.s32.totalorder %s10, 1
    %p105 = scmp.ne.s32.totalorder %s100, %s102
    %p106 = scmp.eq.s32.totalorder %s10, 0
    %p107 = por %p105, %p106
    %p108 = scmp.ne.s32.totalorder %s100, %s102
    %p109 = scmp.eq.s32.totalorder %s15, 1
    %p110 = por %p108, %p109
    %p111 = scmp.ne.s32.totalorder %s102, %s103
    %p112 = scmp.eq.s32.totalorder %s15, 0
    %p113 = por %p111, %p112
    %p114 = scmp.ne.s32.totalorder %s102, %s103
    %p115 = scmp.eq.s32.totalorder %s16, 1
    %p116 = por %p114, %p115
    %p118 = scmp.ne.s32.totalorder %s103, %s117
    %p119 = scmp.eq.s32.totalorder %s16, 0
    %p120 = por %p118, %p119
    %s121 = ssub.s32 %s17, %s29
    %s122 = ssub.s32 %s18, %s25
    %s123 = sor.u32 %s121, %s122
    %p124 = scmp.eq.s32.totalorder %s123, 0
    %s126 = sadd.s32 %s125, 1
    %s127 = scalar_select %p124, %s125, %s126
    %p130 = pneg %p124
    %p131 = scmp.eq.s32.totalorder %s10, 1
    %p132 = por %p130, %p131
    %p133 = scmp.ne.s32.totalorder %s125, %s128
    %p134 = scmp.eq.s32.totalorder %s10, 0
    %p135 = por %p133, %p134
    %p136 = scmp.ne.s32.totalorder %s125, %s128
    %p137 = scmp.eq.s32.totalorder %s15, 1
    %p138 = por %p136, %p137
    %p139 = scmp.ne.s32.totalorder %s128, %s129
    %p140 = scmp.eq.s32.totalorder %s15, 0
    %p141 = por %p139, %p140
    %p142 = scmp.ne.s32.totalorder %s128, %s129
    %p143 = scmp.eq.s32.totalorder %s16, 1
    %p144 = por %p142, %p143
    %p146 = scmp.ne.s32.totalorder %s129, %s145
    %p147 = scmp.eq.s32.totalorder %s16, 0
    %p148 = por %p146, %p147
    %p149 = scmp.le.s32.totalorder 1, %s10
    %p150 = scmp.lt.s32.totalorder %s10, 3
    %p151 = pnand %p149, %p150
    %p152 = pneg %p151
    // Predicated region
    $region9: #{custom_efficientnet_forward.16} parent=5 // pred_check
      _
    $region10: #{custom_efficientnet_forward.16} parent=5 // pred_check_branch
      %154 = sbr.rel (%p151) target = $region12
    $region11: #{custom_efficientnet_forward.16} parent=5 // pred_region
      %s155 = ssub.s32 %s10, 1
      // Predicated region
      $region13: #{custom_efficientnet_forward.16} parent=11 // pred_check
        %p156 = pneg %p71
      $region14: #{custom_efficientnet_forward.16} parent=11 // pred_check_branch
        %158 = sbr.rel (%p156) target = $region16
      $region15: #{custom_efficientnet_forward.16} parent=11 // pred_region
        _
      $region16: #{custom_efficientnet_forward.16} parent=11 // pred_fallthru
        _
      // Predicated region
      $region17: #{custom_efficientnet_forward.16} parent=11 // pred_check
        %p159 = pneg %p92
      $region18: #{custom_efficientnet_forward.16} parent=11 // pred_check_branch
        %161 = sbr.rel (%p159) target = $region20
      $region19: #{custom_efficientnet_forward.16} parent=11 // pred_region
        _
      $region20: #{custom_efficientnet_forward.16} parent=11 // pred_fallthru
        _
      // Predicated region
      $region21: #{custom_efficientnet_forward.16} parent=11 // pred_check
        %p162 = pneg %p113
      $region22: #{custom_efficientnet_forward.16} parent=11 // pred_check_branch
        %164 = sbr.rel (%p162) target = $region24
      $region23: #{custom_efficientnet_forward.16} parent=11 // pred_region
        _
      $region24: #{custom_efficientnet_forward.16} parent=11 // pred_fallthru
        _
    $region12: #{custom_efficientnet_forward.16} parent=5 // pred_fallthru
      _
    %p165 = scmp.lt.s32.totalorder %s10, 2
    // Predicated region
    $region25: #{custom_efficientnet_forward.16} parent=5 // pred_check
      %p166 = pneg %p165
    $region26: #{custom_efficientnet_forward.16} parent=5 // pred_check_branch
      %168 = sbr.rel (%p166) target = $region28
    $region27: #{custom_efficientnet_forward.16} parent=5 // pred_region
      // Predicated region
      $region29: #{custom_efficientnet_forward.16} parent=27 // pred_check
        %p169 = pneg %p44
      $region30: #{custom_efficientnet_forward.16} parent=27 // pred_check_branch
        %171 = sbr.rel (%p169) target = $region32
      $region31: #{custom_efficientnet_forward.16} parent=27 // pred_region
        %s172 = smul.u32 8, %s18
        %p173 = scmp.lt.s32.totalorder %s17, 1
        %s174 = scalar_select %p173, %s17, 1
        %p175 = scmp.lt.s32.totalorder %s172, 7
        %s176 = scalar_select %p175, %s172, 7
        %s177 = smul.addr %s176, 2
        %s178 = smul.addr %s174, 16
        %s179 = sadd.s32 %s177, %s178
        %s180 = smul.addr %s179, 4
        %s181 = scalar_lea.vmem %s0, %s180
        %s182 = smul.u32 8, %s18
      $region32: #{custom_efficientnet_forward.16} parent=27 // pred_fallthru
        _
    $region28: #{custom_efficientnet_forward.16} parent=5 // pred_fallthru
      _
    %p183 = scmp.le.s32.totalorder 1, %s10
    %p184 = scmp.lt.s32.totalorder %s10, 3
    %p185 = pnand %p183, %p184
    %p186 = pneg %p185
    // Predicated region
    $region33: #{custom_efficientnet_forward.16} parent=5 // pred_check
      _
    $region34: #{custom_efficientnet_forward.16} parent=5 // pred_check_branch
      %188 = sbr.rel (%p185) target = $region36
    $region35: #{custom_efficientnet_forward.16} parent=5 // pred_region
      %s189 = ssub.s32 %s10, 1
      %s190 = smul.u32 8, %s20
      %p191 = scmp.lt.s32.totalorder %s19, 1
      %s192 = scalar_select %p191, %s19, 1
      %p193 = scmp.lt.s32.totalorder %s190, 7
      %s194 = scalar_select %p193, %s190, 7
      %s195 = smul.addr %s194, 2
      %s196 = smul.addr %s192, 16
      %s197 = sadd.s32 %s195, %s196
      %s198 = smul.addr %s197, 4
      %s199 = scalar_lea.vmem %s0, %s198
      %p200 = pneg %p50
      %p201 = pneg %p47
      %p202 = pneg %p71
      %p203 = pneg %p68
      %p204 = pneg %p92
      %p205 = pneg %p89
      %p206 = pneg %p113
      %p207 = pneg %p110
      %p208 = pneg %p141
      %p209 = pneg %p138
      %s210 = smul.u32 8, %s20
      %p211 = scmp.lt.s32.totalorder %s19, 1
      %s212 = scalar_select %p211, %s19, 1
      %p213 = scmp.lt.s32.totalorder %s210, 7
      %s214 = scalar_select %p213, %s210, 7
      %s215 = smul.addr %s214, 4
      %s216 = smul.addr %s212, 32
      %s217 = sadd.s32 %s215, %s216
      %s218 = smul.addr %s217, 4
      %s219 = scalar_lea.vmem %s4, %s218
      %s220 = smul.u32 8, %s20
      %p221 = scmp.lt.s32.totalorder %s19, 1
      %s222 = scalar_select %p221, %s19, 1
      %p223 = scmp.lt.s32.totalorder %s220, 7
      %s224 = scalar_select %p223, %s220, 7
      %s225 = smul.addr %s224, 2
      %s226 = smul.addr %s222, 16
      %s227 = sadd.s32 %s225, %s226
      %s228 = smul.addr %s227, 4
      %s229 = scalar_lea.vmem %s0, %s228
      %s230 = smul.u32 8, %s20
      %s231 = smul.u32 8, %s20
      %p232 = scmp.lt.s32.totalorder %s19, 1
      %s233 = scalar_select %p232, %s19, 1
      %p234 = scmp.lt.s32.totalorder %s231, 7
      %s235 = scalar_select %p234, %s231, 7
      %s236 = smul.addr %s235, 4
      %s237 = smul.addr %s233, 32
      %s238 = sadd.s32 %s236, %s237
      %s239 = smul.addr %s238, 4
      %s240 = scalar_lea.vmem %s4, %s239
      %s241 = smul.u32 8, %s20
      %v242 = vld [vmem:[%s229] sm:$0xff]
      %v243 = vld [vmem:[%s229 + $0x8] sm:$0xff]
      %v244 = vld [vmem:[%s229 + $0x10] sm:$0xff]
      %v245 = vld [vmem:[%s229 + $0x18] sm:$0xff]
      %v246 = vld [vmem:[%s229 + $0x20] sm:$0xff]
      %v247 = vld [vmem:[%s229 + $0x28] sm:$0xff]
      %v248 = vld [vmem:[%s229 + $0x30] sm:$0xff]
      %v249 = vld [vmem:[%s229 + $0x38] sm:$0xff]
      %v250 = vld [vmem:[%s1] sm:$0xff]
      %v251 = vld [vmem:[%s1 + $0x8] sm:$0xff]
      %v252 = vld [vmem:[%s1 + $0x10] sm:$0xff]
      %v253 = vld [vmem:[%s1 + $0x18] sm:$0xff]
      %v254 = vld [vmem:[%s1 + $0x20] sm:$0xff]
      %v255 = vld [vmem:[%s1 + $0x28] sm:$0xff]
      %v256 = vld [vmem:[%s1 + $0x30] sm:$0xff]
      %v257 = vld [vmem:[%s1 + $0x38] sm:$0xff]
      %v258 = vld [vmem:[%s1 + $0x40] sm:$0xff]
      %v259 = vld [vmem:[%s1 + $0x48] sm:$0xff]
      %v260 = vld [vmem:[%s1 + $0x50] sm:$0xff]
      %v261 = vld [vmem:[%s1 + $0x58] sm:$0xff]
      %v262 = vld [vmem:[%s1 + $0x60] sm:$0xff]
      %v263 = vld [vmem:[%s1 + $0x68] sm:$0xff]
      %v264 = vld [vmem:[%s1 + $0x70] sm:$0xff]
      %v265 = vld [vmem:[%s1 + $0x78] sm:$0xff]
      %v266 = vld [vmem:[%s1 + $0x80] sm:$0xff]
      %v267 = vld [vmem:[%s1 + $0x88] sm:$0xff]
      %v268 = vld [vmem:[%s1 + $0x90] sm:$0xff]
      %v269 = vld [vmem:[%s1 + $0x98] sm:$0xff]
      %v270 = vld [vmem:[%s1 + $0xa0] sm:$0xff]
      %v271 = vld [vmem:[%s1 + $0xa8] sm:$0xff]
      %v272 = vld [vmem:[%s1 + $0xb0] sm:$0xff]
      %v273 = vld [vmem:[%s1 + $0xb8] sm:$0xff]
      %v274 = vld [vmem:[%s1 + $0xc0] sm:$0xff]
      %v275 = vld [vmem:[%s1 + $0xc8] sm:$0xff]
      %v276 = vld [vmem:[%s1 + $0xd0] sm:$0xff]
      %v277 = vld [vmem:[%s1 + $0xd8] sm:$0xff]
      %v278 = vld [vmem:[%s1 + $0xe0] sm:$0xff]
      %v279 = vld [vmem:[%s1 + $0xe8] sm:$0xff]
      %v280 = vld [vmem:[%s1 + $0xf0] sm:$0xff]
      %v281 = vld [vmem:[%s1 + $0xf8] sm:$0xff]
      %v282 = vld [vmem:[%s1 + $0x100] sm:$0xff]
      %v283 = vld [vmem:[%s1 + $0x108] sm:$0xff]
      %v284 = vld [vmem:[%s1 + $0x110] sm:$0xff]
      %v285 = vld [vmem:[%s1 + $0x118] sm:$0xff]
      %v286 = vld [vmem:[%s1 + $0x120] sm:$0xff]
      %v287 = vld [vmem:[%s1 + $0x128] sm:$0xff]
      %v288 = vld [vmem:[%s1 + $0x130] sm:$0xff]
      %v289 = vld [vmem:[%s1 + $0x138] sm:$0xff]
      %v290 = vld [vmem:[%s1 + $0x140] sm:$0xff]
      %v291 = vld [vmem:[%s1 + $0x148] sm:$0xff]
      %v292 = vld [vmem:[%s1 + $0x150] sm:$0xff]
      %v293 = vld [vmem:[%s1 + $0x158] sm:$0xff]
      %v294 = vld [vmem:[%s1 + $0x160] sm:$0xff]
      %v295 = vld [vmem:[%s1 + $0x168] sm:$0xff]
      %v296 = vld [vmem:[%s1 + $0x170] sm:$0xff]
      %v297 = vld [vmem:[%s1 + $0x178] sm:$0xff]
      %v298 = vld [vmem:[%s1 + $0x180] sm:$0xff]
      %v299 = vld [vmem:[%s1 + $0x188] sm:$0xff]
      %v300 = vld [vmem:[%s1 + $0x190] sm:$0xff]
      %v301 = vld [vmem:[%s1 + $0x198] sm:$0xff]
      %v302 = vld [vmem:[%s1 + $0x1a0] sm:$0xff]
      %v303 = vld [vmem:[%s1 + $0x1a8] sm:$0xff]
      %v304 = vld [vmem:[%s1 + $0x1b0] sm:$0xff]
      %v305 = vld [vmem:[%s1 + $0x1b8] sm:$0xff]
      %v306 = vld [vmem:[%s1 + $0x1c0] sm:$0xff]
      %v307 = vld [vmem:[%s1 + $0x1c8] sm:$0xff]
      %v308 = vld [vmem:[%s1 + $0x1d0] sm:$0xff]
      %v309 = vld [vmem:[%s1 + $0x1d8] sm:$0xff]
      %v310 = vld [vmem:[%s1 + $0x1e0] sm:$0xff]
      %v311 = vld [vmem:[%s1 + $0x1e8] sm:$0xff]
      %v312 = vld [vmem:[%s1 + $0x1f0] sm:$0xff]
      %v313 = vld [vmem:[%s1 + $0x1f8] sm:$0xff]
      %v322 = vunpack.c.l.b16 %v242
      %v323 = vunpack.c.h.b16 %v242
      %v324 = vunpack.c.l.b16 %v243
      %v325 = vunpack.c.h.b16 %v243
      %v326 = vunpack.c.l.b16 %v244
      %v327 = vunpack.c.h.b16 %v244
      %v328 = vunpack.c.l.b16 %v245
      %v329 = vunpack.c.h.b16 %v245
      %v330 = vunpack.c.l.b16 %v246
      %v331 = vunpack.c.h.b16 %v246
      %v332 = vunpack.c.l.b16 %v247
      %v333 = vunpack.c.h.b16 %v247
      %v334 = vunpack.c.l.b16 %v248
      %v335 = vunpack.c.h.b16 %v248
      %v336 = vunpack.c.l.b16 %v249
      %v337 = vunpack.c.h.b16 %v249
      %v338 = vpack.c.b16 %v324, %v322
      %v339 = vpack.c.b16 %v325, %v323
      %v340 = vpack.c.b16 %v328, %v326
      %v341 = vpack.c.b16 %v329, %v327
      %v342 = vpack.c.b16 %v332, %v330
      %v343 = vpack.c.b16 %v333, %v331
      %v344 = vpack.c.b16 %v336, %v334
      %v345 = vpack.c.b16 %v337, %v335
      %v418 = vunpack.c.l.b16 %v250
      %v419 = vunpack.c.h.b16 %v250
      %v420 = vunpack.c.l.b16 %v251
      %v421 = vunpack.c.h.b16 %v251
      %v422 = vunpack.c.l.b16 %v252
      %v423 = vunpack.c.h.b16 %v252
      %v424 = vunpack.c.l.b16 %v253
      %v425 = vunpack.c.h.b16 %v253
      %v426 = vunpack.c.l.b16 %v254
      %v427 = vunpack.c.h.b16 %v254
      %v428 = vunpack.c.l.b16 %v255
      %v429 = vunpack.c.h.b16 %v255
      %v430 = vunpack.c.l.b16 %v256
      %v431 = vunpack.c.h.b16 %v256
      %v432 = vunpack.c.l.b16 %v257
      %v433 = vunpack.c.h.b16 %v257
      %v434 = vunpack.c.l.b16 %v258
      %v435 = vunpack.c.h.b16 %v258
      %v436 = vunpack.c.l.b16 %v259
      %v437 = vunpack.c.h.b16 %v259
      %v438 = vunpack.c.l.b16 %v260
      %v439 = vunpack.c.h.b16 %v260
      %v440 = vunpack.c.l.b16 %v261
      %v441 = vunpack.c.h.b16 %v261
      %v442 = vunpack.c.l.b16 %v262
      %v443 = vunpack.c.h.b16 %v262
      %v444 = vunpack.c.l.b16 %v263
      %v445 = vunpack.c.h.b16 %v263
      %v446 = vunpack.c.l.b16 %v264
      %v447 = vunpack.c.h.b16 %v264
      %v448 = vunpack.c.l.b16 %v265
      %v449 = vunpack.c.h.b16 %v265
      %v450 = vunpack.c.l.b16 %v266
      %v451 = vunpack.c.h.b16 %v266
      %v452 = vunpack.c.l.b16 %v267
      %v453 = vunpack.c.h.b16 %v267
      %v454 = vunpack.c.l.b16 %v268
      %v455 = vunpack.c.h.b16 %v268
      %v456 = vunpack.c.l.b16 %v269
      %v457 = vunpack.c.h.b16 %v269
      %v458 = vunpack.c.l.b16 %v270
      %v459 = vunpack.c.h.b16 %v270
      %v460 = vunpack.c.l.b16 %v271
      %v461 = vunpack.c.h.b16 %v271
      %v462 = vunpack.c.l.b16 %v272
      %v463 = vunpack.c.h.b16 %v272
      %v464 = vunpack.c.l.b16 %v273
      %v465 = vunpack.c.h.b16 %v273
      %v466 = vunpack.c.l.b16 %v274
      %v467 = vunpack.c.h.b16 %v274
      %v468 = vunpack.c.l.b16 %v275
      %v469 = vunpack.c.h.b16 %v275
      %v470 = vunpack.c.l.b16 %v276
      %v471 = vunpack.c.h.b16 %v276
      %v472 = vunpack.c.l.b16 %v277
      %v473 = vunpack.c.h.b16 %v277
      %v474 = vunpack.c.l.b16 %v278
      %v475 = vunpack.c.h.b16 %v278
      %v476 = vunpack.c.l.b16 %v279
      %v477 = vunpack.c.h.b16 %v279
      %v478 = vunpack.c.l.b16 %v280
      %v479 = vunpack.c.h.b16 %v280
      %v480 = vunpack.c.l.b16 %v281
      %v481 = vunpack.c.h.b16 %v281
      %v482 = vunpack.c.l.b16 %v282
      %v483 = vunpack.c.h.b16 %v282
      %v484 = vunpack.c.l.b16 %v283
      %v485 = vunpack.c.h.b16 %v283
      %v486 = vunpack.c.l.b16 %v284
      %v487 = vunpack.c.h.b16 %v284
      %v488 = vunpack.c.l.b16 %v285
      %v489 = vunpack.c.h.b16 %v285
      %v490 = vunpack.c.l.b16 %v286
      %v491 = vunpack.c.h.b16 %v286
      %v492 = vunpack.c.l.b16 %v287
      %v493 = vunpack.c.h.b16 %v287
      %v494 = vunpack.c.l.b16 %v288
      %v495 = vunpack.c.h.b16 %v288
      %v496 = vunpack.c.l.b16 %v289
      %v497 = vunpack.c.h.b16 %v289
      %v498 = vunpack.c.l.b16 %v290
      %v499 = vunpack.c.h.b16 %v290
      %v500 = vunpack.c.l.b16 %v291
      %v501 = vunpack.c.h.b16 %v291
      %v502 = vunpack.c.l.b16 %v292
      %v503 = vunpack.c.h.b16 %v292
      %v504 = vunpack.c.l.b16 %v293
      %v505 = vunpack.c.h.b16 %v293
      %v506 = vunpack.c.l.b16 %v294
      %v507 = vunpack.c.h.b16 %v294
      %v508 = vunpack.c.l.b16 %v295
      %v509 = vunpack.c.h.b16 %v295
      %v510 = vunpack.c.l.b16 %v296
      %v511 = vunpack.c.h.b16 %v296
      %v512 = vunpack.c.l.b16 %v297
      %v513 = vunpack.c.h.b16 %v297
      %v514 = vunpack.c.l.b16 %v298
      %v515 = vunpack.c.h.b16 %v298
      %v516 = vunpack.c.l.b16 %v299
      %v517 = vunpack.c.h.b16 %v299
      %v518 = vunpack.c.l.b16 %v300
      %v519 = vunpack.c.h.b16 %v300
      %v520 = vunpack.c.l.b16 %v301
      %v521 = vunpack.c.h.b16 %v301
      %v522 = vunpack.c.l.b16 %v302
      %v523 = vunpack.c.h.b16 %v302
      %v524 = vunpack.c.l.b16 %v303
      %v525 = vunpack.c.h.b16 %v303
      %v526 = vunpack.c.l.b16 %v304
      %v527 = vunpack.c.h.b16 %v304
      %v528 = vunpack.c.l.b16 %v305
      %v529 = vunpack.c.h.b16 %v305
      %v530 = vunpack.c.l.b16 %v306
      %v531 = vunpack.c.h.b16 %v306
      %v532 = vunpack.c.l.b16 %v307
      %v533 = vunpack.c.h.b16 %v307
      %v534 = vunpack.c.l.b16 %v308
      %v535 = vunpack.c.h.b16 %v308
      %v536 = vunpack.c.l.b16 %v309
      %v537 = vunpack.c.h.b16 %v309
      %v538 = vunpack.c.l.b16 %v310
      %v539 = vunpack.c.h.b16 %v310
      %v540 = vunpack.c.l.b16 %v311
      %v541 = vunpack.c.h.b16 %v311
      %v542 = vunpack.c.l.b16 %v312
      %v543 = vunpack.c.h.b16 %v312
      %v544 = vunpack.c.l.b16 %v313
      %v545 = vunpack.c.h.b16 %v313
      %v546 = vpack.c.b16 %v422, %v418
      %v547 = vpack.c.b16 %v423, %v419
      %v548 = vpack.c.b16 %v424, %v420
      %v549 = vpack.c.b16 %v425, %v421
      %v550 = vpack.c.b16 %v430, %v426
      %v551 = vpack.c.b16 %v431, %v427
      %v552 = vpack.c.b16 %v432, %v428
      %v553 = vpack.c.b16 %v433, %v429
      %v554 = vpack.c.b16 %v438, %v434
      %v555 = vpack.c.b16 %v439, %v435
      %v556 = vpack.c.b16 %v440, %v436
      %v557 = vpack.c.b16 %v441, %v437
      %v558 = vpack.c.b16 %v446, %v442
      %v559 = vpack.c.b16 %v447, %v443
      %v560 = vpack.c.b16 %v448, %v444
      %v561 = vpack.c.b16 %v449, %v445
      %v562 = vpack.c.b16 %v454, %v450
      %v563 = vpack.c.b16 %v455, %v451
      %v564 = vpack.c.b16 %v456, %v452
      %v565 = vpack.c.b16 %v457, %v453
      %v566 = vpack.c.b16 %v462, %v458
      %v567 = vpack.c.b16 %v463, %v459
      %v568 = vpack.c.b16 %v464, %v460
      %v569 = vpack.c.b16 %v465, %v461
      %v570 = vpack.c.b16 %v470, %v466
      %v571 = vpack.c.b16 %v471, %v467
      %v572 = vpack.c.b16 %v472, %v468
      %v573 = vpack.c.b16 %v473, %v469
      %v574 = vpack.c.b16 %v478, %v474
      %v575 = vpack.c.b16 %v479, %v475
      %v576 = vpack.c.b16 %v480, %v476
      %v577 = vpack.c.b16 %v481, %v477
      %v578 = vpack.c.b16 %v486, %v482
      %v579 = vpack.c.b16 %v487, %v483
      %v580 = vpack.c.b16 %v488, %v484
      %v581 = vpack.c.b16 %v489, %v485
      %v582 = vpack.c.b16 %v494, %v490
      %v583 = vpack.c.b16 %v495, %v491
      %v584 = vpack.c.b16 %v496, %v492
      %v585 = vpack.c.b16 %v497, %v493
      %v586 = vpack.c.b16 %v502, %v498
      %v587 = vpack.c.b16 %v503, %v499
      %v588 = vpack.c.b16 %v504, %v500
      %v589 = vpack.c.b16 %v505, %v501
      %v590 = vpack.c.b16 %v510, %v506
      %v591 = vpack.c.b16 %v511, %v507
      %v592 = vpack.c.b16 %v512, %v508
      %v593 = vpack.c.b16 %v513, %v509
      %v594 = vpack.c.b16 %v518, %v514
      %v595 = vpack.c.b16 %v519, %v515
      %v596 = vpack.c.b16 %v520, %v516
      %v597 = vpack.c.b16 %v521, %v517
      %v598 = vpack.c.b16 %v526, %v522
      %v599 = vpack.c.b16 %v527, %v523
      %v600 = vpack.c.b16 %v528, %v524
      %v601 = vpack.c.b16 %v529, %v525
      %v602 = vpack.c.b16 %v534, %v530
      %v603 = vpack.c.b16 %v535, %v531
      %v604 = vpack.c.b16 %v536, %v532
      %v605 = vpack.c.b16 %v537, %v533
      %v606 = vpack.c.b16 %v542, %v538
      %v607 = vpack.c.b16 %v543, %v539
      %v608 = vpack.c.b16 %v544, %v540
      %v609 = vpack.c.b16 %v545, %v541
      %674 = vmatprep.subr.bf16.mxu0 %v547
      %675 = vmatpush1.bf16.msra.mxu0 %v546
      %676 = vmatprep.subr.bf16.mxu0 %v551
      %677 = vmatpush1.bf16.msra.mxu0 %v550
      %678 = vmatprep.subr.bf16.mxu0 %v555
      %679 = vmatpush1.bf16.msra.mxu0 %v554
      %680 = vmatprep.subr.bf16.mxu0 %v559
      %681 = vmatpush1.bf16.msra.mxu0 %v558
      %682 = vmatprep.subr.bf16.mxu0 %v563
      %683 = vmatpush1.bf16.msra.mxu0 %v562
      %684 = vmatprep.subr.bf16.mxu0 %v567
      %685 = vmatpush1.bf16.msra.mxu0 %v566
      %686 = vmatprep.subr.bf16.mxu0 %v571
      %687 = vmatpush1.bf16.msra.mxu0 %v570
      %688 = vmatprep.subr.bf16.mxu0 %v575
      %689 = vmatpush1.bf16.msra.mxu0 %v574
      %690 = vmatprep.subr.bf16.mxu0 %v579
      %691 = vmatpush1.bf16.msra.mxu0 %v578
      %692 = vmatprep.subr.bf16.mxu0 %v583
      %693 = vmatpush1.bf16.msra.mxu0 %v582
      %694 = vmatprep.subr.bf16.mxu0 %v587
      %695 = vmatpush1.bf16.msra.mxu0 %v586
      %696 = vmatprep.subr.bf16.mxu0 %v591
      %697 = vmatpush1.bf16.msra.mxu0 %v590
      %698 = vmatprep.subr.bf16.mxu0 %v595
      %699 = vmatpush1.bf16.msra.mxu0 %v594
      %700 = vmatprep.subr.bf16.mxu0 %v599
      %701 = vmatpush1.bf16.msra.mxu0 %v598
      %702 = vmatprep.subr.bf16.mxu0 %v603
      %703 = vmatpush1.bf16.msra.mxu0 %v602
      %704 = vmatprep.subr.bf16.mxu0 %v607
      %705 = vmatpush1.bf16.msra.mxu0 %v606
      %706 = vmatprep.mubr.bf16.mxu0 %v339
      %707 = vmatmul.mubr.bf16.gmra.mrb[0].mxu0 %v338
      %v708 = vpop.f32.mrb[0].mxu0
      %v709 = vadd.f32 0.0, %v708
      %v710 = vpop.f32.mrb[0].mxu0
      %v711 = vadd.f32 0.0, %v710
      %v712 = vpop.f32.mrb[0].mxu0
      %v713 = vadd.f32 0.0, %v712
      %v714 = vpop.f32.mrb[0].mxu0
      %v715 = vadd.f32 0.0, %v714
      %716 = vmatprep.mubr.bf16.mxu0 %v341
      %717 = vmatmul.mubr.bf16.gmra.mrb[0].mxu0 %v340
      %v718 = vpop.f32.mrb[0].mxu0
      %v719 = vadd.f32 0.0, %v718
      %v720 = vpop.f32.mrb[0].mxu0
      %v721 = vadd.f32 0.0, %v720
      %v722 = vpop.f32.mrb[0].mxu0
      %v723 = vadd.f32 0.0, %v722
      %v724 = vpop.f32.mrb[0].mxu0
      %v725 = vadd.f32 0.0, %v724
      %726 = vmatprep.mubr.bf16.mxu0 %v343
      %727 = vmatmul.mubr.bf16.gmra.mrb[0].mxu0 %v342
      %v728 = vpop.f32.mrb[0].mxu0
      %v729 = vadd.f32 0.0, %v728
      %v730 = vpop.f32.mrb[0].mxu0
      %v731 = vadd.f32 0.0, %v730
      %v732 = vpop.f32.mrb[0].mxu0
      %v733 = vadd.f32 0.0, %v732
      %v734 = vpop.f32.mrb[0].mxu0
      %v735 = vadd.f32 0.0, %v734
      %736 = vmatprep.mubr.bf16.mxu0 %v345
      %737 = vmatmul.mubr.bf16.gmra.mrb[0].mxu0 %v344
      %v738 = vpop.f32.mrb[0].mxu0
      %v739 = vadd.f32 0.0, %v738
      %v740 = vpop.f32.mrb[0].mxu0
      %v741 = vadd.f32 0.0, %v740
      %v742 = vpop.f32.mrb[0].mxu0
      %v743 = vadd.f32 0.0, %v742
      %v744 = vpop.f32.mrb[0].mxu0
      %v745 = vadd.f32 0.0, %v744
      %746 = vdwg.mxu0
      %747 = vmatprep.subr.bf16.mxu0 %v549
      %748 = vmatpush1.bf16.msra.mxu0 %v548
      %749 = vmatprep.subr.bf16.mxu0 %v553
      %750 = vmatpush1.bf16.msra.mxu0 %v552
      %751 = vmatprep.subr.bf16.mxu0 %v557
      %752 = vmatpush1.bf16.msra.mxu0 %v556
      %753 = vmatprep.subr.bf16.mxu0 %v561
      %754 = vmatpush1.bf16.msra.mxu0 %v560
      %755 = vmatprep.subr.bf16.mxu0 %v565
      %756 = vmatpush1.bf16.msra.mxu0 %v564
      %757 = vmatprep.subr.bf16.mxu0 %v569
      %758 = vmatpush1.bf16.msra.mxu0 %v568
      %759 = vmatprep.subr.bf16.mxu0 %v573
      %760 = vmatpush1.bf16.msra.mxu0 %v572
      %761 = vmatprep.subr.bf16.mxu0 %v577
      %762 = vmatpush1.bf16.msra.mxu0 %v576
      %763 = vmatprep.subr.bf16.mxu0 %v581
      %764 = vmatpush1.bf16.msra.mxu0 %v580
      %765 = vmatprep.subr.bf16.mxu0 %v585
      %766 = vmatpush1.bf16.msra.mxu0 %v584
      %767 = vmatprep.subr.bf16.mxu0 %v589
      %768 = vmatpush1.bf16.msra.mxu0 %v588
      %769 = vmatprep.subr.bf16.mxu0 %v593
      %770 = vmatpush1.bf16.msra.mxu0 %v592
      %771 = vmatprep.subr.bf16.mxu0 %v597
      %772 = vmatpush1.bf16.msra.mxu0 %v596
      %773 = vmatprep.subr.bf16.mxu0 %v601
      %774 = vmatpush1.bf16.msra.mxu0 %v600
      %775 = vmatprep.subr.bf16.mxu0 %v605
      %776 = vmatpush1.bf16.msra.mxu0 %v604
      %777 = vmatprep.subr.bf16.mxu0 %v609
      %778 = vmatpush1.bf16.msra.mxu0 %v608
      %779 = vmatprep.mubr.bf16.mxu0 %v339
      %780 = vmatmul.mubr.bf16.gmra.mrb[0].mxu0 %v338
      %v781 = vpop.f32.mrb[0].mxu0
      %v782 = vadd.f32 0.0, %v781
      %v783 = vpop.f32.mrb[0].mxu0
      %v784 = vadd.f32 0.0, %v783
      %v785 = vpop.f32.mrb[0].mxu0
      %v786 = vadd.f32 0.0, %v785
      %v787 = vpop.f32.mrb[0].mxu0
      %v788 = vadd.f32 0.0, %v787
      %789 = vmatprep.mubr.bf16.mxu0 %v341
      %790 = vmatmul.mubr.bf16.gmra.mrb[0].mxu0 %v340
      %v791 = vpop.f32.mrb[0].mxu0
      %v792 = vadd.f32 0.0, %v791
      %v793 = vpop.f32.mrb[0].mxu0
      %v794 = vadd.f32 0.0, %v793
      %v795 = vpop.f32.mrb[0].mxu0
      %v796 = vadd.f32 0.0, %v795
      %v797 = vpop.f32.mrb[0].mxu0
      %v798 = vadd.f32 0.0, %v797
      %799 = vmatprep.mubr.bf16.mxu0 %v343
      %800 = vmatmul.mubr.bf16.gmra.mrb[0].mxu0 %v342
      %v801 = vpop.f32.mrb[0].mxu0
      %v802 = vadd.f32 0.0, %v801
      %v803 = vpop.f32.mrb[0].mxu0
      %v804 = vadd.f32 0.0, %v803
      %v805 = vpop.f32.mrb[0].mxu0
      %v806 = vadd.f32 0.0, %v805
      %v807 = vpop.f32.mrb[0].mxu0
      %v808 = vadd.f32 0.0, %v807
      %809 = vmatprep.mubr.bf16.mxu0 %v345
      %810 = vmatmul.mubr.bf16.gmra.mrb[0].mxu0 %v344
      %v811 = vpop.f32.mrb[0].mxu0
      %v812 = vadd.f32 0.0, %v811
      %v813 = vpop.f32.mrb[0].mxu0
      %v814 = vadd.f32 0.0, %v813
      %v815 = vpop.f32.mrb[0].mxu0
      %v816 = vadd.f32 0.0, %v815
      %v817 = vpop.f32.mrb[0].mxu0
      %v818 = vadd.f32 0.0, %v817
      %819 = vdwg.mxu0
      %v820 = vld [vmem:[%s2] sm:$0xf]
      %v822 = vlaneseq
      %v823 = vshrl.u32 %v822, 7
      %v824 = vsub.s32 0, %v823
      %v825 = vrot.slane %v820, %v824
      %v826 = vlaneseq
      %v827 = vshrl.u32 %v826, 7
      %v828 = vsub.s32 1, %v827
      %v829 = vrot.slane %v820, %v828
      %v830 = vlaneseq
      %v831 = vshrl.u32 %v830, 7
      %v832 = vsub.s32 2, %v831
      %v833 = vrot.slane %v820, %v832
      %v834 = vlaneseq
      %v835 = vshrl.u32 %v834, 7
      %v836 = vsub.s32 3, %v835
      %v837 = vrot.slane %v820, %v836
      %v842 = vmul.f32 %v709, %v825
      %v843 = vmul.f32 %v711, %v829
      %v844 = vmul.f32 %v782, %v833
      %v845 = vmul.f32 %v784, %v837
      %v846 = vmul.f32 %v713, %v825
      %v847 = vmul.f32 %v715, %v829
      %v848 = vmul.f32 %v786, %v833
      %v849 = vmul.f32 %v788, %v837
      %v850 = vmul.f32 %v719, %v825
      %v851 = vmul.f32 %v721, %v829
      %v852 = vmul.f32 %v792, %v833
      %v853 = vmul.f32 %v794, %v837
      %v854 = vmul.f32 %v723, %v825
      %v855 = vmul.f32 %v725, %v829
      %v856 = vmul.f32 %v796, %v833
      %v857 = vmul.f32 %v798, %v837
      %v858 = vmul.f32 %v729, %v825
      %v859 = vmul.f32 %v731, %v829
      %v860 = vmul.f32 %v802, %v833
      %v861 = vmul.f32 %v804, %v837
      %v862 = vmul.f32 %v733, %v825
      %v863 = vmul.f32 %v735, %v829
      %v864 = vmul.f32 %v806, %v833
      %v865 = vmul.f32 %v808, %v837
      %v866 = vmul.f32 %v739, %v825
      %v867 = vmul.f32 %v741, %v829
      %v868 = vmul.f32 %v812, %v833
      %v869 = vmul.f32 %v814, %v837
      %v870 = vmul.f32 %v743, %v825
      %v871 = vmul.f32 %v745, %v829
      %v872 = vmul.f32 %v816, %v833
      %v873 = vmul.f32 %v818, %v837
      %v874 = vld [vmem:[%s3] sm:$0xf]
      %v876 = vlaneseq
      %v877 = vshrl.u32 %v876, 7
      %v878 = vsub.s32 0, %v877
      %v879 = vrot.slane %v874, %v878
      %v880 = vlaneseq
      %v881 = vshrl.u32 %v880, 7
      %v882 = vsub.s32 1, %v881
      %v883 = vrot.slane %v874, %v882
      %v884 = vlaneseq
      %v885 = vshrl.u32 %v884, 7
      %v886 = vsub.s32 2, %v885
      %v887 = vrot.slane %v874, %v886
      %v888 = vlaneseq
      %v889 = vshrl.u32 %v888, 7
      %v890 = vsub.s32 3, %v889
      %v891 = vrot.slane %v874, %v890
      %v896 = vadd.f32 %v842, %v879
      %v897 = vadd.f32 %v843, %v883
      %v898 = vadd.f32 %v844, %v887
      %v899 = vadd.f32 %v845, %v891
      %v900 = vadd.f32 %v846, %v879
      %v901 = vadd.f32 %v847, %v883
      %v902 = vadd.f32 %v848, %v887
      %v903 = vadd.f32 %v849, %v891
      %v904 = vadd.f32 %v850, %v879
      %v905 = vadd.f32 %v851, %v883
      %v906 = vadd.f32 %v852, %v887
      %v907 = vadd.f32 %v853, %v891
      %v908 = vadd.f32 %v854, %v879
      %v909 = vadd.f32 %v855, %v883
      %v910 = vadd.f32 %v856, %v887
      %v911 = vadd.f32 %v857, %v891
      %v912 = vadd.f32 %v858, %v879
      %v913 = vadd.f32 %v859, %v883
      %v914 = vadd.f32 %v860, %v887
      %v915 = vadd.f32 %v861, %v891
      %v916 = vadd.f32 %v862, %v879
      %v917 = vadd.f32 %v863, %v883
      %v918 = vadd.f32 %v864, %v887
      %v919 = vadd.f32 %v865, %v891
      %v920 = vadd.f32 %v866, %v879
      %v921 = vadd.f32 %v867, %v883
      %v922 = vadd.f32 %v868, %v887
      %v923 = vadd.f32 %v869, %v891
      %v924 = vadd.f32 %v870, %v879
      %v925 = vadd.f32 %v871, %v883
      %v926 = vadd.f32 %v872, %v887
      %v927 = vadd.f32 %v873, %v891
      %v928 = vsub.f32 0.0, %v896
      %v929 = vsub.f32 0.0, %v897
      %v930 = vsub.f32 0.0, %v898
      %v931 = vsub.f32 0.0, %v899
      %v932 = vsub.f32 0.0, %v900
      %v933 = vsub.f32 0.0, %v901
      %v934 = vsub.f32 0.0, %v902
      %v935 = vsub.f32 0.0, %v903
      %v936 = vsub.f32 0.0, %v904
      %v937 = vsub.f32 0.0, %v905
      %v938 = vsub.f32 0.0, %v906
      %v939 = vsub.f32 0.0, %v907
      %v940 = vsub.f32 0.0, %v908
      %v941 = vsub.f32 0.0, %v909
      %v942 = vsub.f32 0.0, %v910
      %v943 = vsub.f32 0.0, %v911
      %v944 = vsub.f32 0.0, %v912
      %v945 = vsub.f32 0.0, %v913
      %v946 = vsub.f32 0.0, %v914
      %v947 = vsub.f32 0.0, %v915
      %v948 = vsub.f32 0.0, %v916
      %v949 = vsub.f32 0.0, %v917
      %v950 = vsub.f32 0.0, %v918
      %v951 = vsub.f32 0.0, %v919
      %v952 = vsub.f32 0.0, %v920
      %v953 = vsub.f32 0.0, %v921
      %v954 = vsub.f32 0.0, %v922
      %v955 = vsub.f32 0.0, %v923
      %v956 = vsub.f32 0.0, %v924
      %v957 = vsub.f32 0.0, %v925
      %v958 = vsub.f32 0.0, %v926
      %v959 = vsub.f32 0.0, %v927
      %v960 = vmul.f32 %v928, 1.442695
      %v961 = vpow.pop %v960
      %v962 = vmul.f32 %v929, 1.442695
      %v963 = vpow.pop %v962
      %v964 = vmul.f32 %v930, 1.442695
      %v965 = vpow.pop %v964
      %v966 = vmul.f32 %v931, 1.442695
      %v967 = vpow.pop %v966
      %v968 = vmul.f32 %v932, 1.442695
      %v969 = vpow.pop %v968
      %v970 = vmul.f32 %v933, 1.442695
      %v971 = vpow.pop %v970
      %v972 = vmul.f32 %v934, 1.442695
      %v973 = vpow.pop %v972
      %v974 = vmul.f32 %v935, 1.442695
      %v975 = vpow.pop %v974
      %v976 = vmul.f32 %v936, 1.442695
      %v977 = vpow.pop %v976
      %v978 = vmul.f32 %v937, 1.442695
      %v979 = vpow.pop %v978
      %v980 = vmul.f32 %v938, 1.442695
      %v981 = vpow.pop %v980
      %v982 = vmul.f32 %v939, 1.442695
      %v983 = vpow.pop %v982
      %v984 = vmul.f32 %v940, 1.442695
      %v985 = vpow.pop %v984
      %v986 = vmul.f32 %v941, 1.442695
      %v987 = vpow.pop %v986
      %v988 = vmul.f32 %v942, 1.442695
      %v989 = vpow.pop %v988
      %v990 = vmul.f32 %v943, 1.442695
      %v991 = vpow.pop %v990
      %v992 = vmul.f32 %v944, 1.442695
      %v993 = vpow.pop %v992
      %v994 = vmul.f32 %v945, 1.442695
      %v995 = vpow.pop %v994
      %v996 = vmul.f32 %v946, 1.442695
      %v997 = vpow.pop %v996
      %v998 = vmul.f32 %v947, 1.442695
      %v999 = vpow.pop %v998
      %v1000 = vmul.f32 %v948, 1.442695
      %v1001 = vpow.pop %v1000
      %v1002 = vmul.f32 %v949, 1.442695
      %v1003 = vpow.pop %v1002
      %v1004 = vmul.f32 %v950, 1.442695
      %v1005 = vpow.pop %v1004
      %v1006 = vmul.f32 %v951, 1.442695
      %v1007 = vpow.pop %v1006
      %v1008 = vmul.f32 %v952, 1.442695
      %v1009 = vpow.pop %v1008
      %v1010 = vmul.f32 %v953, 1.442695
      %v1011 = vpow.pop %v1010
      %v1012 = vmul.f32 %v954, 1.442695
      %v1013 = vpow.pop %v1012
      %v1014 = vmul.f32 %v955, 1.442695
      %v1015 = vpow.pop %v1014
      %v1016 = vmul.f32 %v956, 1.442695
      %v1017 = vpow.pop %v1016
      %v1018 = vmul.f32 %v957, 1.442695
      %v1019 = vpow.pop %v1018
      %v1020 = vmul.f32 %v958, 1.442695
      %v1021 = vpow.pop %v1020
      %v1022 = vmul.f32 %v959, 1.442695
      %v1023 = vpow.pop %v1022
      %v1024 = vadd.f32 %v961, 1.0
      %v1025 = vadd.f32 %v963, 1.0
      %v1026 = vadd.f32 %v965, 1.0
      %v1027 = vadd.f32 %v967, 1.0
      %v1028 = vadd.f32 %v969, 1.0
      %v1029 = vadd.f32 %v971, 1.0
      %v1030 = vadd.f32 %v973, 1.0
      %v1031 = vadd.f32 %v975, 1.0
      %v1032 = vadd.f32 %v977, 1.0
      %v1033 = vadd.f32 %v979, 1.0
      %v1034 = vadd.f32 %v981, 1.0
      %v1035 = vadd.f32 %v983, 1.0
      %v1036 = vadd.f32 %v985, 1.0
      %v1037 = vadd.f32 %v987, 1.0
      %v1038 = vadd.f32 %v989, 1.0
      %v1039 = vadd.f32 %v991, 1.0
      %v1040 = vadd.f32 %v993, 1.0
      %v1041 = vadd.f32 %v995, 1.0
      %v1042 = vadd.f32 %v997, 1.0
      %v1043 = vadd.f32 %v999, 1.0
      %v1044 = vadd.f32 %v1001, 1.0
      %v1045 = vadd.f32 %v1003, 1.0
      %v1046 = vadd.f32 %v1005, 1.0
      %v1047 = vadd.f32 %v1007, 1.0
      %v1048 = vadd.f32 %v1009, 1.0
      %v1049 = vadd.f32 %v1011, 1.0
      %v1050 = vadd.f32 %v1013, 1.0
      %v1051 = vadd.f32 %v1015, 1.0
      %v1052 = vadd.f32 %v1017, 1.0
      %v1053 = vadd.f32 %v1019, 1.0
      %v1054 = vadd.f32 %v1021, 1.0
      %v1055 = vadd.f32 %v1023, 1.0
      %v1056 = vrcp.pop %v1024
      %v1057 = vrcp.pop %v1025
      %v1058 = vrcp.pop %v1026
      %v1059 = vrcp.pop %v1027
      %v1060 = vrcp.pop %v1028
      %v1061 = vrcp.pop %v1029
      %v1062 = vrcp.pop %v1030
      %v1063 = vrcp.pop %v1031
      %v1064 = vrcp.pop %v1032
      %v1065 = vrcp.pop %v1033
      %v1066 = vrcp.pop %v1034
      %v1067 = vrcp.pop %v1035
      %v1068 = vrcp.pop %v1036
      %v1069 = vrcp.pop %v1037
      %v1070 = vrcp.pop %v1038
      %v1071 = vrcp.pop %v1039
      %v1072 = vrcp.pop %v1040
      %v1073 = vrcp.pop %v1041
      %v1074 = vrcp.pop %v1042
      %v1075 = vrcp.pop %v1043
      %v1076 = vrcp.pop %v1044
      %v1077 = vrcp.pop %v1045
      %v1078 = vrcp.pop %v1046
      %v1079 = vrcp.pop %v1047
      %v1080 = vrcp.pop %v1048
      %v1081 = vrcp.pop %v1049
      %v1082 = vrcp.pop %v1050
      %v1083 = vrcp.pop %v1051
      %v1084 = vrcp.pop %v1052
      %v1085 = vrcp.pop %v1053
      %v1086 = vrcp.pop %v1054
      %v1087 = vrcp.pop %v1055
      %v1088 = vmul.f32 %v896, %v1056
      %v1089 = vmul.f32 %v897, %v1057
      %v1090 = vmul.f32 %v898, %v1058
      %v1091 = vmul.f32 %v899, %v1059
      %v1092 = vmul.f32 %v900, %v1060
      %v1093 = vmul.f32 %v901, %v1061
      %v1094 = vmul.f32 %v902, %v1062
      %v1095 = vmul.f32 %v903, %v1063
      %v1096 = vmul.f32 %v904, %v1064
      %v1097 = vmul.f32 %v905, %v1065
      %v1098 = vmul.f32 %v906, %v1066
      %v1099 = vmul.f32 %v907, %v1067
      %v1100 = vmul.f32 %v908, %v1068
      %v1101 = vmul.f32 %v909, %v1069
      %v1102 = vmul.f32 %v910, %v1070
      %v1103 = vmul.f32 %v911, %v1071
      %v1104 = vmul.f32 %v912, %v1072
      %v1105 = vmul.f32 %v913, %v1073
      %v1106 = vmul.f32 %v914, %v1074
      %v1107 = vmul.f32 %v915, %v1075
      %v1108 = vmul.f32 %v916, %v1076
      %v1109 = vmul.f32 %v917, %v1077
      %v1110 = vmul.f32 %v918, %v1078
      %v1111 = vmul.f32 %v919, %v1079
      %v1112 = vmul.f32 %v920, %v1080
      %v1113 = vmul.f32 %v921, %v1081
      %v1114 = vmul.f32 %v922, %v1082
      %v1115 = vmul.f32 %v923, %v1083
      %v1116 = vmul.f32 %v924, %v1084
      %v1117 = vmul.f32 %v925, %v1085
      %v1118 = vmul.f32 %v926, %v1086
      %v1119 = vmul.f32 %v927, %v1087
      %v1120 = vpack.c.bf16 %v1092, %v1088
      %v1121 = vpack.c.bf16 %v1093, %v1089
      %v1122 = vpack.c.bf16 %v1094, %v1090
      %v1123 = vpack.c.bf16 %v1095, %v1091
      %v1124 = vpack.c.bf16 %v1100, %v1096
      %v1125 = vpack.c.bf16 %v1101, %v1097
      %v1126 = vpack.c.bf16 %v1102, %v1098
      %v1127 = vpack.c.bf16 %v1103, %v1099
      %v1128 = vpack.c.bf16 %v1108, %v1104
      %v1129 = vpack.c.bf16 %v1109, %v1105
      %v1130 = vpack.c.bf16 %v1110, %v1106
      %v1131 = vpack.c.bf16 %v1111, %v1107
      %v1132 = vpack.c.bf16 %v1116, %v1112
      %v1133 = vpack.c.bf16 %v1117, %v1113
      %v1134 = vpack.c.bf16 %v1118, %v1114
      %v1135 = vpack.c.bf16 %v1119, %v1115
      %v1152 = vunpack.c.l.b16 %v1120
      %v1153 = vunpack.c.l.b16 %v1121
      %v1154 = vunpack.c.l.b16 %v1122
      %v1155 = vunpack.c.l.b16 %v1123
      %v1156 = vunpack.c.h.b16 %v1120
      %v1157 = vunpack.c.h.b16 %v1121
      %v1158 = vunpack.c.h.b16 %v1122
      %v1159 = vunpack.c.h.b16 %v1123
      %v1160 = vunpack.c.l.b16 %v1124
      %v1161 = vunpack.c.l.b16 %v1125
      %v1162 = vunpack.c.l.b16 %v1126
      %v1163 = vunpack.c.l.b16 %v1127
      %v1164 = vunpack.c.h.b16 %v1124
      %v1165 = vunpack.c.h.b16 %v1125
      %v1166 = vunpack.c.h.b16 %v1126
      %v1167 = vunpack.c.h.b16 %v1127
      %v1168 = vunpack.c.l.b16 %v1128
      %v1169 = vunpack.c.l.b16 %v1129
      %v1170 = vunpack.c.l.b16 %v1130
      %v1171 = vunpack.c.l.b16 %v1131
      %v1172 = vunpack.c.h.b16 %v1128
      %v1173 = vunpack.c.h.b16 %v1129
      %v1174 = vunpack.c.h.b16 %v1130
      %v1175 = vunpack.c.h.b16 %v1131
      %v1176 = vunpack.c.l.b16 %v1132
      %v1177 = vunpack.c.l.b16 %v1133
      %v1178 = vunpack.c.l.b16 %v1134
      %v1179 = vunpack.c.l.b16 %v1135
      %v1180 = vunpack.c.h.b16 %v1132
      %v1181 = vunpack.c.h.b16 %v1133
      %v1182 = vunpack.c.h.b16 %v1134
      %v1183 = vunpack.c.h.b16 %v1135
      %v1184 = vpack.c.b16 %v1153, %v1152
      %v1185 = vpack.c.b16 %v1155, %v1154
      %v1186 = vpack.c.b16 %v1157, %v1156
      %v1187 = vpack.c.b16 %v1159, %v1158
      %v1188 = vpack.c.b16 %v1161, %v1160
      %v1189 = vpack.c.b16 %v1163, %v1162
      %v1190 = vpack.c.b16 %v1165, %v1164
      %v1191 = vpack.c.b16 %v1167, %v1166
      %v1192 = vpack.c.b16 %v1169, %v1168
      %v1193 = vpack.c.b16 %v1171, %v1170
      %v1194 = vpack.c.b16 %v1173, %v1172
      %v1195 = vpack.c.b16 %v1175, %v1174
      %v1196 = vpack.c.b16 %v1177, %v1176
      %v1197 = vpack.c.b16 %v1179, %v1178
      %v1198 = vpack.c.b16 %v1181, %v1180
      %v1199 = vpack.c.b16 %v1183, %v1182
      %1216 = vst [vmem:[%s240] sm:$0xff] %v1184
      %1217 = vst [vmem:[%s240 + $0x8] sm:$0xff] %v1185
      %1218 = vst [vmem:[%s240 + $0x10] sm:$0xff] %v1186
      %1219 = vst [vmem:[%s240 + $0x18] sm:$0xff] %v1187
      %1220 = vst [vmem:[%s240 + $0x20] sm:$0xff] %v1188
      %1221 = vst [vmem:[%s240 + $0x28] sm:$0xff] %v1189
      %1222 = vst [vmem:[%s240 + $0x30] sm:$0xff] %v1190
      %1223 = vst [vmem:[%s240 + $0x38] sm:$0xff] %v1191
      %1224 = vst [vmem:[%s240 + $0x40] sm:$0xff] %v1192
      %1225 = vst [vmem:[%s240 + $0x48] sm:$0xff] %v1193
      %1226 = vst [vmem:[%s240 + $0x50] sm:$0xff] %v1194
      %1227 = vst [vmem:[%s240 + $0x58] sm:$0xff] %v1195
      %1228 = vst [vmem:[%s240 + $0x60] sm:$0xff] %v1196
      %1229 = vst [vmem:[%s240 + $0x68] sm:$0xff] %v1197
      %1230 = vst [vmem:[%s240 + $0x70] sm:$0xff] %v1198
      %1231 = vst [vmem:[%s240 + $0x78] sm:$0xff] %v1199
      %s1232 = smul.u32 8, %s20
      %p1233 = scmp.lt.s32.totalorder %s19, 1
      %s1234 = scalar_select %p1233, %s19, 1
      %p1235 = scmp.lt.s32.totalorder %s1232, 7
      %s1236 = scalar_select %p1235, %s1232, 7
      %s1237 = smul.addr %s1236, 4
      %s1238 = smul.addr %s1234, 32
      %s1239 = sadd.s32 %s1237, %s1238
      %s1240 = smul.addr %s1239, 4
      %s1241 = scalar_lea.vmem %s4, %s1240
      // Predicated region
      $region37: #{custom_efficientnet_forward.16} parent=35 // pred_check
        %p1242 = pneg %p138
      $region38: #{custom_efficientnet_forward.16} parent=35 // pred_check_branch
        %1244 = sbr.rel (%p1242) target = $region40
      $region39: #{custom_efficientnet_forward.16} parent=35 // pred_region
        %s1245 = smul.u32 8, %s20
      $region40: #{custom_efficientnet_forward.16} parent=35 // pred_fallthru
        _
    $region36: #{custom_efficientnet_forward.16} parent=5 // pred_fallthru
      _
    %p1246 = scmp.le.s32.totalorder 2, %s10
    // Predicated region
    $region41: #{custom_efficientnet_forward.16} parent=5 // pred_check
      %p1247 = pneg %p1246
    $region42: #{custom_efficientnet_forward.16} parent=5 // pred_check_branch
      %1249 = sbr.rel (%p1247) target = $region44
    $region43: #{custom_efficientnet_forward.16} parent=5 // pred_region
      %s1250 = ssub.s32 %s10, 2
      // Predicated region
      $region45: #{custom_efficientnet_forward.16} parent=43 // pred_check
        %p1251 = pneg %p144
      $region46: #{custom_efficientnet_forward.16} parent=43 // pred_check_branch
        %1253 = sbr.rel (%p1251) target = $region48
      $region47: #{custom_efficientnet_forward.16} parent=43 // pred_region
        %s1254 = smul.u32 8, %s22
        %p1255 = scmp.lt.s32.totalorder %s21, 1
        %s1256 = scalar_select %p1255, %s21, 1
        %p1257 = scmp.lt.s32.totalorder %s1254, 7
        %s1258 = scalar_select %p1257, %s1254, 7
        %s1259 = smul.addr %s1258, 4
        %s1260 = smul.addr %s1256, 32
        %s1261 = sadd.s32 %s1259, %s1260
        %s1262 = smul.addr %s1261, 4
        %s1263 = scalar_lea.vmem %s4, %s1262
      $region48: #{custom_efficientnet_forward.16} parent=43 // pred_fallthru
        _
    $region44: #{custom_efficientnet_forward.16} parent=5 // pred_fallthru
      _
  $region6: #{custom_efficientnet_forward.16} parent=0 // loop_footer
    %s14 = sadd.s32 1, %s10
  $region7: #{custom_efficientnet_forward.16} parent=0 // loop_footer_branch
    %9 = sbr.rel target = $region3
  $region8: #{custom_efficientnet_forward.16} parent=0 // loop_exit
    _

// kernel: custom_efficientnet_forward.15
$region0: #{custom_efficientnet_forward.15}
  #allocation0 [shape = 'u32[]', space=smem, size = 0x4, offset = 0x4, fixed_abs, tag = 'smem constant byte address 0x4 - core index']
  #allocation1 [shape = 'u32[144,128]{1,0:T(1,128)}', space=vmem, size = 0x12000, scoped, tag = 'internal scratch']
  %s0 = inlined_call_operand.vmem [shape: bf16[2,64,512], index: 0, kind: input, shape index: {}]
  %s1 = inlined_call_operand.vmem [shape: bf16[2,1,512], index: 1, kind: input, shape index: {}]
  %s2 = inlined_call_operand.vmem [shape: bf16[512,256], index: 2, kind: input, shape index: {}]
  %s3 = inlined_call_operand.vmem [shape: f32[1,256], index: 3, kind: input, shape index: {}]
  %s4 = inlined_call_operand.vmem [shape: f32[1,256], index: 4, kind: input, shape index: {}]
  %s5 = inlined_call_operand.vmem [shape: bf16[2,64,256], index: 5, kind: output, shape index: {}]
  %s6 = sld [smem:[#allocation0]]
  $region53: #{custom_efficientnet_forward.15} parent=0
    _
  %s8 = ssub.s32 1, %s6
  %s9 = scalar_select 0, %s8, %s6
  loop: start=0, step=1, limit=4
  $region2: #{custom_efficientnet_forward.15} parent=0 // loop_pre_header
    _
  $region3: #{custom_efficientnet_forward.15} parent=0 // loop_header
    %s11 = sphi 0, %s15
    %p12 = scmp.ge.s32.totalorder %s11, 4
    %s18 = sphi 0, %s30
    %s19 = sphi 0, %s26
    %s20 = sphi 0, %s18
    %s21 = sphi 0, %s19
    %s22 = sphi 0, %s20
    %s23 = sphi 0, %s21
    %s35 = sphi 0, %s37
    %s38 = sphi 0, %s35
    %s39 = sphi 0, %s38
    %s55 = sphi 0, %s39
    %s61 = sphi 0, %s63
    %s64 = sphi 0, %s61
    %s65 = sphi 0, %s64
    %s81 = sphi 0, %s65
    %s85 = sphi 0, %s85
    %s87 = sphi 0, %s85
    %s88 = sphi 0, %s87
    %s102 = sphi 0, %s88
    %s106 = sphi 0, %s106
    %s108 = sphi 0, %s106
    %s109 = sphi 0, %s108
    %s123 = sphi 0, %s109
    %s127 = sphi 0, %s127
    %s129 = sphi 0, %s127
    %s130 = sphi 0, %s129
    %s144 = sphi 0, %s130
    %s152 = sphi 0, %s154
    %s155 = sphi 0, %s152
    %s156 = sphi 0, %s155
    %s172 = sphi 0, %s156
  $region4: #{custom_efficientnet_forward.15} parent=0 // loop_header_branch
    %14 = sbr.rel (%p12) target = $region8
  $region5: #{custom_efficientnet_forward.15} parent=0 // loop_body
    %s16 = ssub.s32 %s11, 1
    %s17 = ssub.s32 %s11, 2
    %s24 = sadd.s32 1, %s19
    %p25 = scmp.ge.s32.totalorder %s24, 1
    %s26 = scalar_select %p25, 0, %s24
    %s27 = sadd.s32 1, %s18
    %s28 = scalar_select %p25, %s27, %s18
    %p29 = scmp.ge.s32.totalorder %s28, 2
    %s30 = scalar_select %p29, 0, %s28
    %s31 = ssub.s32 %s18, %s30
    %s32 = ssub.s32 %s19, %s26
    %s33 = sor.u32 %s31, %s32
    %p34 = scmp.eq.s32.totalorder %s33, 0
    %s36 = sadd.s32 %s35, 1
    %s37 = scalar_select %p34, %s35, %s36
    %p40 = pneg %p34
    %p41 = scmp.eq.s32.totalorder %s11, 1
    %p42 = por %p40, %p41
    %p43 = scmp.ne.s32.totalorder %s35, %s38
    %p44 = scmp.eq.s32.totalorder %s11, 0
    %p45 = por %p43, %p44
    %p46 = scmp.ne.s32.totalorder %s35, %s38
    %p47 = scmp.eq.s32.totalorder %s16, 1
    %p48 = por %p46, %p47
    %p49 = scmp.ne.s32.totalorder %s38, %s39
    %p50 = scmp.eq.s32.totalorder %s16, 0
    %p51 = por %p49, %p50
    %p52 = scmp.ne.s32.totalorder %s38, %s39
    %p53 = scmp.eq.s32.totalorder %s17, 1
    %p54 = por %p52, %p53
    %p56 = scmp.ne.s32.totalorder %s39, %s55
    %p57 = scmp.eq.s32.totalorder %s17, 0
    %p58 = por %p56, %p57
    %s59 = ssub.s32 %s18, %s30
    %p60 = scmp.eq.s32.totalorder %s59, 0
    %s62 = sadd.s32 %s61, 1
    %s63 = scalar_select %p60, %s61, %s62
    %p66 = pneg %p60
    %p67 = scmp.eq.s32.totalorder %s11, 1
    %p68 = por %p66, %p67
    %p69 = scmp.ne.s32.totalorder %s61, %s64
    %p70 = scmp.eq.s32.totalorder %s11, 0
    %p71 = por %p69, %p70
    %p72 = scmp.ne.s32.totalorder %s61, %s64
    %p73 = scmp.eq.s32.totalorder %s16, 1
    %p74 = por %p72, %p73
    %p75 = scmp.ne.s32.totalorder %s64, %s65
    %p76 = scmp.eq.s32.totalorder %s16, 0
    %p77 = por %p75, %p76
    %p78 = scmp.ne.s32.totalorder %s64, %s65
    %p79 = scmp.eq.s32.totalorder %s17, 1
    %p80 = por %p78, %p79
    %p82 = scmp.ne.s32.totalorder %s65, %s81
    %p83 = scmp.eq.s32.totalorder %s17, 0
    %p84 = por %p82, %p83
    %s86 = sadd.s32 %s85, 1
    %p89 = scmp.eq.s32.totalorder %s11, 1
    %p90 = scmp.ne.s32.totalorder %s85, %s87
    %p91 = scmp.eq.s32.totalorder %s11, 0
    %p92 = por %p90, %p91
    %p93 = scmp.ne.s32.totalorder %s85, %s87
    %p94 = scmp.eq.s32.totalorder %s16, 1
    %p95 = por %p93, %p94
    %p96 = scmp.ne.s32.totalorder %s87, %s88
    %p97 = scmp.eq.s32.totalorder %s16, 0
    %p98 = por %p96, %p97
    %p99 = scmp.ne.s32.totalorder %s87, %s88
    %p100 = scmp.eq.s32.totalorder %s17, 1
    %p101 = por %p99, %p100
    %p103 = scmp.ne.s32.totalorder %s88, %s102
    %p104 = scmp.eq.s32.totalorder %s17, 0
    %p105 = por %p103, %p104
    %s107 = sadd.s32 %s106, 1
    %p110 = scmp.eq.s32.totalorder %s11, 1
    %p111 = scmp.ne.s32.totalorder %s106, %s108
    %p112 = scmp.eq.s32.totalorder %s11, 0
    %p113 = por %p111, %p112
    %p114 = scmp.ne.s32.totalorder %s106, %s108
    %p115 = scmp.eq.s32.totalorder %s16, 1
    %p116 = por %p114, %p115
    %p117 = scmp.ne.s32.totalorder %s108, %s109
    %p118 = scmp.eq.s32.totalorder %s16, 0
    %p119 = por %p117, %p118
    %p120 = scmp.ne.s32.totalorder %s108, %s109
    %p121 = scmp.eq.s32.totalorder %s17, 1
    %p122 = por %p120, %p121
    %p124 = scmp.ne.s32.totalorder %s109, %s123
    %p125 = scmp.eq.s32.totalorder %s17, 0
    %p126 = por %p124, %p125
    %s128 = sadd.s32 %s127, 1
    %p131 = scmp.eq.s32.totalorder %s11, 1
    %p132 = scmp.ne.s32.totalorder %s127, %s129
    %p133 = scmp.eq.s32.totalorder %s11, 0
    %p134 = por %p132, %p133
    %p135 = scmp.ne.s32.totalorder %s127, %s129
    %p136 = scmp.eq.s32.totalorder %s16, 1
    %p137 = por %p135, %p136
    %p138 = scmp.ne.s32.totalorder %s129, %s130
    %p139 = scmp.eq.s32.totalorder %s16, 0
    %p140 = por %p138, %p139
    %p141 = scmp.ne.s32.totalorder %s129, %s130
    %p142 = scmp.eq.s32.totalorder %s17, 1
    %p143 = por %p141, %p142
    %p145 = scmp.ne.s32.totalorder %s130, %s144
    %p146 = scmp.eq.s32.totalorder %s17, 0
    %p147 = por %p145, %p146
    %s148 = ssub.s32 %s18, %s30
    %s149 = ssub.s32 %s19, %s26
    %s150 = sor.u32 %s148, %s149
    %p151 = scmp.eq.s32.totalorder %s150, 0
    %s153 = sadd.s32 %s152, 1
    %s154 = scalar_select %p151, %s152, %s153
    %p157 = pneg %p151
    %p158 = scmp.eq.s32.totalorder %s11, 1
    %p159 = por %p157, %p158
    %p160 = scmp.ne.s32.totalorder %s152, %s155
    %p161 = scmp.eq.s32.totalorder %s11, 0
    %p162 = por %p160, %p161
    %p163 = scmp.ne.s32.totalorder %s152, %s155
    %p164 = scmp.eq.s32.totalorder %s16, 1
    %p165 = por %p163, %p164
    %p166 = scmp.ne.s32.totalorder %s155, %s156
    %p167 = scmp.eq.s32.totalorder %s16, 0
    %p168 = por %p166, %p167
    %p169 = scmp.ne.s32.totalorder %s155, %s156
    %p170 = scmp.eq.s32.totalorder %s17, 1
    %p171 = por %p169, %p170
    %p173 = scmp.ne.s32.totalorder %s156, %s172
    %p174 = scmp.eq.s32.totalorder %s17, 0
    %p175 = por %p173, %p174
    %p176 = scmp.le.s32.totalorder 1, %s11
    %p177 = scmp.lt.s32.totalorder %s11, 3
    %p178 = pnand %p176, %p177
    %p179 = pneg %p178
    // Predicated region
    $region9: #{custom_efficientnet_forward.15} parent=5 // pred_check
      _
    $region10: #{custom_efficientnet_forward.15} parent=5 // pred_check_branch
      %181 = sbr.rel (%p178) target = $region12
    $region11: #{custom_efficientnet_forward.15} parent=5 // pred_region
      %s182 = ssub.s32 %s11, 1
      // Predicated region
      $region13: #{custom_efficientnet_forward.15} parent=11 // pred_check
        %p183 = pneg %p98
      $region14: #{custom_efficientnet_forward.15} parent=11 // pred_check_branch
        %185 = sbr.rel (%p183) target = $region16
      $region15: #{custom_efficientnet_forward.15} parent=11 // pred_region
        _
      $region16: #{custom_efficientnet_forward.15} parent=11 // pred_fallthru
        _
      // Predicated region
      $region17: #{custom_efficientnet_forward.15} parent=11 // pred_check
        %p186 = pneg %p119
      $region18: #{custom_efficientnet_forward.15} parent=11 // pred_check_branch
        %188 = sbr.rel (%p186) target = $region20
      $region19: #{custom_efficientnet_forward.15} parent=11 // pred_region
        _
      $region20: #{custom_efficientnet_forward.15} parent=11 // pred_fallthru
        _
      // Predicated region
      $region21: #{custom_efficientnet_forward.15} parent=11 // pred_check
        %p189 = pneg %p140
      $region22: #{custom_efficientnet_forward.15} parent=11 // pred_check_branch
        %191 = sbr.rel (%p189) target = $region24
      $region23: #{custom_efficientnet_forward.15} parent=11 // pred_region
        _
      $region24: #{custom_efficientnet_forward.15} parent=11 // pred_fallthru
        _
    $region12: #{custom_efficientnet_forward.15} parent=5 // pred_fallthru
      _
    %p192 = scmp.lt.s32.totalorder %s11, 2
    // Predicated region
    $region25: #{custom_efficientnet_forward.15} parent=5 // pred_check
      %p193 = pneg %p192
    $region26: #{custom_efficientnet_forward.15} parent=5 // pred_check_branch
      %195 = sbr.rel (%p193) target = $region28
    $region27: #{custom_efficientnet_forward.15} parent=5 // pred_region
      // Predicated region
      $region29: #{custom_efficientnet_forward.15} parent=27 // pred_check
        %p196 = pneg %p45
      $region30: #{custom_efficientnet_forward.15} parent=27 // pred_check_branch
        %198 = sbr.rel (%p196) target = $region32
      $region31: #{custom_efficientnet_forward.15} parent=27 // pred_region
        %s199 = smul.u32 8, %s19
        %p200 = scmp.lt.s32.totalorder %s18, 1
        %s201 = scalar_select %p200, %s18, 1
        %p202 = scmp.lt.s32.totalorder %s199, 7
        %s203 = scalar_select %p202, %s199, 7
        %s204 = smul.addr %s203, 4
        %s205 = smul.addr %s201, 32
        %s206 = sadd.s32 %s204, %s205
        %s207 = smul.addr %s206, 4
        %s208 = scalar_lea.vmem %s0, %s207
        %s209 = smul.u32 8, %s19
      $region32: #{custom_efficientnet_forward.15} parent=27 // pred_fallthru
        _
      // Predicated region
      $region33: #{custom_efficientnet_forward.15} parent=27 // pred_check
        %p210 = pneg %p71
      $region34: #{custom_efficientnet_forward.15} parent=27 // pred_check_branch
        %212 = sbr.rel (%p210) target = $region36
      $region35: #{custom_efficientnet_forward.15} parent=27 // pred_region
        %p213 = scmp.lt.s32.totalorder %s18, 1
        %s214 = scalar_select %p213, %s18, 1
        %s215 = smul.addr %s214, 4
        %s216 = scalar_lea.vmem %s1, %s215
      $region36: #{custom_efficientnet_forward.15} parent=27 // pred_fallthru
        _
    $region28: #{custom_efficientnet_forward.15} parent=5 // pred_fallthru
      _
    %p217 = scmp.le.s32.totalorder 1, %s11
    %p218 = scmp.lt.s32.totalorder %s11, 3
    %p219 = pnand %p217, %p218
    %p220 = pneg %p219
    // Predicated region
    $region37: #{custom_efficientnet_forward.15} parent=5 // pred_check
      _
    $region38: #{custom_efficientnet_forward.15} parent=5 // pred_check_branch
      %222 = sbr.rel (%p219) target = $region40
    $region39: #{custom_efficientnet_forward.15} parent=5 // pred_region
      %s223 = ssub.s32 %s11, 1
      %s224 = smul.u32 8, %s21
      %p225 = scmp.lt.s32.totalorder %s20, 1
      %s226 = scalar_select %p225, %s20, 1
      %p227 = scmp.lt.s32.totalorder %s224, 7
      %s228 = scalar_select %p227, %s224, 7
      %s229 = smul.addr %s228, 4
      %s230 = smul.addr %s226, 32
      %s231 = sadd.s32 %s229, %s230
      %s232 = smul.addr %s231, 4
      %s233 = scalar_lea.vmem %s0, %s232
      %p234 = pneg %p51
      %p235 = pneg %p48
      %p236 = scmp.lt.s32.totalorder %s20, 1
      %s237 = scalar_select %p236, %s20, 1
      %s238 = smul.addr %s237, 4
      %s239 = scalar_lea.vmem %s1, %s238
      %p240 = pneg %p77
      %p241 = pneg %p74
      %p242 = pneg %p98
      %p243 = pneg %p95
      %p244 = pneg %p119
      %p245 = pneg %p116
      %p246 = pneg %p140
      %p247 = pneg %p137
      %p248 = pneg %p168
      %p249 = pneg %p165
      %s250 = smul.u32 8, %s21
      %p251 = scmp.lt.s32.totalorder %s20, 1
      %s252 = scalar_select %p251, %s20, 1
      %p253 = scmp.lt.s32.totalorder %s250, 7
      %s254 = scalar_select %p253, %s250, 7
      %s255 = smul.addr %s254, 2
      %s256 = smul.addr %s252, 16
      %s257 = sadd.s32 %s255, %s256
      %s258 = smul.addr %s257, 4
      %s259 = scalar_lea.vmem %s5, %s258
      %s260 = smul.u32 8, %s21
      %p261 = scmp.lt.s32.totalorder %s20, 1
      %s262 = scalar_select %p261, %s20, 1
      %p263 = scmp.lt.s32.totalorder %s260, 7
      %s264 = scalar_select %p263, %s260, 7
      %s265 = smul.addr %s264, 4
      %s266 = smul.addr %s262, 32
      %s267 = sadd.s32 %s265, %s266
      %s268 = smul.addr %s267, 4
      %s269 = scalar_lea.vmem %s0, %s268
      %s270 = smul.u32 8, %s21
      %p271 = scmp.lt.s32.totalorder %s20, 1
      %s272 = scalar_select %p271, %s20, 1
      %s273 = smul.addr %s272, 4
      %s274 = scalar_lea.vmem %s1, %s273
      %s275 = smul.u32 8, %s21
      %p276 = scmp.lt.s32.totalorder %s20, 1
      %s277 = scalar_select %p276, %s20, 1
      %p278 = scmp.lt.s32.totalorder %s275, 7
      %s279 = scalar_select %p278, %s275, 7
      %s280 = smul.addr %s279, 2
      %s281 = smul.addr %s277, 16
      %s282 = sadd.s32 %s280, %s281
      %s283 = smul.addr %s282, 4
      %s284 = scalar_lea.vmem %s5, %s283
      %s285 = smul.u32 8, %s21
      %v286 = vld [vmem:[%s269] sm:$0xff]
      %v287 = vld [vmem:[%s269 + $0x8] sm:$0xff]
      %v288 = vld [vmem:[%s269 + $0x10] sm:$0xff]
      %v289 = vld [vmem:[%s269 + $0x18] sm:$0xff]
      %v290 = vld [vmem:[%s269 + $0x20] sm:$0xff]
      %v291 = vld [vmem:[%s269 + $0x28] sm:$0xff]
      %v292 = vld [vmem:[%s269 + $0x30] sm:$0xff]
      %v293 = vld [vmem:[%s269 + $0x38] sm:$0xff]
      %v294 = vld [vmem:[%s269 + $0x40] sm:$0xff]
      %v295 = vld [vmem:[%s269 + $0x48] sm:$0xff]
      %v296 = vld [vmem:[%s269 + $0x50] sm:$0xff]
      %v297 = vld [vmem:[%s269 + $0x58] sm:$0xff]
      %v298 = vld [vmem:[%s269 + $0x60] sm:$0xff]
      %v299 = vld [vmem:[%s269 + $0x68] sm:$0xff]
      %v300 = vld [vmem:[%s269 + $0x70] sm:$0xff]
      %v301 = vld [vmem:[%s269 + $0x78] sm:$0xff]
      %v302 = vld [vmem:[%s274] sm:$0xf]
      %v305 = vunpack.c.l.s4 1966171168
      %v306 = vunpack.c.0.s8 %v305
      %v307 = vlaneseq
      %v308 = vshrl.u32 %v307, 7
      %v309 = vsub.s32 %v306, %v308
      %v310 = vrot.slane %v302, %v309
      %v311 = vcombine.high %v310, %v310
      %v313 = vunpack.c.l.s4 1966171168
      %v314 = vunpack.c.0.s8 %v313
      %v315 = vlaneseq
      %v316 = vshrl.u32 %v315, 7
      %v317 = vsub.s32 %v314, %v316
      %v318 = vrot.slane %v310, %v317
      %v320 = vunpack.c.l.s4 1966171168
      %v321 = vunpack.c.0.s8 %v320
      %v322 = vlaneseq
      %v323 = vshrl.u32 %v322, 7
      %v324 = vsub.s32 %v321, %v323
      %v325 = vrot.slane %v311, %v324
      %v326 = vcombine.high %v318, %v318
      %v327 = vcombine.high %v325, %v325
      %v329 = vpack.i.b16 %v318, %v318
      %v331 = vlaneseq
      %v332 = vshrl.u32 %v331, 7
      %v333 = vsub.s32 0, %v332
      %v334 = vrot.slane %v329, %v333
      %v336 = vpack.i.b16 %v325, %v325
      %v338 = vlaneseq
      %v339 = vshrl.u32 %v338, 7
      %v340 = vsub.s32 0, %v339
      %v341 = vrot.slane %v336, %v340
      %v343 = vpack.i.b16 %v326, %v326
      %v345 = vlaneseq
      %v346 = vshrl.u32 %v345, 7
      %v347 = vsub.s32 0, %v346
      %v348 = vrot.slane %v343, %v347
      %v350 = vpack.i.b16 %v327, %v327
      %v352 = vlaneseq
      %v353 = vshrl.u32 %v352, 7
      %v354 = vsub.s32 0, %v353
      %v355 = vrot.slane %v350, %v354
      %v360 = vunpack.c.l.b16 %v334
      %v361 = vunpack.c.l.b16 %v341
      %v362 = vunpack.c.l.b16 %v348
      %v363 = vunpack.c.l.b16 %v355
      %v364 = vpack.c.b16 %v361, %v360
      %v365 = vpack.c.b16 %v363, %v362
      %v368 = vmul.bf16 %v286, %v364
      %v369 = vmul.bf16 %v287, %v365
      %v370 = vmul.bf16 %v288, %v364
      %v371 = vmul.bf16 %v289, %v365
      %v372 = vmul.bf16 %v290, %v364
      %v373 = vmul.bf16 %v291, %v365
      %v374 = vmul.bf16 %v292, %v364
      %v375 = vmul.bf16 %v293, %v365
      %v376 = vmul.bf16 %v294, %v364
      %v377 = vmul.bf16 %v295, %v365
      %v378 = vmul.bf16 %v296, %v364
      %v379 = vmul.bf16 %v297, %v365
      %v380 = vmul.bf16 %v298, %v364
      %v381 = vmul.bf16 %v299, %v365
      %v382 = vmul.bf16 %v300, %v364
      %v383 = vmul.bf16 %v301, %v365
      %v384 = vld [vmem:[%s2] sm:$0xff]
      %v385 = vld [vmem:[%s2 + $0x8] sm:$0xff]
      %v386 = vld [vmem:[%s2 + $0x10] sm:$0xff]
      %v387 = vld [vmem:[%s2 + $0x18] sm:$0xff]
      %v388 = vld [vmem:[%s2 + $0x20] sm:$0xff]
      %v389 = vld [vmem:[%s2 + $0x28] sm:$0xff]
      %v390 = vld [vmem:[%s2 + $0x30] sm:$0xff]
      %v391 = vld [vmem:[%s2 + $0x38] sm:$0xff]
      %v392 = vld [vmem:[%s2 + $0x40] sm:$0xff]
      %v393 = vld [vmem:[%s2 + $0x48] sm:$0xff]
      %v394 = vld [vmem:[%s2 + $0x50] sm:$0xff]
      %v395 = vld [vmem:[%s2 + $0x58] sm:$0xff]
      %v396 = vld [vmem:[%s2 + $0x60] sm:$0xff]
      %v397 = vld [vmem:[%s2 + $0x68] sm:$0xff]
      %v398 = vld [vmem:[%s2 + $0x70] sm:$0xff]
      %v399 = vld [vmem:[%s2 + $0x78] sm:$0xff]
      %v400 = vld [vmem:[%s2 + $0x80] sm:$0xff]
      %v401 = vld [vmem:[%s2 + $0x88] sm:$0xff]
      %v402 = vld [vmem:[%s2 + $0x90] sm:$0xff]
      %v403 = vld [vmem:[%s2 + $0x98] sm:$0xff]
      %v404 = vld [vmem:[%s2 + $0xa0] sm:$0xff]
      %v405 = vld [vmem:[%s2 + $0xa8] sm:$0xff]
      %v406 = vld [vmem:[%s2 + $0xb0] sm:$0xff]
      %v407 = vld [vmem:[%s2 + $0xb8] sm:$0xff]
      %v408 = vld [vmem:[%s2 + $0xc0] sm:$0xff]
      %v409 = vld [vmem:[%s2 + $0xc8] sm:$0xff]
      %v410 = vld [vmem:[%s2 + $0xd0] sm:$0xff]
      %v411 = vld [vmem:[%s2 + $0xd8] sm:$0xff]
      %v412 = vld [vmem:[%s2 + $0xe0] sm:$0xff]
      %v413 = vld [vmem:[%s2 + $0xe8] sm:$0xff]
      %v414 = vld [vmem:[%s2 + $0xf0] sm:$0xff]
      %v415 = vld [vmem:[%s2 + $0xf8] sm:$0xff]
      %v416 = vld [vmem:[%s2 + $0x100] sm:$0xff]
      %v417 = vld [vmem:[%s2 + $0x108] sm:$0xff]
      %v418 = vld [vmem:[%s2 + $0x110] sm:$0xff]
      %v419 = vld [vmem:[%s2 + $0x118] sm:$0xff]
      %v420 = vld [vmem:[%s2 + $0x120] sm:$0xff]
      %v421 = vld [vmem:[%s2 + $0x128] sm:$0xff]
      %v422 = vld [vmem:[%s2 + $0x130] sm:$0xff]
      %v423 = vld [vmem:[%s2 + $0x138] sm:$0xff]
      %v424 = vld [vmem:[%s2 + $0x140] sm:$0xff]
      %v425 = vld [vmem:[%s2 + $0x148] sm:$0xff]
      %v426 = vld [vmem:[%s2 + $0x150] sm:$0xff]
      %v427 = vld [vmem:[%s2 + $0x158] sm:$0xff]
      %v428 = vld [vmem:[%s2 + $0x160] sm:$0xff]
      %v429 = vld [vmem:[%s2 + $0x168] sm:$0xff]
      %v430 = vld [vmem:[%s2 + $0x170] sm:$0xff]
      %v431 = vld [vmem:[%s2 + $0x178] sm:$0xff]
      %v432 = vld [vmem:[%s2 + $0x180] sm:$0xff]
      %v433 = vld [vmem:[%s2 + $0x188] sm:$0xff]
      %v434 = vld [vmem:[%s2 + $0x190] sm:$0xff]
      %v435 = vld [vmem:[%s2 + $0x198] sm:$0xff]
      %v436 = vld [vmem:[%s2 + $0x1a0] sm:$0xff]
      %v437 = vld [vmem:[%s2 + $0x1a8] sm:$0xff]
      %v438 = vld [vmem:[%s2 + $0x1b0] sm:$0xff]
      %v439 = vld [vmem:[%s2 + $0x1b8] sm:$0xff]
      %v440 = vld [vmem:[%s2 + $0x1c0] sm:$0xff]
      %v441 = vld [vmem:[%s2 + $0x1c8] sm:$0xff]
      %v442 = vld [vmem:[%s2 + $0x1d0] sm:$0xff]
      %v443 = vld [vmem:[%s2 + $0x1d8] sm:$0xff]
      %v444 = vld [vmem:[%s2 + $0x1e0] sm:$0xff]
      %v445 = vld [vmem:[%s2 + $0x1e8] sm:$0xff]
      %v446 = vld [vmem:[%s2 + $0x1f0] sm:$0xff]
      %v447 = vld [vmem:[%s2 + $0x1f8] sm:$0xff]
      %v464 = vunpack.c.l.b16 %v368
      %v465 = vunpack.c.h.b16 %v368
      %v466 = vunpack.c.l.b16 %v369
      %v467 = vunpack.c.h.b16 %v369
      %v468 = vunpack.c.l.b16 %v370
      %v469 = vunpack.c.h.b16 %v370
      %v470 = vunpack.c.l.b16 %v371
      %v471 = vunpack.c.h.b16 %v371
      %v472 = vunpack.c.l.b16 %v372
      %v473 = vunpack.c.h.b16 %v372
      %v474 = vunpack.c.l.b16 %v373
      %v475 = vunpack.c.h.b16 %v373
      %v476 = vunpack.c.l.b16 %v374
      %v477 = vunpack.c.h.b16 %v374
      %v478 = vunpack.c.l.b16 %v375
      %v479 = vunpack.c.h.b16 %v375
      %v480 = vunpack.c.l.b16 %v376
      %v481 = vunpack.c.h.b16 %v376
      %v482 = vunpack.c.l.b16 %v377
      %v483 = vunpack.c.h.b16 %v377
      %v484 = vunpack.c.l.b16 %v378
      %v485 = vunpack.c.h.b16 %v378
      %v486 = vunpack.c.l.b16 %v379
      %v487 = vunpack.c.h.b16 %v379
      %v488 = vunpack.c.l.b16 %v380
      %v489 = vunpack.c.h.b16 %v380
      %v490 = vunpack.c.l.b16 %v381
      %v491 = vunpack.c.h.b16 %v381
      %v492 = vunpack.c.l.b16 %v382
      %v493 = vunpack.c.h.b16 %v382
      %v494 = vunpack.c.l.b16 %v383
      %v495 = vunpack.c.h.b16 %v383
      %v496 = vpack.c.b16 %v468, %v464
      %v497 = vpack.c.b16 %v469, %v465
      %v498 = vpack.c.b16 %v470, %v466
      %v499 = vpack.c.b16 %v471, %v467
      %v500 = vpack.c.b16 %v476, %v472
      %v501 = vpack.c.b16 %v477, %v473
      %v502 = vpack.c.b16 %v478, %v474
      %v503 = vpack.c.b16 %v479, %v475
      %v504 = vpack.c.b16 %v484, %v480
      %v505 = vpack.c.b16 %v485, %v481
      %v506 = vpack.c.b16 %v486, %v482
      %v507 = vpack.c.b16 %v487, %v483
      %v508 = vpack.c.b16 %v492, %v488
      %v509 = vpack.c.b16 %v493, %v489
      %v510 = vpack.c.b16 %v494, %v490
      %v511 = vpack.c.b16 %v495, %v491
      %v592 = vunpack.c.l.b16 %v384
      %v593 = vunpack.c.h.b16 %v384
      %v594 = vunpack.c.l.b16 %v385
      %v595 = vunpack.c.h.b16 %v385
      %v596 = vunpack.c.l.b16 %v386
      %v597 = vunpack.c.h.b16 %v386
      %v598 = vunpack.c.l.b16 %v387
      %v599 = vunpack.c.h.b16 %v387
      %v600 = vunpack.c.l.b16 %v388
      %v601 = vunpack.c.h.b16 %v388
      %v602 = vunpack.c.l.b16 %v389
      %v603 = vunpack.c.h.b16 %v389
      %v604 = vunpack.c.l.b16 %v390
      %v605 = vunpack.c.h.b16 %v390
      %v606 = vunpack.c.l.b16 %v391
      %v607 = vunpack.c.h.b16 %v391
      %v608 = vunpack.c.l.b16 %v392
      %v609 = vunpack.c.h.b16 %v392
      %v610 = vunpack.c.l.b16 %v393
      %v611 = vunpack.c.h.b16 %v393
      %v612 = vunpack.c.l.b16 %v394
      %v613 = vunpack.c.h.b16 %v394
      %v614 = vunpack.c.l.b16 %v395
      %v615 = vunpack.c.h.b16 %v395
      %v616 = vunpack.c.l.b16 %v396
      %v617 = vunpack.c.h.b16 %v396
      %v618 = vunpack.c.l.b16 %v397
      %v619 = vunpack.c.h.b16 %v397
      %v620 = vunpack.c.l.b16 %v398
      %v621 = vunpack.c.h.b16 %v398
      %v622 = vunpack.c.l.b16 %v399
      %v623 = vunpack.c.h.b16 %v399
      %v624 = vunpack.c.l.b16 %v400
      %v625 = vunpack.c.h.b16 %v400
      %v626 = vunpack.c.l.b16 %v401
      %v627 = vunpack.c.h.b16 %v401
      %v628 = vunpack.c.l.b16 %v402
      %v629 = vunpack.c.h.b16 %v402
      %v630 = vunpack.c.l.b16 %v403
      %v631 = vunpack.c.h.b16 %v403
      %v632 = vunpack.c.l.b16 %v404
      %v633 = vunpack.c.h.b16 %v404
      %v634 = vunpack.c.l.b16 %v405
      %v635 = vunpack.c.h.b16 %v405
      %v636 = vunpack.c.l.b16 %v406
      %v637 = vunpack.c.h.b16 %v406
      %v638 = vunpack.c.l.b16 %v407
      %v639 = vunpack.c.h.b16 %v407
      %v640 = vunpack.c.l.b16 %v408
      %v641 = vunpack.c.h.b16 %v408
      %v642 = vunpack.c.l.b16 %v409
      %v643 = vunpack.c.h.b16 %v409
      %v644 = vunpack.c.l.b16 %v410
      %v645 = vunpack.c.h.b16 %v410
      %v646 = vunpack.c.l.b16 %v411
      %v647 = vunpack.c.h.b16 %v411
      %v648 = vunpack.c.l.b16 %v412
      %v649 = vunpack.c.h.b16 %v412
      %v650 = vunpack.c.l.b16 %v413
      %v651 = vunpack.c.h.b16 %v413
      %v652 = vunpack.c.l.b16 %v414
      %v653 = vunpack.c.h.b16 %v414
      %v654 = vunpack.c.l.b16 %v415
      %v655 = vunpack.c.h.b16 %v415
      %v656 = vunpack.c.l.b16 %v416
      %v657 = vunpack.c.h.b16 %v416
      %v658 = vunpack.c.l.b16 %v417
      %v659 = vunpack.c.h.b16 %v417
      %v660 = vunpack.c.l.b16 %v418
      %v661 = vunpack.c.h.b16 %v418
      %v662 = vunpack.c.l.b16 %v419
      %v663 = vunpack.c.h.b16 %v419
      %v664 = vunpack.c.l.b16 %v420
      %v665 = vunpack.c.h.b16 %v420
      %v666 = vunpack.c.l.b16 %v421
      %v667 = vunpack.c.h.b16 %v421
      %v668 = vunpack.c.l.b16 %v422
      %v669 = vunpack.c.h.b16 %v422
      %v670 = vunpack.c.l.b16 %v423
      %v671 = vunpack.c.h.b16 %v423
      %v672 = vunpack.c.l.b16 %v424
      %v673 = vunpack.c.h.b16 %v424
      %v674 = vunpack.c.l.b16 %v425
      %v675 = vunpack.c.h.b16 %v425
      %v676 = vunpack.c.l.b16 %v426
      %v677 = vunpack.c.h.b16 %v426
      %v678 = vunpack.c.l.b16 %v427
      %v679 = vunpack.c.h.b16 %v427
      %v680 = vunpack.c.l.b16 %v428
      %v681 = vunpack.c.h.b16 %v428
      %v682 = vunpack.c.l.b16 %v429
      %v683 = vunpack.c.h.b16 %v429
      %v684 = vunpack.c.l.b16 %v430
      %v685 = vunpack.c.h.b16 %v430
      %v686 = vunpack.c.l.b16 %v431
      %v687 = vunpack.c.h.b16 %v431
      %v688 = vunpack.c.l.b16 %v432
      %v689 = vunpack.c.h.b16 %v432
      %v690 = vunpack.c.l.b16 %v433
      %v691 = vunpack.c.h.b16 %v433
      %v692 = vunpack.c.l.b16 %v434
      %v693 = vunpack.c.h.b16 %v434
      %v694 = vunpack.c.l.b16 %v435
      %v695 = vunpack.c.h.b16 %v435
      %v696 = vunpack.c.l.b16 %v436
      %v697 = vunpack.c.h.b16 %v436
      %v698 = vunpack.c.l.b16 %v437
      %v699 = vunpack.c.h.b16 %v437
      %v700 = vunpack.c.l.b16 %v438
      %v701 = vunpack.c.h.b16 %v438
      %v702 = vunpack.c.l.b16 %v439
      %v703 = vunpack.c.h.b16 %v439
      %v704 = vunpack.c.l.b16 %v440
      %v705 = vunpack.c.h.b16 %v440
      %v706 = vunpack.c.l.b16 %v441
      %v707 = vunpack.c.h.b16 %v441
      %v708 = vunpack.c.l.b16 %v442
      %v709 = vunpack.c.h.b16 %v442
      %v710 = vunpack.c.l.b16 %v443
      %v711 = vunpack.c.h.b16 %v443
      %v712 = vunpack.c.l.b16 %v444
      %v713 = vunpack.c.h.b16 %v444
      %v714 = vunpack.c.l.b16 %v445
      %v715 = vunpack.c.h.b16 %v445
      %v716 = vunpack.c.l.b16 %v446
      %v717 = vunpack.c.h.b16 %v446
      %v718 = vunpack.c.l.b16 %v447
      %v719 = vunpack.c.h.b16 %v447
      %v720 = vpack.c.b16 %v594, %v592
      %v721 = vpack.c.b16 %v595, %v593
      %v722 = vpack.c.b16 %v598, %v596
      %v723 = vpack.c.b16 %v599, %v597
      %v724 = vpack.c.b16 %v602, %v600
      %v725 = vpack.c.b16 %v603, %v601
      %v726 = vpack.c.b16 %v606, %v604
      %v727 = vpack.c.b16 %v607, %v605
      %v728 = vpack.c.b16 %v610, %v608
      %v729 = vpack.c.b16 %v611, %v609
      %v730 = vpack.c.b16 %v614, %v612
      %v731 = vpack.c.b16 %v615, %v613
      %v732 = vpack.c.b16 %v618, %v616
      %v733 = vpack.c.b16 %v619, %v617
      %v734 = vpack.c.b16 %v622, %v620
      %v735 = vpack.c.b16 %v623, %v621
      %v736 = vpack.c.b16 %v626, %v624
      %v737 = vpack.c.b16 %v627, %v625
      %v738 = vpack.c.b16 %v630, %v628
      %v739 = vpack.c.b16 %v631, %v629
      %v740 = vpack.c.b16 %v634, %v632
      %v741 = vpack.c.b16 %v635, %v633
      %v742 = vpack.c.b16 %v638, %v636
      %v743 = vpack.c.b16 %v639, %v637
      %v744 = vpack.c.b16 %v642, %v640
      %v745 = vpack.c.b16 %v643, %v641
      %v746 = vpack.c.b16 %v646, %v644
      %v747 = vpack.c.b16 %v647, %v645
      %v748 = vpack.c.b16 %v650, %v648
      %v749 = vpack.c.b16 %v651, %v649
      %v750 = vpack.c.b16 %v654, %v652
      %v751 = vpack.c.b16 %v655, %v653
      %v752 = vpack.c.b16 %v658, %v656
      %v753 = vpack.c.b16 %v659, %v657
      %v754 = vpack.c.b16 %v662, %v660
      %v755 = vpack.c.b16 %v663, %v661
      %v756 = vpack.c.b16 %v666, %v664
      %v757 = vpack.c.b16 %v667, %v665
      %v758 = vpack.c.b16 %v670, %v668
      %v759 = vpack.c.b16 %v671, %v669
      %v760 = vpack.c.b16 %v674, %v672
      %v761 = vpack.c.b16 %v675, %v673
      %v762 = vpack.c.b16 %v678, %v676
      %v763 = vpack.c.b16 %v679, %v677
      %v764 = vpack.c.b16 %v682, %v680
      %v765 = vpack.c.b16 %v683, %v681
      %v766 = vpack.c.b16 %v686, %v684
      %v767 = vpack.c.b16 %v687, %v685
      %v768 = vpack.c.b16 %v690, %v688
      %v769 = vpack.c.b16 %v691, %v689
      %v770 = vpack.c.b16 %v694, %v692
      %v771 = vpack.c.b16 %v695, %v693
      %v772 = vpack.c.b16 %v698, %v696
      %v773 = vpack.c.b16 %v699, %v697
      %v774 = vpack.c.b16 %v702, %v700
      %v775 = vpack.c.b16 %v703, %v701
      %v776 = vpack.c.b16 %v706, %v704
      %v777 = vpack.c.b16 %v707, %v705
      %v778 = vpack.c.b16 %v710, %v708
      %v779 = vpack.c.b16 %v711, %v709
      %v780 = vpack.c.b16 %v714, %v712
      %v781 = vpack.c.b16 %v715, %v713
      %v782 = vpack.c.b16 %v718, %v716
      %v783 = vpack.c.b16 %v719, %v717
      %848 = vmatprep.subr.bf16.mxu0 %v721
      %849 = vmatpush1.bf16.msra.mxu0 %v720
      %850 = vmatprep.subr.bf16.mxu0 %v723
      %851 = vmatpush1.bf16.msra.mxu0 %v722
      %852 = vmatprep.subr.bf16.mxu0 %v725
      %853 = vmatpush1.bf16.msra.mxu0 %v724
      %854 = vmatprep.subr.bf16.mxu0 %v727
      %855 = vmatpush1.bf16.msra.mxu0 %v726
      %856 = vmatprep.subr.bf16.mxu0 %v729
      %857 = vmatpush1.bf16.msra.mxu0 %v728
      %858 = vmatprep.subr.bf16.mxu0 %v731
      %859 = vmatpush1.bf16.msra.mxu0 %v730
      %860 = vmatprep.subr.bf16.mxu0 %v733
      %861 = vmatpush1.bf16.msra.mxu0 %v732
      %862 = vmatprep.subr.bf16.mxu0 %v735
      %863 = vmatpush1.bf16.msra.mxu0 %v734
      %864 = vmatprep.subr.bf16.mxu0 %v737
      %865 = vmatpush1.bf16.msra.mxu0 %v736
      %866 = vmatprep.subr.bf16.mxu0 %v739
      %867 = vmatpush1.bf16.msra.mxu0 %v738
      %868 = vmatprep.subr.bf16.mxu0 %v741
      %869 = vmatpush1.bf16.msra.mxu0 %v740
      %870 = vmatprep.subr.bf16.mxu0 %v743
      %871 = vmatpush1.bf16.msra.mxu0 %v742
      %872 = vmatprep.subr.bf16.mxu0 %v745
      %873 = vmatpush1.bf16.msra.mxu0 %v744
      %874 = vmatprep.subr.bf16.mxu0 %v747
      %875 = vmatpush1.bf16.msra.mxu0 %v746
      %876 = vmatprep.subr.bf16.mxu0 %v749
      %877 = vmatpush1.bf16.msra.mxu0 %v748
      %878 = vmatprep.subr.bf16.mxu0 %v751
      %879 = vmatpush1.bf16.msra.mxu0 %v750
      %880 = vmatprep.mubr.bf16.mxu0 %v497
      %881 = vmatmul.mubr.bf16.gmra.mrb[0].mxu0 %v496
      %v882 = vpop.f32.mrb[0].mxu0
      %v883 = vadd.f32 0.0, %v882
      %v884 = vpop.f32.mrb[0].mxu0
      %v885 = vadd.f32 0.0, %v884
      %v886 = vpop.f32.mrb[0].mxu0
      %v887 = vadd.f32 0.0, %v886
      %v888 = vpop.f32.mrb[0].mxu0
      %v889 = vadd.f32 0.0, %v888
      %890 = vmatprep.mubr.bf16.mxu0 %v501
      %891 = vmatmul.mubr.bf16.gmra.mrb[0].mxu0 %v500
      %v892 = vpop.f32.mrb[0].mxu0
      %v893 = vadd.f32 0.0, %v892
      %v894 = vpop.f32.mrb[0].mxu0
      %v895 = vadd.f32 0.0, %v894
      %v896 = vpop.f32.mrb[0].mxu0
      %v897 = vadd.f32 0.0, %v896
      %v898 = vpop.f32.mrb[0].mxu0
      %v899 = vadd.f32 0.0, %v898
      %900 = vmatprep.mubr.bf16.mxu0 %v505
      %901 = vmatmul.mubr.bf16.gmra.mrb[0].mxu0 %v504
      %v902 = vpop.f32.mrb[0].mxu0
      %v903 = vadd.f32 0.0, %v902
      %v904 = vpop.f32.mrb[0].mxu0
      %v905 = vadd.f32 0.0, %v904
      %v906 = vpop.f32.mrb[0].mxu0
      %v907 = vadd.f32 0.0, %v906
      %v908 = vpop.f32.mrb[0].mxu0
      %v909 = vadd.f32 0.0, %v908
      %910 = vmatprep.mubr.bf16.mxu0 %v509
      %911 = vmatmul.mubr.bf16.gmra.mrb[0].mxu0 %v508
      %v912 = vpop.f32.mrb[0].mxu0
      %v913 = vadd.f32 0.0, %v912
      %v914 = vpop.f32.mrb[0].mxu0
      %v915 = vadd.f32 0.0, %v914
      %v916 = vpop.f32.mrb[0].mxu0
      %v917 = vadd.f32 0.0, %v916
      %v918 = vpop.f32.mrb[0].mxu0
      %v919 = vadd.f32 0.0, %v918
      %920 = vdwg.mxu0
      %921 = vmatprep.subr.bf16.mxu0 %v753
      %922 = vmatpush1.bf16.msra.mxu0 %v752
      %923 = vmatprep.subr.bf16.mxu0 %v755
      %924 = vmatpush1.bf16.msra.mxu0 %v754
      %925 = vmatprep.subr.bf16.mxu0 %v757
      %926 = vmatpush1.bf16.msra.mxu0 %v756
      %927 = vmatprep.subr.bf16.mxu0 %v759
      %928 = vmatpush1.bf16.msra.mxu0 %v758
      %929 = vmatprep.subr.bf16.mxu0 %v761
      %930 = vmatpush1.bf16.msra.mxu0 %v760
      %931 = vmatprep.subr.bf16.mxu0 %v763
      %932 = vmatpush1.bf16.msra.mxu0 %v762
      %933 = vmatprep.subr.bf16.mxu0 %v765
      %934 = vmatpush1.bf16.msra.mxu0 %v764
      %935 = vmatprep.subr.bf16.mxu0 %v767
      %936 = vmatpush1.bf16.msra.mxu0 %v766
      %937 = vmatprep.subr.bf16.mxu0 %v769
      %938 = vmatpush1.bf16.msra.mxu0 %v768
      %939 = vmatprep.subr.bf16.mxu0 %v771
      %940 = vmatpush1.bf16.msra.mxu0 %v770
      %941 = vmatprep.subr.bf16.mxu0 %v773
      %942 = vmatpush1.bf16.msra.mxu0 %v772
      %943 = vmatprep.subr.bf16.mxu0 %v775
      %944 = vmatpush1.bf16.msra.mxu0 %v774
      %945 = vmatprep.subr.bf16.mxu0 %v777
      %946 = vmatpush1.bf16.msra.mxu0 %v776
      %947 = vmatprep.subr.bf16.mxu0 %v779
      %948 = vmatpush1.bf16.msra.mxu0 %v778
      %949 = vmatprep.subr.bf16.mxu0 %v781
      %950 = vmatpush1.bf16.msra.mxu0 %v780
      %951 = vmatprep.subr.bf16.mxu0 %v783
      %952 = vmatpush1.bf16.msra.mxu0 %v782
      %953 = vmatprep.mubr.bf16.mxu0 %v499
      %954 = vmatmul.mubr.bf16.gmra.mrb[0].mxu0 %v498
      %v955 = vpop.f32.mrb[0].mxu0
      %v956 = vadd.f32 %v883, %v955
      %v957 = vpop.f32.mrb[0].mxu0
      %v958 = vadd.f32 %v885, %v957
      %v959 = vpop.f32.mrb[0].mxu0
      %v960 = vadd.f32 %v887, %v959
      %v961 = vpop.f32.mrb[0].mxu0
      %v962 = vadd.f32 %v889, %v961
      %963 = vmatprep.mubr.bf16.mxu0 %v503
      %964 = vmatmul.mubr.bf16.gmra.mrb[0].mxu0 %v502
      %v965 = vpop.f32.mrb[0].mxu0
      %v966 = vadd.f32 %v893, %v965
      %v967 = vpop.f32.mrb[0].mxu0
      %v968 = vadd.f32 %v895, %v967
      %v969 = vpop.f32.mrb[0].mxu0
      %v970 = vadd.f32 %v897, %v969
      %v971 = vpop.f32.mrb[0].mxu0
      %v972 = vadd.f32 %v899, %v971
      %973 = vmatprep.mubr.bf16.mxu0 %v507
      %974 = vmatmul.mubr.bf16.gmra.mrb[0].mxu0 %v506
      %v975 = vpop.f32.mrb[0].mxu0
      %v976 = vadd.f32 %v903, %v975
      %v977 = vpop.f32.mrb[0].mxu0
      %v978 = vadd.f32 %v905, %v977
      %v979 = vpop.f32.mrb[0].mxu0
      %v980 = vadd.f32 %v907, %v979
      %v981 = vpop.f32.mrb[0].mxu0
      %v982 = vadd.f32 %v909, %v981
      %983 = vmatprep.mubr.bf16.mxu0 %v511
      %984 = vmatmul.mubr.bf16.gmra.mrb[0].mxu0 %v510
      %v985 = vpop.f32.mrb[0].mxu0
      %v986 = vadd.f32 %v913, %v985
      %v987 = vpop.f32.mrb[0].mxu0
      %v988 = vadd.f32 %v915, %v987
      %v989 = vpop.f32.mrb[0].mxu0
      %v990 = vadd.f32 %v917, %v989
      %v991 = vpop.f32.mrb[0].mxu0
      %v992 = vadd.f32 %v919, %v991
      %993 = vdwg.mxu0
      %v994 = vld [vmem:[%s3] sm:$0x3]
      %v996 = vlaneseq
      %v997 = vshrl.u32 %v996, 7
      %v998 = vsub.s32 0, %v997
      %v999 = vrot.slane %v994, %v998
      %v1000 = vlaneseq
      %v1001 = vshrl.u32 %v1000, 7
      %v1002 = vsub.s32 1, %v1001
      %v1003 = vrot.slane %v994, %v1002
      %v1006 = vmul.f32 %v956, %v999
      %v1007 = vmul.f32 %v958, %v1003
      %v1008 = vmul.f32 %v960, %v999
      %v1009 = vmul.f32 %v962, %v1003
      %v1010 = vmul.f32 %v966, %v999
      %v1011 = vmul.f32 %v968, %v1003
      %v1012 = vmul.f32 %v970, %v999
      %v1013 = vmul.f32 %v972, %v1003
      %v1014 = vmul.f32 %v976, %v999
      %v1015 = vmul.f32 %v978, %v1003
      %v1016 = vmul.f32 %v980, %v999
      %v1017 = vmul.f32 %v982, %v1003
      %v1018 = vmul.f32 %v986, %v999
      %v1019 = vmul.f32 %v988, %v1003
      %v1020 = vmul.f32 %v990, %v999
      %v1021 = vmul.f32 %v992, %v1003
      %v1022 = vld [vmem:[%s4] sm:$0x3]
      %v1024 = vlaneseq
      %v1025 = vshrl.u32 %v1024, 7
      %v1026 = vsub.s32 0, %v1025
      %v1027 = vrot.slane %v1022, %v1026
      %v1028 = vlaneseq
      %v1029 = vshrl.u32 %v1028, 7
      %v1030 = vsub.s32 1, %v1029
      %v1031 = vrot.slane %v1022, %v1030
      %v1034 = vadd.f32 %v1006, %v1027
      %v1035 = vadd.f32 %v1007, %v1031
      %v1036 = vadd.f32 %v1008, %v1027
      %v1037 = vadd.f32 %v1009, %v1031
      %v1038 = vadd.f32 %v1010, %v1027
      %v1039 = vadd.f32 %v1011, %v1031
      %v1040 = vadd.f32 %v1012, %v1027
      %v1041 = vadd.f32 %v1013, %v1031
      %v1042 = vadd.f32 %v1014, %v1027
      %v1043 = vadd.f32 %v1015, %v1031
      %v1044 = vadd.f32 %v1016, %v1027
      %v1045 = vadd.f32 %v1017, %v1031
      %v1046 = vadd.f32 %v1018, %v1027
      %v1047 = vadd.f32 %v1019, %v1031
      %v1048 = vadd.f32 %v1020, %v1027
      %v1049 = vadd.f32 %v1021, %v1031
      %v1050 = vpack.c.bf16 %v1036, %v1034
      %v1051 = vpack.c.bf16 %v1037, %v1035
      %v1052 = vpack.c.bf16 %v1040, %v1038
      %v1053 = vpack.c.bf16 %v1041, %v1039
      %v1054 = vpack.c.bf16 %v1044, %v1042
      %v1055 = vpack.c.bf16 %v1045, %v1043
      %v1056 = vpack.c.bf16 %v1048, %v1046
      %v1057 = vpack.c.bf16 %v1049, %v1047
      %v1066 = vunpack.c.l.b16 %v1050
      %v1067 = vunpack.c.l.b16 %v1051
      %v1068 = vunpack.c.h.b16 %v1050
      %v1069 = vunpack.c.h.b16 %v1051
      %v1070 = vunpack.c.l.b16 %v1052
      %v1071 = vunpack.c.l.b16 %v1053
      %v1072 = vunpack.c.h.b16 %v1052
      %v1073 = vunpack.c.h.b16 %v1053
      %v1074 = vunpack.c.l.b16 %v1054
      %v1075 = vunpack.c.l.b16 %v1055
      %v1076 = vunpack.c.h.b16 %v1054
      %v1077 = vunpack.c.h.b16 %v1055
      %v1078 = vunpack.c.l.b16 %v1056
      %v1079 = vunpack.c.l.b16 %v1057
      %v1080 = vunpack.c.h.b16 %v1056
      %v1081 = vunpack.c.h.b16 %v1057
      %v1082 = vpack.c.b16 %v1067, %v1066
      %v1083 = vpack.c.b16 %v1069, %v1068
      %v1084 = vpack.c.b16 %v1071, %v1070
      %v1085 = vpack.c.b16 %v1073, %v1072
      %v1086 = vpack.c.b16 %v1075, %v1074
      %v1087 = vpack.c.b16 %v1077, %v1076
      %v1088 = vpack.c.b16 %v1079, %v1078
      %v1089 = vpack.c.b16 %v1081, %v1080
      %1098 = vst [vmem:[%s284] sm:$0xff] %v1082
      %1099 = vst [vmem:[%s284 + $0x8] sm:$0xff] %v1083
      %1100 = vst [vmem:[%s284 + $0x10] sm:$0xff] %v1084
      %1101 = vst [vmem:[%s284 + $0x18] sm:$0xff] %v1085
      %1102 = vst [vmem:[%s284 + $0x20] sm:$0xff] %v1086
      %1103 = vst [vmem:[%s284 + $0x28] sm:$0xff] %v1087
      %1104 = vst [vmem:[%s284 + $0x30] sm:$0xff] %v1088
      %1105 = vst [vmem:[%s284 + $0x38] sm:$0xff] %v1089
      %s1106 = smul.u32 8, %s21
      %p1107 = scmp.lt.s32.totalorder %s20, 1
      %s1108 = scalar_select %p1107, %s20, 1
      %p1109 = scmp.lt.s32.totalorder %s1106, 7
      %s1110 = scalar_select %p1109, %s1106, 7
      %s1111 = smul.addr %s1110, 2
      %s1112 = smul.addr %s1108, 16
      %s1113 = sadd.s32 %s1111, %s1112
      %s1114 = smul.addr %s1113, 4
      %s1115 = scalar_lea.vmem %s5, %s1114
      // Predicated region
      $region41: #{custom_efficientnet_forward.15} parent=39 // pred_check
        %p1116 = pneg %p165
      $region42: #{custom_efficientnet_forward.15} parent=39 // pred_check_branch
        %1118 = sbr.rel (%p1116) target = $region44
      $region43: #{custom_efficientnet_forward.15} parent=39 // pred_region
        %s1119 = smul.u32 8, %s21
      $region44: #{custom_efficientnet_forward.15} parent=39 // pred_fallthru
        _
    $region40: #{custom_efficientnet_forward.15} parent=5 // pred_fallthru
      _
    %p1120 = scmp.le.s32.totalorder 2, %s11
    // Predicated region
    $region45: #{custom_efficientnet_forward.15} parent=5 // pred_check
      %p1121 = pneg %p1120
    $region46: #{custom_efficientnet_forward.15} parent=5 // pred_check_branch
      %1123 = sbr.rel (%p1121) target = $region48
    $region47: #{custom_efficientnet_forward.15} parent=5 // pred_region
      %s1124 = ssub.s32 %s11, 2
      // Predicated region
      $region49: #{custom_efficientnet_forward.15} parent=47 // pred_check
        %p1125 = pneg %p171
      $region50: #{custom_efficientnet_forward.15} parent=47 // pred_check_branch
        %1127 = sbr.rel (%p1125) target = $region52
      $region51: #{custom_efficientnet_forward.15} parent=47 // pred_region
        %s1128 = smul.u32 8, %s23
        %p1129 = scmp.lt.s32.totalorder %s22, 1
        %s1130 = scalar_select %p1129, %s22, 1
        %p1131 = scmp.lt.s32.totalorder %s1128, 7
        %s1132 = scalar_select %p1131, %s1128, 7
        %s1133 = smul.addr %s1132, 2
        %s1134 = smul.addr %s1130, 16
        %s1135 = sadd.s32 %s1133, %s1134
        %s1136 = smul.addr %s1135, 4
        %s1137 = scalar_lea.vmem %s5, %s1136
      $region52: #{custom_efficientnet_forward.15} parent=47 // pred_fallthru
        _
    $region48: #{custom_efficientnet_forward.15} parent=5 // pred_fallthru
      _
  $region6: #{custom_efficientnet_forward.15} parent=0 // loop_footer
    %s15 = sadd.s32 1, %s11
  $region7: #{custom_efficientnet_forward.15} parent=0 // loop_footer_branch
    %10 = sbr.rel target = $region3
  $region8: #{custom_efficientnet_forward.15} parent=0 // loop_exit
    _

// kernel: custom_efficientnet_forward.17
$region0: #{custom_efficientnet_forward.17}
  #allocation0 [shape = 'u32[]', space=smem, size = 0x4, offset = 0x4, fixed_abs, tag = 'smem constant byte address 0x4 - core index']
  #allocation1 [shape = 'u32[144,128]{1,0:T(1,128)}', space=vmem, size = 0x12000, scoped, tag = 'internal scratch']
  #allocation2 [shape = 'f32[1,512]{1,0:T(1,128)}', space=vmem, size = 0x800, scoped, tag = 'scratch operand']
  %s0 = inlined_call_operand.vmem [shape: bf16[2,64,512], index: 0, kind: input, shape index: {}]
  %s1 = inlined_call_operand.vmem [shape: f32[512,128], index: 1, kind: input, shape index: {}]
  %s2 = inlined_call_operand.vmem [shape: f32[1,128], index: 2, kind: input, shape index: {}]
  %s3 = inlined_call_operand.hbm [shape: f32[2,1,128], index: 3, kind: output, shape index: {}]
  %s4 = sld [smem:[#allocation0]]
  $region53: #{custom_efficientnet_forward.17} parent=0
    _
  %s6 = ssub.s32 1, %s4
  %s7 = scalar_select 0, %s6, %s4
  $region1: #{custom_efficientnet_forward.17} parent=0
    #allocation3 [shape = 'u8[1024]{0}', space=vmem, size = 0x400, scoped, tag = 'output window, operand 0']
    #allocation4 [shape = 's32[2]{0}', space=sflag, size = 0x8, scoped, tag = 'scoped memory for custom_efficientnet_forward.17']
    %8 = vsyncpa [#allocation4], 0
    %s9 = scalar_lea.sflag [#allocation4], 1
    %10 = vsyncpa %s9, 0
    loop: start=0, step=1, limit=4
    $region2: #{custom_efficientnet_forward.17} parent=1 // loop_pre_header
      _
    $region3: #{custom_efficientnet_forward.17} parent=1 // loop_header
      %s12 = sphi 0, %s16
      %p13 = scmp.ge.s32.totalorder %s12, 4
      %s19 = sphi 0, %s31
      %s20 = sphi 0, %s27
      %s21 = sphi 0, %s19
      %s22 = sphi 0, %s20
      %s23 = sphi 0, %s21
      %s24 = sphi 0, %s22
      %s36 = sphi 0, %s38
      %s39 = sphi 0, %s36
      %s40 = sphi 0, %s39
      %s56 = sphi 0, %s40
      %s60 = sphi 0, %s60
      %s62 = sphi 0, %s60
      %s63 = sphi 0, %s62
      %s77 = sphi 0, %s63
      %s81 = sphi 0, %s81
      %s83 = sphi 0, %s81
      %s84 = sphi 0, %s83
      %s98 = sphi 0, %s84
      %s104 = sphi 0, %s106
      %s107 = sphi 0, %s104
      %s108 = sphi 0, %s107
      %s124 = sphi 0, %s108
    $region4: #{custom_efficientnet_forward.17} parent=1 // loop_header_branch
      %15 = sbr.rel (%p13) target = $region8
    $region5: #{custom_efficientnet_forward.17} parent=1 // loop_body
      %s17 = ssub.s32 %s12, 1
      %s18 = ssub.s32 %s12, 2
      %s25 = sadd.s32 1, %s20
      %p26 = scmp.ge.s32.totalorder %s25, 1
      %s27 = scalar_select %p26, 0, %s25
      %s28 = sadd.s32 1, %s19
      %s29 = scalar_select %p26, %s28, %s19
      %p30 = scmp.ge.s32.totalorder %s29, 2
      %s31 = scalar_select %p30, 0, %s29
      %s32 = ssub.s32 %s19, %s31
      %s33 = ssub.s32 %s20, %s27
      %s34 = sor.u32 %s32, %s33
      %p35 = scmp.eq.s32.totalorder %s34, 0
      %s37 = sadd.s32 %s36, 1
      %s38 = scalar_select %p35, %s36, %s37
      %p41 = pneg %p35
      %p42 = scmp.eq.s32.totalorder %s12, 1
      %p43 = por %p41, %p42
      %p44 = scmp.ne.s32.totalorder %s36, %s39
      %p45 = scmp.eq.s32.totalorder %s12, 0
      %p46 = por %p44, %p45
      %p47 = scmp.ne.s32.totalorder %s36, %s39
      %p48 = scmp.eq.s32.totalorder %s17, 1
      %p49 = por %p47, %p48
      %p50 = scmp.ne.s32.totalorder %s39, %s40
      %p51 = scmp.eq.s32.totalorder %s17, 0
      %p52 = por %p50, %p51
      %p53 = scmp.ne.s32.totalorder %s39, %s40
      %p54 = scmp.eq.s32.totalorder %s18, 1
      %p55 = por %p53, %p54
      %p57 = scmp.ne.s32.totalorder %s40, %s56
      %p58 = scmp.eq.s32.totalorder %s18, 0
      %p59 = por %p57, %p58
      %s61 = sadd.s32 %s60, 1
      %p64 = scmp.eq.s32.totalorder %s12, 1
      %p65 = scmp.ne.s32.totalorder %s60, %s62
      %p66 = scmp.eq.s32.totalorder %s12, 0
      %p67 = por %p65, %p66
      %p68 = scmp.ne.s32.totalorder %s60, %s62
      %p69 = scmp.eq.s32.totalorder %s17, 1
      %p70 = por %p68, %p69
      %p71 = scmp.ne.s32.totalorder %s62, %s63
      %p72 = scmp.eq.s32.totalorder %s17, 0
      %p73 = por %p71, %p72
      %p74 = scmp.ne.s32.totalorder %s62, %s63
      %p75 = scmp.eq.s32.totalorder %s18, 1
      %p76 = por %p74, %p75
      %p78 = scmp.ne.s32.totalorder %s63, %s77
      %p79 = scmp.eq.s32.totalorder %s18, 0
      %p80 = por %p78, %p79
      %s82 = sadd.s32 %s81, 1
      %p85 = scmp.eq.s32.totalorder %s12, 1
      %p86 = scmp.ne.s32.totalorder %s81, %s83
      %p87 = scmp.eq.s32.totalorder %s12, 0
      %p88 = por %p86, %p87
      %p89 = scmp.ne.s32.totalorder %s81, %s83
      %p90 = scmp.eq.s32.totalorder %s17, 1
      %p91 = por %p89, %p90
      %p92 = scmp.ne.s32.totalorder %s83, %s84
      %p93 = scmp.eq.s32.totalorder %s17, 0
      %p94 = por %p92, %p93
      %p95 = scmp.ne.s32.totalorder %s83, %s84
      %p96 = scmp.eq.s32.totalorder %s18, 1
      %p97 = por %p95, %p96
      %p99 = scmp.ne.s32.totalorder %s84, %s98
      %p100 = scmp.eq.s32.totalorder %s18, 0
      %p101 = por %p99, %p100
      %s102 = ssub.s32 %s19, %s31
      %p103 = scmp.eq.s32.totalorder %s102, 0
      %s105 = sadd.s32 %s104, 1
      %s106 = scalar_select %p103, %s104, %s105
      %p109 = pneg %p103
      %p110 = scmp.eq.s32.totalorder %s12, 1
      %p111 = por %p109, %p110
      %p112 = scmp.ne.s32.totalorder %s104, %s107
      %p113 = scmp.eq.s32.totalorder %s12, 0
      %p114 = por %p112, %p113
      %p115 = scmp.ne.s32.totalorder %s104, %s107
      %p116 = scmp.eq.s32.totalorder %s17, 1
      %p117 = por %p115, %p116
      %p118 = scmp.ne.s32.totalorder %s107, %s108
      %p119 = scmp.eq.s32.totalorder %s17, 0
      %p120 = por %p118, %p119
      %p121 = scmp.ne.s32.totalorder %s107, %s108
      %p122 = scmp.eq.s32.totalorder %s18, 1
      %p123 = por %p121, %p122
      %p125 = scmp.ne.s32.totalorder %s108, %s124
      %p126 = scmp.eq.s32.totalorder %s18, 0
      %p127 = por %p125, %p126
      %p128 = scmp.le.s32.totalorder 1, %s12
      %p129 = scmp.lt.s32.totalorder %s12, 3
      %p130 = pnand %p128, %p129
      %p131 = pneg %p130
      // Predicated region
      $region9: #{custom_efficientnet_forward.17} parent=5 // pred_check
        _
      $region10: #{custom_efficientnet_forward.17} parent=5 // pred_check_branch
        %133 = sbr.rel (%p130) target = $region12
      $region11: #{custom_efficientnet_forward.17} parent=5 // pred_region
        %s134 = ssub.s32 %s12, 1
        // Predicated region
        $region13: #{custom_efficientnet_forward.17} parent=11 // pred_check
          %p135 = pneg %p73
        $region14: #{custom_efficientnet_forward.17} parent=11 // pred_check_branch
          %137 = sbr.rel (%p135) target = $region16
        $region15: #{custom_efficientnet_forward.17} parent=11 // pred_region
          _
        $region16: #{custom_efficientnet_forward.17} parent=11 // pred_fallthru
          _
        // Predicated region
        $region17: #{custom_efficientnet_forward.17} parent=11 // pred_check
          %p138 = pneg %p94
        $region18: #{custom_efficientnet_forward.17} parent=11 // pred_check_branch
          %140 = sbr.rel (%p138) target = $region20
        $region19: #{custom_efficientnet_forward.17} parent=11 // pred_region
          _
        $region20: #{custom_efficientnet_forward.17} parent=11 // pred_fallthru
          _
      $region12: #{custom_efficientnet_forward.17} parent=5 // pred_fallthru
        _
      %p141 = scmp.lt.s32.totalorder %s12, 2
      // Predicated region
      $region21: #{custom_efficientnet_forward.17} parent=5 // pred_check
        %p142 = pneg %p141
      $region22: #{custom_efficientnet_forward.17} parent=5 // pred_check_branch
        %144 = sbr.rel (%p142) target = $region24
      $region23: #{custom_efficientnet_forward.17} parent=5 // pred_region
        // Predicated region
        $region25: #{custom_efficientnet_forward.17} parent=23 // pred_check
          %p145 = pneg %p46
        $region26: #{custom_efficientnet_forward.17} parent=23 // pred_check_branch
          %147 = sbr.rel (%p145) target = $region28
        $region27: #{custom_efficientnet_forward.17} parent=23 // pred_region
          %s148 = smul.u32 8, %s20
          %p149 = scmp.lt.s32.totalorder %s19, 1
          %s150 = scalar_select %p149, %s19, 1
          %p151 = scmp.lt.s32.totalorder %s148, 7
          %s152 = scalar_select %p151, %s148, 7
          %s153 = smul.addr %s152, 4
          %s154 = smul.addr %s150, 32
          %s155 = sadd.s32 %s153, %s154
          %s156 = smul.addr %s155, 4
          %s157 = scalar_lea.vmem %s0, %s156
          %s158 = smul.u32 8, %s20
        $region28: #{custom_efficientnet_forward.17} parent=23 // pred_fallthru
          _
      $region24: #{custom_efficientnet_forward.17} parent=5 // pred_fallthru
        _
      %p159 = scmp.le.s32.totalorder 1, %s12
      %p160 = scmp.lt.s32.totalorder %s12, 3
      %p161 = pnand %p159, %p160
      %p162 = pneg %p161
      // Predicated region
      $region29: #{custom_efficientnet_forward.17} parent=5 // pred_check
        _
      $region30: #{custom_efficientnet_forward.17} parent=5 // pred_check_branch
        %164 = sbr.rel (%p161) target = $region32
      $region31: #{custom_efficientnet_forward.17} parent=5 // pred_region
        %s165 = ssub.s32 %s12, 1
        %s166 = smul.u32 8, %s22
        %p167 = scmp.lt.s32.totalorder %s21, 1
        %s168 = scalar_select %p167, %s21, 1
        %p169 = scmp.lt.s32.totalorder %s166, 7
        %s170 = scalar_select %p169, %s166, 7
        %s171 = smul.addr %s170, 4
        %s172 = smul.addr %s168, 32
        %s173 = sadd.s32 %s171, %s172
        %s174 = smul.addr %s173, 4
        %s175 = scalar_lea.vmem %s0, %s174
        %p176 = pneg %p52
        %p177 = pneg %p49
        %p178 = pneg %p73
        %p179 = pneg %p70
        %p180 = pneg %p94
        %p181 = pneg %p91
        %p182 = pneg %p120
        %p183 = pneg %p117
        %s184 = sand.u32 %s107, 1
        %s185 = scalar_lea.sflag [#allocation4], %s184
        %s186 = sand.u32 %s107, 1
        %s187 = scalar_lea.vmem [#allocation3], %s186
        %s188 = smul.u32 8, %s22
        %p189 = scmp.lt.s32.totalorder %s21, 1
        %s190 = scalar_select %p189, %s21, 1
        %p191 = scmp.lt.s32.totalorder %s188, 7
        %s192 = scalar_select %p191, %s188, 7
        %s193 = smul.addr %s192, 4
        %s194 = smul.addr %s190, 32
        %s195 = sadd.s32 %s193, %s194
        %s196 = smul.addr %s195, 4
        %s197 = scalar_lea.vmem %s0, %s196
        %s198 = smul.u32 8, %s22
        %p199 = scmp.eq.s32.totalorder %s22, 0
        // Predicated region
        $region33: #{custom_efficientnet_forward.17} parent=31 // pred_check
          %p200 = pneg %p199
        $region34: #{custom_efficientnet_forward.17} parent=31 // pred_check_branch
          %202 = sbr.rel (%p200) target = $region36
        $region35: #{custom_efficientnet_forward.17} parent=31 // pred_region
          %v203 = vlaneseq
          %vm204 = vcmp.ge.s32.totalorder %v203, 0
          %vm205 = vcmp.lt.s32.totalorder %v203, 512
          %vm206 = vmand %vm204, %vm205
          %207 = vst.msk [vmem:[#allocation2] sm:$0xf] %vm206, 0.0
        $region36: #{custom_efficientnet_forward.17} parent=31 // pred_fallthru
          _
        %v208 = vld [vmem:[#allocation2] sm:$0xf]
        %v209 = vld [vmem:[%s197] sm:$0xff]
        %v210 = vld [vmem:[%s197 + $0x8] sm:$0xff]
        %v211 = vld [vmem:[%s197 + $0x10] sm:$0xff]
        %v212 = vld [vmem:[%s197 + $0x18] sm:$0xff]
        %v213 = vld [vmem:[%s197 + $0x20] sm:$0xff]
        %v214 = vld [vmem:[%s197 + $0x28] sm:$0xff]
        %v215 = vld [vmem:[%s197 + $0x30] sm:$0xff]
        %v216 = vld [vmem:[%s197 + $0x38] sm:$0xff]
        %v217 = vld [vmem:[%s197 + $0x40] sm:$0xff]
        %v218 = vld [vmem:[%s197 + $0x48] sm:$0xff]
        %v219 = vld [vmem:[%s197 + $0x50] sm:$0xff]
        %v220 = vld [vmem:[%s197 + $0x58] sm:$0xff]
        %v221 = vld [vmem:[%s197 + $0x60] sm:$0xff]
        %v222 = vld [vmem:[%s197 + $0x68] sm:$0xff]
        %v223 = vld [vmem:[%s197 + $0x70] sm:$0xff]
        %v224 = vld [vmem:[%s197 + $0x78] sm:$0xff]
        %v225 = vunpack.c.l.bf16 %v209
        %v226 = vunpack.c.h.bf16 %v209
        %v227 = vunpack.c.l.bf16 %v210
        %v228 = vunpack.c.h.bf16 %v210
        %v229 = vunpack.c.l.bf16 %v211
        %v230 = vunpack.c.h.bf16 %v211
        %v231 = vunpack.c.l.bf16 %v212
        %v232 = vunpack.c.h.bf16 %v212
        %v233 = vunpack.c.l.bf16 %v213
        %v234 = vunpack.c.h.bf16 %v213
        %v235 = vunpack.c.l.bf16 %v214
        %v236 = vunpack.c.h.bf16 %v214
        %v237 = vunpack.c.l.bf16 %v215
        %v238 = vunpack.c.h.bf16 %v215
        %v239 = vunpack.c.l.bf16 %v216
        %v240 = vunpack.c.h.bf16 %v216
        %v241 = vunpack.c.l.bf16 %v217
        %v242 = vunpack.c.h.bf16 %v217
        %v243 = vunpack.c.l.bf16 %v218
        %v244 = vunpack.c.h.bf16 %v218
        %v245 = vunpack.c.l.bf16 %v219
        %v246 = vunpack.c.h.bf16 %v219
        %v247 = vunpack.c.l.bf16 %v220
        %v248 = vunpack.c.h.bf16 %v220
        %v249 = vunpack.c.l.bf16 %v221
        %v250 = vunpack.c.h.bf16 %v221
        %v251 = vunpack.c.l.bf16 %v222
        %v252 = vunpack.c.h.bf16 %v222
        %v253 = vunpack.c.l.bf16 %v223
        %v254 = vunpack.c.h.bf16 %v223
        %v255 = vunpack.c.l.bf16 %v224
        %v256 = vunpack.c.h.bf16 %v224
        %v257 = vadd.f32 %v225, %v229
        %v258 = vadd.f32 %v257, %v233
        %v259 = vadd.f32 %v258, %v237
        %v260 = vadd.f32 %v259, %v241
        %v261 = vadd.f32 %v260, %v245
        %v262 = vadd.f32 %v261, %v249
        %v263 = vadd.f32 %v262, %v253
        %v264 = vrot.slane %v263, 4
        %v265 = vadd.f32 %v263, %v264
        %v266 = vrot.slane %v265, 2
        %v267 = vadd.f32 %v265, %v266
        %v268 = vrot.slane %v267, 1
        %v269 = vadd.f32 %v267, %v268
        %v270 = vadd.f32 %v226, %v230
        %v271 = vadd.f32 %v270, %v234
        %v272 = vadd.f32 %v271, %v238
        %v273 = vadd.f32 %v272, %v242
        %v274 = vadd.f32 %v273, %v246
        %v275 = vadd.f32 %v274, %v250
        %v276 = vadd.f32 %v275, %v254
        %v277 = vrot.slane %v276, 4
        %v278 = vadd.f32 %v276, %v277
        %v279 = vrot.slane %v278, 2
        %v280 = vadd.f32 %v278, %v279
        %v281 = vrot.slane %v280, 1
        %v282 = vadd.f32 %v280, %v281
        %v283 = vadd.f32 %v227, %v231
        %v284 = vadd.f32 %v283, %v235
        %v285 = vadd.f32 %v284, %v239
        %v286 = vadd.f32 %v285, %v243
        %v287 = vadd.f32 %v286, %v247
        %v288 = vadd.f32 %v287, %v251
        %v289 = vadd.f32 %v288, %v255
        %v290 = vrot.slane %v289, 4
        %v291 = vadd.f32 %v289, %v290
        %v292 = vrot.slane %v291, 2
        %v293 = vadd.f32 %v291, %v292
        %v294 = vrot.slane %v293, 1
        %v295 = vadd.f32 %v293, %v294
        %v296 = vadd.f32 %v228, %v232
        %v297 = vadd.f32 %v296, %v236
        %v298 = vadd.f32 %v297, %v240
        %v299 = vadd.f32 %v298, %v244
        %v300 = vadd.f32 %v299, %v248
        %v301 = vadd.f32 %v300, %v252
        %v302 = vadd.f32 %v301, %v256
        %v303 = vrot.slane %v302, 4
        %v304 = vadd.f32 %v302, %v303
        %v305 = vrot.slane %v304, 2
        %v306 = vadd.f32 %v304, %v305
        %v307 = vrot.slane %v306, 1
        %v308 = vadd.f32 %v306, %v307
        %v313 = vcombine.low %v269, %v282
        %v314 = vcombine.low %v295, %v308
        %v316 = vunpack.c.l.s4 1966171168
        %v317 = vunpack.c.0.s8 %v316
        %v318 = vlaneseq
        %v319 = vshrl.u32 %v318, 7
        %v320 = vsub.s32 %v317, %v319
        %v321 = vrot.slane %v313, %v320
        %v323 = vunpack.c.l.s4 1966171168
        %v324 = vunpack.c.0.s8 %v323
        %v325 = vlaneseq
        %v326 = vshrl.u32 %v325, 7
        %v327 = vsub.s32 %v324, %v326
        %v328 = vrot.slane %v314, %v327
        %v329 = vcombine.low %v321, %v328
        %v331 = vunpack.c.l.s4 1966171168
        %v332 = vunpack.c.0.s8 %v331
        %v333 = vlaneseq
        %v334 = vshrl.u32 %v333, 7
        %v335 = vsub.s32 %v332, %v334
        %v336 = vrot.slane %v329, %v335
        %v338 = vadd.f32 %v208, %v336
        %v339 = vlaneseq
        %vm340 = vcmp.ge.s32.totalorder %v339, 0
        %vm341 = vcmp.lt.s32.totalorder %v339, 512
        %vm342 = vmand %vm340, %vm341
        %343 = vst.msk [vmem:[#allocation2] sm:$0xf] %vm342, %v338
        // Predicated region
        $region37: #{custom_efficientnet_forward.17} parent=31 // pred_check
          %p344 = pneg %p199
        $region38: #{custom_efficientnet_forward.17} parent=31 // pred_check_branch
          %346 = sbr.rel (%p344) target = $region40
        $region39: #{custom_efficientnet_forward.17} parent=31 // pred_region
          %v347 = vld [vmem:[#allocation2] sm:$0xf]
          %v348 = vmul.f32 %v347, 0.015625
          %v349 = vld [vmem:[%s1] sm:$0xff]
          %v350 = vld [vmem:[%s1 + $0x8] sm:$0xff]
          %v351 = vld [vmem:[%s1 + $0x10] sm:$0xff]
          %v352 = vld [vmem:[%s1 + $0x18] sm:$0xff]
          %v353 = vld [vmem:[%s1 + $0x20] sm:$0xff]
          %v354 = vld [vmem:[%s1 + $0x28] sm:$0xff]
          %v355 = vld [vmem:[%s1 + $0x30] sm:$0xff]
          %v356 = vld [vmem:[%s1 + $0x38] sm:$0xff]
          %v357 = vld [vmem:[%s1 + $0x40] sm:$0xff]
          %v358 = vld [vmem:[%s1 + $0x48] sm:$0xff]
          %v359 = vld [vmem:[%s1 + $0x50] sm:$0xff]
          %v360 = vld [vmem:[%s1 + $0x58] sm:$0xff]
          %v361 = vld [vmem:[%s1 + $0x60] sm:$0xff]
          %v362 = vld [vmem:[%s1 + $0x68] sm:$0xff]
          %v363 = vld [vmem:[%s1 + $0x70] sm:$0xff]
          %v364 = vld [vmem:[%s1 + $0x78] sm:$0xff]
          %v365 = vld [vmem:[%s1 + $0x80] sm:$0xff]
          %v366 = vld [vmem:[%s1 + $0x88] sm:$0xff]
          %v367 = vld [vmem:[%s1 + $0x90] sm:$0xff]
          %v368 = vld [vmem:[%s1 + $0x98] sm:$0xff]
          %v369 = vld [vmem:[%s1 + $0xa0] sm:$0xff]
          %v370 = vld [vmem:[%s1 + $0xa8] sm:$0xff]
          %v371 = vld [vmem:[%s1 + $0xb0] sm:$0xff]
          %v372 = vld [vmem:[%s1 + $0xb8] sm:$0xff]
          %v373 = vld [vmem:[%s1 + $0xc0] sm:$0xff]
          %v374 = vld [vmem:[%s1 + $0xc8] sm:$0xff]
          %v375 = vld [vmem:[%s1 + $0xd0] sm:$0xff]
          %v376 = vld [vmem:[%s1 + $0xd8] sm:$0xff]
          %v377 = vld [vmem:[%s1 + $0xe0] sm:$0xff]
          %v378 = vld [vmem:[%s1 + $0xe8] sm:$0xff]
          %v379 = vld [vmem:[%s1 + $0xf0] sm:$0xff]
          %v380 = vld [vmem:[%s1 + $0xf8] sm:$0xff]
          %v381 = vld [vmem:[%s1 + $0x100] sm:$0xff]
          %v382 = vld [vmem:[%s1 + $0x108] sm:$0xff]
          %v383 = vld [vmem:[%s1 + $0x110] sm:$0xff]
          %v384 = vld [vmem:[%s1 + $0x118] sm:$0xff]
          %v385 = vld [vmem:[%s1 + $0x120] sm:$0xff]
          %v386 = vld [vmem:[%s1 + $0x128] sm:$0xff]
          %v387 = vld [vmem:[%s1 + $0x130] sm:$0xff]
          %v388 = vld [vmem:[%s1 + $0x138] sm:$0xff]
          %v389 = vld [vmem:[%s1 + $0x140] sm:$0xff]
          %v390 = vld [vmem:[%s1 + $0x148] sm:$0xff]
          %v391 = vld [vmem:[%s1 + $0x150] sm:$0xff]
          %v392 = vld [vmem:[%s1 + $0x158] sm:$0xff]
          %v393 = vld [vmem:[%s1 + $0x160] sm:$0xff]
          %v394 = vld [vmem:[%s1 + $0x168] sm:$0xff]
          %v395 = vld [vmem:[%s1 + $0x170] sm:$0xff]
          %v396 = vld [vmem:[%s1 + $0x178] sm:$0xff]
          %v397 = vld [vmem:[%s1 + $0x180] sm:$0xff]
          %v398 = vld [vmem:[%s1 + $0x188] sm:$0xff]
          %v399 = vld [vmem:[%s1 + $0x190] sm:$0xff]
          %v400 = vld [vmem:[%s1 + $0x198] sm:$0xff]
          %v401 = vld [vmem:[%s1 + $0x1a0] sm:$0xff]
          %v402 = vld [vmem:[%s1 + $0x1a8] sm:$0xff]
          %v403 = vld [vmem:[%s1 + $0x1b0] sm:$0xff]
          %v404 = vld [vmem:[%s1 + $0x1b8] sm:$0xff]
          %v405 = vld [vmem:[%s1 + $0x1c0] sm:$0xff]
          %v406 = vld [vmem:[%s1 + $0x1c8] sm:$0xff]
          %v407 = vld [vmem:[%s1 + $0x1d0] sm:$0xff]
          %v408 = vld [vmem:[%s1 + $0x1d8] sm:$0xff]
          %v409 = vld [vmem:[%s1 + $0x1e0] sm:$0xff]
          %v410 = vld [vmem:[%s1 + $0x1e8] sm:$0xff]
          %v411 = vld [vmem:[%s1 + $0x1f0] sm:$0xff]
          %v412 = vld [vmem:[%s1 + $0x1f8] sm:$0xff]
          %v413 = vld [vmem:[%s2] sm:$0x1]
          %v415 = vlaneseq
          %v416 = vshrl.u32 %v415, 7
          %v417 = vsub.s32 0, %v416
          %v418 = vrot.slane %v348, %v417
          %v419 = vlaneseq
          %v420 = vshrl.u32 %v419, 7
          %v421 = vsub.s32 1, %v420
          %v422 = vrot.slane %v348, %v421
          %v423 = vlaneseq
          %v424 = vshrl.u32 %v423, 7
          %v425 = vsub.s32 2, %v424
          %v426 = vrot.slane %v348, %v425
          %v427 = vlaneseq
          %v428 = vshrl.u32 %v427, 7
          %v429 = vsub.s32 3, %v428
          %v430 = vrot.slane %v348, %v429
          %435 = vmatprep.subr.mxu0 0.0
          %436 = vmatpush1.msra.mxu0 %v349
          %437 = vmatprep.subr.mxu0 0.0
          %438 = vmatpush1.msra.mxu0 %v350
          %439 = vmatprep.subr.mxu0 0.0
          %440 = vmatpush1.msra.mxu0 %v351
          %441 = vmatprep.subr.mxu0 0.0
          %442 = vmatpush1.msra.mxu0 %v352
          %443 = vmatprep.subr.mxu0 0.0
          %444 = vmatpush1.msra.mxu0 %v353
          %445 = vmatprep.subr.mxu0 0.0
          %446 = vmatpush1.msra.mxu0 %v354
          %447 = vmatprep.subr.mxu0 0.0
          %448 = vmatpush1.msra.mxu0 %v355
          %449 = vmatprep.subr.mxu0 0.0
          %450 = vmatpush1.msra.mxu0 %v356
          %451 = vmatprep.subr.mxu0 0.0
          %452 = vmatpush1.msra.mxu0 %v357
          %453 = vmatprep.subr.mxu0 0.0
          %454 = vmatpush1.msra.mxu0 %v358
          %455 = vmatprep.subr.mxu0 0.0
          %456 = vmatpush1.msra.mxu0 %v359
          %457 = vmatprep.subr.mxu0 0.0
          %458 = vmatpush1.msra.mxu0 %v360
          %459 = vmatprep.subr.mxu0 0.0
          %460 = vmatpush1.msra.mxu0 %v361
          %461 = vmatprep.subr.mxu0 0.0
          %462 = vmatpush1.msra.mxu0 %v362
          %463 = vmatprep.subr.mxu0 0.0
          %464 = vmatpush1.msra.mxu0 %v363
          %465 = vmatprep.subr.mxu0 0.0
          %466 = vmatpush1.msra.mxu0 %v364
          %467 = vmatprep.subr.mxu0 0.0
          %468 = vmatpush1.msra.mxu0 %v365
          %469 = vmatprep.subr.mxu0 0.0
          %470 = vmatpush1.msra.mxu0 %v366
          %471 = vmatprep.subr.mxu0 0.0
          %472 = vmatpush1.msra.mxu0 %v367
          %473 = vmatprep.subr.mxu0 0.0
          %474 = vmatpush1.msra.mxu0 %v368
          %475 = vmatprep.subr.mxu0 0.0
          %476 = vmatpush1.msra.mxu0 %v369
          %477 = vmatprep.subr.mxu0 0.0
          %478 = vmatpush1.msra.mxu0 %v370
          %479 = vmatprep.subr.mxu0 0.0
          %480 = vmatpush1.msra.mxu0 %v371
          %481 = vmatprep.subr.mxu0 0.0
          %482 = vmatpush1.msra.mxu0 %v372
          %483 = vmatprep.subr.mxu0 0.0
          %484 = vmatpush1.msra.mxu0 %v373
          %485 = vmatprep.subr.mxu0 0.0
          %486 = vmatpush1.msra.mxu0 %v374
          %487 = vmatprep.subr.mxu0 0.0
          %488 = vmatpush1.msra.mxu0 %v375
          %489 = vmatprep.subr.mxu0 0.0
          %490 = vmatpush1.msra.mxu0 %v376
          %491 = vmatprep.subr.mxu0 0.0
          %492 = vmatpush1.msra.mxu0 %v377
          %493 = vmatprep.subr.mxu0 0.0
          %494 = vmatpush1.msra.mxu0 %v378
          %495 = vmatprep.subr.mxu0 0.0
          %496 = vmatpush1.msra.mxu0 %v379
          %497 = vmatprep.subr.mxu0 0.0
          %498 = vmatpush1.msra.mxu0 %v380
          %499 = vmatprep.mubr.f32.mxu0 %v422
          %500 = vmatmul.mubr.f32.gmra.mrb[0].mxu0 %v418
          %v501 = vpop.f32.mrb[0].mxu0
          %v502 = vadd.f32 %v413, %v501
          %v503 = vpop.f32.mrb[0].mxu0
          %504 = vdwg.mxu0
          %505 = vmatprep.subr.mxu0 0.0
          %506 = vmatpush1.msra.mxu0 %v381
          %507 = vmatprep.subr.mxu0 0.0
          %508 = vmatpush1.msra.mxu0 %v382
          %509 = vmatprep.subr.mxu0 0.0
          %510 = vmatpush1.msra.mxu0 %v383
          %511 = vmatprep.subr.mxu0 0.0
          %512 = vmatpush1.msra.mxu0 %v384
          %513 = vmatprep.subr.mxu0 0.0
          %514 = vmatpush1.msra.mxu0 %v385
          %515 = vmatprep.subr.mxu0 0.0
          %516 = vmatpush1.msra.mxu0 %v386
          %517 = vmatprep.subr.mxu0 0.0
          %518 = vmatpush1.msra.mxu0 %v387
          %519 = vmatprep.subr.mxu0 0.0
          %520 = vmatpush1.msra.mxu0 %v388
          %521 = vmatprep.subr.mxu0 0.0
          %522 = vmatpush1.msra.mxu0 %v389
          %523 = vmatprep.subr.mxu0 0.0
          %524 = vmatpush1.msra.mxu0 %v390
          %525 = vmatprep.subr.mxu0 0.0
          %526 = vmatpush1.msra.mxu0 %v391
          %527 = vmatprep.subr.mxu0 0.0
          %528 = vmatpush1.msra.mxu0 %v392
          %529 = vmatprep.subr.mxu0 0.0
          %530 = vmatpush1.msra.mxu0 %v393
          %531 = vmatprep.subr.mxu0 0.0
          %532 = vmatpush1.msra.mxu0 %v394
          %533 = vmatprep.subr.mxu0 0.0
          %534 = vmatpush1.msra.mxu0 %v395
          %535 = vmatprep.subr.mxu0 0.0
          %536 = vmatpush1.msra.mxu0 %v396
          %537 = vmatprep.subr.mxu0 0.0
          %538 = vmatpush1.msra.mxu0 %v397
          %539 = vmatprep.subr.mxu0 0.0
          %540 = vmatpush1.msra.mxu0 %v398
          %541 = vmatprep.subr.mxu0 0.0
          %542 = vmatpush1.msra.mxu0 %v399
          %543 = vmatprep.subr.mxu0 0.0
          %544 = vmatpush1.msra.mxu0 %v400
          %545 = vmatprep.subr.mxu0 0.0
          %546 = vmatpush1.msra.mxu0 %v401
          %547 = vmatprep.subr.mxu0 0.0
          %548 = vmatpush1.msra.mxu0 %v402
          %549 = vmatprep.subr.mxu0 0.0
          %550 = vmatpush1.msra.mxu0 %v403
          %551 = vmatprep.subr.mxu0 0.0
          %552 = vmatpush1.msra.mxu0 %v404
          %553 = vmatprep.subr.mxu0 0.0
          %554 = vmatpush1.msra.mxu0 %v405
          %555 = vmatprep.subr.mxu0 0.0
          %556 = vmatpush1.msra.mxu0 %v406
          %557 = vmatprep.subr.mxu0 0.0
          %558 = vmatpush1.msra.mxu0 %v407
          %559 = vmatprep.subr.mxu0 0.0
          %560 = vmatpush1.msra.mxu0 %v408
          %561 = vmatprep.subr.mxu0 0.0
          %562 = vmatpush1.msra.mxu0 %v409
          %563 = vmatprep.subr.mxu0 0.0
          %564 = vmatpush1.msra.mxu0 %v410
          %565 = vmatprep.subr.mxu0 0.0
          %566 = vmatpush1.msra.mxu0 %v411
          %567 = vmatprep.subr.mxu0 0.0
          %568 = vmatpush1.msra.mxu0 %v412
          %569 = vmatprep.mubr.f32.mxu0 %v430
          %570 = vmatmul.mubr.f32.gmra.mrb[0].mxu0 %v426
          %v571 = vpop.f32.mrb[0].mxu0
          %v572 = vadd.f32 %v502, %v571
          %v573 = vpop.f32.mrb[0].mxu0
          %574 = vdwg.mxu0
          %575 = vst [vmem:[%s187] sm:$0x1] %v572
        $region40: #{custom_efficientnet_forward.17} parent=31 // pred_fallthru
          _
        %s576 = sand.u32 %s107, 1
        %s577 = scalar_lea.sflag [#allocation4], %s576
        %s578 = sand.u32 %s107, 1
        %s579 = scalar_lea.vmem [#allocation3], %s578
        // Predicated region
        $region41: #{custom_efficientnet_forward.17} parent=31 // pred_check
          %p580 = pneg %p117
        $region42: #{custom_efficientnet_forward.17} parent=31 // pred_check_branch
          %582 = sbr.rel (%p580) target = $region44
        $region43: #{custom_efficientnet_forward.17} parent=31 // pred_region
          %s584 = ssub.s32 16, 16
          %585 = vsyncadd %s577, %s584
          %s586 = smul.addr %s21, 16
          %s587 = scalar_lea.hbm %s3, %s586
          %s589 = sshll.u32 %s579, 4
          %s590 = int_to_ptr.vmem [resolvable:$true] %s589
          %592 = dma.vmem_to_hbm [thread:$0]  %s590, 16, %s587, %s577
        $region44: #{custom_efficientnet_forward.17} parent=31 // pred_fallthru
          _
      $region32: #{custom_efficientnet_forward.17} parent=5 // pred_fallthru
        _
      %p593 = scmp.le.s32.totalorder 2, %s12
      // Predicated region
      $region45: #{custom_efficientnet_forward.17} parent=5 // pred_check
        %p594 = pneg %p593
      $region46: #{custom_efficientnet_forward.17} parent=5 // pred_check_branch
        %596 = sbr.rel (%p594) target = $region48
      $region47: #{custom_efficientnet_forward.17} parent=5 // pred_region
        %s597 = ssub.s32 %s12, 2
        // Predicated region
        $region49: #{custom_efficientnet_forward.17} parent=47 // pred_check
          %p598 = pneg %p123
        $region50: #{custom_efficientnet_forward.17} parent=47 // pred_check_branch
          %600 = sbr.rel (%p598) target = $region52
        $region51: #{custom_efficientnet_forward.17} parent=47 // pred_region
          %s601 = sand.u32 %s108, 1
          %s602 = scalar_lea.sflag [#allocation4], %s601
          %s603 = sand.u32 %s108, 1
          %s604 = scalar_lea.vmem [#allocation3], %s603
          %605 = dma.done %s602, 16
        $region52: #{custom_efficientnet_forward.17} parent=47 // pred_fallthru
          _
      $region48: #{custom_efficientnet_forward.17} parent=5 // pred_fallthru
        _
    $region6: #{custom_efficientnet_forward.17} parent=1 // loop_footer
      %s16 = sadd.s32 1, %s12
    $region7: #{custom_efficientnet_forward.17} parent=1 // loop_footer_branch
      %11 = sbr.rel target = $region3
    $region8: #{custom_efficientnet_forward.17} parent=1 // loop_exit
      _
    %606 = vsyncpa [#allocation4], 1
    %s607 = scalar_lea.sflag [#allocation4], 1
    %608 = vsyncpa %s607, 1

</llo_original>
